<compile_context>
chip_gen: v7x
topology: tpu7x:2x2x1
jax: 0.10.0
libtpu: 0.0.40
codegen_flags: <defaults>
</compile_context>

<pallas_src>
import functools

import jax
import jax.numpy as jnp
from jax.experimental import pallas as pl
from jax.experimental.pallas import tpu as pltpu

K = 3  # 3x3x3 conv


# --------------------------------------------------------------------------
# Fused kernel
# --------------------------------------------------------------------------
def _basic_block_kernel(x_ref, B1_ref, b1_ref, g1_ref, be1_ref,
                        B2_ref, b2_ref, g2_ref, be2_ref, msame_ref,
                        o_ref, xpad_ref, lhs_ref, *, eps):
    S, D, H, WC = x_ref.shape
    M = S * D * H

    # Zero halo + bf16 interior fill (stays in VMEM; no XLA-side padded HBM copy).
    xpad_ref[...] = jnp.zeros_like(xpad_ref)
    xpad_ref[:, 1:D + 1, 1:H + 1, :] = x_ref[...].astype(jnp.bfloat16)

    def conv(B_ref, bias_ref):
        # Stage the 9 (kd,kh)-shifted views ONCE into the K-stacked bf16 LHS, then
        # do ONE MXU matmul (K = 9*WC).  No accumulator scratch: the f32 result is
        # register-resident and consumed immediately by the epilogue.
        t = 0
        for kd in range(K):
            for kh in range(K):
                tap = xpad_ref[:, kd:kd + D, kh:kh + H, :]     # (S, D, H, WC) bf16
                lhs_ref[:, t * WC:(t + 1) * WC] = tap.reshape(M, WC)
                t += 1
        return jnp.dot(lhs_ref[...], B_ref[...],
                       preferred_element_type=jnp.float32) + bias_ref[...]

    def groupnorm(h, g_ref, be_ref):
        # Per-sample GroupNorm on lane-folded data.  One fused stat matmul performs
        # the group-reduce AND the broadcast-back for mean and E[x^2] together.
        h3 = h.reshape(S, D * H, WC)
        s = jnp.sum(h3, axis=1)                                # (S, WC)
        ss = jnp.sum(h3 * h3, axis=1)                          # (S, WC)
        stats = jnp.dot(jnp.concatenate([s, ss], axis=0), msame_ref[...],
                        preferred_element_type=jnp.float32)    # (2S, WC)
        mean, ex2 = stats[:S], stats[S:]
        # TODO(synk): E[x^2]-mean^2 (clamped) is fine at this scale; switch to a
        # centered two-pass variance if activations develop a large common mean.
        var = jnp.maximum(ex2 - mean * mean, 0.0)
        inv = jax.lax.rsqrt(var + eps)
        scale = inv * g_ref[...]                               # (S, WC)
        shift = be_ref[...] - mean * scale                     # (S, WC)
        return h3 * scale[:, None, :] + shift[:, None, :]      # (S, D*H, WC)

    # ---- conv1 + bias + GN1 + ReLU ----
    h = jnp.maximum(groupnorm(conv(B1_ref, b1_ref), g1_ref, be1_ref), 0.0)

    # ---- conv2 + bias + GN2 + residual + ReLU ----
    xpad_ref[:, 1:D + 1, 1:H + 1, :] = h.reshape(S, D, H, WC).astype(jnp.bfloat16)
    h2 = groupnorm(conv(B2_ref, b2_ref), g2_ref, be2_ref)

    out = jnp.maximum(h2.reshape(S, D, H, WC) + x_ref[...], 0.0)
    o_ref[...] = out.astype(o_ref.dtype)


# --------------------------------------------------------------------------
# Wrapper (plain-JAX glue: layout fold, stacked banded weights, group matrix)
# --------------------------------------------------------------------------
def _stacked_band_weights(w, W):
    """(kd,kh,kw,Cin,Cout) -> (9*W*Cin, W*Cout).

    For each (kd,kh) tap the 3 kw taps (incl. zero W-boundary padding) are folded
    into a banded (W*Cin, W*Cout) matrix; the 9 (kd,kh) taps are then stacked along
    the contraction so the whole 3x3x3 conv is a single matmul per row block.
    TODO(synk): for C >= 128 drop the W fold and contract Cin directly — the band
    wastes ~(1 - 3/W) of MXU FLOPs on structural zeros once the kernel is MXU-bound.
    """
    Kd, Kh, Kw, Cin, Cout = w.shape
    B = jnp.zeros((Kd, Kh, W * Cin, W * Cout), w.dtype)
    for kw in range(Kw):
        for wo in range(W):
            wi = wo + kw - 1
            if 0 <= wi < W:
                B = B.at[:, :, wi * Cin:(wi + 1) * Cin,
                         wo * Cout:(wo + 1) * Cout].set(w[:, :, kw])
    return B.reshape(Kd * Kh * W * Cin, W * Cout)


@functools.partial(jax.jit, static_argnames=("groups", "eps", "samples_per_step"))
def basic_block_forward(x_ncdhw, params, *, groups=8, eps=1e-5, samples_per_step=2):
    # TODO(synk): stride>1 and a generic `downsample` submodule are not implemented
    # (module defaults: stride=1, downsample=None).
    N, C, D, H, W = x_ncdhw.shape
    WC = W * C
    cs = C // groups
    S = samples_per_step
    assert C % groups == 0, "GroupNorm requires C % groups == 0"
    assert N % S == 0, "batch must be divisible by samples_per_step"
    # Lane folding is correct for any W*C; it is lane-dense (best perf) when
    # W*C is a multiple of 128 (here W*C == 128 exactly).

    # NCDHW -> (N, D, H, W*C): lane-dense folded layout.
    # TODO(synk): at production sizes accept/produce this folded channels-last
    # layout at the module boundary (or use allow_input_fusion) instead of paying
    # these HBM round-trip transposes, and add a D-tile grid axis (halo + two-pass
    # GroupNorm) once the per-step footprint approaches v7x's 64 MiB VMEM.
    x = jnp.transpose(x_ncdhw, (0, 2, 3, 4, 1)).reshape(N, D, H, WC)

    B1 = _stacked_band_weights(params["w1"], W).astype(jnp.bfloat16)
    B2 = _stacked_band_weights(params["w2"], W).astype(jnp.bfloat16)

    def fold(v):  # (C,) -> (1, W*C); lane l holds v[l % C]
        return jnp.tile(v.reshape(1, C), (1, W)).astype(jnp.float32)

    gid = (jnp.arange(WC) % C) // cs
    msame = (gid[:, None] == gid[None, :]).astype(jnp.float32)
    msame = msame / float(D * H * W * cs)          # pre-scale by 1/group element count

    kernel = functools.partial(_basic_block_kernel, eps=eps)
    xspec = pl.BlockSpec((S, D, H, WC), lambda n: (n, 0, 0, 0))
    wspec = pl.BlockSpec((K * K * WC, WC), lambda n: (0, 0))
    vspec = pl.BlockSpec((1, WC), lambda n: (0, 0))
    mspec = pl.BlockSpec((WC, WC), lambda n: (0, 0))
    # NOTE: the weight / vector / msame operands have constant index_maps, so they
    # are DMA'd only once; single-buffering them (pipeline_mode=pl.Buffered(1)) would
    # additionally drop the duplicate VMEM reservation (~0.6 MB here) when VMEM gets
    # tight at larger C (matters most on v7x's 64 MiB VMEM).

    out = pl.pallas_call(
        kernel,
        out_shape=jax.ShapeDtypeStruct((N, D, H, WC), x.dtype),
        grid_spec=pltpu.PrefetchScalarGridSpec(
            num_scalar_prefetch=0,
            grid=(N // S,),
            in_specs=[xspec,
                      wspec, vspec, vspec, vspec,
                      wspec, vspec, vspec, vspec,
                      mspec],
            out_specs=xspec,
            scratch_shapes=[
                pltpu.VMEM((S, D + 2, H + 2, WC), jnp.bfloat16),    # halo-padded act
                pltpu.VMEM((S * D * H, K * K * WC), jnp.bfloat16),  # K-stacked LHS
            ],
        ),
        compiler_params=pltpu.CompilerParams(
            dimension_semantics=("parallel",)),
    )(x, B1, fold(params["b1"]), fold(params["g1"]), fold(params["be1"]),
      B2, fold(params["b2"]), fold(params["g2"]), fold(params["be2"]), msame)

    return jnp.transpose(out.reshape(N, D, H, W, C), (0, 4, 1, 2, 3))


# --------------------------------------------------------------------------
# Pure-JAX reference (for verification)
# --------------------------------------------------------------------------
def _conv_ref(x, w_oidhw, b):
    y = jax.lax.conv_general_dilated(
        x, w_oidhw, window_strides=(1, 1, 1), padding=[(1, 1)] * 3,
        dimension_numbers=("NCDHW", "OIDHW", "NCDHW"))
    return y + b[None, :, None, None, None]


def _gn_ref(x, gamma, beta, groups=8, eps=1e-5):
    N, C, D, H, W = x.shape
    xg = x.reshape(N, groups, C // groups, D, H, W)
    mean = xg.mean(axis=(2, 3, 4, 5), keepdims=True)
    var = xg.var(axis=(2, 3, 4, 5), keepdims=True)
    xn = ((xg - mean) / jnp.sqrt(var + eps)).reshape(N, C, D, H, W)
    return xn * gamma[None, :, None, None, None] + beta[None, :, None, None, None]


def _ref_forward(x, p, groups=8):
    w1 = jnp.transpose(p["w1"], (4, 3, 0, 1, 2))  # (kd,kh,kw,Cin,Cout) -> OIDHW
    w2 = jnp.transpose(p["w2"], (4, 3, 0, 1, 2))
    out = jnp.maximum(
        _gn_ref(_conv_ref(x, w1, p["b1"]), p["g1"], p["be1"], groups), 0.0)
    out = _gn_ref(_conv_ref(out, w2, p["b2"]), p["g2"], p["be2"], groups)
    return jnp.maximum(out + x, 0.0)


if __name__ == "__main__":
    # in_channels == out_channels, W*C = 128 (lane-dense), 2 samples per grid step.
    N, C, D, H, W = 4, 16, 8, 8, 8
    groups = 8

    key = jax.random.PRNGKey(0)
    ks = jax.random.split(key, 9)
    x = jax.random.normal(ks[0], (N, C, D, H, W), jnp.float32)

    params = {
        "w1": 0.1 * jax.random.normal(ks[1], (K, K, K, C, C), jnp.float32),
        "b1": 0.1 * jax.random.normal(ks[2], (C,), jnp.float32),
        "g1": 1.0 + 0.1 * jax.random.normal(ks[3], (C,), jnp.float32),
        "be1": 0.05 * jax.random.normal(ks[4], (C,), jnp.float32),
        "w2": 0.1 * jax.random.normal(ks[5], (K, K, K, C, C), jnp.float32),
        "b2": 0.1 * jax.random.normal(ks[6], (C,), jnp.float32),
        "g2": 1.0 + 0.1 * jax.random.normal(ks[7], (C,), jnp.float32),
        "be2": 0.05 * jax.random.normal(ks[8], (C,), jnp.float32),
    }

    out = jax.block_until_ready(
        basic_block_forward(x, params, groups=groups, samples_per_step=2))
    ref = jax.block_until_ready(_ref_forward(x, params, groups=groups))

    assert out.shape == (N, C, D, H, W)
    # Kernel uses bf16 MXU operands (f32 accumulation); reference is pure f32,
    # so a bf16-level tolerance is expected.
    err = float(jnp.max(jnp.abs(out - ref)))
    assert jnp.allclose(out, ref, atol=5e-2, rtol=5e-2), err
    print("KERNEL_OK")
</pallas_src>

<mosaic_0001>
module attributes {stable_mosaic.version = 11 : i64} {
  func.func @_basic_block_kernel(%arg0: i32, %arg1: memref<2x8x8x128xf32, #tpu.memory_space<vmem>>, %arg2: memref<1152x128xbf16, #tpu.memory_space<vmem>>, %arg3: memref<1x128xf32, #tpu.memory_space<vmem>>, %arg4: memref<1x128xf32, #tpu.memory_space<vmem>>, %arg5: memref<1x128xf32, #tpu.memory_space<vmem>>, %arg6: memref<1152x128xbf16, #tpu.memory_space<vmem>>, %arg7: memref<1x128xf32, #tpu.memory_space<vmem>>, %arg8: memref<1x128xf32, #tpu.memory_space<vmem>>, %arg9: memref<1x128xf32, #tpu.memory_space<vmem>>, %arg10: memref<128x128xf32, #tpu.memory_space<vmem>>, %arg11: memref<2x8x8x128xf32, #tpu.memory_space<vmem>>, %arg12: memref<2x10x10x128xbf16, #tpu.memory_space<vmem>>, %arg13: memref<128x1152xbf16, #tpu.memory_space<vmem>>) attributes {dimension_semantics = [#tpu.dimension_semantics<parallel>], iteration_bounds = array<i64: 2>, scalar_prefetch = 0 : i64, scratch_operands = 2 : i64, tpu.core_type = #tpu.core_type<tc>, window_params = [{transform_indices = @transform_0, window_bounds = array<i64: 2, 8, 8, 128>}, {pipeline_mode = #tpu.pipeline_mode<synchronous>, transform_indices = @transform_1, window_bounds = array<i64: 1152, 128>}, {pipeline_mode = #tpu.pipeline_mode<synchronous>, transform_indices = @transform_2, window_bounds = array<i64: 1, 128>}, {pipeline_mode = #tpu.pipeline_mode<synchronous>, transform_indices = @transform_3, window_bounds = array<i64: 1, 128>}, {pipeline_mode = #tpu.pipeline_mode<synchronous>, transform_indices = @transform_4, window_bounds = array<i64: 1, 128>}, {pipeline_mode = #tpu.pipeline_mode<synchronous>, transform_indices = @transform_5, window_bounds = array<i64: 1152, 128>}, {pipeline_mode = #tpu.pipeline_mode<synchronous>, transform_indices = @transform_6, window_bounds = array<i64: 1, 128>}, {pipeline_mode = #tpu.pipeline_mode<synchronous>, transform_indices = @transform_7, window_bounds = array<i64: 1, 128>}, {pipeline_mode = #tpu.pipeline_mode<synchronous>, transform_indices = @transform_8, window_bounds = array<i64: 1, 128>}, {pipeline_mode = #tpu.pipeline_mode<synchronous>, transform_indices = @transform_9, window_bounds = array<i64: 128, 128>}, {transform_indices = @transform_10, window_bounds = array<i64: 2, 8, 8, 128>}]} {
    %cst = arith.constant 0.000000e+00 : bf16
    %0 = vector.broadcast %cst : bf16 to vector<2x10x10x128xbf16>
    %c0 = arith.constant 0 : index
    %c0_0 = arith.constant 0 : index
    %c0_1 = arith.constant 0 : index
    %c0_2 = arith.constant 0 : index
    %1 = vector.load %arg12[%c0, %c0_0, %c0_1, %c0_2] : memref<2x10x10x128xbf16, #tpu.memory_space<vmem>>, vector<2x10x10x128xbf16>
    tpu.vector_store %arg12[%c0, %c0_0, %c0_1, %c0_2], %0 {strides = array<i32>} : memref<2x10x10x128xbf16, #tpu.memory_space<vmem>>, vector<2x10x10x128xbf16>,
    %c0_3 = arith.constant 0 : index
    %c0_4 = arith.constant 0 : index
    %c0_5 = arith.constant 0 : index
    %c0_6 = arith.constant 0 : index
    %2 = vector.load %arg1[%c0_3, %c0_4, %c0_5, %c0_6] : memref<2x8x8x128xf32, #tpu.memory_space<vmem>>, vector<2x8x8x128xf32>
    %3 = arith.truncf %2 : vector<2x8x8x128xf32> to vector<2x8x8x128xbf16>
    %c0_7 = arith.constant 0 : index
    %c1 = arith.constant 1 : index
    %c1_8 = arith.constant 1 : index
    %c0_9 = arith.constant 0 : index
    %4 = vector.load %arg12[%c0_7, %c1, %c1_8, %c0_9] : memref<2x10x10x128xbf16, #tpu.memory_space<vmem>>, vector<2x8x8x128xbf16>
    tpu.vector_store %arg12[%c0_7, %c1, %c1_8, %c0_9], %3 {strides = array<i32>} : memref<2x10x10x128xbf16, #tpu.memory_space<vmem>>, vector<2x8x8x128xbf16>,
    %c0_10 = arith.constant 0 : index
    %c0_11 = arith.constant 0 : index
    %c0_12 = arith.constant 0 : index
    %c0_13 = arith.constant 0 : index
    %5 = vector.load %arg12[%c0_10, %c0_11, %c0_12, %c0_13] : memref<2x10x10x128xbf16, #tpu.memory_space<vmem>>, vector<2x8x8x128xbf16>
    %6 = vector.shape_cast %5 : vector<2x8x8x128xbf16> to vector<128x128xbf16>
    %c0_14 = arith.constant 0 : index
    %c0_15 = arith.constant 0 : index
    %7 = vector.load %arg13[%c0_14, %c0_15] : memref<128x1152xbf16, #tpu.memory_space<vmem>>, vector<128x128xbf16>
    tpu.vector_store %arg13[%c0_14, %c0_15], %6 {strides = array<i32>} : memref<128x1152xbf16, #tpu.memory_space<vmem>>, vector<128x128xbf16>,
    %c0_16 = arith.constant 0 : index
    %c0_17 = arith.constant 0 : index
    %c1_18 = arith.constant 1 : index
    %c0_19 = arith.constant 0 : index
    %8 = vector.load %arg12[%c0_16, %c0_17, %c1_18, %c0_19] : memref<2x10x10x128xbf16, #tpu.memory_space<vmem>>, vector<2x8x8x128xbf16>
    %9 = vector.shape_cast %8 : vector<2x8x8x128xbf16> to vector<128x128xbf16>
    %c0_20 = arith.constant 0 : index
    %c128 = arith.constant 128 : index
    %10 = vector.load %arg13[%c0_20, %c128] : memref<128x1152xbf16, #tpu.memory_space<vmem>>, vector<128x128xbf16>
    tpu.vector_store %arg13[%c0_20, %c128], %9 {strides = array<i32>} : memref<128x1152xbf16, #tpu.memory_space<vmem>>, vector<128x128xbf16>,
    %c0_21 = arith.constant 0 : index
    %c0_22 = arith.constant 0 : index
    %c2 = arith.constant 2 : index
    %c0_23 = arith.constant 0 : index
    %11 = vector.load %arg12[%c0_21, %c0_22, %c2, %c0_23] : memref<2x10x10x128xbf16, #tpu.memory_space<vmem>>, vector<2x8x8x128xbf16>
    %12 = vector.shape_cast %11 : vector<2x8x8x128xbf16> to vector<128x128xbf16>
    %c0_24 = arith.constant 0 : index
    %c256 = arith.constant 256 : index
    %13 = vector.load %arg13[%c0_24, %c256] : memref<128x1152xbf16, #tpu.memory_space<vmem>>, vector<128x128xbf16>
    tpu.vector_store %arg13[%c0_24, %c256], %12 {strides = array<i32>} : memref<128x1152xbf16, #tpu.memory_space<vmem>>, vector<128x128xbf16>,
    %c0_25 = arith.constant 0 : index
    %c1_26 = arith.constant 1 : index
    %c0_27 = arith.constant 0 : index
    %c0_28 = arith.constant 0 : index
    %14 = vector.load %arg12[%c0_25, %c1_26, %c0_27, %c0_28] : memref<2x10x10x128xbf16, #tpu.memory_space<vmem>>, vector<2x8x8x128xbf16>
    %15 = vector.shape_cast %14 : vector<2x8x8x128xbf16> to vector<128x128xbf16>
    %c0_29 = arith.constant 0 : index
    %c384 = arith.constant 384 : index
    %16 = vector.load %arg13[%c0_29, %c384] : memref<128x1152xbf16, #tpu.memory_space<vmem>>, vector<128x128xbf16>
    tpu.vector_store %arg13[%c0_29, %c384], %15 {strides = array<i32>} : memref<128x1152xbf16, #tpu.memory_space<vmem>>, vector<128x128xbf16>,
    %c0_30 = arith.constant 0 : index
    %c1_31 = arith.constant 1 : index
    %c1_32 = arith.constant 1 : index
    %c0_33 = arith.constant 0 : index
    %17 = vector.load %arg12[%c0_30, %c1_31, %c1_32, %c0_33] : memref<2x10x10x128xbf16, #tpu.memory_space<vmem>>, vector<2x8x8x128xbf16>
    %18 = vector.shape_cast %17 : vector<2x8x8x128xbf16> to vector<128x128xbf16>
    %c0_34 = arith.constant 0 : index
    %c512 = arith.constant 512 : index
    %19 = vector.load %arg13[%c0_34, %c512] : memref<128x1152xbf16, #tpu.memory_space<vmem>>, vector<128x128xbf16>
    tpu.vector_store %arg13[%c0_34, %c512], %18 {strides = array<i32>} : memref<128x1152xbf16, #tpu.memory_space<vmem>>, vector<128x128xbf16>,
    %c0_35 = arith.constant 0 : index
    %c1_36 = arith.constant 1 : index
    %c2_37 = arith.constant 2 : index
    %c0_38 = arith.constant 0 : index
    %20 = vector.load %arg12[%c0_35, %c1_36, %c2_37, %c0_38] : memref<2x10x10x128xbf16, #tpu.memory_space<vmem>>, vector<2x8x8x128xbf16>
    %21 = vector.shape_cast %20 : vector<2x8x8x128xbf16> to vector<128x128xbf16>
    %c0_39 = arith.constant 0 : index
    %c640 = arith.constant 640 : index
    %22 = vector.load %arg13[%c0_39, %c640] : memref<128x1152xbf16, #tpu.memory_space<vmem>>, vector<128x128xbf16>
    tpu.vector_store %arg13[%c0_39, %c640], %21 {strides = array<i32>} : memref<128x1152xbf16, #tpu.memory_space<vmem>>, vector<128x128xbf16>,
    %c0_40 = arith.constant 0 : index
    %c2_41 = arith.constant 2 : index
    %c0_42 = arith.constant 0 : index
    %c0_43 = arith.constant 0 : index
    %23 = vector.load %arg12[%c0_40, %c2_41, %c0_42, %c0_43] : memref<2x10x10x128xbf16, #tpu.memory_space<vmem>>, vector<2x8x8x128xbf16>
    %24 = vector.shape_cast %23 : vector<2x8x8x128xbf16> to vector<128x128xbf16>
    %c0_44 = arith.constant 0 : index
    %c768 = arith.constant 768 : index
    %25 = vector.load %arg13[%c0_44, %c768] : memref<128x1152xbf16, #tpu.memory_space<vmem>>, vector<128x128xbf16>
    tpu.vector_store %arg13[%c0_44, %c768], %24 {strides = array<i32>} : memref<128x1152xbf16, #tpu.memory_space<vmem>>, vector<128x128xbf16>,
    %c0_45 = arith.constant 0 : index
    %c2_46 = arith.constant 2 : index
    %c1_47 = arith.constant 1 : index
    %c0_48 = arith.constant 0 : index
    %26 = vector.load %arg12[%c0_45, %c2_46, %c1_47, %c0_48] : memref<2x10x10x128xbf16, #tpu.memory_space<vmem>>, vector<2x8x8x128xbf16>
    %27 = vector.shape_cast %26 : vector<2x8x8x128xbf16> to vector<128x128xbf16>
    %c0_49 = arith.constant 0 : index
    %c896 = arith.constant 896 : index
    %28 = vector.load %arg13[%c0_49, %c896] : memref<128x1152xbf16, #tpu.memory_space<vmem>>, vector<128x128xbf16>
    tpu.vector_store %arg13[%c0_49, %c896], %27 {strides = array<i32>} : memref<128x1152xbf16, #tpu.memory_space<vmem>>, vector<128x128xbf16>,
    %c0_50 = arith.constant 0 : index
    %c2_51 = arith.constant 2 : index
    %c2_52 = arith.constant 2 : index
    %c0_53 = arith.constant 0 : index
    %29 = vector.load %arg12[%c0_50, %c2_51, %c2_52, %c0_53] : memref<2x10x10x128xbf16, #tpu.memory_space<vmem>>, vector<2x8x8x128xbf16>
    %30 = vector.shape_cast %29 : vector<2x8x8x128xbf16> to vector<128x128xbf16>
    %c0_54 = arith.constant 0 : index
    %c1024 = arith.constant 1024 : index
    %31 = vector.load %arg13[%c0_54, %c1024] : memref<128x1152xbf16, #tpu.memory_space<vmem>>, vector<128x128xbf16>
    tpu.vector_store %arg13[%c0_54, %c1024], %30 {strides = array<i32>} : memref<128x1152xbf16, #tpu.memory_space<vmem>>, vector<128x128xbf16>,
    %c0_55 = arith.constant 0 : index
    %c0_56 = arith.constant 0 : index
    %32 = vector.load %arg13[%c0_55, %c0_56] : memref<128x1152xbf16, #tpu.memory_space<vmem>>, vector<128x1152xbf16>
    %c0_57 = arith.constant 0 : index
    %c0_58 = arith.constant 0 : index
    %33 = vector.load %arg2[%c0_57, %c0_58] : memref<1152x128xbf16, #tpu.memory_space<vmem>>, vector<1152x128xbf16>
    %cst_59 = arith.constant dense<0.000000e+00> : vector<128x128xf32>
    %34 = tpu.matmul %32, %33, %cst_59 {dimension_numbers = #tpu.dot_dimension_numbers<[1], [0], [0], [1], [0, 0, 1, 1], [], []>} : vector<128x1152xbf16>, vector<1152x128xbf16>, vector<128x128xf32> -> vector<128x128xf32>
    %c0_60 = arith.constant 0 : index
    %c0_61 = arith.constant 0 : index
    %35 = vector.load %arg3[%c0_60, %c0_61] : memref<1x128xf32, #tpu.memory_space<vmem>>, vector<1x128xf32>
    %36 = vector.broadcast %35 : vector<1x128xf32> to vector<128x128xf32>
    %37 = arith.addf %34, %36 : vector<128x128xf32>
    %38 = vector.shape_cast %37 : vector<128x128xf32> to vector<2x64x128xf32>
    %cst_62 = arith.constant dense<0.000000e+00> : vector<2x128xf32>
    %39 = vector.multi_reduction <add>, %38, %cst_62 [1] : vector<2x64x128xf32> to vector<2x128xf32>
    %40 = arith.mulf %38, %38 : vector<2x64x128xf32>
    %cst_63 = arith.constant dense<0.000000e+00> : vector<2x128xf32>
    %41 = vector.multi_reduction <add>, %40, %cst_63 [1] : vector<2x64x128xf32> to vector<2x128xf32>
    %42 = tpu.concatenate %39, %41 in 0 : vector<2x128xf32>, vector<2x128xf32> -> vector<4x128xf32>
    %c0_64 = arith.constant 0 : index
    %c0_65 = arith.constant 0 : index
    %43 = vector.load %arg10[%c0_64, %c0_65] : memref<128x128xf32, #tpu.memory_space<vmem>>, vector<128x128xf32>
    %cst_66 = arith.constant dense<0.000000e+00> : vector<4x128xf32>
    %44 = tpu.matmul %42, %43, %cst_66 {dimension_numbers = #tpu.dot_dimension_numbers<[1], [0], [0], [1], [0, 0, 1, 1], [], []>} : vector<4x128xf32>, vector<128x128xf32>, vector<4x128xf32> -> vector<4x128xf32>
    %45 = vector.extract_strided_slice %44 {offsets = [0, 0], sizes = [2, 128], strides = [1, 1]} : vector<4x128xf32> to vector<2x128xf32>
    %46 = vector.extract_strided_slice %44 {offsets = [2, 0], sizes = [2, 128], strides = [1, 1]} : vector<4x128xf32> to vector<2x128xf32>
    %47 = arith.mulf %45, %45 : vector<2x128xf32>
    %48 = arith.subf %46, %47 : vector<2x128xf32>
    %cst_67 = arith.constant 0.000000e+00 : f32
    %49 = vector.broadcast %cst_67 : f32 to vector<2x128xf32>
    %50 = arith.maximumf %48, %49 : vector<2x128xf32>
    %cst_68 = arith.constant 9.99999974E-6 : f32
    %51 = vector.broadcast %cst_68 : f32 to vector<2x128xf32>
    %52 = arith.addf %50, %51 : vector<2x128xf32>
    %53 = math.rsqrt %52 : vector<2x128xf32>
    %c0_69 = arith.constant 0 : index
    %c0_70 = arith.constant 0 : index
    %54 = vector.load %arg4[%c0_69, %c0_70] : memref<1x128xf32, #tpu.memory_space<vmem>>, vector<1x128xf32>
    %55 = vector.broadcast %54 : vector<1x128xf32> to vector<2x128xf32>
    %56 = arith.mulf %53, %55 : vector<2x128xf32>
    %c0_71 = arith.constant 0 : index
    %c0_72 = arith.constant 0 : index
    %57 = vector.load %arg5[%c0_71, %c0_72] : memref<1x128xf32, #tpu.memory_space<vmem>>, vector<1x128xf32>
    %58 = arith.mulf %45, %56 : vector<2x128xf32>
    %59 = vector.broadcast %57 : vector<1x128xf32> to vector<2x128xf32>
    %60 = arith.subf %59, %58 : vector<2x128xf32>
    %61 = vector.shape_cast %56 : vector<2x128xf32> to vector<2x1x128xf32>
    %62 = vector.broadcast %61 : vector<2x1x128xf32> to vector<2x64x128xf32>
    %63 = arith.mulf %38, %62 : vector<2x64x128xf32>
    %64 = vector.shape_cast %60 : vector<2x128xf32> to vector<2x1x128xf32>
    %65 = vector.broadcast %64 : vector<2x1x128xf32> to vector<2x64x128xf32>
    %66 = arith.addf %63, %65 : vector<2x64x128xf32>
    %cst_73 = arith.constant 0.000000e+00 : f32
    %67 = vector.broadcast %cst_73 : f32 to vector<2x64x128xf32>
    %68 = arith.maximumf %66, %67 : vector<2x64x128xf32>
    %69 = vector.shape_cast %68 : vector<2x64x128xf32> to vector<2x8x8x128xf32>
    %70 = arith.truncf %69 : vector<2x8x8x128xf32> to vector<2x8x8x128xbf16>
    %c0_74 = arith.constant 0 : index
    %c1_75 = arith.constant 1 : index
    %c1_76 = arith.constant 1 : index
    %c0_77 = arith.constant 0 : index
    %71 = vector.load %arg12[%c0_74, %c1_75, %c1_76, %c0_77] : memref<2x10x10x128xbf16, #tpu.memory_space<vmem>>, vector<2x8x8x128xbf16>
    tpu.vector_store %arg12[%c0_74, %c1_75, %c1_76, %c0_77], %70 {strides = array<i32>} : memref<2x10x10x128xbf16, #tpu.memory_space<vmem>>, vector<2x8x8x128xbf16>,
    %c0_78 = arith.constant 0 : index
    %c0_79 = arith.constant 0 : index
    %c0_80 = arith.constant 0 : index
    %c0_81 = arith.constant 0 : index
    %72 = vector.load %arg12[%c0_78, %c0_79, %c0_80, %c0_81] : memref<2x10x10x128xbf16, #tpu.memory_space<vmem>>, vector<2x8x8x128xbf16>
    %73 = vector.shape_cast %72 : vector<2x8x8x128xbf16> to vector<128x128xbf16>
    %c0_82 = arith.constant 0 : index
    %c0_83 = arith.constant 0 : index
    %74 = vector.load %arg13[%c0_82, %c0_83] : memref<128x1152xbf16, #tpu.memory_space<vmem>>, vector<128x128xbf16>
    tpu.vector_store %arg13[%c0_82, %c0_83], %73 {strides = array<i32>} : memref<128x1152xbf16, #tpu.memory_space<vmem>>, vector<128x128xbf16>,
    %c0_84 = arith.constant 0 : index
    %c0_85 = arith.constant 0 : index
    %c1_86 = arith.constant 1 : index
    %c0_87 = arith.constant 0 : index
    %75 = vector.load %arg12[%c0_84, %c0_85, %c1_86, %c0_87] : memref<2x10x10x128xbf16, #tpu.memory_space<vmem>>, vector<2x8x8x128xbf16>
    %76 = vector.shape_cast %75 : vector<2x8x8x128xbf16> to vector<128x128xbf16>
    %c0_88 = arith.constant 0 : index
    %c128_89 = arith.constant 128 : index
    %77 = vector.load %arg13[%c0_88, %c128_89] : memref<128x1152xbf16, #tpu.memory_space<vmem>>, vector<128x128xbf16>
    tpu.vector_store %arg13[%c0_88, %c128_89], %76 {strides = array<i32>} : memref<128x1152xbf16, #tpu.memory_space<vmem>>, vector<128x128xbf16>,
    %c0_90 = arith.constant 0 : index
    %c0_91 = arith.constant 0 : index
    %c2_92 = arith.constant 2 : index
    %c0_93 = arith.constant 0 : index
    %78 = vector.load %arg12[%c0_90, %c0_91, %c2_92, %c0_93] : memref<2x10x10x128xbf16, #tpu.memory_space<vmem>>, vector<2x8x8x128xbf16>
    %79 = vector.shape_cast %78 : vector<2x8x8x128xbf16> to vector<128x128xbf16>
    %c0_94 = arith.constant 0 : index
    %c256_95 = arith.constant 256 : index
    %80 = vector.load %arg13[%c0_94, %c256_95] : memref<128x1152xbf16, #tpu.memory_space<vmem>>, vector<128x128xbf16>
    tpu.vector_store %arg13[%c0_94, %c256_95], %79 {strides = array<i32>} : memref<128x1152xbf16, #tpu.memory_space<vmem>>, vector<128x128xbf16>,
    %c0_96 = arith.constant 0 : index
    %c1_97 = arith.constant 1 : index
    %c0_98 = arith.constant 0 : index
    %c0_99 = arith.constant 0 : index
    %81 = vector.load %arg12[%c0_96, %c1_97, %c0_98, %c0_99] : memref<2x10x10x128xbf16, #tpu.memory_space<vmem>>, vector<2x8x8x128xbf16>
    %82 = vector.shape_cast %81 : vector<2x8x8x128xbf16> to vector<128x128xbf16>
    %c0_100 = arith.constant 0 : index
    %c384_101 = arith.constant 384 : index
    %83 = vector.load %arg13[%c0_100, %c384_101] : memref<128x1152xbf16, #tpu.memory_space<vmem>>, vector<128x128xbf16>
    tpu.vector_store %arg13[%c0_100, %c384_101], %82 {strides = array<i32>} : memref<128x1152xbf16, #tpu.memory_space<vmem>>, vector<128x128xbf16>,
    %c0_102 = arith.constant 0 : index
    %c1_103 = arith.constant 1 : index
    %c1_104 = arith.constant 1 : index
    %c0_105 = arith.constant 0 : index
    %84 = vector.load %arg12[%c0_102, %c1_103, %c1_104, %c0_105] : memref<2x10x10x128xbf16, #tpu.memory_space<vmem>>, vector<2x8x8x128xbf16>
    %85 = vector.shape_cast %84 : vector<2x8x8x128xbf16> to vector<128x128xbf16>
    %c0_106 = arith.constant 0 : index
    %c512_107 = arith.constant 512 : index
    %86 = vector.load %arg13[%c0_106, %c512_107] : memref<128x1152xbf16, #tpu.memory_space<vmem>>, vector<128x128xbf16>
    tpu.vector_store %arg13[%c0_106, %c512_107], %85 {strides = array<i32>} : memref<128x1152xbf16, #tpu.memory_space<vmem>>, vector<128x128xbf16>,
    %c0_108 = arith.constant 0 : index
    %c1_109 = arith.constant 1 : index
    %c2_110 = arith.constant 2 : index
    %c0_111 = arith.constant 0 : index
    %87 = vector.load %arg12[%c0_108, %c1_109, %c2_110, %c0_111] : memref<2x10x10x128xbf16, #tpu.memory_space<vmem>>, vector<2x8x8x128xbf16>
    %88 = vector.shape_cast %87 : vector<2x8x8x128xbf16> to vector<128x128xbf16>
    %c0_112 = arith.constant 0 : index
    %c640_113 = arith.constant 640 : index
    %89 = vector.load %arg13[%c0_112, %c640_113] : memref<128x1152xbf16, #tpu.memory_space<vmem>>, vector<128x128xbf16>
    tpu.vector_store %arg13[%c0_112, %c640_113], %88 {strides = array<i32>} : memref<128x1152xbf16, #tpu.memory_space<vmem>>, vector<128x128xbf16>,
    %c0_114 = arith.constant 0 : index
    %c2_115 = arith.constant 2 : index
    %c0_116 = arith.constant 0 : index
    %c0_117 = arith.constant 0 : index
    %90 = vector.load %arg12[%c0_114, %c2_115, %c0_116, %c0_117] : memref<2x10x10x128xbf16, #tpu.memory_space<vmem>>, vector<2x8x8x128xbf16>
    %91 = vector.shape_cast %90 : vector<2x8x8x128xbf16> to vector<128x128xbf16>
    %c0_118 = arith.constant 0 : index
    %c768_119 = arith.constant 768 : index
    %92 = vector.load %arg13[%c0_118, %c768_119] : memref<128x1152xbf16, #tpu.memory_space<vmem>>, vector<128x128xbf16>
    tpu.vector_store %arg13[%c0_118, %c768_119], %91 {strides = array<i32>} : memref<128x1152xbf16, #tpu.memory_space<vmem>>, vector<128x128xbf16>,
    %c0_120 = arith.constant 0 : index
    %c2_121 = arith.constant 2 : index
    %c1_122 = arith.constant 1 : index
    %c0_123 = arith.constant 0 : index
    %93 = vector.load %arg12[%c0_120, %c2_121, %c1_122, %c0_123] : memref<2x10x10x128xbf16, #tpu.memory_space<vmem>>, vector<2x8x8x128xbf16>
    %94 = vector.shape_cast %93 : vector<2x8x8x128xbf16> to vector<128x128xbf16>
    %c0_124 = arith.constant 0 : index
    %c896_125 = arith.constant 896 : index
    %95 = vector.load %arg13[%c0_124, %c896_125] : memref<128x1152xbf16, #tpu.memory_space<vmem>>, vector<128x128xbf16>
    tpu.vector_store %arg13[%c0_124, %c896_125], %94 {strides = array<i32>} : memref<128x1152xbf16, #tpu.memory_space<vmem>>, vector<128x128xbf16>,
    %c0_126 = arith.constant 0 : index
    %c2_127 = arith.constant 2 : index
    %c2_128 = arith.constant 2 : index
    %c0_129 = arith.constant 0 : index
    %96 = vector.load %arg12[%c0_126, %c2_127, %c2_128, %c0_129] : memref<2x10x10x128xbf16, #tpu.memory_space<vmem>>, vector<2x8x8x128xbf16>
    %97 = vector.shape_cast %96 : vector<2x8x8x128xbf16> to vector<128x128xbf16>
    %c0_130 = arith.constant 0 : index
    %c1024_131 = arith.constant 1024 : index
    %98 = vector.load %arg13[%c0_130, %c1024_131] : memref<128x1152xbf16, #tpu.memory_space<vmem>>, vector<128x128xbf16>
    tpu.vector_store %arg13[%c0_130, %c1024_131], %97 {strides = array<i32>} : memref<128x1152xbf16, #tpu.memory_space<vmem>>, vector<128x128xbf16>,
    %c0_132 = arith.constant 0 : index
    %c0_133 = arith.constant 0 : index
    %99 = vector.load %arg13[%c0_132, %c0_133] : memref<128x1152xbf16, #tpu.memory_space<vmem>>, vector<128x1152xbf16>
    %c0_134 = arith.constant 0 : index
    %c0_135 = arith.constant 0 : index
    %100 = vector.load %arg6[%c0_134, %c0_135] : memref<1152x128xbf16, #tpu.memory_space<vmem>>, vector<1152x128xbf16>
    %cst_136 = arith.constant dense<0.000000e+00> : vector<128x128xf32>
    %101 = tpu.matmul %99, %100, %cst_136 {dimension_numbers = #tpu.dot_dimension_numbers<[1], [0], [0], [1], [0, 0, 1, 1], [], []>} : vector<128x1152xbf16>, vector<1152x128xbf16>, vector<128x128xf32> -> vector<128x128xf32>
    %c0_137 = arith.constant 0 : index
    %c0_138 = arith.constant 0 : index
    %102 = vector.load %arg7[%c0_137, %c0_138] : memref<1x128xf32, #tpu.memory_space<vmem>>, vector<1x128xf32>
    %103 = vector.broadcast %102 : vector<1x128xf32> to vector<128x128xf32>
    %104 = arith.addf %101, %103 : vector<128x128xf32>
    %105 = vector.shape_cast %104 : vector<128x128xf32> to vector<2x64x128xf32>
    %cst_139 = arith.constant dense<0.000000e+00> : vector<2x128xf32>
    %106 = vector.multi_reduction <add>, %105, %cst_139 [1] : vector<2x64x128xf32> to vector<2x128xf32>
    %107 = arith.mulf %105, %105 : vector<2x64x128xf32>
    %cst_140 = arith.constant dense<0.000000e+00> : vector<2x128xf32>
    %108 = vector.multi_reduction <add>, %107, %cst_140 [1] : vector<2x64x128xf32> to vector<2x128xf32>
    %109 = tpu.concatenate %106, %108 in 0 : vector<2x128xf32>, vector<2x128xf32> -> vector<4x128xf32>
    %c0_141 = arith.constant 0 : index
    %c0_142 = arith.constant 0 : index
    %110 = vector.load %arg10[%c0_141, %c0_142] : memref<128x128xf32, #tpu.memory_space<vmem>>, vector<128x128xf32>
    %cst_143 = arith.constant dense<0.000000e+00> : vector<4x128xf32>
    %111 = tpu.matmul %109, %110, %cst_143 {dimension_numbers = #tpu.dot_dimension_numbers<[1], [0], [0], [1], [0, 0, 1, 1], [], []>} : vector<4x128xf32>, vector<128x128xf32>, vector<4x128xf32> -> vector<4x128xf32>
    %112 = vector.extract_strided_slice %111 {offsets = [0, 0], sizes = [2, 128], strides = [1, 1]} : vector<4x128xf32> to vector<2x128xf32>
    %113 = vector.extract_strided_slice %111 {offsets = [2, 0], sizes = [2, 128], strides = [1, 1]} : vector<4x128xf32> to vector<2x128xf32>
    %114 = arith.mulf %112, %112 : vector<2x128xf32>
    %115 = arith.subf %113, %114 : vector<2x128xf32>
    %cst_144 = arith.constant 0.000000e+00 : f32
    %116 = vector.broadcast %cst_144 : f32 to vector<2x128xf32>
    %117 = arith.maximumf %115, %116 : vector<2x128xf32>
    %cst_145 = arith.constant 9.99999974E-6 : f32
    %118 = vector.broadcast %cst_145 : f32 to vector<2x128xf32>
    %119 = arith.addf %117, %118 : vector<2x128xf32>
    %120 = math.rsqrt %119 : vector<2x128xf32>
    %c0_146 = arith.constant 0 : index
    %c0_147 = arith.constant 0 : index
    %121 = vector.load %arg8[%c0_146, %c0_147] : memref<1x128xf32, #tpu.memory_space<vmem>>, vector<1x128xf32>
    %122 = vector.broadcast %121 : vector<1x128xf32> to vector<2x128xf32>
    %123 = arith.mulf %120, %122 : vector<2x128xf32>
    %c0_148 = arith.constant 0 : index
    %c0_149 = arith.constant 0 : index
    %124 = vector.load %arg9[%c0_148, %c0_149] : memref<1x128xf32, #tpu.memory_space<vmem>>, vector<1x128xf32>
    %125 = arith.mulf %112, %123 : vector<2x128xf32>
    %126 = vector.broadcast %124 : vector<1x128xf32> to vector<2x128xf32>
    %127 = arith.subf %126, %125 : vector<2x128xf32>
    %128 = vector.shape_cast %123 : vector<2x128xf32> to vector<2x1x128xf32>
    %129 = vector.broadcast %128 : vector<2x1x128xf32> to vector<2x64x128xf32>
    %130 = arith.mulf %105, %129 : vector<2x64x128xf32>
    %131 = vector.shape_cast %127 : vector<2x128xf32> to vector<2x1x128xf32>
    %132 = vector.broadcast %131 : vector<2x1x128xf32> to vector<2x64x128xf32>
    %133 = arith.addf %130, %132 : vector<2x64x128xf32>
    %134 = vector.shape_cast %133 : vector<2x64x128xf32> to vector<2x8x8x128xf32>
    %c0_150 = arith.constant 0 : index
    %c0_151 = arith.constant 0 : index
    %c0_152 = arith.constant 0 : index
    %c0_153 = arith.constant 0 : index
    %135 = vector.load %arg1[%c0_150, %c0_151, %c0_152, %c0_153] : memref<2x8x8x128xf32, #tpu.memory_space<vmem>>, vector<2x8x8x128xf32>
    %136 = arith.addf %134, %135 : vector<2x8x8x128xf32>
    %cst_154 = arith.constant 0.000000e+00 : f32
    %137 = vector.broadcast %cst_154 : f32 to vector<2x8x8x128xf32>
    %138 = arith.maximumf %136, %137 : vector<2x8x8x128xf32>
    %c0_155 = arith.constant 0 : index
    %c0_156 = arith.constant 0 : index
    %c0_157 = arith.constant 0 : index
    %c0_158 = arith.constant 0 : index
    %139 = vector.load %arg11[%c0_155, %c0_156, %c0_157, %c0_158] : memref<2x8x8x128xf32, #tpu.memory_space<vmem>>, vector<2x8x8x128xf32>
    tpu.vector_store %arg11[%c0_155, %c0_156, %c0_157, %c0_158], %138 {strides = array<i32>} : memref<2x8x8x128xf32, #tpu.memory_space<vmem>>, vector<2x8x8x128xf32>,
    return
  }
  func.func @transform_0(%arg0: i32) -> (i32, i32, i32, i32) {
    %c0_i32 = arith.constant 0 : i32
    %c0_i32_0 = arith.constant 0 : i32
    %c0_i32_1 = arith.constant 0 : i32
    %c0_i32_2 = arith.constant 0 : i32
    return %arg0, %c0_i32, %c0_i32_0, %c0_i32_1 : i32, i32, i32, i32
  }
  func.func @transform_1(%arg0: i32) -> (i32, i32) {
    %c0_i32 = arith.constant 0 : i32
    %c0_i32_0 = arith.constant 0 : i32
    %c0_i32_1 = arith.constant 0 : i32
    return %c0_i32, %c0_i32_0 : i32, i32
  }
  func.func @transform_2(%arg0: i32) -> (i32, i32) {
    %c0_i32 = arith.constant 0 : i32
    %c0_i32_0 = arith.constant 0 : i32
    %c0_i32_1 = arith.constant 0 : i32
    return %c0_i32, %c0_i32_0 : i32, i32
  }
  func.func @transform_3(%arg0: i32) -> (i32, i32) {
    %c0_i32 = arith.constant 0 : i32
    %c0_i32_0 = arith.constant 0 : i32
    %c0_i32_1 = arith.constant 0 : i32
    return %c0_i32, %c0_i32_0 : i32, i32
  }
  func.func @transform_4(%arg0: i32) -> (i32, i32) {
    %c0_i32 = arith.constant 0 : i32
    %c0_i32_0 = arith.constant 0 : i32
    %c0_i32_1 = arith.constant 0 : i32
    return %c0_i32, %c0_i32_0 : i32, i32
  }
  func.func @transform_5(%arg0: i32) -> (i32, i32) {
    %c0_i32 = arith.constant 0 : i32
    %c0_i32_0 = arith.constant 0 : i32
    %c0_i32_1 = arith.constant 0 : i32
    return %c0_i32, %c0_i32_0 : i32, i32
  }
  func.func @transform_6(%arg0: i32) -> (i32, i32) {
    %c0_i32 = arith.constant 0 : i32
    %c0_i32_0 = arith.constant 0 : i32
    %c0_i32_1 = arith.constant 0 : i32
    return %c0_i32, %c0_i32_0 : i32, i32
  }
  func.func @transform_7(%arg0: i32) -> (i32, i32) {
    %c0_i32 = arith.constant 0 : i32
    %c0_i32_0 = arith.constant 0 : i32
    %c0_i32_1 = arith.constant 0 : i32
    return %c0_i32, %c0_i32_0 : i32, i32
  }
  func.func @transform_8(%arg0: i32) -> (i32, i32) {
    %c0_i32 = arith.constant 0 : i32
    %c0_i32_0 = arith.constant 0 : i32
    %c0_i32_1 = arith.constant 0 : i32
    return %c0_i32, %c0_i32_0 : i32, i32
  }
  func.func @transform_9(%arg0: i32) -> (i32, i32) {
    %c0_i32 = arith.constant 0 : i32
    %c0_i32_0 = arith.constant 0 : i32
    %c0_i32_1 = arith.constant 0 : i32
    return %c0_i32, %c0_i32_0 : i32, i32
  }
  func.func @transform_10(%arg0: i32) -> (i32, i32, i32, i32) {
    %c0_i32 = arith.constant 0 : i32
    %c0_i32_0 = arith.constant 0 : i32
    %c0_i32_1 = arith.constant 0 : i32
    %c0_i32_2 = arith.constant 0 : i32
    return %arg0, %c0_i32, %c0_i32_0, %c0_i32_1 : i32, i32, i32, i32
  }
}

</mosaic_0001>

<llo_original>
// kernel: basic_block_forward.1
$region0: #{basic_block_forward.1}
  #allocation0 [shape = 'u32[]', space=smem, size = 0x4, offset = 0x4, fixed_abs, tag = 'smem constant byte address 0x4 - core index']
  #allocation1 [shape = 'u32[144,128]{1,0:T(1,128)}', space=vmem, size = 0x12000, scoped, tag = 'internal scratch']
  #allocation2 [shape = 'bf16[2,10,10,128]{3,2,1,0:T(8,128)(2,1)}', space=vmem, size = 0x14000, scoped, tag = 'scratch operand']
  #allocation3 [shape = 'bf16[128,1152]{1,0:T(16,128)(2,1)}', space=vmem, size = 0x48000, scoped, tag = 'scratch operand']
  %s0 = inlined_call_operand.vmem [shape: f32[4,8,8,128], index: 0, kind: input, shape index: {}]
  %s1 = inlined_call_operand.vmem [shape: bf16[1152,128], index: 1, kind: input, shape index: {}]
  %s2 = inlined_call_operand.vmem [shape: f32[1,128], index: 2, kind: input, shape index: {}]
  %s3 = inlined_call_operand.vmem [shape: f32[1,128], index: 3, kind: input, shape index: {}]
  %s4 = inlined_call_operand.vmem [shape: f32[1,128], index: 4, kind: input, shape index: {}]
  %s5 = inlined_call_operand.vmem [shape: bf16[1152,128], index: 5, kind: input, shape index: {}]
  %s6 = inlined_call_operand.vmem [shape: f32[1,128], index: 6, kind: input, shape index: {}]
  %s7 = inlined_call_operand.vmem [shape: f32[1,128], index: 7, kind: input, shape index: {}]
  %s8 = inlined_call_operand.vmem [shape: f32[1,128], index: 8, kind: input, shape index: {}]
  %s9 = inlined_call_operand.vmem [shape: f32[128,128], index: 9, kind: input, shape index: {}]
  %s10 = inlined_call_operand.vmem [shape: f32[4,8,8,128], index: 10, kind: output, shape index: {}]
  %s11 = sld [smem:[#allocation0]]
  $region73: #{basic_block_forward.1} parent=0
    _
  %s13 = ssub.s32 1, %s11
  %s14 = scalar_select 0, %s13, %s11
  loop: start=0, step=1, limit=4
  $region2: #{basic_block_forward.1} parent=0 // loop_pre_header
    _
  $region3: #{basic_block_forward.1} parent=0 // loop_header
    %s16 = sphi 0, %s20
    %p17 = scmp.ge.s32.totalorder %s16, 4
    %s26 = sphi 0, %s28
    %s29 = sphi 0, %s26
    %s30 = sphi 0, %s29
    %s46 = sphi 0, %s30
    %s50 = sphi 0, %s50
    %s52 = sphi 0, %s50
    %s53 = sphi 0, %s52
    %s67 = sphi 0, %s53
    %s71 = sphi 0, %s71
    %s73 = sphi 0, %s71
    %s74 = sphi 0, %s73
    %s88 = sphi 0, %s74
    %s92 = sphi 0, %s92
    %s94 = sphi 0, %s92
    %s95 = sphi 0, %s94
    %s109 = sphi 0, %s95
    %s113 = sphi 0, %s113
    %s115 = sphi 0, %s113
    %s116 = sphi 0, %s115
    %s130 = sphi 0, %s116
    %s134 = sphi 0, %s134
    %s136 = sphi 0, %s134
    %s137 = sphi 0, %s136
    %s151 = sphi 0, %s137
    %s155 = sphi 0, %s155
    %s157 = sphi 0, %s155
    %s158 = sphi 0, %s157
    %s172 = sphi 0, %s158
    %s176 = sphi 0, %s176
    %s178 = sphi 0, %s176
    %s179 = sphi 0, %s178
    %s193 = sphi 0, %s179
    %s197 = sphi 0, %s197
    %s199 = sphi 0, %s197
    %s200 = sphi 0, %s199
    %s214 = sphi 0, %s200
    %s218 = sphi 0, %s218
    %s220 = sphi 0, %s218
    %s221 = sphi 0, %s220
    %s235 = sphi 0, %s221
    %s241 = sphi 0, %s243
    %s244 = sphi 0, %s241
    %s245 = sphi 0, %s244
    %s261 = sphi 0, %s245
  $region4: #{basic_block_forward.1} parent=0 // loop_header_branch
    %19 = sbr.rel (%p17) target = $region8
  $region5: #{basic_block_forward.1} parent=0 // loop_body
    %s21 = ssub.s32 %s16, 1
    %s22 = ssub.s32 %s16, 2
    %s23 = sadd.s32 %s16, 1
    %s24 = ssub.s32 %s16, %s23
    %p25 = scmp.eq.s32.totalorder %s24, 0
    %s27 = sadd.s32 %s26, 1
    %s28 = scalar_select %p25, %s26, %s27
    %p31 = pneg %p25
    %p32 = scmp.eq.s32.totalorder %s16, 1
    %p33 = por %p31, %p32
    %p34 = scmp.ne.s32.totalorder %s26, %s29
    %p35 = scmp.eq.s32.totalorder %s16, 0
    %p36 = por %p34, %p35
    %p37 = scmp.ne.s32.totalorder %s26, %s29
    %p38 = scmp.eq.s32.totalorder %s21, 1
    %p39 = por %p37, %p38
    %p40 = scmp.ne.s32.totalorder %s29, %s30
    %p41 = scmp.eq.s32.totalorder %s21, 0
    %p42 = por %p40, %p41
    %p43 = scmp.ne.s32.totalorder %s29, %s30
    %p44 = scmp.eq.s32.totalorder %s22, 1
    %p45 = por %p43, %p44
    %p47 = scmp.ne.s32.totalorder %s30, %s46
    %p48 = scmp.eq.s32.totalorder %s22, 0
    %p49 = por %p47, %p48
    %s51 = sadd.s32 %s50, 1
    %p54 = scmp.eq.s32.totalorder %s16, 1
    %p55 = scmp.ne.s32.totalorder %s50, %s52
    %p56 = scmp.eq.s32.totalorder %s16, 0
    %p57 = por %p55, %p56
    %p58 = scmp.ne.s32.totalorder %s50, %s52
    %p59 = scmp.eq.s32.totalorder %s21, 1
    %p60 = por %p58, %p59
    %p61 = scmp.ne.s32.totalorder %s52, %s53
    %p62 = scmp.eq.s32.totalorder %s21, 0
    %p63 = por %p61, %p62
    %p64 = scmp.ne.s32.totalorder %s52, %s53
    %p65 = scmp.eq.s32.totalorder %s22, 1
    %p66 = por %p64, %p65
    %p68 = scmp.ne.s32.totalorder %s53, %s67
    %p69 = scmp.eq.s32.totalorder %s22, 0
    %p70 = por %p68, %p69
    %s72 = sadd.s32 %s71, 1
    %p75 = scmp.eq.s32.totalorder %s16, 1
    %p76 = scmp.ne.s32.totalorder %s71, %s73
    %p77 = scmp.eq.s32.totalorder %s16, 0
    %p78 = por %p76, %p77
    %p79 = scmp.ne.s32.totalorder %s71, %s73
    %p80 = scmp.eq.s32.totalorder %s21, 1
    %p81 = por %p79, %p80
    %p82 = scmp.ne.s32.totalorder %s73, %s74
    %p83 = scmp.eq.s32.totalorder %s21, 0
    %p84 = por %p82, %p83
    %p85 = scmp.ne.s32.totalorder %s73, %s74
    %p86 = scmp.eq.s32.totalorder %s22, 1
    %p87 = por %p85, %p86
    %p89 = scmp.ne.s32.totalorder %s74, %s88
    %p90 = scmp.eq.s32.totalorder %s22, 0
    %p91 = por %p89, %p90
    %s93 = sadd.s32 %s92, 1
    %p96 = scmp.eq.s32.totalorder %s16, 1
    %p97 = scmp.ne.s32.totalorder %s92, %s94
    %p98 = scmp.eq.s32.totalorder %s16, 0
    %p99 = por %p97, %p98
    %p100 = scmp.ne.s32.totalorder %s92, %s94
    %p101 = scmp.eq.s32.totalorder %s21, 1
    %p102 = por %p100, %p101
    %p103 = scmp.ne.s32.totalorder %s94, %s95
    %p104 = scmp.eq.s32.totalorder %s21, 0
    %p105 = por %p103, %p104
    %p106 = scmp.ne.s32.totalorder %s94, %s95
    %p107 = scmp.eq.s32.totalorder %s22, 1
    %p108 = por %p106, %p107
    %p110 = scmp.ne.s32.totalorder %s95, %s109
    %p111 = scmp.eq.s32.totalorder %s22, 0
    %p112 = por %p110, %p111
    %s114 = sadd.s32 %s113, 1
    %p117 = scmp.eq.s32.totalorder %s16, 1
    %p118 = scmp.ne.s32.totalorder %s113, %s115
    %p119 = scmp.eq.s32.totalorder %s16, 0
    %p120 = por %p118, %p119
    %p121 = scmp.ne.s32.totalorder %s113, %s115
    %p122 = scmp.eq.s32.totalorder %s21, 1
    %p123 = por %p121, %p122
    %p124 = scmp.ne.s32.totalorder %s115, %s116
    %p125 = scmp.eq.s32.totalorder %s21, 0
    %p126 = por %p124, %p125
    %p127 = scmp.ne.s32.totalorder %s115, %s116
    %p128 = scmp.eq.s32.totalorder %s22, 1
    %p129 = por %p127, %p128
    %p131 = scmp.ne.s32.totalorder %s116, %s130
    %p132 = scmp.eq.s32.totalorder %s22, 0
    %p133 = por %p131, %p132
    %s135 = sadd.s32 %s134, 1
    %p138 = scmp.eq.s32.totalorder %s16, 1
    %p139 = scmp.ne.s32.totalorder %s134, %s136
    %p140 = scmp.eq.s32.totalorder %s16, 0
    %p141 = por %p139, %p140
    %p142 = scmp.ne.s32.totalorder %s134, %s136
    %p143 = scmp.eq.s32.totalorder %s21, 1
    %p144 = por %p142, %p143
    %p145 = scmp.ne.s32.totalorder %s136, %s137
    %p146 = scmp.eq.s32.totalorder %s21, 0
    %p147 = por %p145, %p146
    %p148 = scmp.ne.s32.totalorder %s136, %s137
    %p149 = scmp.eq.s32.totalorder %s22, 1
    %p150 = por %p148, %p149
    %p152 = scmp.ne.s32.totalorder %s137, %s151
    %p153 = scmp.eq.s32.totalorder %s22, 0
    %p154 = por %p152, %p153
    %s156 = sadd.s32 %s155, 1
    %p159 = scmp.eq.s32.totalorder %s16, 1
    %p160 = scmp.ne.s32.totalorder %s155, %s157
    %p161 = scmp.eq.s32.totalorder %s16, 0
    %p162 = por %p160, %p161
    %p163 = scmp.ne.s32.totalorder %s155, %s157
    %p164 = scmp.eq.s32.totalorder %s21, 1
    %p165 = por %p163, %p164
    %p166 = scmp.ne.s32.totalorder %s157, %s158
    %p167 = scmp.eq.s32.totalorder %s21, 0
    %p168 = por %p166, %p167
    %p169 = scmp.ne.s32.totalorder %s157, %s158
    %p170 = scmp.eq.s32.totalorder %s22, 1
    %p171 = por %p169, %p170
    %p173 = scmp.ne.s32.totalorder %s158, %s172
    %p174 = scmp.eq.s32.totalorder %s22, 0
    %p175 = por %p173, %p174
    %s177 = sadd.s32 %s176, 1
    %p180 = scmp.eq.s32.totalorder %s16, 1
    %p181 = scmp.ne.s32.totalorder %s176, %s178
    %p182 = scmp.eq.s32.totalorder %s16, 0
    %p183 = por %p181, %p182
    %p184 = scmp.ne.s32.totalorder %s176, %s178
    %p185 = scmp.eq.s32.totalorder %s21, 1
    %p186 = por %p184, %p185
    %p187 = scmp.ne.s32.totalorder %s178, %s179
    %p188 = scmp.eq.s32.totalorder %s21, 0
    %p189 = por %p187, %p188
    %p190 = scmp.ne.s32.totalorder %s178, %s179
    %p191 = scmp.eq.s32.totalorder %s22, 1
    %p192 = por %p190, %p191
    %p194 = scmp.ne.s32.totalorder %s179, %s193
    %p195 = scmp.eq.s32.totalorder %s22, 0
    %p196 = por %p194, %p195
    %s198 = sadd.s32 %s197, 1
    %p201 = scmp.eq.s32.totalorder %s16, 1
    %p202 = scmp.ne.s32.totalorder %s197, %s199
    %p203 = scmp.eq.s32.totalorder %s16, 0
    %p204 = por %p202, %p203
    %p205 = scmp.ne.s32.totalorder %s197, %s199
    %p206 = scmp.eq.s32.totalorder %s21, 1
    %p207 = por %p205, %p206
    %p208 = scmp.ne.s32.totalorder %s199, %s200
    %p209 = scmp.eq.s32.totalorder %s21, 0
    %p210 = por %p208, %p209
    %p211 = scmp.ne.s32.totalorder %s199, %s200
    %p212 = scmp.eq.s32.totalorder %s22, 1
    %p213 = por %p211, %p212
    %p215 = scmp.ne.s32.totalorder %s200, %s214
    %p216 = scmp.eq.s32.totalorder %s22, 0
    %p217 = por %p215, %p216
    %s219 = sadd.s32 %s218, 1
    %p222 = scmp.eq.s32.totalorder %s16, 1
    %p223 = scmp.ne.s32.totalorder %s218, %s220
    %p224 = scmp.eq.s32.totalorder %s16, 0
    %p225 = por %p223, %p224
    %p226 = scmp.ne.s32.totalorder %s218, %s220
    %p227 = scmp.eq.s32.totalorder %s21, 1
    %p228 = por %p226, %p227
    %p229 = scmp.ne.s32.totalorder %s220, %s221
    %p230 = scmp.eq.s32.totalorder %s21, 0
    %p231 = por %p229, %p230
    %p232 = scmp.ne.s32.totalorder %s220, %s221
    %p233 = scmp.eq.s32.totalorder %s22, 1
    %p234 = por %p232, %p233
    %p236 = scmp.ne.s32.totalorder %s221, %s235
    %p237 = scmp.eq.s32.totalorder %s22, 0
    %p238 = por %p236, %p237
    %s239 = ssub.s32 %s16, %s23
    %p240 = scmp.eq.s32.totalorder %s239, 0
    %s242 = sadd.s32 %s241, 1
    %s243 = scalar_select %p240, %s241, %s242
    %p246 = pneg %p240
    %p247 = scmp.eq.s32.totalorder %s16, 1
    %p248 = por %p246, %p247
    %p249 = scmp.ne.s32.totalorder %s241, %s244
    %p250 = scmp.eq.s32.totalorder %s16, 0
    %p251 = por %p249, %p250
    %p252 = scmp.ne.s32.totalorder %s241, %s244
    %p253 = scmp.eq.s32.totalorder %s21, 1
    %p254 = por %p252, %p253
    %p255 = scmp.ne.s32.totalorder %s244, %s245
    %p256 = scmp.eq.s32.totalorder %s21, 0
    %p257 = por %p255, %p256
    %p258 = scmp.ne.s32.totalorder %s244, %s245
    %p259 = scmp.eq.s32.totalorder %s22, 1
    %p260 = por %p258, %p259
    %p262 = scmp.ne.s32.totalorder %s245, %s261
    %p263 = scmp.eq.s32.totalorder %s22, 0
    %p264 = por %p262, %p263
    %p265 = scmp.le.s32.totalorder 1, %s16
    %p266 = scmp.lt.s32.totalorder %s16, 3
    %p267 = pnand %p265, %p266
    %p268 = pneg %p267
    // Predicated region
    $region9: #{basic_block_forward.1} parent=5 // pred_check
      _
    $region10: #{basic_block_forward.1} parent=5 // pred_check_branch
      %270 = sbr.rel (%p267) target = $region12
    $region11: #{basic_block_forward.1} parent=5 // pred_region
      %s271 = ssub.s32 %s16, 1
      // Predicated region
      $region13: #{basic_block_forward.1} parent=11 // pred_check
        %p272 = pneg %p63
      $region14: #{basic_block_forward.1} parent=11 // pred_check_branch
        %274 = sbr.rel (%p272) target = $region16
      $region15: #{basic_block_forward.1} parent=11 // pred_region
        _
      $region16: #{basic_block_forward.1} parent=11 // pred_fallthru
        _
      // Predicated region
      $region17: #{basic_block_forward.1} parent=11 // pred_check
        %p275 = pneg %p84
      $region18: #{basic_block_forward.1} parent=11 // pred_check_branch
        %277 = sbr.rel (%p275) target = $region20
      $region19: #{basic_block_forward.1} parent=11 // pred_region
        _
      $region20: #{basic_block_forward.1} parent=11 // pred_fallthru
        _
      // Predicated region
      $region21: #{basic_block_forward.1} parent=11 // pred_check
        %p278 = pneg %p105
      $region22: #{basic_block_forward.1} parent=11 // pred_check_branch
        %280 = sbr.rel (%p278) target = $region24
      $region23: #{basic_block_forward.1} parent=11 // pred_region
        _
      $region24: #{basic_block_forward.1} parent=11 // pred_fallthru
        _
      // Predicated region
      $region25: #{basic_block_forward.1} parent=11 // pred_check
        %p281 = pneg %p126
      $region26: #{basic_block_forward.1} parent=11 // pred_check_branch
        %283 = sbr.rel (%p281) target = $region28
      $region27: #{basic_block_forward.1} parent=11 // pred_region
        _
      $region28: #{basic_block_forward.1} parent=11 // pred_fallthru
        _
      // Predicated region
      $region29: #{basic_block_forward.1} parent=11 // pred_check
        %p284 = pneg %p147
      $region30: #{basic_block_forward.1} parent=11 // pred_check_branch
        %286 = sbr.rel (%p284) target = $region32
      $region31: #{basic_block_forward.1} parent=11 // pred_region
        _
      $region32: #{basic_block_forward.1} parent=11 // pred_fallthru
        _
      // Predicated region
      $region33: #{basic_block_forward.1} parent=11 // pred_check
        %p287 = pneg %p168
      $region34: #{basic_block_forward.1} parent=11 // pred_check_branch
        %289 = sbr.rel (%p287) target = $region36
      $region35: #{basic_block_forward.1} parent=11 // pred_region
        _
      $region36: #{basic_block_forward.1} parent=11 // pred_fallthru
        _
      // Predicated region
      $region37: #{basic_block_forward.1} parent=11 // pred_check
        %p290 = pneg %p189
      $region38: #{basic_block_forward.1} parent=11 // pred_check_branch
        %292 = sbr.rel (%p290) target = $region40
      $region39: #{basic_block_forward.1} parent=11 // pred_region
        _
      $region40: #{basic_block_forward.1} parent=11 // pred_fallthru
        _
      // Predicated region
      $region41: #{basic_block_forward.1} parent=11 // pred_check
        %p293 = pneg %p210
      $region42: #{basic_block_forward.1} parent=11 // pred_check_branch
        %295 = sbr.rel (%p293) target = $region44
      $region43: #{basic_block_forward.1} parent=11 // pred_region
        _
      $region44: #{basic_block_forward.1} parent=11 // pred_fallthru
        _
      // Predicated region
      $region45: #{basic_block_forward.1} parent=11 // pred_check
        %p296 = pneg %p231
      $region46: #{basic_block_forward.1} parent=11 // pred_check_branch
        %298 = sbr.rel (%p296) target = $region48
      $region47: #{basic_block_forward.1} parent=11 // pred_region
        _
      $region48: #{basic_block_forward.1} parent=11 // pred_fallthru
        _
    $region12: #{basic_block_forward.1} parent=5 // pred_fallthru
      _
    %p299 = scmp.lt.s32.totalorder %s16, 2
    // Predicated region
    $region49: #{basic_block_forward.1} parent=5 // pred_check
      %p300 = pneg %p299
    $region50: #{basic_block_forward.1} parent=5 // pred_check_branch
      %302 = sbr.rel (%p300) target = $region52
    $region51: #{basic_block_forward.1} parent=5 // pred_region
      // Predicated region
      $region53: #{basic_block_forward.1} parent=51 // pred_check
        %p303 = pneg %p36
      $region54: #{basic_block_forward.1} parent=51 // pred_check_branch
        %305 = sbr.rel (%p303) target = $region56
      $region55: #{basic_block_forward.1} parent=51 // pred_region
        %s306 = smul.u32 2, %s16
        %p307 = scmp.lt.s32.totalorder %s306, 3
        %s308 = scalar_select %p307, %s306, 3
        %s309 = smul.addr %s308, 8
        %s310 = smul.addr %s309, 8
        %s311 = scalar_lea.vmem %s0, %s310
        %s312 = smul.u32 2, %s16
      $region56: #{basic_block_forward.1} parent=51 // pred_fallthru
        _
    $region52: #{basic_block_forward.1} parent=5 // pred_fallthru
      _
    %p313 = scmp.le.s32.totalorder 1, %s16
    %p314 = scmp.lt.s32.totalorder %s16, 3
    %p315 = pnand %p313, %p314
    %p316 = pneg %p315
    // Predicated region
    $region57: #{basic_block_forward.1} parent=5 // pred_check
      _
    $region58: #{basic_block_forward.1} parent=5 // pred_check_branch
      %318 = sbr.rel (%p315) target = $region60
    $region59: #{basic_block_forward.1} parent=5 // pred_region
      %s319 = ssub.s32 %s16, 1
      %s320 = smul.u32 2, %s21
      %p321 = scmp.lt.s32.totalorder %s320, 3
      %s322 = scalar_select %p321, %s320, 3
      %s323 = smul.addr %s322, 8
      %s324 = smul.addr %s323, 8
      %s325 = scalar_lea.vmem %s0, %s324
      %p326 = pneg %p42
      %p327 = pneg %p39
      %p328 = pneg %p63
      %p329 = pneg %p60
      %p330 = pneg %p84
      %p331 = pneg %p81
      %p332 = pneg %p105
      %p333 = pneg %p102
      %p334 = pneg %p126
      %p335 = pneg %p123
      %p336 = pneg %p147
      %p337 = pneg %p144
      %p338 = pneg %p168
      %p339 = pneg %p165
      %p340 = pneg %p189
      %p341 = pneg %p186
      %p342 = pneg %p210
      %p343 = pneg %p207
      %p344 = pneg %p231
      %p345 = pneg %p228
      %p346 = pneg %p257
      %p347 = pneg %p254
      %s348 = smul.u32 2, %s21
      %p349 = scmp.lt.s32.totalorder %s348, 3
      %s350 = scalar_select %p349, %s348, 3
      %s351 = smul.addr %s350, 8
      %s352 = smul.addr %s351, 8
      %s353 = scalar_lea.vmem %s10, %s352
      %s354 = smul.u32 2, %s21
      %p355 = scmp.lt.s32.totalorder %s354, 3
      %s356 = scalar_select %p355, %s354, 3
      %s357 = smul.addr %s356, 8
      %s358 = smul.addr %s357, 8
      %s359 = scalar_lea.vmem %s0, %s358
      %s360 = smul.u32 2, %s21
      %s361 = smul.u32 2, %s21
      %p362 = scmp.lt.s32.totalorder %s361, 3
      %s363 = scalar_select %p362, %s361, 3
      %s364 = smul.addr %s363, 8
      %s365 = smul.addr %s364, 8
      %s366 = scalar_lea.vmem %s10, %s365
      %s367 = smul.u32 2, %s21
      %369 = vst [vmem:[#allocation2] sm:$0xf] 0
      %370 = vst [vmem:[#allocation2 + $0x4] sm:$0x1] 0
      %371 = vst [vmem:[#allocation2 + $0x8] sm:$0xf] 0
      %372 = vst [vmem:[#allocation2 + $0xc] sm:$0x1] 0
      %373 = vst [vmem:[#allocation2 + $0x10] sm:$0xf] 0
      %374 = vst [vmem:[#allocation2 + $0x14] sm:$0x1] 0
      %375 = vst [vmem:[#allocation2 + $0x18] sm:$0xf] 0
      %376 = vst [vmem:[#allocation2 + $0x1c] sm:$0x1] 0
      %377 = vst [vmem:[#allocation2 + $0x20] sm:$0xf] 0
      %378 = vst [vmem:[#allocation2 + $0x24] sm:$0x1] 0
      %379 = vst [vmem:[#allocation2 + $0x28] sm:$0xf] 0
      %380 = vst [vmem:[#allocation2 + $0x2c] sm:$0x1] 0
      %381 = vst [vmem:[#allocation2 + $0x30] sm:$0xf] 0
      %382 = vst [vmem:[#allocation2 + $0x34] sm:$0x1] 0
      %383 = vst [vmem:[#allocation2 + $0x38] sm:$0xf] 0
      %384 = vst [vmem:[#allocation2 + $0x3c] sm:$0x1] 0
      %385 = vst [vmem:[#allocation2 + $0x40] sm:$0xf] 0
      %386 = vst [vmem:[#allocation2 + $0x44] sm:$0x1] 0
      %387 = vst [vmem:[#allocation2 + $0x48] sm:$0xf] 0
      %388 = vst [vmem:[#allocation2 + $0x4c] sm:$0x1] 0
      %389 = vst [vmem:[#allocation2 + $0x50] sm:$0xf] 0
      %390 = vst [vmem:[#allocation2 + $0x54] sm:$0x1] 0
      %391 = vst [vmem:[#allocation2 + $0x58] sm:$0xf] 0
      %392 = vst [vmem:[#allocation2 + $0x5c] sm:$0x1] 0
      %393 = vst [vmem:[#allocation2 + $0x60] sm:$0xf] 0
      %394 = vst [vmem:[#allocation2 + $0x64] sm:$0x1] 0
      %395 = vst [vmem:[#allocation2 + $0x68] sm:$0xf] 0
      %396 = vst [vmem:[#allocation2 + $0x6c] sm:$0x1] 0
      %397 = vst [vmem:[#allocation2 + $0x70] sm:$0xf] 0
      %398 = vst [vmem:[#allocation2 + $0x74] sm:$0x1] 0
      %399 = vst [vmem:[#allocation2 + $0x78] sm:$0xf] 0
      %400 = vst [vmem:[#allocation2 + $0x7c] sm:$0x1] 0
      %401 = vst [vmem:[#allocation2 + $0x80] sm:$0xf] 0
      %402 = vst [vmem:[#allocation2 + $0x84] sm:$0x1] 0
      %403 = vst [vmem:[#allocation2 + $0x88] sm:$0xf] 0
      %404 = vst [vmem:[#allocation2 + $0x8c] sm:$0x1] 0
      %405 = vst [vmem:[#allocation2 + $0x90] sm:$0xf] 0
      %406 = vst [vmem:[#allocation2 + $0x94] sm:$0x1] 0
      %407 = vst [vmem:[#allocation2 + $0x98] sm:$0xf] 0
      %408 = vst [vmem:[#allocation2 + $0x9c] sm:$0x1] 0
      %v409 = vld [vmem:[%s359] sm:$0xff]
      %v410 = vld [vmem:[%s359 + $0x8] sm:$0xff]
      %v411 = vld [vmem:[%s359 + $0x10] sm:$0xff]
      %v412 = vld [vmem:[%s359 + $0x18] sm:$0xff]
      %v413 = vld [vmem:[%s359 + $0x20] sm:$0xff]
      %v414 = vld [vmem:[%s359 + $0x28] sm:$0xff]
      %v415 = vld [vmem:[%s359 + $0x30] sm:$0xff]
      %v416 = vld [vmem:[%s359 + $0x38] sm:$0xff]
      %v417 = vld [vmem:[%s359 + $0x40] sm:$0xff]
      %v418 = vld [vmem:[%s359 + $0x48] sm:$0xff]
      %v419 = vld [vmem:[%s359 + $0x50] sm:$0xff]
      %v420 = vld [vmem:[%s359 + $0x58] sm:$0xff]
      %v421 = vld [vmem:[%s359 + $0x60] sm:$0xff]
      %v422 = vld [vmem:[%s359 + $0x68] sm:$0xff]
      %v423 = vld [vmem:[%s359 + $0x70] sm:$0xff]
      %v424 = vld [vmem:[%s359 + $0x78] sm:$0xff]
      %v425 = vpack.c.bf16 %v409, %v409
      %v426 = vpack.c.bf16 %v410, %v410
      %v427 = vpack.c.bf16 %v411, %v411
      %v428 = vpack.c.bf16 %v412, %v412
      %v429 = vpack.c.bf16 %v413, %v413
      %v430 = vpack.c.bf16 %v414, %v414
      %v431 = vpack.c.bf16 %v415, %v415
      %v432 = vpack.c.bf16 %v416, %v416
      %v433 = vpack.c.bf16 %v417, %v417
      %v434 = vpack.c.bf16 %v418, %v418
      %v435 = vpack.c.bf16 %v419, %v419
      %v436 = vpack.c.bf16 %v420, %v420
      %v437 = vpack.c.bf16 %v421, %v421
      %v438 = vpack.c.bf16 %v422, %v422
      %v439 = vpack.c.bf16 %v423, %v423
      %v440 = vpack.c.bf16 %v424, %v424
      %v457 = vunpack.c.l.b16 %v425
      %v458 = vunpack.c.l.b16 %v426
      %v459 = vunpack.c.l.b16 %v427
      %v460 = vunpack.c.l.b16 %v428
      %v461 = vunpack.c.l.b16 %v429
      %v462 = vunpack.c.l.b16 %v430
      %v463 = vunpack.c.l.b16 %v431
      %v464 = vunpack.c.l.b16 %v432
      %v465 = vunpack.c.l.b16 %v433
      %v466 = vunpack.c.l.b16 %v434
      %v467 = vunpack.c.l.b16 %v435
      %v468 = vunpack.c.l.b16 %v436
      %v469 = vunpack.c.l.b16 %v437
      %v470 = vunpack.c.l.b16 %v438
      %v471 = vunpack.c.l.b16 %v439
      %v472 = vunpack.c.l.b16 %v440
      %v473 = vpack.c.b16 %v457, %v457
      %v474 = vpack.c.b16 %v458, %v458
      %v475 = vpack.c.b16 %v459, %v459
      %v476 = vpack.c.b16 %v460, %v460
      %v477 = vpack.c.b16 %v461, %v461
      %v478 = vpack.c.b16 %v462, %v462
      %v479 = vpack.c.b16 %v463, %v463
      %v480 = vpack.c.b16 %v464, %v464
      %v481 = vpack.c.b16 %v465, %v465
      %v482 = vpack.c.b16 %v466, %v466
      %v483 = vpack.c.b16 %v467, %v467
      %v484 = vpack.c.b16 %v468, %v468
      %v485 = vpack.c.b16 %v469, %v469
      %v486 = vpack.c.b16 %v470, %v470
      %v487 = vpack.c.b16 %v471, %v471
      %v488 = vpack.c.b16 %v472, %v472
      %v490 = vshrl.u32 %v473, 16
      %v492 = vrot.slane %v490, 7
      %v493 = vshll.u32 %v473, 16
      %v495 = vor.u32 %v492, %v493
      %v496 = vrot.slane %v492, 4
      %v498 = vshrl.u32 %v474, 16
      %v500 = vrot.slane %v498, 7
      %v501 = vshll.u32 %v474, 16
      %v503 = vor.u32 %v500, %v501
      %v504 = vrot.slane %v500, 4
      %v506 = vshrl.u32 %v475, 16
      %v508 = vrot.slane %v506, 7
      %v509 = vshll.u32 %v475, 16
      %v511 = vor.u32 %v508, %v509
      %v512 = vrot.slane %v508, 4
      %v514 = vshrl.u32 %v476, 16
      %v516 = vrot.slane %v514, 7
      %v517 = vshll.u32 %v476, 16
      %v519 = vor.u32 %v516, %v517
      %v520 = vrot.slane %v516, 4
      %v522 = vshrl.u32 %v477, 16
      %v524 = vrot.slane %v522, 7
      %v525 = vshll.u32 %v477, 16
      %v527 = vor.u32 %v524, %v525
      %v528 = vrot.slane %v524, 4
      %v530 = vshrl.u32 %v478, 16
      %v532 = vrot.slane %v530, 7
      %v533 = vshll.u32 %v478, 16
      %v535 = vor.u32 %v532, %v533
      %v536 = vrot.slane %v532, 4
      %v538 = vshrl.u32 %v479, 16
      %v540 = vrot.slane %v538, 7
      %v541 = vshll.u32 %v479, 16
      %v543 = vor.u32 %v540, %v541
      %v544 = vrot.slane %v540, 4
      %v546 = vshrl.u32 %v480, 16
      %v548 = vrot.slane %v546, 7
      %v549 = vshll.u32 %v480, 16
      %v551 = vor.u32 %v548, %v549
      %v552 = vrot.slane %v548, 4
      %v554 = vshrl.u32 %v481, 16
      %v556 = vrot.slane %v554, 7
      %v557 = vshll.u32 %v481, 16
      %v559 = vor.u32 %v556, %v557
      %v560 = vrot.slane %v556, 4
      %v562 = vshrl.u32 %v482, 16
      %v564 = vrot.slane %v562, 7
      %v565 = vshll.u32 %v482, 16
      %v567 = vor.u32 %v564, %v565
      %v568 = vrot.slane %v564, 4
      %v570 = vshrl.u32 %v483, 16
      %v572 = vrot.slane %v570, 7
      %v573 = vshll.u32 %v483, 16
      %v575 = vor.u32 %v572, %v573
      %v576 = vrot.slane %v572, 4
      %v578 = vshrl.u32 %v484, 16
      %v580 = vrot.slane %v578, 7
      %v581 = vshll.u32 %v484, 16
      %v583 = vor.u32 %v580, %v581
      %v584 = vrot.slane %v580, 4
      %v586 = vshrl.u32 %v485, 16
      %v588 = vrot.slane %v586, 7
      %v589 = vshll.u32 %v485, 16
      %v591 = vor.u32 %v588, %v589
      %v592 = vrot.slane %v588, 4
      %v594 = vshrl.u32 %v486, 16
      %v596 = vrot.slane %v594, 7
      %v597 = vshll.u32 %v486, 16
      %v599 = vor.u32 %v596, %v597
      %v600 = vrot.slane %v596, 4
      %v602 = vshrl.u32 %v487, 16
      %v604 = vrot.slane %v602, 7
      %v605 = vshll.u32 %v487, 16
      %v607 = vor.u32 %v604, %v605
      %v608 = vrot.slane %v604, 4
      %v610 = vshrl.u32 %v488, 16
      %v612 = vrot.slane %v610, 7
      %v613 = vshll.u32 %v488, 16
      %v615 = vor.u32 %v612, %v613
      %v616 = vrot.slane %v612, 4
      %s649 = scalar_lea.vmem [#allocation2], 8
      %vm650 = vcmask 1043456
      %vm651 = vsmask.f32 7938
      %vm652 = vmand %vm650, %vm651
      %v653 = vld [vmem:[%s649] sm:$0xf]
      %v654 = vsel %vm652, %v495, %v653
      %655 = vst [vmem:[%s649] sm:$0xf] %v654
      %vm656 = vcmask 1040384
      %vm657 = vsmask.f32 256
      %vm658 = vmand %vm656, %vm657
      %v659 = vld [vmem:[%s649 + $0x4] sm:$0x1]
      %v660 = vsel %vm658, %v496, %v659
      %661 = vst [vmem:[%s649 + $0x4] sm:$0x1] %v660
      %v662 = vld [vmem:[%s649 + $0x8] sm:$0xf]
      %v663 = vsel %vm652, %v503, %v662
      %664 = vst [vmem:[%s649 + $0x8] sm:$0xf] %v663
      %v665 = vld [vmem:[%s649 + $0xc] sm:$0x1]
      %v666 = vsel %vm658, %v504, %v665
      %667 = vst [vmem:[%s649 + $0xc] sm:$0x1] %v666
      %v668 = vld [vmem:[%s649 + $0x10] sm:$0xf]
      %v669 = vsel %vm652, %v511, %v668
      %670 = vst [vmem:[%s649 + $0x10] sm:$0xf] %v669
      %v671 = vld [vmem:[%s649 + $0x14] sm:$0x1]
      %v672 = vsel %vm658, %v512, %v671
      %673 = vst [vmem:[%s649 + $0x14] sm:$0x1] %v672
      %v674 = vld [vmem:[%s649 + $0x18] sm:$0xf]
      %v675 = vsel %vm652, %v519, %v674
      %676 = vst [vmem:[%s649 + $0x18] sm:$0xf] %v675
      %v677 = vld [vmem:[%s649 + $0x1c] sm:$0x1]
      %v678 = vsel %vm658, %v520, %v677
      %679 = vst [vmem:[%s649 + $0x1c] sm:$0x1] %v678
      %v680 = vld [vmem:[%s649 + $0x20] sm:$0xf]
      %v681 = vsel %vm652, %v527, %v680
      %682 = vst [vmem:[%s649 + $0x20] sm:$0xf] %v681
      %v683 = vld [vmem:[%s649 + $0x24] sm:$0x1]
      %v684 = vsel %vm658, %v528, %v683
      %685 = vst [vmem:[%s649 + $0x24] sm:$0x1] %v684
      %v686 = vld [vmem:[%s649 + $0x28] sm:$0xf]
      %v687 = vsel %vm652, %v535, %v686
      %688 = vst [vmem:[%s649 + $0x28] sm:$0xf] %v687
      %v689 = vld [vmem:[%s649 + $0x2c] sm:$0x1]
      %v690 = vsel %vm658, %v536, %v689
      %691 = vst [vmem:[%s649 + $0x2c] sm:$0x1] %v690
      %v692 = vld [vmem:[%s649 + $0x30] sm:$0xf]
      %v693 = vsel %vm652, %v543, %v692
      %694 = vst [vmem:[%s649 + $0x30] sm:$0xf] %v693
      %v695 = vld [vmem:[%s649 + $0x34] sm:$0x1]
      %v696 = vsel %vm658, %v544, %v695
      %697 = vst [vmem:[%s649 + $0x34] sm:$0x1] %v696
      %v698 = vld [vmem:[%s649 + $0x38] sm:$0xf]
      %v699 = vsel %vm652, %v551, %v698
      %700 = vst [vmem:[%s649 + $0x38] sm:$0xf] %v699
      %v701 = vld [vmem:[%s649 + $0x3c] sm:$0x1]
      %v702 = vsel %vm658, %v552, %v701
      %703 = vst [vmem:[%s649 + $0x3c] sm:$0x1] %v702
      %v704 = vld [vmem:[%s649 + $0x50] sm:$0xf]
      %v705 = vsel %vm652, %v559, %v704
      %706 = vst [vmem:[%s649 + $0x50] sm:$0xf] %v705
      %v707 = vld [vmem:[%s649 + $0x54] sm:$0x1]
      %v708 = vsel %vm658, %v560, %v707
      %709 = vst [vmem:[%s649 + $0x54] sm:$0x1] %v708
      %v710 = vld [vmem:[%s649 + $0x58] sm:$0xf]
      %v711 = vsel %vm652, %v567, %v710
      %712 = vst [vmem:[%s649 + $0x58] sm:$0xf] %v711
      %v713 = vld [vmem:[%s649 + $0x5c] sm:$0x1]
      %v714 = vsel %vm658, %v568, %v713
      %715 = vst [vmem:[%s649 + $0x5c] sm:$0x1] %v714
      %v716 = vld [vmem:[%s649 + $0x60] sm:$0xf]
      %v717 = vsel %vm652, %v575, %v716
      %718 = vst [vmem:[%s649 + $0x60] sm:$0xf] %v717
      %v719 = vld [vmem:[%s649 + $0x64] sm:$0x1]
      %v720 = vsel %vm658, %v576, %v719
      %721 = vst [vmem:[%s649 + $0x64] sm:$0x1] %v720
      %v722 = vld [vmem:[%s649 + $0x68] sm:$0xf]
      %v723 = vsel %vm652, %v583, %v722
      %724 = vst [vmem:[%s649 + $0x68] sm:$0xf] %v723
      %v725 = vld [vmem:[%s649 + $0x6c] sm:$0x1]
      %v726 = vsel %vm658, %v584, %v725
      %727 = vst [vmem:[%s649 + $0x6c] sm:$0x1] %v726
      %v728 = vld [vmem:[%s649 + $0x70] sm:$0xf]
      %v729 = vsel %vm652, %v591, %v728
      %730 = vst [vmem:[%s649 + $0x70] sm:$0xf] %v729
      %v731 = vld [vmem:[%s649 + $0x74] sm:$0x1]
      %v732 = vsel %vm658, %v592, %v731
      %733 = vst [vmem:[%s649 + $0x74] sm:$0x1] %v732
      %v734 = vld [vmem:[%s649 + $0x78] sm:$0xf]
      %v735 = vsel %vm652, %v599, %v734
      %736 = vst [vmem:[%s649 + $0x78] sm:$0xf] %v735
      %v737 = vld [vmem:[%s649 + $0x7c] sm:$0x1]
      %v738 = vsel %vm658, %v600, %v737
      %739 = vst [vmem:[%s649 + $0x7c] sm:$0x1] %v738
      %v740 = vld [vmem:[%s649 + $0x80] sm:$0xf]
      %v741 = vsel %vm652, %v607, %v740
      %742 = vst [vmem:[%s649 + $0x80] sm:$0xf] %v741
      %v743 = vld [vmem:[%s649 + $0x84] sm:$0x1]
      %v744 = vsel %vm658, %v608, %v743
      %745 = vst [vmem:[%s649 + $0x84] sm:$0x1] %v744
      %v746 = vld [vmem:[%s649 + $0x88] sm:$0xf]
      %v747 = vsel %vm652, %v615, %v746
      %748 = vst [vmem:[%s649 + $0x88] sm:$0xf] %v747
      %v749 = vld [vmem:[%s649 + $0x8c] sm:$0x1]
      %v750 = vsel %vm658, %v616, %v749
      %751 = vst [vmem:[%s649 + $0x8c] sm:$0x1] %v750
      %v752 = vld [vmem:[#allocation2] sm:$0xf]
      %v753 = vld [vmem:[#allocation2 + $0x8] sm:$0xf]
      %v754 = vld [vmem:[#allocation2 + $0x10] sm:$0xf]
      %v755 = vld [vmem:[#allocation2 + $0x18] sm:$0xf]
      %v756 = vld [vmem:[#allocation2 + $0x20] sm:$0xf]
      %v757 = vld [vmem:[#allocation2 + $0x28] sm:$0xf]
      %v758 = vld [vmem:[#allocation2 + $0x30] sm:$0xf]
      %v759 = vld [vmem:[#allocation2 + $0x38] sm:$0xf]
      %v760 = vld [vmem:[#allocation2 + $0x50] sm:$0xf]
      %v761 = vld [vmem:[#allocation2 + $0x58] sm:$0xf]
      %v762 = vld [vmem:[#allocation2 + $0x60] sm:$0xf]
      %v763 = vld [vmem:[#allocation2 + $0x68] sm:$0xf]
      %v764 = vld [vmem:[#allocation2 + $0x70] sm:$0xf]
      %v765 = vld [vmem:[#allocation2 + $0x78] sm:$0xf]
      %v766 = vld [vmem:[#allocation2 + $0x80] sm:$0xf]
      %v767 = vld [vmem:[#allocation2 + $0x88] sm:$0xf]
      %v784 = vunpack.c.l.b16 %v752
      %v785 = vunpack.c.l.b16 %v753
      %v786 = vunpack.c.l.b16 %v754
      %v787 = vunpack.c.l.b16 %v755
      %v788 = vunpack.c.l.b16 %v756
      %v789 = vunpack.c.l.b16 %v757
      %v790 = vunpack.c.l.b16 %v758
      %v791 = vunpack.c.l.b16 %v759
      %v792 = vunpack.c.l.b16 %v760
      %v793 = vunpack.c.l.b16 %v761
      %v794 = vunpack.c.l.b16 %v762
      %v795 = vunpack.c.l.b16 %v763
      %v796 = vunpack.c.l.b16 %v764
      %v797 = vunpack.c.l.b16 %v765
      %v798 = vunpack.c.l.b16 %v766
      %v799 = vunpack.c.l.b16 %v767
      %v800 = vpack.c.b16 %v785, %v784
      %v801 = vpack.c.b16 %v787, %v786
      %v802 = vpack.c.b16 %v789, %v788
      %v803 = vpack.c.b16 %v791, %v790
      %v804 = vpack.c.b16 %v793, %v792
      %v805 = vpack.c.b16 %v795, %v794
      %v806 = vpack.c.b16 %v797, %v796
      %v807 = vpack.c.b16 %v799, %v798
      %816 = vst [vmem:[#allocation3] sm:$0xff] %v800
      %817 = vst [vmem:[#allocation3 + $0x48] sm:$0xff] %v801
      %818 = vst [vmem:[#allocation3 + $0x90] sm:$0xff] %v802
      %819 = vst [vmem:[#allocation3 + $0xd8] sm:$0xff] %v803
      %820 = vst [vmem:[#allocation3 + $0x120] sm:$0xff] %v804
      %821 = vst [vmem:[#allocation3 + $0x168] sm:$0xff] %v805
      %822 = vst [vmem:[#allocation3 + $0x1b0] sm:$0xff] %v806
      %823 = vst [vmem:[#allocation3 + $0x1f8] sm:$0xff] %v807
      %v824 = vld [vmem:[#allocation2] sm:$0xf]
      %v825 = vld [vmem:[#allocation2 + $0x4] sm:$0x1]
      %v826 = vld [vmem:[#allocation2 + $0x8] sm:$0xf]
      %v827 = vld [vmem:[#allocation2 + $0xc] sm:$0x1]
      %v828 = vld [vmem:[#allocation2 + $0x10] sm:$0xf]
      %v829 = vld [vmem:[#allocation2 + $0x14] sm:$0x1]
      %v830 = vld [vmem:[#allocation2 + $0x18] sm:$0xf]
      %v831 = vld [vmem:[#allocation2 + $0x1c] sm:$0x1]
      %v832 = vld [vmem:[#allocation2 + $0x20] sm:$0xf]
      %v833 = vld [vmem:[#allocation2 + $0x24] sm:$0x1]
      %v834 = vld [vmem:[#allocation2 + $0x28] sm:$0xf]
      %v835 = vld [vmem:[#allocation2 + $0x2c] sm:$0x1]
      %v836 = vld [vmem:[#allocation2 + $0x30] sm:$0xf]
      %v837 = vld [vmem:[#allocation2 + $0x34] sm:$0x1]
      %v838 = vld [vmem:[#allocation2 + $0x38] sm:$0xf]
      %v839 = vld [vmem:[#allocation2 + $0x3c] sm:$0x1]
      %v840 = vld [vmem:[#allocation2 + $0x50] sm:$0xf]
      %v841 = vld [vmem:[#allocation2 + $0x54] sm:$0x1]
      %v842 = vld [vmem:[#allocation2 + $0x58] sm:$0xf]
      %v843 = vld [vmem:[#allocation2 + $0x5c] sm:$0x1]
      %v844 = vld [vmem:[#allocation2 + $0x60] sm:$0xf]
      %v845 = vld [vmem:[#allocation2 + $0x64] sm:$0x1]
      %v846 = vld [vmem:[#allocation2 + $0x68] sm:$0xf]
      %v847 = vld [vmem:[#allocation2 + $0x6c] sm:$0x1]
      %v848 = vld [vmem:[#allocation2 + $0x70] sm:$0xf]
      %v849 = vld [vmem:[#allocation2 + $0x74] sm:$0x1]
      %v850 = vld [vmem:[#allocation2 + $0x78] sm:$0xf]
      %v851 = vld [vmem:[#allocation2 + $0x7c] sm:$0x1]
      %v852 = vld [vmem:[#allocation2 + $0x80] sm:$0xf]
      %v853 = vld [vmem:[#allocation2 + $0x84] sm:$0x1]
      %v854 = vld [vmem:[#allocation2 + $0x88] sm:$0xf]
      %v855 = vld [vmem:[#allocation2 + $0x8c] sm:$0x1]
      %vm856 = vsmask.f32 3328
      %vm857 = vsmask.f32 7440
      %vm858 = vmor %vm856, %vm857
      %v860 = vshrl.u32 %v824, 16
      %v862 = vrot.slane %v860, 4
      %v863 = vshll.u32 %v824, 16
      %v865 = vrot.slane %v863, 5
      %v866 = vor.u32 %v862, %v865
      %v867 = vrot.slane %v866, 4
      %v869 = vshll.u32 %v825, 16
      %v871 = vrot.slane %v869, 5
      %v872 = vsel %vm858, %v867, %v871
      %v874 = vshrl.u32 %v826, 16
      %v876 = vrot.slane %v874, 4
      %v877 = vshll.u32 %v826, 16
      %v879 = vrot.slane %v877, 5
      %v880 = vor.u32 %v876, %v879
      %v881 = vrot.slane %v880, 4
      %v883 = vshll.u32 %v827, 16
      %v885 = vrot.slane %v883, 5
      %v886 = vsel %vm858, %v881, %v885
      %v888 = vshrl.u32 %v828, 16
      %v890 = vrot.slane %v888, 4
      %v891 = vshll.u32 %v828, 16
      %v893 = vrot.slane %v891, 5
      %v894 = vor.u32 %v890, %v893
      %v895 = vrot.slane %v894, 4
      %v897 = vshll.u32 %v829, 16
      %v899 = vrot.slane %v897, 5
      %v900 = vsel %vm858, %v895, %v899
      %v902 = vshrl.u32 %v830, 16
      %v904 = vrot.slane %v902, 4
      %v905 = vshll.u32 %v830, 16
      %v907 = vrot.slane %v905, 5
      %v908 = vor.u32 %v904, %v907
      %v909 = vrot.slane %v908, 4
      %v911 = vshll.u32 %v831, 16
      %v913 = vrot.slane %v911, 5
      %v914 = vsel %vm858, %v909, %v913
      %v916 = vshrl.u32 %v832, 16
      %v918 = vrot.slane %v916, 4
      %v919 = vshll.u32 %v832, 16
      %v921 = vrot.slane %v919, 5
      %v922 = vor.u32 %v918, %v921
      %v923 = vrot.slane %v922, 4
      %v925 = vshll.u32 %v833, 16
      %v927 = vrot.slane %v925, 5
      %v928 = vsel %vm858, %v923, %v927
      %v930 = vshrl.u32 %v834, 16
      %v932 = vrot.slane %v930, 4
      %v933 = vshll.u32 %v834, 16
      %v935 = vrot.slane %v933, 5
      %v936 = vor.u32 %v932, %v935
      %v937 = vrot.slane %v936, 4
      %v939 = vshll.u32 %v835, 16
      %v941 = vrot.slane %v939, 5
      %v942 = vsel %vm858, %v937, %v941
      %v944 = vshrl.u32 %v836, 16
      %v946 = vrot.slane %v944, 4
      %v947 = vshll.u32 %v836, 16
      %v949 = vrot.slane %v947, 5
      %v950 = vor.u32 %v946, %v949
      %v951 = vrot.slane %v950, 4
      %v953 = vshll.u32 %v837, 16
      %v955 = vrot.slane %v953, 5
      %v956 = vsel %vm858, %v951, %v955
      %v958 = vshrl.u32 %v838, 16
      %v960 = vrot.slane %v958, 4
      %v961 = vshll.u32 %v838, 16
      %v963 = vrot.slane %v961, 5
      %v964 = vor.u32 %v960, %v963
      %v965 = vrot.slane %v964, 4
      %v967 = vshll.u32 %v839, 16
      %v969 = vrot.slane %v967, 5
      %v970 = vsel %vm858, %v965, %v969
      %v972 = vshrl.u32 %v840, 16
      %v974 = vrot.slane %v972, 4
      %v975 = vshll.u32 %v840, 16
      %v977 = vrot.slane %v975, 5
      %v978 = vor.u32 %v974, %v977
      %v979 = vrot.slane %v978, 4
      %v981 = vshll.u32 %v841, 16
      %v983 = vrot.slane %v981, 5
      %v984 = vsel %vm858, %v979, %v983
      %v986 = vshrl.u32 %v842, 16
      %v988 = vrot.slane %v986, 4
      %v989 = vshll.u32 %v842, 16
      %v991 = vrot.slane %v989, 5
      %v992 = vor.u32 %v988, %v991
      %v993 = vrot.slane %v992, 4
      %v995 = vshll.u32 %v843, 16
      %v997 = vrot.slane %v995, 5
      %v998 = vsel %vm858, %v993, %v997
      %v1000 = vshrl.u32 %v844, 16
      %v1002 = vrot.slane %v1000, 4
      %v1003 = vshll.u32 %v844, 16
      %v1005 = vrot.slane %v1003, 5
      %v1006 = vor.u32 %v1002, %v1005
      %v1007 = vrot.slane %v1006, 4
      %v1009 = vshll.u32 %v845, 16
      %v1011 = vrot.slane %v1009, 5
      %v1012 = vsel %vm858, %v1007, %v1011
      %v1014 = vshrl.u32 %v846, 16
      %v1016 = vrot.slane %v1014, 4
      %v1017 = vshll.u32 %v846, 16
      %v1019 = vrot.slane %v1017, 5
      %v1020 = vor.u32 %v1016, %v1019
      %v1021 = vrot.slane %v1020, 4
      %v1023 = vshll.u32 %v847, 16
      %v1025 = vrot.slane %v1023, 5
      %v1026 = vsel %vm858, %v1021, %v1025
      %v1028 = vshrl.u32 %v848, 16
      %v1030 = vrot.slane %v1028, 4
      %v1031 = vshll.u32 %v848, 16
      %v1033 = vrot.slane %v1031, 5
      %v1034 = vor.u32 %v1030, %v1033
      %v1035 = vrot.slane %v1034, 4
      %v1037 = vshll.u32 %v849, 16
      %v1039 = vrot.slane %v1037, 5
      %v1040 = vsel %vm858, %v1035, %v1039
      %v1042 = vshrl.u32 %v850, 16
      %v1044 = vrot.slane %v1042, 4
      %v1045 = vshll.u32 %v850, 16
      %v1047 = vrot.slane %v1045, 5
      %v1048 = vor.u32 %v1044, %v1047
      %v1049 = vrot.slane %v1048, 4
      %v1051 = vshll.u32 %v851, 16
      %v1053 = vrot.slane %v1051, 5
      %v1054 = vsel %vm858, %v1049, %v1053
      %v1056 = vshrl.u32 %v852, 16
      %v1058 = vrot.slane %v1056, 4
      %v1059 = vshll.u32 %v852, 16
      %v1061 = vrot.slane %v1059, 5
      %v1062 = vor.u32 %v1058, %v1061
      %v1063 = vrot.slane %v1062, 4
      %v1065 = vshll.u32 %v853, 16
      %v1067 = vrot.slane %v1065, 5
      %v1068 = vsel %vm858, %v1063, %v1067
      %v1070 = vshrl.u32 %v854, 16
      %v1072 = vrot.slane %v1070, 4
      %v1073 = vshll.u32 %v854, 16
      %v1075 = vrot.slane %v1073, 5
      %v1076 = vor.u32 %v1072, %v1075
      %v1077 = vrot.slane %v1076, 4
      %v1079 = vshll.u32 %v855, 16
      %v1081 = vrot.slane %v1079, 5
      %v1082 = vsel %vm858, %v1077, %v1081
      %v1083 = vunpack.c.l.b16 %v872
      %v1084 = vunpack.c.l.b16 %v886
      %v1085 = vunpack.c.l.b16 %v900
      %v1086 = vunpack.c.l.b16 %v914
      %v1087 = vunpack.c.l.b16 %v928
      %v1088 = vunpack.c.l.b16 %v942
      %v1089 = vunpack.c.l.b16 %v956
      %v1090 = vunpack.c.l.b16 %v970
      %v1091 = vunpack.c.l.b16 %v984
      %v1092 = vunpack.c.l.b16 %v998
      %v1093 = vunpack.c.l.b16 %v1012
      %v1094 = vunpack.c.l.b16 %v1026
      %v1095 = vunpack.c.l.b16 %v1040
      %v1096 = vunpack.c.l.b16 %v1054
      %v1097 = vunpack.c.l.b16 %v1068
      %v1098 = vunpack.c.l.b16 %v1082
      %v1099 = vpack.c.b16 %v1084, %v1083
      %v1100 = vpack.c.b16 %v1086, %v1085
      %v1101 = vpack.c.b16 %v1088, %v1087
      %v1102 = vpack.c.b16 %v1090, %v1089
      %v1103 = vpack.c.b16 %v1092, %v1091
      %v1104 = vpack.c.b16 %v1094, %v1093
      %v1105 = vpack.c.b16 %v1096, %v1095
      %v1106 = vpack.c.b16 %v1098, %v1097
      %1115 = vst [vmem:[#allocation3 + $0x8] sm:$0xff] %v1099
      %1116 = vst [vmem:[#allocation3 + $0x50] sm:$0xff] %v1100
      %1117 = vst [vmem:[#allocation3 + $0x98] sm:$0xff] %v1101
      %1118 = vst [vmem:[#allocation3 + $0xe0] sm:$0xff] %v1102
      %1119 = vst [vmem:[#allocation3 + $0x128] sm:$0xff] %v1103
      %1120 = vst [vmem:[#allocation3 + $0x170] sm:$0xff] %v1104
      %1121 = vst [vmem:[#allocation3 + $0x1b8] sm:$0xff] %v1105
      %1122 = vst [vmem:[#allocation3 + $0x200] sm:$0xff] %v1106
      %v1123 = vld [vmem:[#allocation2] sm:$0xe]
      %v1124 = vld [vmem:[#allocation2 + $0x4] sm:$0x1]
      %v1125 = vld [vmem:[#allocation2 + $0x8] sm:$0xe]
      %v1126 = vld [vmem:[#allocation2 + $0xc] sm:$0x1]
      %v1127 = vld [vmem:[#allocation2 + $0x10] sm:$0xe]
      %v1128 = vld [vmem:[#allocation2 + $0x14] sm:$0x1]
      %v1129 = vld [vmem:[#allocation2 + $0x18] sm:$0xe]
      %v1130 = vld [vmem:[#allocation2 + $0x1c] sm:$0x1]
      %v1131 = vld [vmem:[#allocation2 + $0x20] sm:$0xe]
      %v1132 = vld [vmem:[#allocation2 + $0x24] sm:$0x1]
      %v1133 = vld [vmem:[#allocation2 + $0x28] sm:$0xe]
      %v1134 = vld [vmem:[#allocation2 + $0x2c] sm:$0x1]
      %v1135 = vld [vmem:[#allocation2 + $0x30] sm:$0xe]
      %v1136 = vld [vmem:[#allocation2 + $0x34] sm:$0x1]
      %v1137 = vld [vmem:[#allocation2 + $0x38] sm:$0xe]
      %v1138 = vld [vmem:[#allocation2 + $0x3c] sm:$0x1]
      %v1139 = vld [vmem:[#allocation2 + $0x50] sm:$0xe]
      %v1140 = vld [vmem:[#allocation2 + $0x54] sm:$0x1]
      %v1141 = vld [vmem:[#allocation2 + $0x58] sm:$0xe]
      %v1142 = vld [vmem:[#allocation2 + $0x5c] sm:$0x1]
      %v1143 = vld [vmem:[#allocation2 + $0x60] sm:$0xe]
      %v1144 = vld [vmem:[#allocation2 + $0x64] sm:$0x1]
      %v1145 = vld [vmem:[#allocation2 + $0x68] sm:$0xe]
      %v1146 = vld [vmem:[#allocation2 + $0x6c] sm:$0x1]
      %v1147 = vld [vmem:[#allocation2 + $0x70] sm:$0xe]
      %v1148 = vld [vmem:[#allocation2 + $0x74] sm:$0x1]
      %v1149 = vld [vmem:[#allocation2 + $0x78] sm:$0xe]
      %v1150 = vld [vmem:[#allocation2 + $0x7c] sm:$0x1]
      %v1151 = vld [vmem:[#allocation2 + $0x80] sm:$0xe]
      %v1152 = vld [vmem:[#allocation2 + $0x84] sm:$0x1]
      %v1153 = vld [vmem:[#allocation2 + $0x88] sm:$0xe]
      %v1154 = vld [vmem:[#allocation2 + $0x8c] sm:$0x1]
      %vm1187 = vcmask 1042432
      %vm1188 = vcmask 1046532
      %vm1189 = vmor %vm1187, %vm1188
      %v1190 = vrot.slane %v1123, 5
      %v1191 = vrot.slane %v1190, 4
      %v1192 = vrot.slane %v1124, 5
      %v1193 = vsel %vm1189, %v1191, %v1192
      %v1194 = vrot.slane %v1125, 5
      %v1195 = vrot.slane %v1194, 4
      %v1196 = vrot.slane %v1126, 5
      %v1197 = vsel %vm1189, %v1195, %v1196
      %v1198 = vrot.slane %v1127, 5
      %v1199 = vrot.slane %v1198, 4
      %v1200 = vrot.slane %v1128, 5
      %v1201 = vsel %vm1189, %v1199, %v1200
      %v1202 = vrot.slane %v1129, 5
      %v1203 = vrot.slane %v1202, 4
      %v1204 = vrot.slane %v1130, 5
      %v1205 = vsel %vm1189, %v1203, %v1204
      %v1206 = vrot.slane %v1131, 5
      %v1207 = vrot.slane %v1206, 4
      %v1208 = vrot.slane %v1132, 5
      %v1209 = vsel %vm1189, %v1207, %v1208
      %v1210 = vrot.slane %v1133, 5
      %v1211 = vrot.slane %v1210, 4
      %v1212 = vrot.slane %v1134, 5
      %v1213 = vsel %vm1189, %v1211, %v1212
      %v1214 = vrot.slane %v1135, 5
      %v1215 = vrot.slane %v1214, 4
      %v1216 = vrot.slane %v1136, 5
      %v1217 = vsel %vm1189, %v1215, %v1216
      %v1218 = vrot.slane %v1137, 5
      %v1219 = vrot.slane %v1218, 4
      %v1220 = vrot.slane %v1138, 5
      %v1221 = vsel %vm1189, %v1219, %v1220
      %v1222 = vrot.slane %v1139, 5
      %v1223 = vrot.slane %v1222, 4
      %v1224 = vrot.slane %v1140, 5
      %v1225 = vsel %vm1189, %v1223, %v1224
      %v1226 = vrot.slane %v1141, 5
      %v1227 = vrot.slane %v1226, 4
      %v1228 = vrot.slane %v1142, 5
      %v1229 = vsel %vm1189, %v1227, %v1228
      %v1230 = vrot.slane %v1143, 5
      %v1231 = vrot.slane %v1230, 4
      %v1232 = vrot.slane %v1144, 5
      %v1233 = vsel %vm1189, %v1231, %v1232
      %v1234 = vrot.slane %v1145, 5
      %v1235 = vrot.slane %v1234, 4
      %v1236 = vrot.slane %v1146, 5
      %v1237 = vsel %vm1189, %v1235, %v1236
      %v1238 = vrot.slane %v1147, 5
      %v1239 = vrot.slane %v1238, 4
      %v1240 = vrot.slane %v1148, 5
      %v1241 = vsel %vm1189, %v1239, %v1240
      %v1242 = vrot.slane %v1149, 5
      %v1243 = vrot.slane %v1242, 4
      %v1244 = vrot.slane %v1150, 5
      %v1245 = vsel %vm1189, %v1243, %v1244
      %v1246 = vrot.slane %v1151, 5
      %v1247 = vrot.slane %v1246, 4
      %v1248 = vrot.slane %v1152, 5
      %v1249 = vsel %vm1189, %v1247, %v1248
      %v1250 = vrot.slane %v1153, 5
      %v1251 = vrot.slane %v1250, 4
      %v1252 = vrot.slane %v1154, 5
      %v1253 = vsel %vm1189, %v1251, %v1252
      %v1254 = vunpack.c.l.b16 %v1193
      %v1255 = vunpack.c.l.b16 %v1197
      %v1256 = vunpack.c.l.b16 %v1201
      %v1257 = vunpack.c.l.b16 %v1205
      %v1258 = vunpack.c.l.b16 %v1209
      %v1259 = vunpack.c.l.b16 %v1213
      %v1260 = vunpack.c.l.b16 %v1217
      %v1261 = vunpack.c.l.b16 %v1221
      %v1262 = vunpack.c.l.b16 %v1225
      %v1263 = vunpack.c.l.b16 %v1229
      %v1264 = vunpack.c.l.b16 %v1233
      %v1265 = vunpack.c.l.b16 %v1237
      %v1266 = vunpack.c.l.b16 %v1241
      %v1267 = vunpack.c.l.b16 %v1245
      %v1268 = vunpack.c.l.b16 %v1249
      %v1269 = vunpack.c.l.b16 %v1253
      %v1270 = vpack.c.b16 %v1255, %v1254
      %v1271 = vpack.c.b16 %v1257, %v1256
      %v1272 = vpack.c.b16 %v1259, %v1258
      %v1273 = vpack.c.b16 %v1261, %v1260
      %v1274 = vpack.c.b16 %v1263, %v1262
      %v1275 = vpack.c.b16 %v1265, %v1264
      %v1276 = vpack.c.b16 %v1267, %v1266
      %v1277 = vpack.c.b16 %v1269, %v1268
      %1286 = vst [vmem:[#allocation3 + $0x10] sm:$0xff] %v1270
      %1287 = vst [vmem:[#allocation3 + $0x58] sm:$0xff] %v1271
      %1288 = vst [vmem:[#allocation3 + $0xa0] sm:$0xff] %v1272
      %1289 = vst [vmem:[#allocation3 + $0xe8] sm:$0xff] %v1273
      %1290 = vst [vmem:[#allocation3 + $0x130] sm:$0xff] %v1274
      %1291 = vst [vmem:[#allocation3 + $0x178] sm:$0xff] %v1275
      %1292 = vst [vmem:[#allocation3 + $0x1c0] sm:$0xff] %v1276
      %1293 = vst [vmem:[#allocation3 + $0x208] sm:$0xff] %v1277
      %v1294 = vld [vmem:[%s649] sm:$0xf]
      %v1295 = vld [vmem:[%s649 + $0x8] sm:$0xf]
      %v1296 = vld [vmem:[%s649 + $0x10] sm:$0xf]
      %v1297 = vld [vmem:[%s649 + $0x18] sm:$0xf]
      %v1298 = vld [vmem:[%s649 + $0x20] sm:$0xf]
      %v1299 = vld [vmem:[%s649 + $0x28] sm:$0xf]
      %v1300 = vld [vmem:[%s649 + $0x30] sm:$0xf]
      %v1301 = vld [vmem:[%s649 + $0x38] sm:$0xf]
      %v1302 = vld [vmem:[%s649 + $0x50] sm:$0xf]
      %v1303 = vld [vmem:[%s649 + $0x58] sm:$0xf]
      %v1304 = vld [vmem:[%s649 + $0x60] sm:$0xf]
      %v1305 = vld [vmem:[%s649 + $0x68] sm:$0xf]
      %v1306 = vld [vmem:[%s649 + $0x70] sm:$0xf]
      %v1307 = vld [vmem:[%s649 + $0x78] sm:$0xf]
      %v1308 = vld [vmem:[%s649 + $0x80] sm:$0xf]
      %v1309 = vld [vmem:[%s649 + $0x88] sm:$0xf]
      %v1326 = vunpack.c.l.b16 %v1294
      %v1327 = vunpack.c.l.b16 %v1295
      %v1328 = vunpack.c.l.b16 %v1296
      %v1329 = vunpack.c.l.b16 %v1297
      %v1330 = vunpack.c.l.b16 %v1298
      %v1331 = vunpack.c.l.b16 %v1299
      %v1332 = vunpack.c.l.b16 %v1300
      %v1333 = vunpack.c.l.b16 %v1301
      %v1334 = vunpack.c.l.b16 %v1302
      %v1335 = vunpack.c.l.b16 %v1303
      %v1336 = vunpack.c.l.b16 %v1304
      %v1337 = vunpack.c.l.b16 %v1305
      %v1338 = vunpack.c.l.b16 %v1306
      %v1339 = vunpack.c.l.b16 %v1307
      %v1340 = vunpack.c.l.b16 %v1308
      %v1341 = vunpack.c.l.b16 %v1309
      %v1342 = vpack.c.b16 %v1327, %v1326
      %v1343 = vpack.c.b16 %v1329, %v1328
      %v1344 = vpack.c.b16 %v1331, %v1330
      %v1345 = vpack.c.b16 %v1333, %v1332
      %v1346 = vpack.c.b16 %v1335, %v1334
      %v1347 = vpack.c.b16 %v1337, %v1336
      %v1348 = vpack.c.b16 %v1339, %v1338
      %v1349 = vpack.c.b16 %v1341, %v1340
      %1358 = vst [vmem:[#allocation3 + $0x18] sm:$0xff] %v1342
      %1359 = vst [vmem:[#allocation3 + $0x60] sm:$0xff] %v1343
      %1360 = vst [vmem:[#allocation3 + $0xa8] sm:$0xff] %v1344
      %1361 = vst [vmem:[#allocation3 + $0xf0] sm:$0xff] %v1345
      %1362 = vst [vmem:[#allocation3 + $0x138] sm:$0xff] %v1346
      %1363 = vst [vmem:[#allocation3 + $0x180] sm:$0xff] %v1347
      %1364 = vst [vmem:[#allocation3 + $0x1c8] sm:$0xff] %v1348
      %1365 = vst [vmem:[#allocation3 + $0x210] sm:$0xff] %v1349
      %v1366 = vld [vmem:[%s649] sm:$0xf]
      %v1367 = vld [vmem:[%s649 + $0x4] sm:$0x1]
      %v1368 = vld [vmem:[%s649 + $0x8] sm:$0xf]
      %v1369 = vld [vmem:[%s649 + $0xc] sm:$0x1]
      %v1370 = vld [vmem:[%s649 + $0x10] sm:$0xf]
      %v1371 = vld [vmem:[%s649 + $0x14] sm:$0x1]
      %v1372 = vld [vmem:[%s649 + $0x18] sm:$0xf]
      %v1373 = vld [vmem:[%s649 + $0x1c] sm:$0x1]
      %v1374 = vld [vmem:[%s649 + $0x20] sm:$0xf]
      %v1375 = vld [vmem:[%s649 + $0x24] sm:$0x1]
      %v1376 = vld [vmem:[%s649 + $0x28] sm:$0xf]
      %v1377 = vld [vmem:[%s649 + $0x2c] sm:$0x1]
      %v1378 = vld [vmem:[%s649 + $0x30] sm:$0xf]
      %v1379 = vld [vmem:[%s649 + $0x34] sm:$0x1]
      %v1380 = vld [vmem:[%s649 + $0x38] sm:$0xf]
      %v1381 = vld [vmem:[%s649 + $0x3c] sm:$0x1]
      %v1382 = vld [vmem:[%s649 + $0x50] sm:$0xf]
      %v1383 = vld [vmem:[%s649 + $0x54] sm:$0x1]
      %v1384 = vld [vmem:[%s649 + $0x58] sm:$0xf]
      %v1385 = vld [vmem:[%s649 + $0x5c] sm:$0x1]
      %v1386 = vld [vmem:[%s649 + $0x60] sm:$0xf]
      %v1387 = vld [vmem:[%s649 + $0x64] sm:$0x1]
      %v1388 = vld [vmem:[%s649 + $0x68] sm:$0xf]
      %v1389 = vld [vmem:[%s649 + $0x6c] sm:$0x1]
      %v1390 = vld [vmem:[%s649 + $0x70] sm:$0xf]
      %v1391 = vld [vmem:[%s649 + $0x74] sm:$0x1]
      %v1392 = vld [vmem:[%s649 + $0x78] sm:$0xf]
      %v1393 = vld [vmem:[%s649 + $0x7c] sm:$0x1]
      %v1394 = vld [vmem:[%s649 + $0x80] sm:$0xf]
      %v1395 = vld [vmem:[%s649 + $0x84] sm:$0x1]
      %v1396 = vld [vmem:[%s649 + $0x88] sm:$0xf]
      %v1397 = vld [vmem:[%s649 + $0x8c] sm:$0x1]
      %v1399 = vshrl.u32 %v1366, 16
      %v1401 = vrot.slane %v1399, 4
      %v1402 = vshll.u32 %v1366, 16
      %v1404 = vrot.slane %v1402, 5
      %v1405 = vor.u32 %v1401, %v1404
      %v1406 = vrot.slane %v1405, 4
      %v1408 = vshll.u32 %v1367, 16
      %v1410 = vrot.slane %v1408, 5
      %v1411 = vsel %vm858, %v1406, %v1410
      %v1413 = vshrl.u32 %v1368, 16
      %v1415 = vrot.slane %v1413, 4
      %v1416 = vshll.u32 %v1368, 16
      %v1418 = vrot.slane %v1416, 5
      %v1419 = vor.u32 %v1415, %v1418
      %v1420 = vrot.slane %v1419, 4
      %v1422 = vshll.u32 %v1369, 16
      %v1424 = vrot.slane %v1422, 5
      %v1425 = vsel %vm858, %v1420, %v1424
      %v1427 = vshrl.u32 %v1370, 16
      %v1429 = vrot.slane %v1427, 4
      %v1430 = vshll.u32 %v1370, 16
      %v1432 = vrot.slane %v1430, 5
      %v1433 = vor.u32 %v1429, %v1432
      %v1434 = vrot.slane %v1433, 4
      %v1436 = vshll.u32 %v1371, 16
      %v1438 = vrot.slane %v1436, 5
      %v1439 = vsel %vm858, %v1434, %v1438
      %v1441 = vshrl.u32 %v1372, 16
      %v1443 = vrot.slane %v1441, 4
      %v1444 = vshll.u32 %v1372, 16
      %v1446 = vrot.slane %v1444, 5
      %v1447 = vor.u32 %v1443, %v1446
      %v1448 = vrot.slane %v1447, 4
      %v1450 = vshll.u32 %v1373, 16
      %v1452 = vrot.slane %v1450, 5
      %v1453 = vsel %vm858, %v1448, %v1452
      %v1455 = vshrl.u32 %v1374, 16
      %v1457 = vrot.slane %v1455, 4
      %v1458 = vshll.u32 %v1374, 16
      %v1460 = vrot.slane %v1458, 5
      %v1461 = vor.u32 %v1457, %v1460
      %v1462 = vrot.slane %v1461, 4
      %v1464 = vshll.u32 %v1375, 16
      %v1466 = vrot.slane %v1464, 5
      %v1467 = vsel %vm858, %v1462, %v1466
      %v1469 = vshrl.u32 %v1376, 16
      %v1471 = vrot.slane %v1469, 4
      %v1472 = vshll.u32 %v1376, 16
      %v1474 = vrot.slane %v1472, 5
      %v1475 = vor.u32 %v1471, %v1474
      %v1476 = vrot.slane %v1475, 4
      %v1478 = vshll.u32 %v1377, 16
      %v1480 = vrot.slane %v1478, 5
      %v1481 = vsel %vm858, %v1476, %v1480
      %v1483 = vshrl.u32 %v1378, 16
      %v1485 = vrot.slane %v1483, 4
      %v1486 = vshll.u32 %v1378, 16
      %v1488 = vrot.slane %v1486, 5
      %v1489 = vor.u32 %v1485, %v1488
      %v1490 = vrot.slane %v1489, 4
      %v1492 = vshll.u32 %v1379, 16
      %v1494 = vrot.slane %v1492, 5
      %v1495 = vsel %vm858, %v1490, %v1494
      %v1497 = vshrl.u32 %v1380, 16
      %v1499 = vrot.slane %v1497, 4
      %v1500 = vshll.u32 %v1380, 16
      %v1502 = vrot.slane %v1500, 5
      %v1503 = vor.u32 %v1499, %v1502
      %v1504 = vrot.slane %v1503, 4
      %v1506 = vshll.u32 %v1381, 16
      %v1508 = vrot.slane %v1506, 5
      %v1509 = vsel %vm858, %v1504, %v1508
      %v1511 = vshrl.u32 %v1382, 16
      %v1513 = vrot.slane %v1511, 4
      %v1514 = vshll.u32 %v1382, 16
      %v1516 = vrot.slane %v1514, 5
      %v1517 = vor.u32 %v1513, %v1516
      %v1518 = vrot.slane %v1517, 4
      %v1520 = vshll.u32 %v1383, 16
      %v1522 = vrot.slane %v1520, 5
      %v1523 = vsel %vm858, %v1518, %v1522
      %v1525 = vshrl.u32 %v1384, 16
      %v1527 = vrot.slane %v1525, 4
      %v1528 = vshll.u32 %v1384, 16
      %v1530 = vrot.slane %v1528, 5
      %v1531 = vor.u32 %v1527, %v1530
      %v1532 = vrot.slane %v1531, 4
      %v1534 = vshll.u32 %v1385, 16
      %v1536 = vrot.slane %v1534, 5
      %v1537 = vsel %vm858, %v1532, %v1536
      %v1539 = vshrl.u32 %v1386, 16
      %v1541 = vrot.slane %v1539, 4
      %v1542 = vshll.u32 %v1386, 16
      %v1544 = vrot.slane %v1542, 5
      %v1545 = vor.u32 %v1541, %v1544
      %v1546 = vrot.slane %v1545, 4
      %v1548 = vshll.u32 %v1387, 16
      %v1550 = vrot.slane %v1548, 5
      %v1551 = vsel %vm858, %v1546, %v1550
      %v1553 = vshrl.u32 %v1388, 16
      %v1555 = vrot.slane %v1553, 4
      %v1556 = vshll.u32 %v1388, 16
      %v1558 = vrot.slane %v1556, 5
      %v1559 = vor.u32 %v1555, %v1558
      %v1560 = vrot.slane %v1559, 4
      %v1562 = vshll.u32 %v1389, 16
      %v1564 = vrot.slane %v1562, 5
      %v1565 = vsel %vm858, %v1560, %v1564
      %v1567 = vshrl.u32 %v1390, 16
      %v1569 = vrot.slane %v1567, 4
      %v1570 = vshll.u32 %v1390, 16
      %v1572 = vrot.slane %v1570, 5
      %v1573 = vor.u32 %v1569, %v1572
      %v1574 = vrot.slane %v1573, 4
      %v1576 = vshll.u32 %v1391, 16
      %v1578 = vrot.slane %v1576, 5
      %v1579 = vsel %vm858, %v1574, %v1578
      %v1581 = vshrl.u32 %v1392, 16
      %v1583 = vrot.slane %v1581, 4
      %v1584 = vshll.u32 %v1392, 16
      %v1586 = vrot.slane %v1584, 5
      %v1587 = vor.u32 %v1583, %v1586
      %v1588 = vrot.slane %v1587, 4
      %v1590 = vshll.u32 %v1393, 16
      %v1592 = vrot.slane %v1590, 5
      %v1593 = vsel %vm858, %v1588, %v1592
      %v1595 = vshrl.u32 %v1394, 16
      %v1597 = vrot.slane %v1595, 4
      %v1598 = vshll.u32 %v1394, 16
      %v1600 = vrot.slane %v1598, 5
      %v1601 = vor.u32 %v1597, %v1600
      %v1602 = vrot.slane %v1601, 4
      %v1604 = vshll.u32 %v1395, 16
      %v1606 = vrot.slane %v1604, 5
      %v1607 = vsel %vm858, %v1602, %v1606
      %v1609 = vshrl.u32 %v1396, 16
      %v1611 = vrot.slane %v1609, 4
      %v1612 = vshll.u32 %v1396, 16
      %v1614 = vrot.slane %v1612, 5
      %v1615 = vor.u32 %v1611, %v1614
      %v1616 = vrot.slane %v1615, 4
      %v1618 = vshll.u32 %v1397, 16
      %v1620 = vrot.slane %v1618, 5
      %v1621 = vsel %vm858, %v1616, %v1620
      %v1622 = vunpack.c.l.b16 %v1411
      %v1623 = vunpack.c.l.b16 %v1425
      %v1624 = vunpack.c.l.b16 %v1439
      %v1625 = vunpack.c.l.b16 %v1453
      %v1626 = vunpack.c.l.b16 %v1467
      %v1627 = vunpack.c.l.b16 %v1481
      %v1628 = vunpack.c.l.b16 %v1495
      %v1629 = vunpack.c.l.b16 %v1509
      %v1630 = vunpack.c.l.b16 %v1523
      %v1631 = vunpack.c.l.b16 %v1537
      %v1632 = vunpack.c.l.b16 %v1551
      %v1633 = vunpack.c.l.b16 %v1565
      %v1634 = vunpack.c.l.b16 %v1579
      %v1635 = vunpack.c.l.b16 %v1593
      %v1636 = vunpack.c.l.b16 %v1607
      %v1637 = vunpack.c.l.b16 %v1621
      %v1638 = vpack.c.b16 %v1623, %v1622
      %v1639 = vpack.c.b16 %v1625, %v1624
      %v1640 = vpack.c.b16 %v1627, %v1626
      %v1641 = vpack.c.b16 %v1629, %v1628
      %v1642 = vpack.c.b16 %v1631, %v1630
      %v1643 = vpack.c.b16 %v1633, %v1632
      %v1644 = vpack.c.b16 %v1635, %v1634
      %v1645 = vpack.c.b16 %v1637, %v1636
      %1654 = vst [vmem:[#allocation3 + $0x20] sm:$0xff] %v1638
      %1655 = vst [vmem:[#allocation3 + $0x68] sm:$0xff] %v1639
      %1656 = vst [vmem:[#allocation3 + $0xb0] sm:$0xff] %v1640
      %1657 = vst [vmem:[#allocation3 + $0xf8] sm:$0xff] %v1641
      %1658 = vst [vmem:[#allocation3 + $0x140] sm:$0xff] %v1642
      %1659 = vst [vmem:[#allocation3 + $0x188] sm:$0xff] %v1643
      %1660 = vst [vmem:[#allocation3 + $0x1d0] sm:$0xff] %v1644
      %1661 = vst [vmem:[#allocation3 + $0x218] sm:$0xff] %v1645
      %v1662 = vld [vmem:[%s649] sm:$0xe]
      %v1663 = vld [vmem:[%s649 + $0x4] sm:$0x1]
      %v1664 = vld [vmem:[%s649 + $0x8] sm:$0xe]
      %v1665 = vld [vmem:[%s649 + $0xc] sm:$0x1]
      %v1666 = vld [vmem:[%s649 + $0x10] sm:$0xe]
      %v1667 = vld [vmem:[%s649 + $0x14] sm:$0x1]
      %v1668 = vld [vmem:[%s649 + $0x18] sm:$0xe]
      %v1669 = vld [vmem:[%s649 + $0x1c] sm:$0x1]
      %v1670 = vld [vmem:[%s649 + $0x20] sm:$0xe]
      %v1671 = vld [vmem:[%s649 + $0x24] sm:$0x1]
      %v1672 = vld [vmem:[%s649 + $0x28] sm:$0xe]
      %v1673 = vld [vmem:[%s649 + $0x2c] sm:$0x1]
      %v1674 = vld [vmem:[%s649 + $0x30] sm:$0xe]
      %v1675 = vld [vmem:[%s649 + $0x34] sm:$0x1]
      %v1676 = vld [vmem:[%s649 + $0x38] sm:$0xe]
      %v1677 = vld [vmem:[%s649 + $0x3c] sm:$0x1]
      %v1678 = vld [vmem:[%s649 + $0x50] sm:$0xe]
      %v1679 = vld [vmem:[%s649 + $0x54] sm:$0x1]
      %v1680 = vld [vmem:[%s649 + $0x58] sm:$0xe]
      %v1681 = vld [vmem:[%s649 + $0x5c] sm:$0x1]
      %v1682 = vld [vmem:[%s649 + $0x60] sm:$0xe]
      %v1683 = vld [vmem:[%s649 + $0x64] sm:$0x1]
      %v1684 = vld [vmem:[%s649 + $0x68] sm:$0xe]
      %v1685 = vld [vmem:[%s649 + $0x6c] sm:$0x1]
      %v1686 = vld [vmem:[%s649 + $0x70] sm:$0xe]
      %v1687 = vld [vmem:[%s649 + $0x74] sm:$0x1]
      %v1688 = vld [vmem:[%s649 + $0x78] sm:$0xe]
      %v1689 = vld [vmem:[%s649 + $0x7c] sm:$0x1]
      %v1690 = vld [vmem:[%s649 + $0x80] sm:$0xe]
      %v1691 = vld [vmem:[%s649 + $0x84] sm:$0x1]
      %v1692 = vld [vmem:[%s649 + $0x88] sm:$0xe]
      %v1693 = vld [vmem:[%s649 + $0x8c] sm:$0x1]
      %v1726 = vrot.slane %v1662, 5
      %v1727 = vrot.slane %v1726, 4
      %v1728 = vrot.slane %v1663, 5
      %v1729 = vsel %vm1189, %v1727, %v1728
      %v1730 = vrot.slane %v1664, 5
      %v1731 = vrot.slane %v1730, 4
      %v1732 = vrot.slane %v1665, 5
      %v1733 = vsel %vm1189, %v1731, %v1732
      %v1734 = vrot.slane %v1666, 5
      %v1735 = vrot.slane %v1734, 4
      %v1736 = vrot.slane %v1667, 5
      %v1737 = vsel %vm1189, %v1735, %v1736
      %v1738 = vrot.slane %v1668, 5
      %v1739 = vrot.slane %v1738, 4
      %v1740 = vrot.slane %v1669, 5
      %v1741 = vsel %vm1189, %v1739, %v1740
      %v1742 = vrot.slane %v1670, 5
      %v1743 = vrot.slane %v1742, 4
      %v1744 = vrot.slane %v1671, 5
      %v1745 = vsel %vm1189, %v1743, %v1744
      %v1746 = vrot.slane %v1672, 5
      %v1747 = vrot.slane %v1746, 4
      %v1748 = vrot.slane %v1673, 5
      %v1749 = vsel %vm1189, %v1747, %v1748
      %v1750 = vrot.slane %v1674, 5
      %v1751 = vrot.slane %v1750, 4
      %v1752 = vrot.slane %v1675, 5
      %v1753 = vsel %vm1189, %v1751, %v1752
      %v1754 = vrot.slane %v1676, 5
      %v1755 = vrot.slane %v1754, 4
      %v1756 = vrot.slane %v1677, 5
      %v1757 = vsel %vm1189, %v1755, %v1756
      %v1758 = vrot.slane %v1678, 5
      %v1759 = vrot.slane %v1758, 4
      %v1760 = vrot.slane %v1679, 5
      %v1761 = vsel %vm1189, %v1759, %v1760
      %v1762 = vrot.slane %v1680, 5
      %v1763 = vrot.slane %v1762, 4
      %v1764 = vrot.slane %v1681, 5
      %v1765 = vsel %vm1189, %v1763, %v1764
      %v1766 = vrot.slane %v1682, 5
      %v1767 = vrot.slane %v1766, 4
      %v1768 = vrot.slane %v1683, 5
      %v1769 = vsel %vm1189, %v1767, %v1768
      %v1770 = vrot.slane %v1684, 5
      %v1771 = vrot.slane %v1770, 4
      %v1772 = vrot.slane %v1685, 5
      %v1773 = vsel %vm1189, %v1771, %v1772
      %v1774 = vrot.slane %v1686, 5
      %v1775 = vrot.slane %v1774, 4
      %v1776 = vrot.slane %v1687, 5
      %v1777 = vsel %vm1189, %v1775, %v1776
      %v1778 = vrot.slane %v1688, 5
      %v1779 = vrot.slane %v1778, 4
      %v1780 = vrot.slane %v1689, 5
      %v1781 = vsel %vm1189, %v1779, %v1780
      %v1782 = vrot.slane %v1690, 5
      %v1783 = vrot.slane %v1782, 4
      %v1784 = vrot.slane %v1691, 5
      %v1785 = vsel %vm1189, %v1783, %v1784
      %v1786 = vrot.slane %v1692, 5
      %v1787 = vrot.slane %v1786, 4
      %v1788 = vrot.slane %v1693, 5
      %v1789 = vsel %vm1189, %v1787, %v1788
      %v1790 = vunpack.c.l.b16 %v1729
      %v1791 = vunpack.c.l.b16 %v1733
      %v1792 = vunpack.c.l.b16 %v1737
      %v1793 = vunpack.c.l.b16 %v1741
      %v1794 = vunpack.c.l.b16 %v1745
      %v1795 = vunpack.c.l.b16 %v1749
      %v1796 = vunpack.c.l.b16 %v1753
      %v1797 = vunpack.c.l.b16 %v1757
      %v1798 = vunpack.c.l.b16 %v1761
      %v1799 = vunpack.c.l.b16 %v1765
      %v1800 = vunpack.c.l.b16 %v1769
      %v1801 = vunpack.c.l.b16 %v1773
      %v1802 = vunpack.c.l.b16 %v1777
      %v1803 = vunpack.c.l.b16 %v1781
      %v1804 = vunpack.c.l.b16 %v1785
      %v1805 = vunpack.c.l.b16 %v1789
      %v1806 = vpack.c.b16 %v1791, %v1790
      %v1807 = vpack.c.b16 %v1793, %v1792
      %v1808 = vpack.c.b16 %v1795, %v1794
      %v1809 = vpack.c.b16 %v1797, %v1796
      %v1810 = vpack.c.b16 %v1799, %v1798
      %v1811 = vpack.c.b16 %v1801, %v1800
      %v1812 = vpack.c.b16 %v1803, %v1802
      %v1813 = vpack.c.b16 %v1805, %v1804
      %1822 = vst [vmem:[#allocation3 + $0x28] sm:$0xff] %v1806
      %1823 = vst [vmem:[#allocation3 + $0x70] sm:$0xff] %v1807
      %1824 = vst [vmem:[#allocation3 + $0xb8] sm:$0xff] %v1808
      %1825 = vst [vmem:[#allocation3 + $0x100] sm:$0xff] %v1809
      %1826 = vst [vmem:[#allocation3 + $0x148] sm:$0xff] %v1810
      %1827 = vst [vmem:[#allocation3 + $0x190] sm:$0xff] %v1811
      %1828 = vst [vmem:[#allocation3 + $0x1d8] sm:$0xff] %v1812
      %1829 = vst [vmem:[#allocation3 + $0x220] sm:$0xff] %v1813
      %s1830 = scalar_lea.vmem [#allocation2], 16
      %v1831 = vld [vmem:[%s1830] sm:$0xf]
      %v1832 = vld [vmem:[%s1830 + $0x8] sm:$0xf]
      %v1833 = vld [vmem:[%s1830 + $0x10] sm:$0xf]
      %v1834 = vld [vmem:[%s1830 + $0x18] sm:$0xf]
      %v1835 = vld [vmem:[%s1830 + $0x20] sm:$0xf]
      %v1836 = vld [vmem:[%s1830 + $0x28] sm:$0xf]
      %v1837 = vld [vmem:[%s1830 + $0x30] sm:$0xf]
      %v1838 = vld [vmem:[%s1830 + $0x38] sm:$0xf]
      %v1839 = vld [vmem:[%s1830 + $0x50] sm:$0xf]
      %v1840 = vld [vmem:[%s1830 + $0x58] sm:$0xf]
      %v1841 = vld [vmem:[%s1830 + $0x60] sm:$0xf]
      %v1842 = vld [vmem:[%s1830 + $0x68] sm:$0xf]
      %v1843 = vld [vmem:[%s1830 + $0x70] sm:$0xf]
      %v1844 = vld [vmem:[%s1830 + $0x78] sm:$0xf]
      %v1845 = vld [vmem:[%s1830 + $0x80] sm:$0xf]
      %v1846 = vld [vmem:[%s1830 + $0x88] sm:$0xf]
      %v1863 = vunpack.c.l.b16 %v1831
      %v1864 = vunpack.c.l.b16 %v1832
      %v1865 = vunpack.c.l.b16 %v1833
      %v1866 = vunpack.c.l.b16 %v1834
      %v1867 = vunpack.c.l.b16 %v1835
      %v1868 = vunpack.c.l.b16 %v1836
      %v1869 = vunpack.c.l.b16 %v1837
      %v1870 = vunpack.c.l.b16 %v1838
      %v1871 = vunpack.c.l.b16 %v1839
      %v1872 = vunpack.c.l.b16 %v1840
      %v1873 = vunpack.c.l.b16 %v1841
      %v1874 = vunpack.c.l.b16 %v1842
      %v1875 = vunpack.c.l.b16 %v1843
      %v1876 = vunpack.c.l.b16 %v1844
      %v1877 = vunpack.c.l.b16 %v1845
      %v1878 = vunpack.c.l.b16 %v1846
      %v1879 = vpack.c.b16 %v1864, %v1863
      %v1880 = vpack.c.b16 %v1866, %v1865
      %v1881 = vpack.c.b16 %v1868, %v1867
      %v1882 = vpack.c.b16 %v1870, %v1869
      %v1883 = vpack.c.b16 %v1872, %v1871
      %v1884 = vpack.c.b16 %v1874, %v1873
      %v1885 = vpack.c.b16 %v1876, %v1875
      %v1886 = vpack.c.b16 %v1878, %v1877
      %1895 = vst [vmem:[#allocation3 + $0x30] sm:$0xff] %v1879
      %1896 = vst [vmem:[#allocation3 + $0x78] sm:$0xff] %v1880
      %1897 = vst [vmem:[#allocation3 + $0xc0] sm:$0xff] %v1881
      %1898 = vst [vmem:[#allocation3 + $0x108] sm:$0xff] %v1882
      %1899 = vst [vmem:[#allocation3 + $0x150] sm:$0xff] %v1883
      %1900 = vst [vmem:[#allocation3 + $0x198] sm:$0xff] %v1884
      %1901 = vst [vmem:[#allocation3 + $0x1e0] sm:$0xff] %v1885
      %1902 = vst [vmem:[#allocation3 + $0x228] sm:$0xff] %v1886
      %v1903 = vld [vmem:[%s1830] sm:$0xf]
      %v1904 = vld [vmem:[%s1830 + $0x4] sm:$0x1]
      %v1905 = vld [vmem:[%s1830 + $0x8] sm:$0xf]
      %v1906 = vld [vmem:[%s1830 + $0xc] sm:$0x1]
      %v1907 = vld [vmem:[%s1830 + $0x10] sm:$0xf]
      %v1908 = vld [vmem:[%s1830 + $0x14] sm:$0x1]
      %v1909 = vld [vmem:[%s1830 + $0x18] sm:$0xf]
      %v1910 = vld [vmem:[%s1830 + $0x1c] sm:$0x1]
      %v1911 = vld [vmem:[%s1830 + $0x20] sm:$0xf]
      %v1912 = vld [vmem:[%s1830 + $0x24] sm:$0x1]
      %v1913 = vld [vmem:[%s1830 + $0x28] sm:$0xf]
      %v1914 = vld [vmem:[%s1830 + $0x2c] sm:$0x1]
      %v1915 = vld [vmem:[%s1830 + $0x30] sm:$0xf]
      %v1916 = vld [vmem:[%s1830 + $0x34] sm:$0x1]
      %v1917 = vld [vmem:[%s1830 + $0x38] sm:$0xf]
      %v1918 = vld [vmem:[%s1830 + $0x3c] sm:$0x1]
      %v1919 = vld [vmem:[%s1830 + $0x50] sm:$0xf]
      %v1920 = vld [vmem:[%s1830 + $0x54] sm:$0x1]
      %v1921 = vld [vmem:[%s1830 + $0x58] sm:$0xf]
      %v1922 = vld [vmem:[%s1830 + $0x5c] sm:$0x1]
      %v1923 = vld [vmem:[%s1830 + $0x60] sm:$0xf]
      %v1924 = vld [vmem:[%s1830 + $0x64] sm:$0x1]
      %v1925 = vld [vmem:[%s1830 + $0x68] sm:$0xf]
      %v1926 = vld [vmem:[%s1830 + $0x6c] sm:$0x1]
      %v1927 = vld [vmem:[%s1830 + $0x70] sm:$0xf]
      %v1928 = vld [vmem:[%s1830 + $0x74] sm:$0x1]
      %v1929 = vld [vmem:[%s1830 + $0x78] sm:$0xf]
      %v1930 = vld [vmem:[%s1830 + $0x7c] sm:$0x1]
      %v1931 = vld [vmem:[%s1830 + $0x80] sm:$0xf]
      %v1932 = vld [vmem:[%s1830 + $0x84] sm:$0x1]
      %v1933 = vld [vmem:[%s1830 + $0x88] sm:$0xf]
      %v1934 = vld [vmem:[%s1830 + $0x8c] sm:$0x1]
      %v1936 = vshrl.u32 %v1903, 16
      %v1938 = vrot.slane %v1936, 4
      %v1939 = vshll.u32 %v1903, 16
      %v1941 = vrot.slane %v1939, 5
      %v1942 = vor.u32 %v1938, %v1941
      %v1943 = vrot.slane %v1942, 4
      %v1945 = vshll.u32 %v1904, 16
      %v1947 = vrot.slane %v1945, 5
      %v1948 = vsel %vm858, %v1943, %v1947
      %v1950 = vshrl.u32 %v1905, 16
      %v1952 = vrot.slane %v1950, 4
      %v1953 = vshll.u32 %v1905, 16
      %v1955 = vrot.slane %v1953, 5
      %v1956 = vor.u32 %v1952, %v1955
      %v1957 = vrot.slane %v1956, 4
      %v1959 = vshll.u32 %v1906, 16
      %v1961 = vrot.slane %v1959, 5
      %v1962 = vsel %vm858, %v1957, %v1961
      %v1964 = vshrl.u32 %v1907, 16
      %v1966 = vrot.slane %v1964, 4
      %v1967 = vshll.u32 %v1907, 16
      %v1969 = vrot.slane %v1967, 5
      %v1970 = vor.u32 %v1966, %v1969
      %v1971 = vrot.slane %v1970, 4
      %v1973 = vshll.u32 %v1908, 16
      %v1975 = vrot.slane %v1973, 5
      %v1976 = vsel %vm858, %v1971, %v1975
      %v1978 = vshrl.u32 %v1909, 16
      %v1980 = vrot.slane %v1978, 4
      %v1981 = vshll.u32 %v1909, 16
      %v1983 = vrot.slane %v1981, 5
      %v1984 = vor.u32 %v1980, %v1983
      %v1985 = vrot.slane %v1984, 4
      %v1987 = vshll.u32 %v1910, 16
      %v1989 = vrot.slane %v1987, 5
      %v1990 = vsel %vm858, %v1985, %v1989
      %v1992 = vshrl.u32 %v1911, 16
      %v1994 = vrot.slane %v1992, 4
      %v1995 = vshll.u32 %v1911, 16
      %v1997 = vrot.slane %v1995, 5
      %v1998 = vor.u32 %v1994, %v1997
      %v1999 = vrot.slane %v1998, 4
      %v2001 = vshll.u32 %v1912, 16
      %v2003 = vrot.slane %v2001, 5
      %v2004 = vsel %vm858, %v1999, %v2003
      %v2006 = vshrl.u32 %v1913, 16
      %v2008 = vrot.slane %v2006, 4
      %v2009 = vshll.u32 %v1913, 16
      %v2011 = vrot.slane %v2009, 5
      %v2012 = vor.u32 %v2008, %v2011
      %v2013 = vrot.slane %v2012, 4
      %v2015 = vshll.u32 %v1914, 16
      %v2017 = vrot.slane %v2015, 5
      %v2018 = vsel %vm858, %v2013, %v2017
      %v2020 = vshrl.u32 %v1915, 16
      %v2022 = vrot.slane %v2020, 4
      %v2023 = vshll.u32 %v1915, 16
      %v2025 = vrot.slane %v2023, 5
      %v2026 = vor.u32 %v2022, %v2025
      %v2027 = vrot.slane %v2026, 4
      %v2029 = vshll.u32 %v1916, 16
      %v2031 = vrot.slane %v2029, 5
      %v2032 = vsel %vm858, %v2027, %v2031
      %v2034 = vshrl.u32 %v1917, 16
      %v2036 = vrot.slane %v2034, 4
      %v2037 = vshll.u32 %v1917, 16
      %v2039 = vrot.slane %v2037, 5
      %v2040 = vor.u32 %v2036, %v2039
      %v2041 = vrot.slane %v2040, 4
      %v2043 = vshll.u32 %v1918, 16
      %v2045 = vrot.slane %v2043, 5
      %v2046 = vsel %vm858, %v2041, %v2045
      %v2048 = vshrl.u32 %v1919, 16
      %v2050 = vrot.slane %v2048, 4
      %v2051 = vshll.u32 %v1919, 16
      %v2053 = vrot.slane %v2051, 5
      %v2054 = vor.u32 %v2050, %v2053
      %v2055 = vrot.slane %v2054, 4
      %v2057 = vshll.u32 %v1920, 16
      %v2059 = vrot.slane %v2057, 5
      %v2060 = vsel %vm858, %v2055, %v2059
      %v2062 = vshrl.u32 %v1921, 16
      %v2064 = vrot.slane %v2062, 4
      %v2065 = vshll.u32 %v1921, 16
      %v2067 = vrot.slane %v2065, 5
      %v2068 = vor.u32 %v2064, %v2067
      %v2069 = vrot.slane %v2068, 4
      %v2071 = vshll.u32 %v1922, 16
      %v2073 = vrot.slane %v2071, 5
      %v2074 = vsel %vm858, %v2069, %v2073
      %v2076 = vshrl.u32 %v1923, 16
      %v2078 = vrot.slane %v2076, 4
      %v2079 = vshll.u32 %v1923, 16
      %v2081 = vrot.slane %v2079, 5
      %v2082 = vor.u32 %v2078, %v2081
      %v2083 = vrot.slane %v2082, 4
      %v2085 = vshll.u32 %v1924, 16
      %v2087 = vrot.slane %v2085, 5
      %v2088 = vsel %vm858, %v2083, %v2087
      %v2090 = vshrl.u32 %v1925, 16
      %v2092 = vrot.slane %v2090, 4
      %v2093 = vshll.u32 %v1925, 16
      %v2095 = vrot.slane %v2093, 5
      %v2096 = vor.u32 %v2092, %v2095
      %v2097 = vrot.slane %v2096, 4
      %v2099 = vshll.u32 %v1926, 16
      %v2101 = vrot.slane %v2099, 5
      %v2102 = vsel %vm858, %v2097, %v2101
      %v2104 = vshrl.u32 %v1927, 16
      %v2106 = vrot.slane %v2104, 4
      %v2107 = vshll.u32 %v1927, 16
      %v2109 = vrot.slane %v2107, 5
      %v2110 = vor.u32 %v2106, %v2109
      %v2111 = vrot.slane %v2110, 4
      %v2113 = vshll.u32 %v1928, 16
      %v2115 = vrot.slane %v2113, 5
      %v2116 = vsel %vm858, %v2111, %v2115
      %v2118 = vshrl.u32 %v1929, 16
      %v2120 = vrot.slane %v2118, 4
      %v2121 = vshll.u32 %v1929, 16
      %v2123 = vrot.slane %v2121, 5
      %v2124 = vor.u32 %v2120, %v2123
      %v2125 = vrot.slane %v2124, 4
      %v2127 = vshll.u32 %v1930, 16
      %v2129 = vrot.slane %v2127, 5
      %v2130 = vsel %vm858, %v2125, %v2129
      %v2132 = vshrl.u32 %v1931, 16
      %v2134 = vrot.slane %v2132, 4
      %v2135 = vshll.u32 %v1931, 16
      %v2137 = vrot.slane %v2135, 5
      %v2138 = vor.u32 %v2134, %v2137
      %v2139 = vrot.slane %v2138, 4
      %v2141 = vshll.u32 %v1932, 16
      %v2143 = vrot.slane %v2141, 5
      %v2144 = vsel %vm858, %v2139, %v2143
      %v2146 = vshrl.u32 %v1933, 16
      %v2148 = vrot.slane %v2146, 4
      %v2149 = vshll.u32 %v1933, 16
      %v2151 = vrot.slane %v2149, 5
      %v2152 = vor.u32 %v2148, %v2151
      %v2153 = vrot.slane %v2152, 4
      %v2155 = vshll.u32 %v1934, 16
      %v2157 = vrot.slane %v2155, 5
      %v2158 = vsel %vm858, %v2153, %v2157
      %v2159 = vunpack.c.l.b16 %v1948
      %v2160 = vunpack.c.l.b16 %v1962
      %v2161 = vunpack.c.l.b16 %v1976
      %v2162 = vunpack.c.l.b16 %v1990
      %v2163 = vunpack.c.l.b16 %v2004
      %v2164 = vunpack.c.l.b16 %v2018
      %v2165 = vunpack.c.l.b16 %v2032
      %v2166 = vunpack.c.l.b16 %v2046
      %v2167 = vunpack.c.l.b16 %v2060
      %v2168 = vunpack.c.l.b16 %v2074
      %v2169 = vunpack.c.l.b16 %v2088
      %v2170 = vunpack.c.l.b16 %v2102
      %v2171 = vunpack.c.l.b16 %v2116
      %v2172 = vunpack.c.l.b16 %v2130
      %v2173 = vunpack.c.l.b16 %v2144
      %v2174 = vunpack.c.l.b16 %v2158
      %v2175 = vpack.c.b16 %v2160, %v2159
      %v2176 = vpack.c.b16 %v2162, %v2161
      %v2177 = vpack.c.b16 %v2164, %v2163
      %v2178 = vpack.c.b16 %v2166, %v2165
      %v2179 = vpack.c.b16 %v2168, %v2167
      %v2180 = vpack.c.b16 %v2170, %v2169
      %v2181 = vpack.c.b16 %v2172, %v2171
      %v2182 = vpack.c.b16 %v2174, %v2173
      %2191 = vst [vmem:[#allocation3 + $0x38] sm:$0xff] %v2175
      %2192 = vst [vmem:[#allocation3 + $0x80] sm:$0xff] %v2176
      %2193 = vst [vmem:[#allocation3 + $0xc8] sm:$0xff] %v2177
      %2194 = vst [vmem:[#allocation3 + $0x110] sm:$0xff] %v2178
      %2195 = vst [vmem:[#allocation3 + $0x158] sm:$0xff] %v2179
      %2196 = vst [vmem:[#allocation3 + $0x1a0] sm:$0xff] %v2180
      %2197 = vst [vmem:[#allocation3 + $0x1e8] sm:$0xff] %v2181
      %2198 = vst [vmem:[#allocation3 + $0x230] sm:$0xff] %v2182
      %v2199 = vld [vmem:[%s1830] sm:$0xe]
      %v2200 = vld [vmem:[%s1830 + $0x4] sm:$0x1]
      %v2201 = vld [vmem:[%s1830 + $0x8] sm:$0xe]
      %v2202 = vld [vmem:[%s1830 + $0xc] sm:$0x1]
      %v2203 = vld [vmem:[%s1830 + $0x10] sm:$0xe]
      %v2204 = vld [vmem:[%s1830 + $0x14] sm:$0x1]
      %v2205 = vld [vmem:[%s1830 + $0x18] sm:$0xe]
      %v2206 = vld [vmem:[%s1830 + $0x1c] sm:$0x1]
      %v2207 = vld [vmem:[%s1830 + $0x20] sm:$0xe]
      %v2208 = vld [vmem:[%s1830 + $0x24] sm:$0x1]
      %v2209 = vld [vmem:[%s1830 + $0x28] sm:$0xe]
      %v2210 = vld [vmem:[%s1830 + $0x2c] sm:$0x1]
      %v2211 = vld [vmem:[%s1830 + $0x30] sm:$0xe]
      %v2212 = vld [vmem:[%s1830 + $0x34] sm:$0x1]
      %v2213 = vld [vmem:[%s1830 + $0x38] sm:$0xe]
      %v2214 = vld [vmem:[%s1830 + $0x3c] sm:$0x1]
      %v2215 = vld [vmem:[%s1830 + $0x50] sm:$0xe]
      %v2216 = vld [vmem:[%s1830 + $0x54] sm:$0x1]
      %v2217 = vld [vmem:[%s1830 + $0x58] sm:$0xe]
      %v2218 = vld [vmem:[%s1830 + $0x5c] sm:$0x1]
      %v2219 = vld [vmem:[%s1830 + $0x60] sm:$0xe]
      %v2220 = vld [vmem:[%s1830 + $0x64] sm:$0x1]
      %v2221 = vld [vmem:[%s1830 + $0x68] sm:$0xe]
      %v2222 = vld [vmem:[%s1830 + $0x6c] sm:$0x1]
      %v2223 = vld [vmem:[%s1830 + $0x70] sm:$0xe]
      %v2224 = vld [vmem:[%s1830 + $0x74] sm:$0x1]
      %v2225 = vld [vmem:[%s1830 + $0x78] sm:$0xe]
      %v2226 = vld [vmem:[%s1830 + $0x7c] sm:$0x1]
      %v2227 = vld [vmem:[%s1830 + $0x80] sm:$0xe]
      %v2228 = vld [vmem:[%s1830 + $0x84] sm:$0x1]
      %v2229 = vld [vmem:[%s1830 + $0x88] sm:$0xe]
      %v2230 = vld [vmem:[%s1830 + $0x8c] sm:$0x1]
      %v2263 = vrot.slane %v2199, 5
      %v2264 = vrot.slane %v2263, 4
      %v2265 = vrot.slane %v2200, 5
      %v2266 = vsel %vm1189, %v2264, %v2265
      %v2267 = vrot.slane %v2201, 5
      %v2268 = vrot.slane %v2267, 4
      %v2269 = vrot.slane %v2202, 5
      %v2270 = vsel %vm1189, %v2268, %v2269
      %v2271 = vrot.slane %v2203, 5
      %v2272 = vrot.slane %v2271, 4
      %v2273 = vrot.slane %v2204, 5
      %v2274 = vsel %vm1189, %v2272, %v2273
      %v2275 = vrot.slane %v2205, 5
      %v2276 = vrot.slane %v2275, 4
      %v2277 = vrot.slane %v2206, 5
      %v2278 = vsel %vm1189, %v2276, %v2277
      %v2279 = vrot.slane %v2207, 5
      %v2280 = vrot.slane %v2279, 4
      %v2281 = vrot.slane %v2208, 5
      %v2282 = vsel %vm1189, %v2280, %v2281
      %v2283 = vrot.slane %v2209, 5
      %v2284 = vrot.slane %v2283, 4
      %v2285 = vrot.slane %v2210, 5
      %v2286 = vsel %vm1189, %v2284, %v2285
      %v2287 = vrot.slane %v2211, 5
      %v2288 = vrot.slane %v2287, 4
      %v2289 = vrot.slane %v2212, 5
      %v2290 = vsel %vm1189, %v2288, %v2289
      %v2291 = vrot.slane %v2213, 5
      %v2292 = vrot.slane %v2291, 4
      %v2293 = vrot.slane %v2214, 5
      %v2294 = vsel %vm1189, %v2292, %v2293
      %v2295 = vrot.slane %v2215, 5
      %v2296 = vrot.slane %v2295, 4
      %v2297 = vrot.slane %v2216, 5
      %v2298 = vsel %vm1189, %v2296, %v2297
      %v2299 = vrot.slane %v2217, 5
      %v2300 = vrot.slane %v2299, 4
      %v2301 = vrot.slane %v2218, 5
      %v2302 = vsel %vm1189, %v2300, %v2301
      %v2303 = vrot.slane %v2219, 5
      %v2304 = vrot.slane %v2303, 4
      %v2305 = vrot.slane %v2220, 5
      %v2306 = vsel %vm1189, %v2304, %v2305
      %v2307 = vrot.slane %v2221, 5
      %v2308 = vrot.slane %v2307, 4
      %v2309 = vrot.slane %v2222, 5
      %v2310 = vsel %vm1189, %v2308, %v2309
      %v2311 = vrot.slane %v2223, 5
      %v2312 = vrot.slane %v2311, 4
      %v2313 = vrot.slane %v2224, 5
      %v2314 = vsel %vm1189, %v2312, %v2313
      %v2315 = vrot.slane %v2225, 5
      %v2316 = vrot.slane %v2315, 4
      %v2317 = vrot.slane %v2226, 5
      %v2318 = vsel %vm1189, %v2316, %v2317
      %v2319 = vrot.slane %v2227, 5
      %v2320 = vrot.slane %v2319, 4
      %v2321 = vrot.slane %v2228, 5
      %v2322 = vsel %vm1189, %v2320, %v2321
      %v2323 = vrot.slane %v2229, 5
      %v2324 = vrot.slane %v2323, 4
      %v2325 = vrot.slane %v2230, 5
      %v2326 = vsel %vm1189, %v2324, %v2325
      %v2327 = vunpack.c.l.b16 %v2266
      %v2328 = vunpack.c.l.b16 %v2270
      %v2329 = vunpack.c.l.b16 %v2274
      %v2330 = vunpack.c.l.b16 %v2278
      %v2331 = vunpack.c.l.b16 %v2282
      %v2332 = vunpack.c.l.b16 %v2286
      %v2333 = vunpack.c.l.b16 %v2290
      %v2334 = vunpack.c.l.b16 %v2294
      %v2335 = vunpack.c.l.b16 %v2298
      %v2336 = vunpack.c.l.b16 %v2302
      %v2337 = vunpack.c.l.b16 %v2306
      %v2338 = vunpack.c.l.b16 %v2310
      %v2339 = vunpack.c.l.b16 %v2314
      %v2340 = vunpack.c.l.b16 %v2318
      %v2341 = vunpack.c.l.b16 %v2322
      %v2342 = vunpack.c.l.b16 %v2326
      %v2343 = vpack.c.b16 %v2328, %v2327
      %v2344 = vpack.c.b16 %v2330, %v2329
      %v2345 = vpack.c.b16 %v2332, %v2331
      %v2346 = vpack.c.b16 %v2334, %v2333
      %v2347 = vpack.c.b16 %v2336, %v2335
      %v2348 = vpack.c.b16 %v2338, %v2337
      %v2349 = vpack.c.b16 %v2340, %v2339
      %v2350 = vpack.c.b16 %v2342, %v2341
      %2359 = vst [vmem:[#allocation3 + $0x40] sm:$0xff] %v2343
      %2360 = vst [vmem:[#allocation3 + $0x88] sm:$0xff] %v2344
      %2361 = vst [vmem:[#allocation3 + $0xd0] sm:$0xff] %v2345
      %2362 = vst [vmem:[#allocation3 + $0x118] sm:$0xff] %v2346
      %2363 = vst [vmem:[#allocation3 + $0x160] sm:$0xff] %v2347
      %2364 = vst [vmem:[#allocation3 + $0x1a8] sm:$0xff] %v2348
      %2365 = vst [vmem:[#allocation3 + $0x1f0] sm:$0xff] %v2349
      %2366 = vst [vmem:[#allocation3 + $0x238] sm:$0xff] %v2350
      %v2367 = vld [vmem:[#allocation3] sm:$0xff]
      %v2368 = vld [vmem:[#allocation3 + $0x8] sm:$0xff]
      %v2369 = vld [vmem:[#allocation3 + $0x10] sm:$0xff]
      %v2370 = vld [vmem:[#allocation3 + $0x18] sm:$0xff]
      %v2371 = vld [vmem:[#allocation3 + $0x20] sm:$0xff]
      %v2372 = vld [vmem:[#allocation3 + $0x28] sm:$0xff]
      %v2373 = vld [vmem:[#allocation3 + $0x30] sm:$0xff]
      %v2374 = vld [vmem:[#allocation3 + $0x38] sm:$0xff]
      %v2375 = vld [vmem:[#allocation3 + $0x40] sm:$0xff]
      %v2376 = vld [vmem:[#allocation3 + $0x48] sm:$0xff]
      %v2377 = vld [vmem:[#allocation3 + $0x50] sm:$0xff]
      %v2378 = vld [vmem:[#allocation3 + $0x58] sm:$0xff]
      %v2379 = vld [vmem:[#allocation3 + $0x60] sm:$0xff]
      %v2380 = vld [vmem:[#allocation3 + $0x68] sm:$0xff]
      %v2381 = vld [vmem:[#allocation3 + $0x70] sm:$0xff]
      %v2382 = vld [vmem:[#allocation3 + $0x78] sm:$0xff]
      %v2383 = vld [vmem:[#allocation3 + $0x80] sm:$0xff]
      %v2384 = vld [vmem:[#allocation3 + $0x88] sm:$0xff]
      %v2385 = vld [vmem:[#allocation3 + $0x90] sm:$0xff]
      %v2386 = vld [vmem:[#allocation3 + $0x98] sm:$0xff]
      %v2387 = vld [vmem:[#allocation3 + $0xa0] sm:$0xff]
      %v2388 = vld [vmem:[#allocation3 + $0xa8] sm:$0xff]
      %v2389 = vld [vmem:[#allocation3 + $0xb0] sm:$0xff]
      %v2390 = vld [vmem:[#allocation3 + $0xb8] sm:$0xff]
      %v2391 = vld [vmem:[#allocation3 + $0xc0] sm:$0xff]
      %v2392 = vld [vmem:[#allocation3 + $0xc8] sm:$0xff]
      %v2393 = vld [vmem:[#allocation3 + $0xd0] sm:$0xff]
      %v2394 = vld [vmem:[#allocation3 + $0xd8] sm:$0xff]
      %v2395 = vld [vmem:[#allocation3 + $0xe0] sm:$0xff]
      %v2396 = vld [vmem:[#allocation3 + $0xe8] sm:$0xff]
      %v2397 = vld [vmem:[#allocation3 + $0xf0] sm:$0xff]
      %v2398 = vld [vmem:[#allocation3 + $0xf8] sm:$0xff]
      %v2399 = vld [vmem:[#allocation3 + $0x100] sm:$0xff]
      %v2400 = vld [vmem:[#allocation3 + $0x108] sm:$0xff]
      %v2401 = vld [vmem:[#allocation3 + $0x110] sm:$0xff]
      %v2402 = vld [vmem:[#allocation3 + $0x118] sm:$0xff]
      %v2403 = vld [vmem:[#allocation3 + $0x120] sm:$0xff]
      %v2404 = vld [vmem:[#allocation3 + $0x128] sm:$0xff]
      %v2405 = vld [vmem:[#allocation3 + $0x130] sm:$0xff]
      %v2406 = vld [vmem:[#allocation3 + $0x138] sm:$0xff]
      %v2407 = vld [vmem:[#allocation3 + $0x140] sm:$0xff]
      %v2408 = vld [vmem:[#allocation3 + $0x148] sm:$0xff]
      %v2409 = vld [vmem:[#allocation3 + $0x150] sm:$0xff]
      %v2410 = vld [vmem:[#allocation3 + $0x158] sm:$0xff]
      %v2411 = vld [vmem:[#allocation3 + $0x160] sm:$0xff]
      %v2412 = vld [vmem:[#allocation3 + $0x168] sm:$0xff]
      %v2413 = vld [vmem:[#allocation3 + $0x170] sm:$0xff]
      %v2414 = vld [vmem:[#allocation3 + $0x178] sm:$0xff]
      %v2415 = vld [vmem:[#allocation3 + $0x180] sm:$0xff]
      %v2416 = vld [vmem:[#allocation3 + $0x188] sm:$0xff]
      %v2417 = vld [vmem:[#allocation3 + $0x190] sm:$0xff]
      %v2418 = vld [vmem:[#allocation3 + $0x198] sm:$0xff]
      %v2419 = vld [vmem:[#allocation3 + $0x1a0] sm:$0xff]
      %v2420 = vld [vmem:[#allocation3 + $0x1a8] sm:$0xff]
      %v2421 = vld [vmem:[#allocation3 + $0x1b0] sm:$0xff]
      %v2422 = vld [vmem:[#allocation3 + $0x1b8] sm:$0xff]
      %v2423 = vld [vmem:[#allocation3 + $0x1c0] sm:$0xff]
      %v2424 = vld [vmem:[#allocation3 + $0x1c8] sm:$0xff]
      %v2425 = vld [vmem:[#allocation3 + $0x1d0] sm:$0xff]
      %v2426 = vld [vmem:[#allocation3 + $0x1d8] sm:$0xff]
      %v2427 = vld [vmem:[#allocation3 + $0x1e0] sm:$0xff]
      %v2428 = vld [vmem:[#allocation3 + $0x1e8] sm:$0xff]
      %v2429 = vld [vmem:[#allocation3 + $0x1f0] sm:$0xff]
      %v2430 = vld [vmem:[#allocation3 + $0x1f8] sm:$0xff]
      %v2431 = vld [vmem:[#allocation3 + $0x200] sm:$0xff]
      %v2432 = vld [vmem:[#allocation3 + $0x208] sm:$0xff]
      %v2433 = vld [vmem:[#allocation3 + $0x210] sm:$0xff]
      %v2434 = vld [vmem:[#allocation3 + $0x218] sm:$0xff]
      %v2435 = vld [vmem:[#allocation3 + $0x220] sm:$0xff]
      %v2436 = vld [vmem:[#allocation3 + $0x228] sm:$0xff]
      %v2437 = vld [vmem:[#allocation3 + $0x230] sm:$0xff]
      %v2438 = vld [vmem:[#allocation3 + $0x238] sm:$0xff]
      %v2439 = vld [vmem:[%s1] sm:$0xf]
      %v2440 = vld [vmem:[%s1 + $0x4] sm:$0xf]
      %v2441 = vld [vmem:[%s1 + $0x8] sm:$0xf]
      %v2442 = vld [vmem:[%s1 + $0xc] sm:$0xf]
      %v2443 = vld [vmem:[%s1 + $0x10] sm:$0xf]
      %v2444 = vld [vmem:[%s1 + $0x14] sm:$0xf]
      %v2445 = vld [vmem:[%s1 + $0x18] sm:$0xf]
      %v2446 = vld [vmem:[%s1 + $0x1c] sm:$0xf]
      %v2447 = vld [vmem:[%s1 + $0x20] sm:$0xf]
      %v2448 = vld [vmem:[%s1 + $0x24] sm:$0xf]
      %v2449 = vld [vmem:[%s1 + $0x28] sm:$0xf]
      %v2450 = vld [vmem:[%s1 + $0x2c] sm:$0xf]
      %v2451 = vld [vmem:[%s1 + $0x30] sm:$0xf]
      %v2452 = vld [vmem:[%s1 + $0x34] sm:$0xf]
      %v2453 = vld [vmem:[%s1 + $0x38] sm:$0xf]
      %v2454 = vld [vmem:[%s1 + $0x3c] sm:$0xf]
      %v2455 = vld [vmem:[%s1 + $0x40] sm:$0xf]
      %v2456 = vld [vmem:[%s1 + $0x44] sm:$0xf]
      %v2457 = vld [vmem:[%s1 + $0x48] sm:$0xf]
      %v2458 = vld [vmem:[%s1 + $0x4c] sm:$0xf]
      %v2459 = vld [vmem:[%s1 + $0x50] sm:$0xf]
      %v2460 = vld [vmem:[%s1 + $0x54] sm:$0xf]
      %v2461 = vld [vmem:[%s1 + $0x58] sm:$0xf]
      %v2462 = vld [vmem:[%s1 + $0x5c] sm:$0xf]
      %v2463 = vld [vmem:[%s1 + $0x60] sm:$0xf]
      %v2464 = vld [vmem:[%s1 + $0x64] sm:$0xf]
      %v2465 = vld [vmem:[%s1 + $0x68] sm:$0xf]
      %v2466 = vld [vmem:[%s1 + $0x6c] sm:$0xf]
      %v2467 = vld [vmem:[%s1 + $0x70] sm:$0xf]
      %v2468 = vld [vmem:[%s1 + $0x74] sm:$0xf]
      %v2469 = vld [vmem:[%s1 + $0x78] sm:$0xf]
      %v2470 = vld [vmem:[%s1 + $0x7c] sm:$0xf]
      %v2471 = vld [vmem:[%s1 + $0x80] sm:$0xf]
      %v2472 = vld [vmem:[%s1 + $0x84] sm:$0xf]
      %v2473 = vld [vmem:[%s1 + $0x88] sm:$0xf]
      %v2474 = vld [vmem:[%s1 + $0x8c] sm:$0xf]
      %v2475 = vld [vmem:[%s1 + $0x90] sm:$0xf]
      %v2476 = vld [vmem:[%s1 + $0x94] sm:$0xf]
      %v2477 = vld [vmem:[%s1 + $0x98] sm:$0xf]
      %v2478 = vld [vmem:[%s1 + $0x9c] sm:$0xf]
      %v2479 = vld [vmem:[%s1 + $0xa0] sm:$0xf]
      %v2480 = vld [vmem:[%s1 + $0xa4] sm:$0xf]
      %v2481 = vld [vmem:[%s1 + $0xa8] sm:$0xf]
      %v2482 = vld [vmem:[%s1 + $0xac] sm:$0xf]
      %v2483 = vld [vmem:[%s1 + $0xb0] sm:$0xf]
      %v2484 = vld [vmem:[%s1 + $0xb4] sm:$0xf]
      %v2485 = vld [vmem:[%s1 + $0xb8] sm:$0xf]
      %v2486 = vld [vmem:[%s1 + $0xbc] sm:$0xf]
      %v2487 = vld [vmem:[%s1 + $0xc0] sm:$0xf]
      %v2488 = vld [vmem:[%s1 + $0xc4] sm:$0xf]
      %v2489 = vld [vmem:[%s1 + $0xc8] sm:$0xf]
      %v2490 = vld [vmem:[%s1 + $0xcc] sm:$0xf]
      %v2491 = vld [vmem:[%s1 + $0xd0] sm:$0xf]
      %v2492 = vld [vmem:[%s1 + $0xd4] sm:$0xf]
      %v2493 = vld [vmem:[%s1 + $0xd8] sm:$0xf]
      %v2494 = vld [vmem:[%s1 + $0xdc] sm:$0xf]
      %v2495 = vld [vmem:[%s1 + $0xe0] sm:$0xf]
      %v2496 = vld [vmem:[%s1 + $0xe4] sm:$0xf]
      %v2497 = vld [vmem:[%s1 + $0xe8] sm:$0xf]
      %v2498 = vld [vmem:[%s1 + $0xec] sm:$0xf]
      %v2499 = vld [vmem:[%s1 + $0xf0] sm:$0xf]
      %v2500 = vld [vmem:[%s1 + $0xf4] sm:$0xf]
      %v2501 = vld [vmem:[%s1 + $0xf8] sm:$0xf]
      %v2502 = vld [vmem:[%s1 + $0xfc] sm:$0xf]
      %v2503 = vld [vmem:[%s1 + $0x100] sm:$0xf]
      %v2504 = vld [vmem:[%s1 + $0x104] sm:$0xf]
      %v2505 = vld [vmem:[%s1 + $0x108] sm:$0xf]
      %v2506 = vld [vmem:[%s1 + $0x10c] sm:$0xf]
      %v2507 = vld [vmem:[%s1 + $0x110] sm:$0xf]
      %v2508 = vld [vmem:[%s1 + $0x114] sm:$0xf]
      %v2509 = vld [vmem:[%s1 + $0x118] sm:$0xf]
      %v2510 = vld [vmem:[%s1 + $0x11c] sm:$0xf]
      %v2511 = vld [vmem:[%s1 + $0x120] sm:$0xf]
      %v2512 = vld [vmem:[%s1 + $0x124] sm:$0xf]
      %v2513 = vld [vmem:[%s1 + $0x128] sm:$0xf]
      %v2514 = vld [vmem:[%s1 + $0x12c] sm:$0xf]
      %v2515 = vld [vmem:[%s1 + $0x130] sm:$0xf]
      %v2516 = vld [vmem:[%s1 + $0x134] sm:$0xf]
      %v2517 = vld [vmem:[%s1 + $0x138] sm:$0xf]
      %v2518 = vld [vmem:[%s1 + $0x13c] sm:$0xf]
      %v2519 = vld [vmem:[%s1 + $0x140] sm:$0xf]
      %v2520 = vld [vmem:[%s1 + $0x144] sm:$0xf]
      %v2521 = vld [vmem:[%s1 + $0x148] sm:$0xf]
      %v2522 = vld [vmem:[%s1 + $0x14c] sm:$0xf]
      %v2523 = vld [vmem:[%s1 + $0x150] sm:$0xf]
      %v2524 = vld [vmem:[%s1 + $0x154] sm:$0xf]
      %v2525 = vld [vmem:[%s1 + $0x158] sm:$0xf]
      %v2526 = vld [vmem:[%s1 + $0x15c] sm:$0xf]
      %v2527 = vld [vmem:[%s1 + $0x160] sm:$0xf]
      %v2528 = vld [vmem:[%s1 + $0x164] sm:$0xf]
      %v2529 = vld [vmem:[%s1 + $0x168] sm:$0xf]
      %v2530 = vld [vmem:[%s1 + $0x16c] sm:$0xf]
      %v2531 = vld [vmem:[%s1 + $0x170] sm:$0xf]
      %v2532 = vld [vmem:[%s1 + $0x174] sm:$0xf]
      %v2533 = vld [vmem:[%s1 + $0x178] sm:$0xf]
      %v2534 = vld [vmem:[%s1 + $0x17c] sm:$0xf]
      %v2535 = vld [vmem:[%s1 + $0x180] sm:$0xf]
      %v2536 = vld [vmem:[%s1 + $0x184] sm:$0xf]
      %v2537 = vld [vmem:[%s1 + $0x188] sm:$0xf]
      %v2538 = vld [vmem:[%s1 + $0x18c] sm:$0xf]
      %v2539 = vld [vmem:[%s1 + $0x190] sm:$0xf]
      %v2540 = vld [vmem:[%s1 + $0x194] sm:$0xf]
      %v2541 = vld [vmem:[%s1 + $0x198] sm:$0xf]
      %v2542 = vld [vmem:[%s1 + $0x19c] sm:$0xf]
      %v2543 = vld [vmem:[%s1 + $0x1a0] sm:$0xf]
      %v2544 = vld [vmem:[%s1 + $0x1a4] sm:$0xf]
      %v2545 = vld [vmem:[%s1 + $0x1a8] sm:$0xf]
      %v2546 = vld [vmem:[%s1 + $0x1ac] sm:$0xf]
      %v2547 = vld [vmem:[%s1 + $0x1b0] sm:$0xf]
      %v2548 = vld [vmem:[%s1 + $0x1b4] sm:$0xf]
      %v2549 = vld [vmem:[%s1 + $0x1b8] sm:$0xf]
      %v2550 = vld [vmem:[%s1 + $0x1bc] sm:$0xf]
      %v2551 = vld [vmem:[%s1 + $0x1c0] sm:$0xf]
      %v2552 = vld [vmem:[%s1 + $0x1c4] sm:$0xf]
      %v2553 = vld [vmem:[%s1 + $0x1c8] sm:$0xf]
      %v2554 = vld [vmem:[%s1 + $0x1cc] sm:$0xf]
      %v2555 = vld [vmem:[%s1 + $0x1d0] sm:$0xf]
      %v2556 = vld [vmem:[%s1 + $0x1d4] sm:$0xf]
      %v2557 = vld [vmem:[%s1 + $0x1d8] sm:$0xf]
      %v2558 = vld [vmem:[%s1 + $0x1dc] sm:$0xf]
      %v2559 = vld [vmem:[%s1 + $0x1e0] sm:$0xf]
      %v2560 = vld [vmem:[%s1 + $0x1e4] sm:$0xf]
      %v2561 = vld [vmem:[%s1 + $0x1e8] sm:$0xf]
      %v2562 = vld [vmem:[%s1 + $0x1ec] sm:$0xf]
      %v2563 = vld [vmem:[%s1 + $0x1f0] sm:$0xf]
      %v2564 = vld [vmem:[%s1 + $0x1f4] sm:$0xf]
      %v2565 = vld [vmem:[%s1 + $0x1f8] sm:$0xf]
      %v2566 = vld [vmem:[%s1 + $0x1fc] sm:$0xf]
      %v2567 = vld [vmem:[%s1 + $0x200] sm:$0xf]
      %v2568 = vld [vmem:[%s1 + $0x204] sm:$0xf]
      %v2569 = vld [vmem:[%s1 + $0x208] sm:$0xf]
      %v2570 = vld [vmem:[%s1 + $0x20c] sm:$0xf]
      %v2571 = vld [vmem:[%s1 + $0x210] sm:$0xf]
      %v2572 = vld [vmem:[%s1 + $0x214] sm:$0xf]
      %v2573 = vld [vmem:[%s1 + $0x218] sm:$0xf]
      %v2574 = vld [vmem:[%s1 + $0x21c] sm:$0xf]
      %v2575 = vld [vmem:[%s1 + $0x220] sm:$0xf]
      %v2576 = vld [vmem:[%s1 + $0x224] sm:$0xf]
      %v2577 = vld [vmem:[%s1 + $0x228] sm:$0xf]
      %v2578 = vld [vmem:[%s1 + $0x22c] sm:$0xf]
      %v2579 = vld [vmem:[%s1 + $0x230] sm:$0xf]
      %v2580 = vld [vmem:[%s1 + $0x234] sm:$0xf]
      %v2581 = vld [vmem:[%s1 + $0x238] sm:$0xf]
      %v2582 = vld [vmem:[%s1 + $0x23c] sm:$0xf]
      %v2583 = vld [vmem:[%s2] sm:$0x1]
      %v2585 = vlaneseq
      %v2586 = vshrl.u32 %v2585, 7
      %v2587 = vsub.s32 0, %v2586
      %v2588 = vrot.slane %v2583, %v2587
      %v2734 = vunpack.c.l.b16 %v2439
      %v2735 = vunpack.c.l.b16 %v2440
      %v2736 = vunpack.c.l.b16 %v2441
      %v2737 = vunpack.c.l.b16 %v2442
      %v2738 = vunpack.c.l.b16 %v2443
      %v2739 = vunpack.c.l.b16 %v2444
      %v2740 = vunpack.c.l.b16 %v2445
      %v2741 = vunpack.c.l.b16 %v2446
      %v2742 = vunpack.c.l.b16 %v2447
      %v2743 = vunpack.c.l.b16 %v2448
      %v2744 = vunpack.c.l.b16 %v2449
      %v2745 = vunpack.c.l.b16 %v2450
      %v2746 = vunpack.c.l.b16 %v2451
      %v2747 = vunpack.c.l.b16 %v2452
      %v2748 = vunpack.c.l.b16 %v2453
      %v2749 = vunpack.c.l.b16 %v2454
      %v2750 = vunpack.c.l.b16 %v2455
      %v2751 = vunpack.c.l.b16 %v2456
      %v2752 = vunpack.c.l.b16 %v2457
      %v2753 = vunpack.c.l.b16 %v2458
      %v2754 = vunpack.c.l.b16 %v2459
      %v2755 = vunpack.c.l.b16 %v2460
      %v2756 = vunpack.c.l.b16 %v2461
      %v2757 = vunpack.c.l.b16 %v2462
      %v2758 = vunpack.c.l.b16 %v2463
      %v2759 = vunpack.c.l.b16 %v2464
      %v2760 = vunpack.c.l.b16 %v2465
      %v2761 = vunpack.c.l.b16 %v2466
      %v2762 = vunpack.c.l.b16 %v2467
      %v2763 = vunpack.c.l.b16 %v2468
      %v2764 = vunpack.c.l.b16 %v2469
      %v2765 = vunpack.c.l.b16 %v2470
      %v2766 = vunpack.c.l.b16 %v2471
      %v2767 = vunpack.c.l.b16 %v2472
      %v2768 = vunpack.c.l.b16 %v2473
      %v2769 = vunpack.c.l.b16 %v2474
      %v2770 = vunpack.c.l.b16 %v2475
      %v2771 = vunpack.c.l.b16 %v2476
      %v2772 = vunpack.c.l.b16 %v2477
      %v2773 = vunpack.c.l.b16 %v2478
      %v2774 = vunpack.c.l.b16 %v2479
      %v2775 = vunpack.c.l.b16 %v2480
      %v2776 = vunpack.c.l.b16 %v2481
      %v2777 = vunpack.c.l.b16 %v2482
      %v2778 = vunpack.c.l.b16 %v2483
      %v2779 = vunpack.c.l.b16 %v2484
      %v2780 = vunpack.c.l.b16 %v2485
      %v2781 = vunpack.c.l.b16 %v2486
      %v2782 = vunpack.c.l.b16 %v2487
      %v2783 = vunpack.c.l.b16 %v2488
      %v2784 = vunpack.c.l.b16 %v2489
      %v2785 = vunpack.c.l.b16 %v2490
      %v2786 = vunpack.c.l.b16 %v2491
      %v2787 = vunpack.c.l.b16 %v2492
      %v2788 = vunpack.c.l.b16 %v2493
      %v2789 = vunpack.c.l.b16 %v2494
      %v2790 = vunpack.c.l.b16 %v2495
      %v2791 = vunpack.c.l.b16 %v2496
      %v2792 = vunpack.c.l.b16 %v2497
      %v2793 = vunpack.c.l.b16 %v2498
      %v2794 = vunpack.c.l.b16 %v2499
      %v2795 = vunpack.c.l.b16 %v2500
      %v2796 = vunpack.c.l.b16 %v2501
      %v2797 = vunpack.c.l.b16 %v2502
      %v2798 = vunpack.c.l.b16 %v2503
      %v2799 = vunpack.c.l.b16 %v2504
      %v2800 = vunpack.c.l.b16 %v2505
      %v2801 = vunpack.c.l.b16 %v2506
      %v2802 = vunpack.c.l.b16 %v2507
      %v2803 = vunpack.c.l.b16 %v2508
      %v2804 = vunpack.c.l.b16 %v2509
      %v2805 = vunpack.c.l.b16 %v2510
      %v2806 = vunpack.c.l.b16 %v2511
      %v2807 = vunpack.c.l.b16 %v2512
      %v2808 = vunpack.c.l.b16 %v2513
      %v2809 = vunpack.c.l.b16 %v2514
      %v2810 = vunpack.c.l.b16 %v2515
      %v2811 = vunpack.c.l.b16 %v2516
      %v2812 = vunpack.c.l.b16 %v2517
      %v2813 = vunpack.c.l.b16 %v2518
      %v2814 = vunpack.c.l.b16 %v2519
      %v2815 = vunpack.c.l.b16 %v2520
      %v2816 = vunpack.c.l.b16 %v2521
      %v2817 = vunpack.c.l.b16 %v2522
      %v2818 = vunpack.c.l.b16 %v2523
      %v2819 = vunpack.c.l.b16 %v2524
      %v2820 = vunpack.c.l.b16 %v2525
      %v2821 = vunpack.c.l.b16 %v2526
      %v2822 = vunpack.c.l.b16 %v2527
      %v2823 = vunpack.c.l.b16 %v2528
      %v2824 = vunpack.c.l.b16 %v2529
      %v2825 = vunpack.c.l.b16 %v2530
      %v2826 = vunpack.c.l.b16 %v2531
      %v2827 = vunpack.c.l.b16 %v2532
      %v2828 = vunpack.c.l.b16 %v2533
      %v2829 = vunpack.c.l.b16 %v2534
      %v2830 = vunpack.c.l.b16 %v2535
      %v2831 = vunpack.c.l.b16 %v2536
      %v2832 = vunpack.c.l.b16 %v2537
      %v2833 = vunpack.c.l.b16 %v2538
      %v2834 = vunpack.c.l.b16 %v2539
      %v2835 = vunpack.c.l.b16 %v2540
      %v2836 = vunpack.c.l.b16 %v2541
      %v2837 = vunpack.c.l.b16 %v2542
      %v2838 = vunpack.c.l.b16 %v2543
      %v2839 = vunpack.c.l.b16 %v2544
      %v2840 = vunpack.c.l.b16 %v2545
      %v2841 = vunpack.c.l.b16 %v2546
      %v2842 = vunpack.c.l.b16 %v2547
      %v2843 = vunpack.c.l.b16 %v2548
      %v2844 = vunpack.c.l.b16 %v2549
      %v2845 = vunpack.c.l.b16 %v2550
      %v2846 = vunpack.c.l.b16 %v2551
      %v2847 = vunpack.c.l.b16 %v2552
      %v2848 = vunpack.c.l.b16 %v2553
      %v2849 = vunpack.c.l.b16 %v2554
      %v2850 = vunpack.c.l.b16 %v2555
      %v2851 = vunpack.c.l.b16 %v2556
      %v2852 = vunpack.c.l.b16 %v2557
      %v2853 = vunpack.c.l.b16 %v2558
      %v2854 = vunpack.c.l.b16 %v2559
      %v2855 = vunpack.c.l.b16 %v2560
      %v2856 = vunpack.c.l.b16 %v2561
      %v2857 = vunpack.c.l.b16 %v2562
      %v2858 = vunpack.c.l.b16 %v2563
      %v2859 = vunpack.c.l.b16 %v2564
      %v2860 = vunpack.c.l.b16 %v2565
      %v2861 = vunpack.c.l.b16 %v2566
      %v2862 = vunpack.c.l.b16 %v2567
      %v2863 = vunpack.c.l.b16 %v2568
      %v2864 = vunpack.c.l.b16 %v2569
      %v2865 = vunpack.c.l.b16 %v2570
      %v2866 = vunpack.c.l.b16 %v2571
      %v2867 = vunpack.c.l.b16 %v2572
      %v2868 = vunpack.c.l.b16 %v2573
      %v2869 = vunpack.c.l.b16 %v2574
      %v2870 = vunpack.c.l.b16 %v2575
      %v2871 = vunpack.c.l.b16 %v2576
      %v2872 = vunpack.c.l.b16 %v2577
      %v2873 = vunpack.c.l.b16 %v2578
      %v2874 = vunpack.c.l.b16 %v2579
      %v2875 = vunpack.c.l.b16 %v2580
      %v2876 = vunpack.c.l.b16 %v2581
      %v2877 = vunpack.c.l.b16 %v2582
      %v2878 = vpack.c.b16 %v2735, %v2734
      %v2879 = vpack.c.b16 %v2737, %v2736
      %v2880 = vpack.c.b16 %v2739, %v2738
      %v2881 = vpack.c.b16 %v2741, %v2740
      %v2882 = vpack.c.b16 %v2743, %v2742
      %v2883 = vpack.c.b16 %v2745, %v2744
      %v2884 = vpack.c.b16 %v2747, %v2746
      %v2885 = vpack.c.b16 %v2749, %v2748
      %v2886 = vpack.c.b16 %v2751, %v2750
      %v2887 = vpack.c.b16 %v2753, %v2752
      %v2888 = vpack.c.b16 %v2755, %v2754
      %v2889 = vpack.c.b16 %v2757, %v2756
      %v2890 = vpack.c.b16 %v2759, %v2758
      %v2891 = vpack.c.b16 %v2761, %v2760
      %v2892 = vpack.c.b16 %v2763, %v2762
      %v2893 = vpack.c.b16 %v2765, %v2764
      %v2894 = vpack.c.b16 %v2767, %v2766
      %v2895 = vpack.c.b16 %v2769, %v2768
      %v2896 = vpack.c.b16 %v2771, %v2770
      %v2897 = vpack.c.b16 %v2773, %v2772
      %v2898 = vpack.c.b16 %v2775, %v2774
      %v2899 = vpack.c.b16 %v2777, %v2776
      %v2900 = vpack.c.b16 %v2779, %v2778
      %v2901 = vpack.c.b16 %v2781, %v2780
      %v2902 = vpack.c.b16 %v2783, %v2782
      %v2903 = vpack.c.b16 %v2785, %v2784
      %v2904 = vpack.c.b16 %v2787, %v2786
      %v2905 = vpack.c.b16 %v2789, %v2788
      %v2906 = vpack.c.b16 %v2791, %v2790
      %v2907 = vpack.c.b16 %v2793, %v2792
      %v2908 = vpack.c.b16 %v2795, %v2794
      %v2909 = vpack.c.b16 %v2797, %v2796
      %v2910 = vpack.c.b16 %v2799, %v2798
      %v2911 = vpack.c.b16 %v2801, %v2800
      %v2912 = vpack.c.b16 %v2803, %v2802
      %v2913 = vpack.c.b16 %v2805, %v2804
      %v2914 = vpack.c.b16 %v2807, %v2806
      %v2915 = vpack.c.b16 %v2809, %v2808
      %v2916 = vpack.c.b16 %v2811, %v2810
      %v2917 = vpack.c.b16 %v2813, %v2812
      %v2918 = vpack.c.b16 %v2815, %v2814
      %v2919 = vpack.c.b16 %v2817, %v2816
      %v2920 = vpack.c.b16 %v2819, %v2818
      %v2921 = vpack.c.b16 %v2821, %v2820
      %v2922 = vpack.c.b16 %v2823, %v2822
      %v2923 = vpack.c.b16 %v2825, %v2824
      %v2924 = vpack.c.b16 %v2827, %v2826
      %v2925 = vpack.c.b16 %v2829, %v2828
      %v2926 = vpack.c.b16 %v2831, %v2830
      %v2927 = vpack.c.b16 %v2833, %v2832
      %v2928 = vpack.c.b16 %v2835, %v2834
      %v2929 = vpack.c.b16 %v2837, %v2836
      %v2930 = vpack.c.b16 %v2839, %v2838
      %v2931 = vpack.c.b16 %v2841, %v2840
      %v2932 = vpack.c.b16 %v2843, %v2842
      %v2933 = vpack.c.b16 %v2845, %v2844
      %v2934 = vpack.c.b16 %v2847, %v2846
      %v2935 = vpack.c.b16 %v2849, %v2848
      %v2936 = vpack.c.b16 %v2851, %v2850
      %v2937 = vpack.c.b16 %v2853, %v2852
      %v2938 = vpack.c.b16 %v2855, %v2854
      %v2939 = vpack.c.b16 %v2857, %v2856
      %v2940 = vpack.c.b16 %v2859, %v2858
      %v2941 = vpack.c.b16 %v2861, %v2860
      %v2942 = vpack.c.b16 %v2863, %v2862
      %v2943 = vpack.c.b16 %v2865, %v2864
      %v2944 = vpack.c.b16 %v2867, %v2866
      %v2945 = vpack.c.b16 %v2869, %v2868
      %v2946 = vpack.c.b16 %v2871, %v2870
      %v2947 = vpack.c.b16 %v2873, %v2872
      %v2948 = vpack.c.b16 %v2875, %v2874
      %v2949 = vpack.c.b16 %v2877, %v2876
      %3022 = vmatprep.subr.bf16.mxu0 0
      %3023 = vmatpush1.bf16.msra.mxu0 %v2878
      %3024 = vmatprep.subr.bf16.mxu0 0
      %3025 = vmatpush1.bf16.msra.mxu0 %v2879
      %3026 = vmatprep.subr.bf16.mxu0 0
      %3027 = vmatpush1.bf16.msra.mxu0 %v2880
      %3028 = vmatprep.subr.bf16.mxu0 0
      %3029 = vmatpush1.bf16.msra.mxu0 %v2881
      %3030 = vmatprep.subr.bf16.mxu0 0
      %3031 = vmatpush1.bf16.msra.mxu0 %v2882
      %3032 = vmatprep.subr.bf16.mxu0 0
      %3033 = vmatpush1.bf16.msra.mxu0 %v2883
      %3034 = vmatprep.subr.bf16.mxu0 0
      %3035 = vmatpush1.bf16.msra.mxu0 %v2884
      %3036 = vmatprep.subr.bf16.mxu0 0
      %3037 = vmatpush1.bf16.msra.mxu0 %v2885
      %3038 = vmatprep.subr.bf16.mxu0 0
      %3039 = vmatpush1.bf16.msra.mxu0 %v2886
      %3040 = vmatprep.subr.bf16.mxu0 0
      %3041 = vmatpush1.bf16.msra.mxu0 %v2887
      %3042 = vmatprep.subr.bf16.mxu0 0
      %3043 = vmatpush1.bf16.msra.mxu0 %v2888
      %3044 = vmatprep.subr.bf16.mxu0 0
      %3045 = vmatpush1.bf16.msra.mxu0 %v2889
      %3046 = vmatprep.subr.bf16.mxu0 0
      %3047 = vmatpush1.bf16.msra.mxu0 %v2890
      %3048 = vmatprep.subr.bf16.mxu0 0
      %3049 = vmatpush1.bf16.msra.mxu0 %v2891
      %3050 = vmatprep.subr.bf16.mxu0 0
      %3051 = vmatpush1.bf16.msra.mxu0 %v2892
      %3052 = vmatprep.subr.bf16.mxu0 0
      %3053 = vmatpush1.bf16.msra.mxu0 %v2893
      %3054 = vmatprep.mubr.bf16.mxu0 %v2368
      %3055 = vmatmul.mubr.bf16.gmra.mrb[0].mxu0 %v2367
      %v3056 = vpop.f32.mrb[0].mxu0
      %v3057 = vadd.f32 %v2588, %v3056
      %v3058 = vpop.f32.mrb[0].mxu0
      %v3059 = vpop.f32.mrb[0].mxu0
      %v3060 = vadd.f32 %v2588, %v3059
      %v3061 = vpop.f32.mrb[0].mxu0
      %3062 = vmatprep.mubr.bf16.mxu0 %v2377
      %3063 = vmatmul.mubr.bf16.gmra.mrb[0].mxu0 %v2376
      %v3064 = vpop.f32.mrb[0].mxu0
      %v3065 = vadd.f32 %v2588, %v3064
      %v3066 = vpop.f32.mrb[0].mxu0
      %v3067 = vpop.f32.mrb[0].mxu0
      %v3068 = vadd.f32 %v2588, %v3067
      %v3069 = vpop.f32.mrb[0].mxu0
      %3070 = vmatprep.mubr.bf16.mxu0 %v2386
      %3071 = vmatmul.mubr.bf16.gmra.mrb[0].mxu0 %v2385
      %v3072 = vpop.f32.mrb[0].mxu0
      %v3073 = vadd.f32 %v2588, %v3072
      %v3074 = vpop.f32.mrb[0].mxu0
      %v3075 = vpop.f32.mrb[0].mxu0
      %v3076 = vadd.f32 %v2588, %v3075
      %v3077 = vpop.f32.mrb[0].mxu0
      %3078 = vmatprep.mubr.bf16.mxu0 %v2395
      %3079 = vmatmul.mubr.bf16.gmra.mrb[0].mxu0 %v2394
      %v3080 = vpop.f32.mrb[0].mxu0
      %v3081 = vadd.f32 %v2588, %v3080
      %v3082 = vpop.f32.mrb[0].mxu0
      %v3083 = vpop.f32.mrb[0].mxu0
      %v3084 = vadd.f32 %v2588, %v3083
      %v3085 = vpop.f32.mrb[0].mxu0
      %3086 = vmatprep.mubr.bf16.mxu0 %v2404
      %3087 = vmatmul.mubr.bf16.gmra.mrb[0].mxu0 %v2403
      %v3088 = vpop.f32.mrb[0].mxu0
      %v3089 = vadd.f32 %v2588, %v3088
      %v3090 = vpop.f32.mrb[0].mxu0
      %v3091 = vpop.f32.mrb[0].mxu0
      %v3092 = vadd.f32 %v2588, %v3091
      %v3093 = vpop.f32.mrb[0].mxu0
      %3094 = vmatprep.mubr.bf16.mxu0 %v2413
      %3095 = vmatmul.mubr.bf16.gmra.mrb[0].mxu0 %v2412
      %v3096 = vpop.f32.mrb[0].mxu0
      %v3097 = vadd.f32 %v2588, %v3096
      %v3098 = vpop.f32.mrb[0].mxu0
      %v3099 = vpop.f32.mrb[0].mxu0
      %v3100 = vadd.f32 %v2588, %v3099
      %v3101 = vpop.f32.mrb[0].mxu0
      %3102 = vmatprep.mubr.bf16.mxu0 %v2422
      %3103 = vmatmul.mubr.bf16.gmra.mrb[0].mxu0 %v2421
      %v3104 = vpop.f32.mrb[0].mxu0
      %v3105 = vadd.f32 %v2588, %v3104
      %v3106 = vpop.f32.mrb[0].mxu0
      %v3107 = vpop.f32.mrb[0].mxu0
      %v3108 = vadd.f32 %v2588, %v3107
      %v3109 = vpop.f32.mrb[0].mxu0
      %3110 = vmatprep.mubr.bf16.mxu0 %v2431
      %3111 = vmatmul.mubr.bf16.gmra.mrb[0].mxu0 %v2430
      %v3112 = vpop.f32.mrb[0].mxu0
      %v3113 = vadd.f32 %v2588, %v3112
      %v3114 = vpop.f32.mrb[0].mxu0
      %v3115 = vpop.f32.mrb[0].mxu0
      %v3116 = vadd.f32 %v2588, %v3115
      %v3117 = vpop.f32.mrb[0].mxu0
      %3118 = vdwg.mxu0
      %3119 = vmatprep.subr.bf16.mxu0 0
      %3120 = vmatpush1.bf16.msra.mxu0 %v2894
      %3121 = vmatprep.subr.bf16.mxu0 0
      %3122 = vmatpush1.bf16.msra.mxu0 %v2895
      %3123 = vmatprep.subr.bf16.mxu0 0
      %3124 = vmatpush1.bf16.msra.mxu0 %v2896
      %3125 = vmatprep.subr.bf16.mxu0 0
      %3126 = vmatpush1.bf16.msra.mxu0 %v2897
      %3127 = vmatprep.subr.bf16.mxu0 0
      %3128 = vmatpush1.bf16.msra.mxu0 %v2898
      %3129 = vmatprep.subr.bf16.mxu0 0
      %3130 = vmatpush1.bf16.msra.mxu0 %v2899
      %3131 = vmatprep.subr.bf16.mxu0 0
      %3132 = vmatpush1.bf16.msra.mxu0 %v2900
      %3133 = vmatprep.subr.bf16.mxu0 0
      %3134 = vmatpush1.bf16.msra.mxu0 %v2901
      %3135 = vmatprep.subr.bf16.mxu0 0
      %3136 = vmatpush1.bf16.msra.mxu0 %v2902
      %3137 = vmatprep.subr.bf16.mxu0 0
      %3138 = vmatpush1.bf16.msra.mxu0 %v2903
      %3139 = vmatprep.subr.bf16.mxu0 0
      %3140 = vmatpush1.bf16.msra.mxu0 %v2904
      %3141 = vmatprep.subr.bf16.mxu0 0
      %3142 = vmatpush1.bf16.msra.mxu0 %v2905
      %3143 = vmatprep.subr.bf16.mxu0 0
      %3144 = vmatpush1.bf16.msra.mxu0 %v2906
      %3145 = vmatprep.subr.bf16.mxu0 0
      %3146 = vmatpush1.bf16.msra.mxu0 %v2907
      %3147 = vmatprep.subr.bf16.mxu0 0
      %3148 = vmatpush1.bf16.msra.mxu0 %v2908
      %3149 = vmatprep.subr.bf16.mxu0 0
      %3150 = vmatpush1.bf16.msra.mxu0 %v2909
      %3151 = vmatprep.mubr.bf16.mxu0 %v2370
      %3152 = vmatmul.mubr.bf16.gmra.mrb[0].mxu0 %v2369
      %v3153 = vpop.f32.mrb[0].mxu0
      %v3154 = vadd.f32 %v3057, %v3153
      %v3155 = vpop.f32.mrb[0].mxu0
      %v3156 = vpop.f32.mrb[0].mxu0
      %v3157 = vadd.f32 %v3060, %v3156
      %v3158 = vpop.f32.mrb[0].mxu0
      %3159 = vmatprep.mubr.bf16.mxu0 %v2379
      %3160 = vmatmul.mubr.bf16.gmra.mrb[0].mxu0 %v2378
      %v3161 = vpop.f32.mrb[0].mxu0
      %v3162 = vadd.f32 %v3065, %v3161
      %v3163 = vpop.f32.mrb[0].mxu0
      %v3164 = vpop.f32.mrb[0].mxu0
      %v3165 = vadd.f32 %v3068, %v3164
      %v3166 = vpop.f32.mrb[0].mxu0
      %3167 = vmatprep.mubr.bf16.mxu0 %v2388
      %3168 = vmatmul.mubr.bf16.gmra.mrb[0].mxu0 %v2387
      %v3169 = vpop.f32.mrb[0].mxu0
      %v3170 = vadd.f32 %v3073, %v3169
      %v3171 = vpop.f32.mrb[0].mxu0
      %v3172 = vpop.f32.mrb[0].mxu0
      %v3173 = vadd.f32 %v3076, %v3172
      %v3174 = vpop.f32.mrb[0].mxu0
      %3175 = vmatprep.mubr.bf16.mxu0 %v2397
      %3176 = vmatmul.mubr.bf16.gmra.mrb[0].mxu0 %v2396
      %v3177 = vpop.f32.mrb[0].mxu0
      %v3178 = vadd.f32 %v3081, %v3177
      %v3179 = vpop.f32.mrb[0].mxu0
      %v3180 = vpop.f32.mrb[0].mxu0
      %v3181 = vadd.f32 %v3084, %v3180
      %v3182 = vpop.f32.mrb[0].mxu0
      %3183 = vmatprep.mubr.bf16.mxu0 %v2406
      %3184 = vmatmul.mubr.bf16.gmra.mrb[0].mxu0 %v2405
      %v3185 = vpop.f32.mrb[0].mxu0
      %v3186 = vadd.f32 %v3089, %v3185
      %v3187 = vpop.f32.mrb[0].mxu0
      %v3188 = vpop.f32.mrb[0].mxu0
      %v3189 = vadd.f32 %v3092, %v3188
      %v3190 = vpop.f32.mrb[0].mxu0
      %3191 = vmatprep.mubr.bf16.mxu0 %v2415
      %3192 = vmatmul.mubr.bf16.gmra.mrb[0].mxu0 %v2414
      %v3193 = vpop.f32.mrb[0].mxu0
      %v3194 = vadd.f32 %v3097, %v3193
      %v3195 = vpop.f32.mrb[0].mxu0
      %v3196 = vpop.f32.mrb[0].mxu0
      %v3197 = vadd.f32 %v3100, %v3196
      %v3198 = vpop.f32.mrb[0].mxu0
      %3199 = vmatprep.mubr.bf16.mxu0 %v2424
      %3200 = vmatmul.mubr.bf16.gmra.mrb[0].mxu0 %v2423
      %v3201 = vpop.f32.mrb[0].mxu0
      %v3202 = vadd.f32 %v3105, %v3201
      %v3203 = vpop.f32.mrb[0].mxu0
      %v3204 = vpop.f32.mrb[0].mxu0
      %v3205 = vadd.f32 %v3108, %v3204
      %v3206 = vpop.f32.mrb[0].mxu0
      %3207 = vmatprep.mubr.bf16.mxu0 %v2433
      %3208 = vmatmul.mubr.bf16.gmra.mrb[0].mxu0 %v2432
      %v3209 = vpop.f32.mrb[0].mxu0
      %v3210 = vadd.f32 %v3113, %v3209
      %v3211 = vpop.f32.mrb[0].mxu0
      %v3212 = vpop.f32.mrb[0].mxu0
      %v3213 = vadd.f32 %v3116, %v3212
      %v3214 = vpop.f32.mrb[0].mxu0
      %3215 = vdwg.mxu0
      %3216 = vmatprep.subr.bf16.mxu0 0
      %3217 = vmatpush1.bf16.msra.mxu0 %v2910
      %3218 = vmatprep.subr.bf16.mxu0 0
      %3219 = vmatpush1.bf16.msra.mxu0 %v2911
      %3220 = vmatprep.subr.bf16.mxu0 0
      %3221 = vmatpush1.bf16.msra.mxu0 %v2912
      %3222 = vmatprep.subr.bf16.mxu0 0
      %3223 = vmatpush1.bf16.msra.mxu0 %v2913
      %3224 = vmatprep.subr.bf16.mxu0 0
      %3225 = vmatpush1.bf16.msra.mxu0 %v2914
      %3226 = vmatprep.subr.bf16.mxu0 0
      %3227 = vmatpush1.bf16.msra.mxu0 %v2915
      %3228 = vmatprep.subr.bf16.mxu0 0
      %3229 = vmatpush1.bf16.msra.mxu0 %v2916
      %3230 = vmatprep.subr.bf16.mxu0 0
      %3231 = vmatpush1.bf16.msra.mxu0 %v2917
      %3232 = vmatprep.subr.bf16.mxu0 0
      %3233 = vmatpush1.bf16.msra.mxu0 %v2918
      %3234 = vmatprep.subr.bf16.mxu0 0
      %3235 = vmatpush1.bf16.msra.mxu0 %v2919
      %3236 = vmatprep.subr.bf16.mxu0 0
      %3237 = vmatpush1.bf16.msra.mxu0 %v2920
      %3238 = vmatprep.subr.bf16.mxu0 0
      %3239 = vmatpush1.bf16.msra.mxu0 %v2921
      %3240 = vmatprep.subr.bf16.mxu0 0
      %3241 = vmatpush1.bf16.msra.mxu0 %v2922
      %3242 = vmatprep.subr.bf16.mxu0 0
      %3243 = vmatpush1.bf16.msra.mxu0 %v2923
      %3244 = vmatprep.subr.bf16.mxu0 0
      %3245 = vmatpush1.bf16.msra.mxu0 %v2924
      %3246 = vmatprep.subr.bf16.mxu0 0
      %3247 = vmatpush1.bf16.msra.mxu0 %v2925
      %3248 = vmatprep.mubr.bf16.mxu0 %v2372
      %3249 = vmatmul.mubr.bf16.gmra.mrb[0].mxu0 %v2371
      %v3250 = vpop.f32.mrb[0].mxu0
      %v3251 = vadd.f32 %v3154, %v3250
      %v3252 = vpop.f32.mrb[0].mxu0
      %v3253 = vpop.f32.mrb[0].mxu0
      %v3254 = vadd.f32 %v3157, %v3253
      %v3255 = vpop.f32.mrb[0].mxu0
      %3256 = vmatprep.mubr.bf16.mxu0 %v2381
      %3257 = vmatmul.mubr.bf16.gmra.mrb[0].mxu0 %v2380
      %v3258 = vpop.f32.mrb[0].mxu0
      %v3259 = vadd.f32 %v3162, %v3258
      %v3260 = vpop.f32.mrb[0].mxu0
      %v3261 = vpop.f32.mrb[0].mxu0
      %v3262 = vadd.f32 %v3165, %v3261
      %v3263 = vpop.f32.mrb[0].mxu0
      %3264 = vmatprep.mubr.bf16.mxu0 %v2390
      %3265 = vmatmul.mubr.bf16.gmra.mrb[0].mxu0 %v2389
      %v3266 = vpop.f32.mrb[0].mxu0
      %v3267 = vadd.f32 %v3170, %v3266
      %v3268 = vpop.f32.mrb[0].mxu0
      %v3269 = vpop.f32.mrb[0].mxu0
      %v3270 = vadd.f32 %v3173, %v3269
      %v3271 = vpop.f32.mrb[0].mxu0
      %3272 = vmatprep.mubr.bf16.mxu0 %v2399
      %3273 = vmatmul.mubr.bf16.gmra.mrb[0].mxu0 %v2398
      %v3274 = vpop.f32.mrb[0].mxu0
      %v3275 = vadd.f32 %v3178, %v3274
      %v3276 = vpop.f32.mrb[0].mxu0
      %v3277 = vpop.f32.mrb[0].mxu0
      %v3278 = vadd.f32 %v3181, %v3277
      %v3279 = vpop.f32.mrb[0].mxu0
      %3280 = vmatprep.mubr.bf16.mxu0 %v2408
      %3281 = vmatmul.mubr.bf16.gmra.mrb[0].mxu0 %v2407
      %v3282 = vpop.f32.mrb[0].mxu0
      %v3283 = vadd.f32 %v3186, %v3282
      %v3284 = vpop.f32.mrb[0].mxu0
      %v3285 = vpop.f32.mrb[0].mxu0
      %v3286 = vadd.f32 %v3189, %v3285
      %v3287 = vpop.f32.mrb[0].mxu0
      %3288 = vmatprep.mubr.bf16.mxu0 %v2417
      %3289 = vmatmul.mubr.bf16.gmra.mrb[0].mxu0 %v2416
      %v3290 = vpop.f32.mrb[0].mxu0
      %v3291 = vadd.f32 %v3194, %v3290
      %v3292 = vpop.f32.mrb[0].mxu0
      %v3293 = vpop.f32.mrb[0].mxu0
      %v3294 = vadd.f32 %v3197, %v3293
      %v3295 = vpop.f32.mrb[0].mxu0
      %3296 = vmatprep.mubr.bf16.mxu0 %v2426
      %3297 = vmatmul.mubr.bf16.gmra.mrb[0].mxu0 %v2425
      %v3298 = vpop.f32.mrb[0].mxu0
      %v3299 = vadd.f32 %v3202, %v3298
      %v3300 = vpop.f32.mrb[0].mxu0
      %v3301 = vpop.f32.mrb[0].mxu0
      %v3302 = vadd.f32 %v3205, %v3301
      %v3303 = vpop.f32.mrb[0].mxu0
      %3304 = vmatprep.mubr.bf16.mxu0 %v2435
      %3305 = vmatmul.mubr.bf16.gmra.mrb[0].mxu0 %v2434
      %v3306 = vpop.f32.mrb[0].mxu0
      %v3307 = vadd.f32 %v3210, %v3306
      %v3308 = vpop.f32.mrb[0].mxu0
      %v3309 = vpop.f32.mrb[0].mxu0
      %v3310 = vadd.f32 %v3213, %v3309
      %v3311 = vpop.f32.mrb[0].mxu0
      %3312 = vdwg.mxu0
      %3313 = vmatprep.subr.bf16.mxu0 0
      %3314 = vmatpush1.bf16.msra.mxu0 %v2926
      %3315 = vmatprep.subr.bf16.mxu0 0
      %3316 = vmatpush1.bf16.msra.mxu0 %v2927
      %3317 = vmatprep.subr.bf16.mxu0 0
      %3318 = vmatpush1.bf16.msra.mxu0 %v2928
      %3319 = vmatprep.subr.bf16.mxu0 0
      %3320 = vmatpush1.bf16.msra.mxu0 %v2929
      %3321 = vmatprep.subr.bf16.mxu0 0
      %3322 = vmatpush1.bf16.msra.mxu0 %v2930
      %3323 = vmatprep.subr.bf16.mxu0 0
      %3324 = vmatpush1.bf16.msra.mxu0 %v2931
      %3325 = vmatprep.subr.bf16.mxu0 0
      %3326 = vmatpush1.bf16.msra.mxu0 %v2932
      %3327 = vmatprep.subr.bf16.mxu0 0
      %3328 = vmatpush1.bf16.msra.mxu0 %v2933
      %3329 = vmatprep.subr.bf16.mxu0 0
      %3330 = vmatpush1.bf16.msra.mxu0 %v2934
      %3331 = vmatprep.subr.bf16.mxu0 0
      %3332 = vmatpush1.bf16.msra.mxu0 %v2935
      %3333 = vmatprep.subr.bf16.mxu0 0
      %3334 = vmatpush1.bf16.msra.mxu0 %v2936
      %3335 = vmatprep.subr.bf16.mxu0 0
      %3336 = vmatpush1.bf16.msra.mxu0 %v2937
      %3337 = vmatprep.subr.bf16.mxu0 0
      %3338 = vmatpush1.bf16.msra.mxu0 %v2938
      %3339 = vmatprep.subr.bf16.mxu0 0
      %3340 = vmatpush1.bf16.msra.mxu0 %v2939
      %3341 = vmatprep.subr.bf16.mxu0 0
      %3342 = vmatpush1.bf16.msra.mxu0 %v2940
      %3343 = vmatprep.subr.bf16.mxu0 0
      %3344 = vmatpush1.bf16.msra.mxu0 %v2941
      %3345 = vmatprep.mubr.bf16.mxu0 %v2374
      %3346 = vmatmul.mubr.bf16.gmra.mrb[0].mxu0 %v2373
      %v3347 = vpop.f32.mrb[0].mxu0
      %v3348 = vadd.f32 %v3251, %v3347
      %v3349 = vpop.f32.mrb[0].mxu0
      %v3350 = vpop.f32.mrb[0].mxu0
      %v3351 = vadd.f32 %v3254, %v3350
      %v3352 = vpop.f32.mrb[0].mxu0
      %3353 = vmatprep.mubr.bf16.mxu0 %v2383
      %3354 = vmatmul.mubr.bf16.gmra.mrb[0].mxu0 %v2382
      %v3355 = vpop.f32.mrb[0].mxu0
      %v3356 = vadd.f32 %v3259, %v3355
      %v3357 = vpop.f32.mrb[0].mxu0
      %v3358 = vpop.f32.mrb[0].mxu0
      %v3359 = vadd.f32 %v3262, %v3358
      %v3360 = vpop.f32.mrb[0].mxu0
      %3361 = vmatprep.mubr.bf16.mxu0 %v2392
      %3362 = vmatmul.mubr.bf16.gmra.mrb[0].mxu0 %v2391
      %v3363 = vpop.f32.mrb[0].mxu0
      %v3364 = vadd.f32 %v3267, %v3363
      %v3365 = vpop.f32.mrb[0].mxu0
      %v3366 = vpop.f32.mrb[0].mxu0
      %v3367 = vadd.f32 %v3270, %v3366
      %v3368 = vpop.f32.mrb[0].mxu0
      %3369 = vmatprep.mubr.bf16.mxu0 %v2401
      %3370 = vmatmul.mubr.bf16.gmra.mrb[0].mxu0 %v2400
      %v3371 = vpop.f32.mrb[0].mxu0
      %v3372 = vadd.f32 %v3275, %v3371
      %v3373 = vpop.f32.mrb[0].mxu0
      %v3374 = vpop.f32.mrb[0].mxu0
      %v3375 = vadd.f32 %v3278, %v3374
      %v3376 = vpop.f32.mrb[0].mxu0
      %3377 = vmatprep.mubr.bf16.mxu0 %v2410
      %3378 = vmatmul.mubr.bf16.gmra.mrb[0].mxu0 %v2409
      %v3379 = vpop.f32.mrb[0].mxu0
      %v3380 = vadd.f32 %v3283, %v3379
      %v3381 = vpop.f32.mrb[0].mxu0
      %v3382 = vpop.f32.mrb[0].mxu0
      %v3383 = vadd.f32 %v3286, %v3382
      %v3384 = vpop.f32.mrb[0].mxu0
      %3385 = vmatprep.mubr.bf16.mxu0 %v2419
      %3386 = vmatmul.mubr.bf16.gmra.mrb[0].mxu0 %v2418
      %v3387 = vpop.f32.mrb[0].mxu0
      %v3388 = vadd.f32 %v3291, %v3387
      %v3389 = vpop.f32.mrb[0].mxu0
      %v3390 = vpop.f32.mrb[0].mxu0
      %v3391 = vadd.f32 %v3294, %v3390
      %v3392 = vpop.f32.mrb[0].mxu0
      %3393 = vmatprep.mubr.bf16.mxu0 %v2428
      %3394 = vmatmul.mubr.bf16.gmra.mrb[0].mxu0 %v2427
      %v3395 = vpop.f32.mrb[0].mxu0
      %v3396 = vadd.f32 %v3299, %v3395
      %v3397 = vpop.f32.mrb[0].mxu0
      %v3398 = vpop.f32.mrb[0].mxu0
      %v3399 = vadd.f32 %v3302, %v3398
      %v3400 = vpop.f32.mrb[0].mxu0
      %3401 = vmatprep.mubr.bf16.mxu0 %v2437
      %3402 = vmatmul.mubr.bf16.gmra.mrb[0].mxu0 %v2436
      %v3403 = vpop.f32.mrb[0].mxu0
      %v3404 = vadd.f32 %v3307, %v3403
      %v3405 = vpop.f32.mrb[0].mxu0
      %v3406 = vpop.f32.mrb[0].mxu0
      %v3407 = vadd.f32 %v3310, %v3406
      %v3408 = vpop.f32.mrb[0].mxu0
      %3409 = vdwg.mxu0
      %3410 = vmatprep.subr.bf16.mxu0 0
      %3411 = vmatpush1.bf16.msra.mxu0 %v2942
      %3412 = vmatprep.subr.bf16.mxu0 0
      %3413 = vmatpush1.bf16.msra.mxu0 %v2943
      %3414 = vmatprep.subr.bf16.mxu0 0
      %3415 = vmatpush1.bf16.msra.mxu0 %v2944
      %3416 = vmatprep.subr.bf16.mxu0 0
      %3417 = vmatpush1.bf16.msra.mxu0 %v2945
      %3418 = vmatprep.subr.bf16.mxu0 0
      %3419 = vmatpush1.bf16.msra.mxu0 %v2946
      %3420 = vmatprep.subr.bf16.mxu0 0
      %3421 = vmatpush1.bf16.msra.mxu0 %v2947
      %3422 = vmatprep.subr.bf16.mxu0 0
      %3423 = vmatpush1.bf16.msra.mxu0 %v2948
      %3424 = vmatprep.subr.bf16.mxu0 0
      %3425 = vmatpush1.bf16.msra.mxu0 %v2949
      %3426 = vmatprep.subr.bf16.mxu0 0
      %3427 = vmatpush1.bf16.msra.mxu0 0
      %3428 = vmatprep.subr.bf16.mxu0 0
      %3429 = vmatpush1.bf16.msra.mxu0 0
      %3430 = vmatprep.subr.bf16.mxu0 0
      %3431 = vmatpush1.bf16.msra.mxu0 0
      %3432 = vmatprep.subr.bf16.mxu0 0
      %3433 = vmatpush1.bf16.msra.mxu0 0
      %3434 = vmatprep.subr.bf16.mxu0 0
      %3435 = vmatpush1.bf16.msra.mxu0 0
      %3436 = vmatprep.subr.bf16.mxu0 0
      %3437 = vmatpush1.bf16.msra.mxu0 0
      %3438 = vmatprep.subr.bf16.mxu0 0
      %3439 = vmatpush1.bf16.msra.mxu0 0
      %3440 = vmatprep.subr.bf16.mxu0 0
      %3441 = vmatpush1.bf16.msra.mxu0 0
      %3442 = vmatprep.mubr.bf16.mxu0 0
      %3443 = vmatmul.mubr.bf16.gmra.mrb[0].mxu0 %v2375
      %v3444 = vpop.f32.mrb[0].mxu0
      %v3445 = vadd.f32 %v3348, %v3444
      %v3446 = vpop.f32.mrb[0].mxu0
      %v3447 = vpop.f32.mrb[0].mxu0
      %v3448 = vadd.f32 %v3351, %v3447
      %v3449 = vpop.f32.mrb[0].mxu0
      %3450 = vmatprep.mubr.bf16.mxu0 0
      %3451 = vmatmul.mubr.bf16.gmra.mrb[0].mxu0 %v2384
      %v3452 = vpop.f32.mrb[0].mxu0
      %v3453 = vadd.f32 %v3356, %v3452
      %v3454 = vpop.f32.mrb[0].mxu0
      %v3455 = vpop.f32.mrb[0].mxu0
      %v3456 = vadd.f32 %v3359, %v3455
      %v3457 = vpop.f32.mrb[0].mxu0
      %3458 = vmatprep.mubr.bf16.mxu0 0
      %3459 = vmatmul.mubr.bf16.gmra.mrb[0].mxu0 %v2393
      %v3460 = vpop.f32.mrb[0].mxu0
      %v3461 = vadd.f32 %v3364, %v3460
      %v3462 = vpop.f32.mrb[0].mxu0
      %v3463 = vpop.f32.mrb[0].mxu0
      %v3464 = vadd.f32 %v3367, %v3463
      %v3465 = vpop.f32.mrb[0].mxu0
      %3466 = vmatprep.mubr.bf16.mxu0 0
      %3467 = vmatmul.mubr.bf16.gmra.mrb[0].mxu0 %v2402
      %v3468 = vpop.f32.mrb[0].mxu0
      %v3469 = vadd.f32 %v3372, %v3468
      %v3470 = vpop.f32.mrb[0].mxu0
      %v3471 = vpop.f32.mrb[0].mxu0
      %v3472 = vadd.f32 %v3375, %v3471
      %v3473 = vpop.f32.mrb[0].mxu0
      %3474 = vmatprep.mubr.bf16.mxu0 0
      %3475 = vmatmul.mubr.bf16.gmra.mrb[0].mxu0 %v2411
      %v3476 = vpop.f32.mrb[0].mxu0
      %v3477 = vadd.f32 %v3380, %v3476
      %v3478 = vpop.f32.mrb[0].mxu0
      %v3479 = vpop.f32.mrb[0].mxu0
      %v3480 = vadd.f32 %v3383, %v3479
      %v3481 = vpop.f32.mrb[0].mxu0
      %3482 = vmatprep.mubr.bf16.mxu0 0
      %3483 = vmatmul.mubr.bf16.gmra.mrb[0].mxu0 %v2420
      %v3484 = vpop.f32.mrb[0].mxu0
      %v3485 = vadd.f32 %v3388, %v3484
      %v3486 = vpop.f32.mrb[0].mxu0
      %v3487 = vpop.f32.mrb[0].mxu0
      %v3488 = vadd.f32 %v3391, %v3487
      %v3489 = vpop.f32.mrb[0].mxu0
      %3490 = vmatprep.mubr.bf16.mxu0 0
      %3491 = vmatmul.mubr.bf16.gmra.mrb[0].mxu0 %v2429
      %v3492 = vpop.f32.mrb[0].mxu0
      %v3493 = vadd.f32 %v3396, %v3492
      %v3494 = vpop.f32.mrb[0].mxu0
      %v3495 = vpop.f32.mrb[0].mxu0
      %v3496 = vadd.f32 %v3399, %v3495
      %v3497 = vpop.f32.mrb[0].mxu0
      %3498 = vmatprep.mubr.bf16.mxu0 0
      %3499 = vmatmul.mubr.bf16.gmra.mrb[0].mxu0 %v2438
      %v3500 = vpop.f32.mrb[0].mxu0
      %v3501 = vadd.f32 %v3404, %v3500
      %v3502 = vpop.f32.mrb[0].mxu0
      %v3503 = vpop.f32.mrb[0].mxu0
      %v3504 = vadd.f32 %v3407, %v3503
      %v3505 = vpop.f32.mrb[0].mxu0
      %3506 = vdwg.mxu0
      %v3507 = vadd.f32 %v3445, %v3448
      %v3508 = vadd.f32 %v3507, %v3453
      %v3509 = vadd.f32 %v3508, %v3456
      %v3510 = vadd.f32 %v3509, %v3461
      %v3511 = vadd.f32 %v3510, %v3464
      %v3512 = vadd.f32 %v3511, %v3469
      %v3513 = vadd.f32 %v3512, %v3472
      %v3514 = vrot.slane %v3513, 4
      %v3515 = vadd.f32 %v3513, %v3514
      %v3516 = vrot.slane %v3515, 2
      %v3517 = vadd.f32 %v3515, %v3516
      %v3518 = vrot.slane %v3517, 1
      %v3519 = vadd.f32 %v3517, %v3518
      %v3520 = vadd.f32 %v3477, %v3480
      %v3521 = vadd.f32 %v3520, %v3485
      %v3522 = vadd.f32 %v3521, %v3488
      %v3523 = vadd.f32 %v3522, %v3493
      %v3524 = vadd.f32 %v3523, %v3496
      %v3525 = vadd.f32 %v3524, %v3501
      %v3526 = vadd.f32 %v3525, %v3504
      %v3527 = vrot.slane %v3526, 4
      %v3528 = vadd.f32 %v3526, %v3527
      %v3529 = vrot.slane %v3528, 2
      %v3530 = vadd.f32 %v3528, %v3529
      %v3531 = vrot.slane %v3530, 1
      %v3532 = vadd.f32 %v3530, %v3531
      %v3533 = vmul.f32 %v3445, %v3445
      %v3534 = vmul.f32 %v3448, %v3448
      %v3535 = vmul.f32 %v3453, %v3453
      %v3536 = vmul.f32 %v3456, %v3456
      %v3537 = vmul.f32 %v3461, %v3461
      %v3538 = vmul.f32 %v3464, %v3464
      %v3539 = vmul.f32 %v3469, %v3469
      %v3540 = vmul.f32 %v3472, %v3472
      %v3541 = vmul.f32 %v3477, %v3477
      %v3542 = vmul.f32 %v3480, %v3480
      %v3543 = vmul.f32 %v3485, %v3485
      %v3544 = vmul.f32 %v3488, %v3488
      %v3545 = vmul.f32 %v3493, %v3493
      %v3546 = vmul.f32 %v3496, %v3496
      %v3547 = vmul.f32 %v3501, %v3501
      %v3548 = vmul.f32 %v3504, %v3504
      %v3549 = vadd.f32 %v3533, %v3534
      %v3550 = vadd.f32 %v3549, %v3535
      %v3551 = vadd.f32 %v3550, %v3536
      %v3552 = vadd.f32 %v3551, %v3537
      %v3553 = vadd.f32 %v3552, %v3538
      %v3554 = vadd.f32 %v3553, %v3539
      %v3555 = vadd.f32 %v3554, %v3540
      %v3556 = vrot.slane %v3555, 4
      %v3557 = vadd.f32 %v3555, %v3556
      %v3558 = vrot.slane %v3557, 2
      %v3559 = vadd.f32 %v3557, %v3558
      %v3560 = vrot.slane %v3559, 1
      %v3561 = vadd.f32 %v3559, %v3560
      %v3562 = vadd.f32 %v3541, %v3542
      %v3563 = vadd.f32 %v3562, %v3543
      %v3564 = vadd.f32 %v3563, %v3544
      %v3565 = vadd.f32 %v3564, %v3545
      %v3566 = vadd.f32 %v3565, %v3546
      %v3567 = vadd.f32 %v3566, %v3547
      %v3568 = vadd.f32 %v3567, %v3548
      %v3569 = vrot.slane %v3568, 4
      %v3570 = vadd.f32 %v3568, %v3569
      %v3571 = vrot.slane %v3570, 2
      %v3572 = vadd.f32 %v3570, %v3571
      %v3573 = vrot.slane %v3572, 1
      %v3574 = vadd.f32 %v3572, %v3573
      %vm3577 = vcmask 1041409
      %v3578 = vsel %vm3577, %v3532, %v3519
      %vm3582 = vcmask 1043459
      %v3583 = vsel %vm3582, %v3574, %v3561
      %vm3585 = vcmask 1041408
      %v3586 = vsel %vm3585, %v3578, %v3583
      %v3587 = vld [vmem:[%s9] sm:$0xff]
      %v3588 = vld [vmem:[%s9 + $0x8] sm:$0xff]
      %v3589 = vld [vmem:[%s9 + $0x10] sm:$0xff]
      %v3590 = vld [vmem:[%s9 + $0x18] sm:$0xff]
      %v3591 = vld [vmem:[%s9 + $0x20] sm:$0xff]
      %v3592 = vld [vmem:[%s9 + $0x28] sm:$0xff]
      %v3593 = vld [vmem:[%s9 + $0x30] sm:$0xff]
      %v3594 = vld [vmem:[%s9 + $0x38] sm:$0xff]
      %v3595 = vld [vmem:[%s9 + $0x40] sm:$0xff]
      %v3596 = vld [vmem:[%s9 + $0x48] sm:$0xff]
      %v3597 = vld [vmem:[%s9 + $0x50] sm:$0xff]
      %v3598 = vld [vmem:[%s9 + $0x58] sm:$0xff]
      %v3599 = vld [vmem:[%s9 + $0x60] sm:$0xff]
      %v3600 = vld [vmem:[%s9 + $0x68] sm:$0xff]
      %v3601 = vld [vmem:[%s9 + $0x70] sm:$0xff]
      %v3602 = vld [vmem:[%s9 + $0x78] sm:$0xff]
      %3603 = vmatprep.subr.mxu0 0.0
      %3604 = vmatpush1.msra.mxu0 %v3587
      %3605 = vmatprep.subr.mxu0 0.0
      %3606 = vmatpush1.msra.mxu0 %v3588
      %3607 = vmatprep.subr.mxu0 0.0
      %3608 = vmatpush1.msra.mxu0 %v3589
      %3609 = vmatprep.subr.mxu0 0.0
      %3610 = vmatpush1.msra.mxu0 %v3590
      %3611 = vmatprep.subr.mxu0 0.0
      %3612 = vmatpush1.msra.mxu0 %v3591
      %3613 = vmatprep.subr.mxu0 0.0
      %3614 = vmatpush1.msra.mxu0 %v3592
      %3615 = vmatprep.subr.mxu0 0.0
      %3616 = vmatpush1.msra.mxu0 %v3593
      %3617 = vmatprep.subr.mxu0 0.0
      %3618 = vmatpush1.msra.mxu0 %v3594
      %3619 = vmatprep.subr.mxu0 0.0
      %3620 = vmatpush1.msra.mxu0 %v3595
      %3621 = vmatprep.subr.mxu0 0.0
      %3622 = vmatpush1.msra.mxu0 %v3596
      %3623 = vmatprep.subr.mxu0 0.0
      %3624 = vmatpush1.msra.mxu0 %v3597
      %3625 = vmatprep.subr.mxu0 0.0
      %3626 = vmatpush1.msra.mxu0 %v3598
      %3627 = vmatprep.subr.mxu0 0.0
      %3628 = vmatpush1.msra.mxu0 %v3599
      %3629 = vmatprep.subr.mxu0 0.0
      %3630 = vmatpush1.msra.mxu0 %v3600
      %3631 = vmatprep.subr.mxu0 0.0
      %3632 = vmatpush1.msra.mxu0 %v3601
      %3633 = vmatprep.subr.mxu0 0.0
      %3634 = vmatpush1.msra.mxu0 %v3602
      %3635 = vmatprep.subr.mxu0 0.0
      %3636 = vmatpush1.msra.mxu0 0.0
      %3637 = vmatprep.subr.mxu0 0.0
      %3638 = vmatpush1.msra.mxu0 0.0
      %3639 = vmatprep.subr.mxu0 0.0
      %3640 = vmatpush1.msra.mxu0 0.0
      %3641 = vmatprep.subr.mxu0 0.0
      %3642 = vmatpush1.msra.mxu0 0.0
      %3643 = vmatprep.subr.mxu0 0.0
      %3644 = vmatpush1.msra.mxu0 0.0
      %3645 = vmatprep.subr.mxu0 0.0
      %3646 = vmatpush1.msra.mxu0 0.0
      %3647 = vmatprep.subr.mxu0 0.0
      %3648 = vmatpush1.msra.mxu0 0.0
      %3649 = vmatprep.subr.mxu0 0.0
      %3650 = vmatpush1.msra.mxu0 0.0
      %3651 = vmatprep.subr.mxu0 0.0
      %3652 = vmatpush1.msra.mxu0 0.0
      %3653 = vmatprep.subr.mxu0 0.0
      %3654 = vmatpush1.msra.mxu0 0.0
      %3655 = vmatprep.subr.mxu0 0.0
      %3656 = vmatpush1.msra.mxu0 0.0
      %3657 = vmatprep.subr.mxu0 0.0
      %3658 = vmatpush1.msra.mxu0 0.0
      %3659 = vmatprep.subr.mxu0 0.0
      %3660 = vmatpush1.msra.mxu0 0.0
      %3661 = vmatprep.subr.mxu0 0.0
      %3662 = vmatpush1.msra.mxu0 0.0
      %3663 = vmatprep.subr.mxu0 0.0
      %3664 = vmatpush1.msra.mxu0 0.0
      %3665 = vmatprep.subr.mxu0 0.0
      %3666 = vmatpush1.msra.mxu0 0.0
      %3667 = vmatprep.mubr.f32.mxu0 0.0
      %3668 = vmatmul.mubr.f32.gmra.mrb[0].mxu0 %v3586
      %v3669 = vpop.f32.mrb[0].mxu0
      %v3670 = vadd.f32 0.0, %v3669
      %v3671 = vpop.f32.mrb[0].mxu0
      %3672 = vdwg.mxu0
      %v3673 = vmul.f32 %v3670, %v3670
      %v3675 = vrot.slane %v3673, 6
      %v3677 = vsub.f32 %v3670, %v3675
      %v3678 = vmax.f32 %v3677, 0.0
      %v3679 = vadd.f32 %v3678, 1e-05
      %v3680 = vrsqrt.pop %v3679
      %v3681 = vld [vmem:[%s3] sm:$0x1]
      %v3683 = vlaneseq
      %v3684 = vshrl.u32 %v3683, 7
      %v3685 = vsub.s32 0, %v3684
      %v3686 = vrot.slane %v3681, %v3685
      %v3688 = vmul.f32 %v3680, %v3686
      %v3689 = vld [vmem:[%s4] sm:$0x1]
      %v3691 = vrot.slane %v3688, 2
      %v3693 = vmul.f32 %v3670, %v3691
      %v3695 = vlaneseq
      %v3696 = vshrl.u32 %v3695, 7
      %v3697 = vsub.s32 0, %v3696
      %v3698 = vrot.slane %v3689, %v3697
      %v3700 = vsub.f32 %v3698, %v3693
      %v3702 = vunpack.c.l.s4 1966171168
      %v3703 = vunpack.c.0.s8 %v3702
      %v3704 = vlaneseq
      %v3705 = vshrl.u32 %v3704, 7
      %v3706 = vsub.s32 %v3703, %v3705
      %v3707 = vrot.slane %v3688, %v3706
      %v3708 = vcombine.high %v3707, %v3707
      %v3710 = vunpack.c.l.s4 1966171168
      %v3711 = vunpack.c.0.s8 %v3710
      %v3712 = vlaneseq
      %v3713 = vshrl.u32 %v3712, 7
      %v3714 = vsub.s32 %v3711, %v3713
      %v3715 = vrot.slane %v3707, %v3714
      %v3717 = vunpack.c.l.s4 1966171168
      %v3718 = vunpack.c.0.s8 %v3717
      %v3719 = vlaneseq
      %v3720 = vshrl.u32 %v3719, 7
      %v3721 = vsub.s32 %v3718, %v3720
      %v3722 = vrot.slane %v3708, %v3721
      %v3723 = vcombine.high %v3715, %v3715
      %v3724 = vcombine.high %v3722, %v3722
      %v3725 = vlaneseq
      %v3726 = vshrl.u32 %v3725, 7
      %v3727 = vsub.s32 0, %v3726
      %v3728 = vrot.slane %v3723, %v3727
      %v3729 = vlaneseq
      %v3730 = vshrl.u32 %v3729, 7
      %v3731 = vsub.s32 0, %v3730
      %v3732 = vrot.slane %v3724, %v3731
      %v3735 = vmul.f32 %v3445, %v3728
      %v3736 = vmul.f32 %v3448, %v3728
      %v3737 = vmul.f32 %v3453, %v3728
      %v3738 = vmul.f32 %v3456, %v3728
      %v3739 = vmul.f32 %v3461, %v3728
      %v3740 = vmul.f32 %v3464, %v3728
      %v3741 = vmul.f32 %v3469, %v3728
      %v3742 = vmul.f32 %v3472, %v3728
      %v3743 = vmul.f32 %v3477, %v3732
      %v3744 = vmul.f32 %v3480, %v3732
      %v3745 = vmul.f32 %v3485, %v3732
      %v3746 = vmul.f32 %v3488, %v3732
      %v3747 = vmul.f32 %v3493, %v3732
      %v3748 = vmul.f32 %v3496, %v3732
      %v3749 = vmul.f32 %v3501, %v3732
      %v3750 = vmul.f32 %v3504, %v3732
      %v3753 = vunpack.c.l.s4 1966171168
      %v3754 = vunpack.c.0.s8 %v3753
      %v3755 = vlaneseq
      %v3756 = vshrl.u32 %v3755, 7
      %v3757 = vsub.s32 %v3754, %v3756
      %v3758 = vrot.slane %v3700, %v3757
      %v3759 = vcombine.high %v3758, %v3758
      %v3761 = vunpack.c.l.s4 1966171168
      %v3762 = vunpack.c.0.s8 %v3761
      %v3763 = vlaneseq
      %v3764 = vshrl.u32 %v3763, 7
      %v3765 = vsub.s32 %v3762, %v3764
      %v3766 = vrot.slane %v3758, %v3765
      %v3768 = vunpack.c.l.s4 1966171168
      %v3769 = vunpack.c.0.s8 %v3768
      %v3770 = vlaneseq
      %v3771 = vshrl.u32 %v3770, 7
      %v3772 = vsub.s32 %v3769, %v3771
      %v3773 = vrot.slane %v3759, %v3772
      %v3774 = vlaneseq
      %v3775 = vshrl.u32 %v3774, 7
      %v3776 = vsub.s32 0, %v3775
      %v3777 = vrot.slane %v3766, %v3776
      %v3778 = vlaneseq
      %v3779 = vshrl.u32 %v3778, 7
      %v3780 = vsub.s32 0, %v3779
      %v3781 = vrot.slane %v3773, %v3780
      %v3784 = vadd.f32 %v3735, %v3777
      %v3785 = vadd.f32 %v3736, %v3777
      %v3786 = vadd.f32 %v3737, %v3777
      %v3787 = vadd.f32 %v3738, %v3777
      %v3788 = vadd.f32 %v3739, %v3777
      %v3789 = vadd.f32 %v3740, %v3777
      %v3790 = vadd.f32 %v3741, %v3777
      %v3791 = vadd.f32 %v3742, %v3777
      %v3792 = vadd.f32 %v3743, %v3781
      %v3793 = vadd.f32 %v3744, %v3781
      %v3794 = vadd.f32 %v3745, %v3781
      %v3795 = vadd.f32 %v3746, %v3781
      %v3796 = vadd.f32 %v3747, %v3781
      %v3797 = vadd.f32 %v3748, %v3781
      %v3798 = vadd.f32 %v3749, %v3781
      %v3799 = vadd.f32 %v3750, %v3781
      %v3800 = vmax.f32 %v3784, 0.0
      %v3801 = vmax.f32 %v3785, 0.0
      %v3802 = vmax.f32 %v3786, 0.0
      %v3803 = vmax.f32 %v3787, 0.0
      %v3804 = vmax.f32 %v3788, 0.0
      %v3805 = vmax.f32 %v3789, 0.0
      %v3806 = vmax.f32 %v3790, 0.0
      %v3807 = vmax.f32 %v3791, 0.0
      %v3808 = vmax.f32 %v3792, 0.0
      %v3809 = vmax.f32 %v3793, 0.0
      %v3810 = vmax.f32 %v3794, 0.0
      %v3811 = vmax.f32 %v3795, 0.0
      %v3812 = vmax.f32 %v3796, 0.0
      %v3813 = vmax.f32 %v3797, 0.0
      %v3814 = vmax.f32 %v3798, 0.0
      %v3815 = vmax.f32 %v3799, 0.0
      %v3816 = vpack.c.bf16 %v3800, %v3800
      %v3817 = vpack.c.bf16 %v3801, %v3801
      %v3818 = vpack.c.bf16 %v3802, %v3802
      %v3819 = vpack.c.bf16 %v3803, %v3803
      %v3820 = vpack.c.bf16 %v3804, %v3804
      %v3821 = vpack.c.bf16 %v3805, %v3805
      %v3822 = vpack.c.bf16 %v3806, %v3806
      %v3823 = vpack.c.bf16 %v3807, %v3807
      %v3824 = vpack.c.bf16 %v3808, %v3808
      %v3825 = vpack.c.bf16 %v3809, %v3809
      %v3826 = vpack.c.bf16 %v3810, %v3810
      %v3827 = vpack.c.bf16 %v3811, %v3811
      %v3828 = vpack.c.bf16 %v3812, %v3812
      %v3829 = vpack.c.bf16 %v3813, %v3813
      %v3830 = vpack.c.bf16 %v3814, %v3814
      %v3831 = vpack.c.bf16 %v3815, %v3815
      %v3848 = vunpack.c.l.b16 %v3816
      %v3849 = vunpack.c.l.b16 %v3817
      %v3850 = vunpack.c.l.b16 %v3818
      %v3851 = vunpack.c.l.b16 %v3819
      %v3852 = vunpack.c.l.b16 %v3820
      %v3853 = vunpack.c.l.b16 %v3821
      %v3854 = vunpack.c.l.b16 %v3822
      %v3855 = vunpack.c.l.b16 %v3823
      %v3856 = vunpack.c.l.b16 %v3824
      %v3857 = vunpack.c.l.b16 %v3825
      %v3858 = vunpack.c.l.b16 %v3826
      %v3859 = vunpack.c.l.b16 %v3827
      %v3860 = vunpack.c.l.b16 %v3828
      %v3861 = vunpack.c.l.b16 %v3829
      %v3862 = vunpack.c.l.b16 %v3830
      %v3863 = vunpack.c.l.b16 %v3831
      %v3864 = vpack.c.b16 %v3848, %v3848
      %v3865 = vpack.c.b16 %v3849, %v3849
      %v3866 = vpack.c.b16 %v3850, %v3850
      %v3867 = vpack.c.b16 %v3851, %v3851
      %v3868 = vpack.c.b16 %v3852, %v3852
      %v3869 = vpack.c.b16 %v3853, %v3853
      %v3870 = vpack.c.b16 %v3854, %v3854
      %v3871 = vpack.c.b16 %v3855, %v3855
      %v3872 = vpack.c.b16 %v3856, %v3856
      %v3873 = vpack.c.b16 %v3857, %v3857
      %v3874 = vpack.c.b16 %v3858, %v3858
      %v3875 = vpack.c.b16 %v3859, %v3859
      %v3876 = vpack.c.b16 %v3860, %v3860
      %v3877 = vpack.c.b16 %v3861, %v3861
      %v3878 = vpack.c.b16 %v3862, %v3862
      %v3879 = vpack.c.b16 %v3863, %v3863
      %v3881 = vshrl.u32 %v3864, 16
      %v3883 = vrot.slane %v3881, 7
      %v3884 = vshll.u32 %v3864, 16
      %v3886 = vor.u32 %v3883, %v3884
      %v3887 = vrot.slane %v3883, 4
      %v3889 = vshrl.u32 %v3865, 16
      %v3891 = vrot.slane %v3889, 7
      %v3892 = vshll.u32 %v3865, 16
      %v3894 = vor.u32 %v3891, %v3892
      %v3895 = vrot.slane %v3891, 4
      %v3897 = vshrl.u32 %v3866, 16
      %v3899 = vrot.slane %v3897, 7
      %v3900 = vshll.u32 %v3866, 16
      %v3902 = vor.u32 %v3899, %v3900
      %v3903 = vrot.slane %v3899, 4
      %v3905 = vshrl.u32 %v3867, 16
      %v3907 = vrot.slane %v3905, 7
      %v3908 = vshll.u32 %v3867, 16
      %v3910 = vor.u32 %v3907, %v3908
      %v3911 = vrot.slane %v3907, 4
      %v3913 = vshrl.u32 %v3868, 16
      %v3915 = vrot.slane %v3913, 7
      %v3916 = vshll.u32 %v3868, 16
      %v3918 = vor.u32 %v3915, %v3916
      %v3919 = vrot.slane %v3915, 4
      %v3921 = vshrl.u32 %v3869, 16
      %v3923 = vrot.slane %v3921, 7
      %v3924 = vshll.u32 %v3869, 16
      %v3926 = vor.u32 %v3923, %v3924
      %v3927 = vrot.slane %v3923, 4
      %v3929 = vshrl.u32 %v3870, 16
      %v3931 = vrot.slane %v3929, 7
      %v3932 = vshll.u32 %v3870, 16
      %v3934 = vor.u32 %v3931, %v3932
      %v3935 = vrot.slane %v3931, 4
      %v3937 = vshrl.u32 %v3871, 16
      %v3939 = vrot.slane %v3937, 7
      %v3940 = vshll.u32 %v3871, 16
      %v3942 = vor.u32 %v3939, %v3940
      %v3943 = vrot.slane %v3939, 4
      %v3945 = vshrl.u32 %v3872, 16
      %v3947 = vrot.slane %v3945, 7
      %v3948 = vshll.u32 %v3872, 16
      %v3950 = vor.u32 %v3947, %v3948
      %v3951 = vrot.slane %v3947, 4
      %v3953 = vshrl.u32 %v3873, 16
      %v3955 = vrot.slane %v3953, 7
      %v3956 = vshll.u32 %v3873, 16
      %v3958 = vor.u32 %v3955, %v3956
      %v3959 = vrot.slane %v3955, 4
      %v3961 = vshrl.u32 %v3874, 16
      %v3963 = vrot.slane %v3961, 7
      %v3964 = vshll.u32 %v3874, 16
      %v3966 = vor.u32 %v3963, %v3964
      %v3967 = vrot.slane %v3963, 4
      %v3969 = vshrl.u32 %v3875, 16
      %v3971 = vrot.slane %v3969, 7
      %v3972 = vshll.u32 %v3875, 16
      %v3974 = vor.u32 %v3971, %v3972
      %v3975 = vrot.slane %v3971, 4
      %v3977 = vshrl.u32 %v3876, 16
      %v3979 = vrot.slane %v3977, 7
      %v3980 = vshll.u32 %v3876, 16
      %v3982 = vor.u32 %v3979, %v3980
      %v3983 = vrot.slane %v3979, 4
      %v3985 = vshrl.u32 %v3877, 16
      %v3987 = vrot.slane %v3985, 7
      %v3988 = vshll.u32 %v3877, 16
      %v3990 = vor.u32 %v3987, %v3988
      %v3991 = vrot.slane %v3987, 4
      %v3993 = vshrl.u32 %v3878, 16
      %v3995 = vrot.slane %v3993, 7
      %v3996 = vshll.u32 %v3878, 16
      %v3998 = vor.u32 %v3995, %v3996
      %v3999 = vrot.slane %v3995, 4
      %v4001 = vshrl.u32 %v3879, 16
      %v4003 = vrot.slane %v4001, 7
      %v4004 = vshll.u32 %v3879, 16
      %v4006 = vor.u32 %v4003, %v4004
      %v4007 = vrot.slane %v4003, 4
      %v4040 = vld [vmem:[%s649] sm:$0xf]
      %v4041 = vsel %vm652, %v3886, %v4040
      %4042 = vst [vmem:[%s649] sm:$0xf] %v4041
      %v4043 = vld [vmem:[%s649 + $0x4] sm:$0x1]
      %v4044 = vsel %vm658, %v3887, %v4043
      %4045 = vst [vmem:[%s649 + $0x4] sm:$0x1] %v4044
      %v4046 = vld [vmem:[%s649 + $0x8] sm:$0xf]
      %v4047 = vsel %vm652, %v3894, %v4046
      %4048 = vst [vmem:[%s649 + $0x8] sm:$0xf] %v4047
      %v4049 = vld [vmem:[%s649 + $0xc] sm:$0x1]
      %v4050 = vsel %vm658, %v3895, %v4049
      %4051 = vst [vmem:[%s649 + $0xc] sm:$0x1] %v4050
      %v4052 = vld [vmem:[%s649 + $0x10] sm:$0xf]
      %v4053 = vsel %vm652, %v3902, %v4052
      %4054 = vst [vmem:[%s649 + $0x10] sm:$0xf] %v4053
      %v4055 = vld [vmem:[%s649 + $0x14] sm:$0x1]
      %v4056 = vsel %vm658, %v3903, %v4055
      %4057 = vst [vmem:[%s649 + $0x14] sm:$0x1] %v4056
      %v4058 = vld [vmem:[%s649 + $0x18] sm:$0xf]
      %v4059 = vsel %vm652, %v3910, %v4058
      %4060 = vst [vmem:[%s649 + $0x18] sm:$0xf] %v4059
      %v4061 = vld [vmem:[%s649 + $0x1c] sm:$0x1]
      %v4062 = vsel %vm658, %v3911, %v4061
      %4063 = vst [vmem:[%s649 + $0x1c] sm:$0x1] %v4062
      %v4064 = vld [vmem:[%s649 + $0x20] sm:$0xf]
      %v4065 = vsel %vm652, %v3918, %v4064
      %4066 = vst [vmem:[%s649 + $0x20] sm:$0xf] %v4065
      %v4067 = vld [vmem:[%s649 + $0x24] sm:$0x1]
      %v4068 = vsel %vm658, %v3919, %v4067
      %4069 = vst [vmem:[%s649 + $0x24] sm:$0x1] %v4068
      %v4070 = vld [vmem:[%s649 + $0x28] sm:$0xf]
      %v4071 = vsel %vm652, %v3926, %v4070
      %4072 = vst [vmem:[%s649 + $0x28] sm:$0xf] %v4071
      %v4073 = vld [vmem:[%s649 + $0x2c] sm:$0x1]
      %v4074 = vsel %vm658, %v3927, %v4073
      %4075 = vst [vmem:[%s649 + $0x2c] sm:$0x1] %v4074
      %v4076 = vld [vmem:[%s649 + $0x30] sm:$0xf]
      %v4077 = vsel %vm652, %v3934, %v4076
      %4078 = vst [vmem:[%s649 + $0x30] sm:$0xf] %v4077
      %v4079 = vld [vmem:[%s649 + $0x34] sm:$0x1]
      %v4080 = vsel %vm658, %v3935, %v4079
      %4081 = vst [vmem:[%s649 + $0x34] sm:$0x1] %v4080
      %v4082 = vld [vmem:[%s649 + $0x38] sm:$0xf]
      %v4083 = vsel %vm652, %v3942, %v4082
      %4084 = vst [vmem:[%s649 + $0x38] sm:$0xf] %v4083
      %v4085 = vld [vmem:[%s649 + $0x3c] sm:$0x1]
      %v4086 = vsel %vm658, %v3943, %v4085
      %4087 = vst [vmem:[%s649 + $0x3c] sm:$0x1] %v4086
      %v4088 = vld [vmem:[%s649 + $0x50] sm:$0xf]
      %v4089 = vsel %vm652, %v3950, %v4088
      %4090 = vst [vmem:[%s649 + $0x50] sm:$0xf] %v4089
      %v4091 = vld [vmem:[%s649 + $0x54] sm:$0x1]
      %v4092 = vsel %vm658, %v3951, %v4091
      %4093 = vst [vmem:[%s649 + $0x54] sm:$0x1] %v4092
      %v4094 = vld [vmem:[%s649 + $0x58] sm:$0xf]
      %v4095 = vsel %vm652, %v3958, %v4094
      %4096 = vst [vmem:[%s649 + $0x58] sm:$0xf] %v4095
      %v4097 = vld [vmem:[%s649 + $0x5c] sm:$0x1]
      %v4098 = vsel %vm658, %v3959, %v4097
      %4099 = vst [vmem:[%s649 + $0x5c] sm:$0x1] %v4098
      %v4100 = vld [vmem:[%s649 + $0x60] sm:$0xf]
      %v4101 = vsel %vm652, %v3966, %v4100
      %4102 = vst [vmem:[%s649 + $0x60] sm:$0xf] %v4101
      %v4103 = vld [vmem:[%s649 + $0x64] sm:$0x1]
      %v4104 = vsel %vm658, %v3967, %v4103
      %4105 = vst [vmem:[%s649 + $0x64] sm:$0x1] %v4104
      %v4106 = vld [vmem:[%s649 + $0x68] sm:$0xf]
      %v4107 = vsel %vm652, %v3974, %v4106
      %4108 = vst [vmem:[%s649 + $0x68] sm:$0xf] %v4107
      %v4109 = vld [vmem:[%s649 + $0x6c] sm:$0x1]
      %v4110 = vsel %vm658, %v3975, %v4109
      %4111 = vst [vmem:[%s649 + $0x6c] sm:$0x1] %v4110
      %v4112 = vld [vmem:[%s649 + $0x70] sm:$0xf]
      %v4113 = vsel %vm652, %v3982, %v4112
      %4114 = vst [vmem:[%s649 + $0x70] sm:$0xf] %v4113
      %v4115 = vld [vmem:[%s649 + $0x74] sm:$0x1]
      %v4116 = vsel %vm658, %v3983, %v4115
      %4117 = vst [vmem:[%s649 + $0x74] sm:$0x1] %v4116
      %v4118 = vld [vmem:[%s649 + $0x78] sm:$0xf]
      %v4119 = vsel %vm652, %v3990, %v4118
      %4120 = vst [vmem:[%s649 + $0x78] sm:$0xf] %v4119
      %v4121 = vld [vmem:[%s649 + $0x7c] sm:$0x1]
      %v4122 = vsel %vm658, %v3991, %v4121
      %4123 = vst [vmem:[%s649 + $0x7c] sm:$0x1] %v4122
      %v4124 = vld [vmem:[%s649 + $0x80] sm:$0xf]
      %v4125 = vsel %vm652, %v3998, %v4124
      %4126 = vst [vmem:[%s649 + $0x80] sm:$0xf] %v4125
      %v4127 = vld [vmem:[%s649 + $0x84] sm:$0x1]
      %v4128 = vsel %vm658, %v3999, %v4127
      %4129 = vst [vmem:[%s649 + $0x84] sm:$0x1] %v4128
      %v4130 = vld [vmem:[%s649 + $0x88] sm:$0xf]
      %v4131 = vsel %vm652, %v4006, %v4130
      %4132 = vst [vmem:[%s649 + $0x88] sm:$0xf] %v4131
      %v4133 = vld [vmem:[%s649 + $0x8c] sm:$0x1]
      %v4134 = vsel %vm658, %v4007, %v4133
      %4135 = vst [vmem:[%s649 + $0x8c] sm:$0x1] %v4134
      %v4136 = vld [vmem:[#allocation2] sm:$0xf]
      %v4137 = vld [vmem:[#allocation2 + $0x8] sm:$0xf]
      %v4138 = vld [vmem:[#allocation2 + $0x10] sm:$0xf]
      %v4139 = vld [vmem:[#allocation2 + $0x18] sm:$0xf]
      %v4140 = vld [vmem:[#allocation2 + $0x20] sm:$0xf]
      %v4141 = vld [vmem:[#allocation2 + $0x28] sm:$0xf]
      %v4142 = vld [vmem:[#allocation2 + $0x30] sm:$0xf]
      %v4143 = vld [vmem:[#allocation2 + $0x38] sm:$0xf]
      %v4144 = vld [vmem:[#allocation2 + $0x50] sm:$0xf]
      %v4145 = vld [vmem:[#allocation2 + $0x58] sm:$0xf]
      %v4146 = vld [vmem:[#allocation2 + $0x60] sm:$0xf]
      %v4147 = vld [vmem:[#allocation2 + $0x68] sm:$0xf]
      %v4148 = vld [vmem:[#allocation2 + $0x70] sm:$0xf]
      %v4149 = vld [vmem:[#allocation2 + $0x78] sm:$0xf]
      %v4150 = vld [vmem:[#allocation2 + $0x80] sm:$0xf]
      %v4151 = vld [vmem:[#allocation2 + $0x88] sm:$0xf]
      %v4168 = vunpack.c.l.b16 %v4136
      %v4169 = vunpack.c.l.b16 %v4137
      %v4170 = vunpack.c.l.b16 %v4138
      %v4171 = vunpack.c.l.b16 %v4139
      %v4172 = vunpack.c.l.b16 %v4140
      %v4173 = vunpack.c.l.b16 %v4141
      %v4174 = vunpack.c.l.b16 %v4142
      %v4175 = vunpack.c.l.b16 %v4143
      %v4176 = vunpack.c.l.b16 %v4144
      %v4177 = vunpack.c.l.b16 %v4145
      %v4178 = vunpack.c.l.b16 %v4146
      %v4179 = vunpack.c.l.b16 %v4147
      %v4180 = vunpack.c.l.b16 %v4148
      %v4181 = vunpack.c.l.b16 %v4149
      %v4182 = vunpack.c.l.b16 %v4150
      %v4183 = vunpack.c.l.b16 %v4151
      %v4184 = vpack.c.b16 %v4169, %v4168
      %v4185 = vpack.c.b16 %v4171, %v4170
      %v4186 = vpack.c.b16 %v4173, %v4172
      %v4187 = vpack.c.b16 %v4175, %v4174
      %v4188 = vpack.c.b16 %v4177, %v4176
      %v4189 = vpack.c.b16 %v4179, %v4178
      %v4190 = vpack.c.b16 %v4181, %v4180
      %v4191 = vpack.c.b16 %v4183, %v4182
      %4200 = vst [vmem:[#allocation3] sm:$0xff] %v4184
      %4201 = vst [vmem:[#allocation3 + $0x48] sm:$0xff] %v4185
      %4202 = vst [vmem:[#allocation3 + $0x90] sm:$0xff] %v4186
      %4203 = vst [vmem:[#allocation3 + $0xd8] sm:$0xff] %v4187
      %4204 = vst [vmem:[#allocation3 + $0x120] sm:$0xff] %v4188
      %4205 = vst [vmem:[#allocation3 + $0x168] sm:$0xff] %v4189
      %4206 = vst [vmem:[#allocation3 + $0x1b0] sm:$0xff] %v4190
      %4207 = vst [vmem:[#allocation3 + $0x1f8] sm:$0xff] %v4191
      %v4208 = vld [vmem:[#allocation2] sm:$0xf]
      %v4209 = vld [vmem:[#allocation2 + $0x4] sm:$0x1]
      %v4210 = vld [vmem:[#allocation2 + $0x8] sm:$0xf]
      %v4211 = vld [vmem:[#allocation2 + $0xc] sm:$0x1]
      %v4212 = vld [vmem:[#allocation2 + $0x10] sm:$0xf]
      %v4213 = vld [vmem:[#allocation2 + $0x14] sm:$0x1]
      %v4214 = vld [vmem:[#allocation2 + $0x18] sm:$0xf]
      %v4215 = vld [vmem:[#allocation2 + $0x1c] sm:$0x1]
      %v4216 = vld [vmem:[#allocation2 + $0x20] sm:$0xf]
      %v4217 = vld [vmem:[#allocation2 + $0x24] sm:$0x1]
      %v4218 = vld [vmem:[#allocation2 + $0x28] sm:$0xf]
      %v4219 = vld [vmem:[#allocation2 + $0x2c] sm:$0x1]
      %v4220 = vld [vmem:[#allocation2 + $0x30] sm:$0xf]
      %v4221 = vld [vmem:[#allocation2 + $0x34] sm:$0x1]
      %v4222 = vld [vmem:[#allocation2 + $0x38] sm:$0xf]
      %v4223 = vld [vmem:[#allocation2 + $0x3c] sm:$0x1]
      %v4224 = vld [vmem:[#allocation2 + $0x50] sm:$0xf]
      %v4225 = vld [vmem:[#allocation2 + $0x54] sm:$0x1]
      %v4226 = vld [vmem:[#allocation2 + $0x58] sm:$0xf]
      %v4227 = vld [vmem:[#allocation2 + $0x5c] sm:$0x1]
      %v4228 = vld [vmem:[#allocation2 + $0x60] sm:$0xf]
      %v4229 = vld [vmem:[#allocation2 + $0x64] sm:$0x1]
      %v4230 = vld [vmem:[#allocation2 + $0x68] sm:$0xf]
      %v4231 = vld [vmem:[#allocation2 + $0x6c] sm:$0x1]
      %v4232 = vld [vmem:[#allocation2 + $0x70] sm:$0xf]
      %v4233 = vld [vmem:[#allocation2 + $0x74] sm:$0x1]
      %v4234 = vld [vmem:[#allocation2 + $0x78] sm:$0xf]
      %v4235 = vld [vmem:[#allocation2 + $0x7c] sm:$0x1]
      %v4236 = vld [vmem:[#allocation2 + $0x80] sm:$0xf]
      %v4237 = vld [vmem:[#allocation2 + $0x84] sm:$0x1]
      %v4238 = vld [vmem:[#allocation2 + $0x88] sm:$0xf]
      %v4239 = vld [vmem:[#allocation2 + $0x8c] sm:$0x1]
      %v4241 = vshrl.u32 %v4208, 16
      %v4243 = vrot.slane %v4241, 4
      %v4244 = vshll.u32 %v4208, 16
      %v4246 = vrot.slane %v4244, 5
      %v4247 = vor.u32 %v4243, %v4246
      %v4248 = vrot.slane %v4247, 4
      %v4250 = vshll.u32 %v4209, 16
      %v4252 = vrot.slane %v4250, 5
      %v4253 = vsel %vm858, %v4248, %v4252
      %v4255 = vshrl.u32 %v4210, 16
      %v4257 = vrot.slane %v4255, 4
      %v4258 = vshll.u32 %v4210, 16
      %v4260 = vrot.slane %v4258, 5
      %v4261 = vor.u32 %v4257, %v4260
      %v4262 = vrot.slane %v4261, 4
      %v4264 = vshll.u32 %v4211, 16
      %v4266 = vrot.slane %v4264, 5
      %v4267 = vsel %vm858, %v4262, %v4266
      %v4269 = vshrl.u32 %v4212, 16
      %v4271 = vrot.slane %v4269, 4
      %v4272 = vshll.u32 %v4212, 16
      %v4274 = vrot.slane %v4272, 5
      %v4275 = vor.u32 %v4271, %v4274
      %v4276 = vrot.slane %v4275, 4
      %v4278 = vshll.u32 %v4213, 16
      %v4280 = vrot.slane %v4278, 5
      %v4281 = vsel %vm858, %v4276, %v4280
      %v4283 = vshrl.u32 %v4214, 16
      %v4285 = vrot.slane %v4283, 4
      %v4286 = vshll.u32 %v4214, 16
      %v4288 = vrot.slane %v4286, 5
      %v4289 = vor.u32 %v4285, %v4288
      %v4290 = vrot.slane %v4289, 4
      %v4292 = vshll.u32 %v4215, 16
      %v4294 = vrot.slane %v4292, 5
      %v4295 = vsel %vm858, %v4290, %v4294
      %v4297 = vshrl.u32 %v4216, 16
      %v4299 = vrot.slane %v4297, 4
      %v4300 = vshll.u32 %v4216, 16
      %v4302 = vrot.slane %v4300, 5
      %v4303 = vor.u32 %v4299, %v4302
      %v4304 = vrot.slane %v4303, 4
      %v4306 = vshll.u32 %v4217, 16
      %v4308 = vrot.slane %v4306, 5
      %v4309 = vsel %vm858, %v4304, %v4308
      %v4311 = vshrl.u32 %v4218, 16
      %v4313 = vrot.slane %v4311, 4
      %v4314 = vshll.u32 %v4218, 16
      %v4316 = vrot.slane %v4314, 5
      %v4317 = vor.u32 %v4313, %v4316
      %v4318 = vrot.slane %v4317, 4
      %v4320 = vshll.u32 %v4219, 16
      %v4322 = vrot.slane %v4320, 5
      %v4323 = vsel %vm858, %v4318, %v4322
      %v4325 = vshrl.u32 %v4220, 16
      %v4327 = vrot.slane %v4325, 4
      %v4328 = vshll.u32 %v4220, 16
      %v4330 = vrot.slane %v4328, 5
      %v4331 = vor.u32 %v4327, %v4330
      %v4332 = vrot.slane %v4331, 4
      %v4334 = vshll.u32 %v4221, 16
      %v4336 = vrot.slane %v4334, 5
      %v4337 = vsel %vm858, %v4332, %v4336
      %v4339 = vshrl.u32 %v4222, 16
      %v4341 = vrot.slane %v4339, 4
      %v4342 = vshll.u32 %v4222, 16
      %v4344 = vrot.slane %v4342, 5
      %v4345 = vor.u32 %v4341, %v4344
      %v4346 = vrot.slane %v4345, 4
      %v4348 = vshll.u32 %v4223, 16
      %v4350 = vrot.slane %v4348, 5
      %v4351 = vsel %vm858, %v4346, %v4350
      %v4353 = vshrl.u32 %v4224, 16
      %v4355 = vrot.slane %v4353, 4
      %v4356 = vshll.u32 %v4224, 16
      %v4358 = vrot.slane %v4356, 5
      %v4359 = vor.u32 %v4355, %v4358
      %v4360 = vrot.slane %v4359, 4
      %v4362 = vshll.u32 %v4225, 16
      %v4364 = vrot.slane %v4362, 5
      %v4365 = vsel %vm858, %v4360, %v4364
      %v4367 = vshrl.u32 %v4226, 16
      %v4369 = vrot.slane %v4367, 4
      %v4370 = vshll.u32 %v4226, 16
      %v4372 = vrot.slane %v4370, 5
      %v4373 = vor.u32 %v4369, %v4372
      %v4374 = vrot.slane %v4373, 4
      %v4376 = vshll.u32 %v4227, 16
      %v4378 = vrot.slane %v4376, 5
      %v4379 = vsel %vm858, %v4374, %v4378
      %v4381 = vshrl.u32 %v4228, 16
      %v4383 = vrot.slane %v4381, 4
      %v4384 = vshll.u32 %v4228, 16
      %v4386 = vrot.slane %v4384, 5
      %v4387 = vor.u32 %v4383, %v4386
      %v4388 = vrot.slane %v4387, 4
      %v4390 = vshll.u32 %v4229, 16
      %v4392 = vrot.slane %v4390, 5
      %v4393 = vsel %vm858, %v4388, %v4392
      %v4395 = vshrl.u32 %v4230, 16
      %v4397 = vrot.slane %v4395, 4
      %v4398 = vshll.u32 %v4230, 16
      %v4400 = vrot.slane %v4398, 5
      %v4401 = vor.u32 %v4397, %v4400
      %v4402 = vrot.slane %v4401, 4
      %v4404 = vshll.u32 %v4231, 16
      %v4406 = vrot.slane %v4404, 5
      %v4407 = vsel %vm858, %v4402, %v4406
      %v4409 = vshrl.u32 %v4232, 16
      %v4411 = vrot.slane %v4409, 4
      %v4412 = vshll.u32 %v4232, 16
      %v4414 = vrot.slane %v4412, 5
      %v4415 = vor.u32 %v4411, %v4414
      %v4416 = vrot.slane %v4415, 4
      %v4418 = vshll.u32 %v4233, 16
      %v4420 = vrot.slane %v4418, 5
      %v4421 = vsel %vm858, %v4416, %v4420
      %v4423 = vshrl.u32 %v4234, 16
      %v4425 = vrot.slane %v4423, 4
      %v4426 = vshll.u32 %v4234, 16
      %v4428 = vrot.slane %v4426, 5
      %v4429 = vor.u32 %v4425, %v4428
      %v4430 = vrot.slane %v4429, 4
      %v4432 = vshll.u32 %v4235, 16
      %v4434 = vrot.slane %v4432, 5
      %v4435 = vsel %vm858, %v4430, %v4434
      %v4437 = vshrl.u32 %v4236, 16
      %v4439 = vrot.slane %v4437, 4
      %v4440 = vshll.u32 %v4236, 16
      %v4442 = vrot.slane %v4440, 5
      %v4443 = vor.u32 %v4439, %v4442
      %v4444 = vrot.slane %v4443, 4
      %v4446 = vshll.u32 %v4237, 16
      %v4448 = vrot.slane %v4446, 5
      %v4449 = vsel %vm858, %v4444, %v4448
      %v4451 = vshrl.u32 %v4238, 16
      %v4453 = vrot.slane %v4451, 4
      %v4454 = vshll.u32 %v4238, 16
      %v4456 = vrot.slane %v4454, 5
      %v4457 = vor.u32 %v4453, %v4456
      %v4458 = vrot.slane %v4457, 4
      %v4460 = vshll.u32 %v4239, 16
      %v4462 = vrot.slane %v4460, 5
      %v4463 = vsel %vm858, %v4458, %v4462
      %v4464 = vunpack.c.l.b16 %v4253
      %v4465 = vunpack.c.l.b16 %v4267
      %v4466 = vunpack.c.l.b16 %v4281
      %v4467 = vunpack.c.l.b16 %v4295
      %v4468 = vunpack.c.l.b16 %v4309
      %v4469 = vunpack.c.l.b16 %v4323
      %v4470 = vunpack.c.l.b16 %v4337
      %v4471 = vunpack.c.l.b16 %v4351
      %v4472 = vunpack.c.l.b16 %v4365
      %v4473 = vunpack.c.l.b16 %v4379
      %v4474 = vunpack.c.l.b16 %v4393
      %v4475 = vunpack.c.l.b16 %v4407
      %v4476 = vunpack.c.l.b16 %v4421
      %v4477 = vunpack.c.l.b16 %v4435
      %v4478 = vunpack.c.l.b16 %v4449
      %v4479 = vunpack.c.l.b16 %v4463
      %v4480 = vpack.c.b16 %v4465, %v4464
      %v4481 = vpack.c.b16 %v4467, %v4466
      %v4482 = vpack.c.b16 %v4469, %v4468
      %v4483 = vpack.c.b16 %v4471, %v4470
      %v4484 = vpack.c.b16 %v4473, %v4472
      %v4485 = vpack.c.b16 %v4475, %v4474
      %v4486 = vpack.c.b16 %v4477, %v4476
      %v4487 = vpack.c.b16 %v4479, %v4478
      %4496 = vst [vmem:[#allocation3 + $0x8] sm:$0xff] %v4480
      %4497 = vst [vmem:[#allocation3 + $0x50] sm:$0xff] %v4481
      %4498 = vst [vmem:[#allocation3 + $0x98] sm:$0xff] %v4482
      %4499 = vst [vmem:[#allocation3 + $0xe0] sm:$0xff] %v4483
      %4500 = vst [vmem:[#allocation3 + $0x128] sm:$0xff] %v4484
      %4501 = vst [vmem:[#allocation3 + $0x170] sm:$0xff] %v4485
      %4502 = vst [vmem:[#allocation3 + $0x1b8] sm:$0xff] %v4486
      %4503 = vst [vmem:[#allocation3 + $0x200] sm:$0xff] %v4487
      %v4504 = vld [vmem:[#allocation2] sm:$0xe]
      %v4505 = vld [vmem:[#allocation2 + $0x4] sm:$0x1]
      %v4506 = vld [vmem:[#allocation2 + $0x8] sm:$0xe]
      %v4507 = vld [vmem:[#allocation2 + $0xc] sm:$0x1]
      %v4508 = vld [vmem:[#allocation2 + $0x10] sm:$0xe]
      %v4509 = vld [vmem:[#allocation2 + $0x14] sm:$0x1]
      %v4510 = vld [vmem:[#allocation2 + $0x18] sm:$0xe]
      %v4511 = vld [vmem:[#allocation2 + $0x1c] sm:$0x1]
      %v4512 = vld [vmem:[#allocation2 + $0x20] sm:$0xe]
      %v4513 = vld [vmem:[#allocation2 + $0x24] sm:$0x1]
      %v4514 = vld [vmem:[#allocation2 + $0x28] sm:$0xe]
      %v4515 = vld [vmem:[#allocation2 + $0x2c] sm:$0x1]
      %v4516 = vld [vmem:[#allocation2 + $0x30] sm:$0xe]
      %v4517 = vld [vmem:[#allocation2 + $0x34] sm:$0x1]
      %v4518 = vld [vmem:[#allocation2 + $0x38] sm:$0xe]
      %v4519 = vld [vmem:[#allocation2 + $0x3c] sm:$0x1]
      %v4520 = vld [vmem:[#allocation2 + $0x50] sm:$0xe]
      %v4521 = vld [vmem:[#allocation2 + $0x54] sm:$0x1]
      %v4522 = vld [vmem:[#allocation2 + $0x58] sm:$0xe]
      %v4523 = vld [vmem:[#allocation2 + $0x5c] sm:$0x1]
      %v4524 = vld [vmem:[#allocation2 + $0x60] sm:$0xe]
      %v4525 = vld [vmem:[#allocation2 + $0x64] sm:$0x1]
      %v4526 = vld [vmem:[#allocation2 + $0x68] sm:$0xe]
      %v4527 = vld [vmem:[#allocation2 + $0x6c] sm:$0x1]
      %v4528 = vld [vmem:[#allocation2 + $0x70] sm:$0xe]
      %v4529 = vld [vmem:[#allocation2 + $0x74] sm:$0x1]
      %v4530 = vld [vmem:[#allocation2 + $0x78] sm:$0xe]
      %v4531 = vld [vmem:[#allocation2 + $0x7c] sm:$0x1]
      %v4532 = vld [vmem:[#allocation2 + $0x80] sm:$0xe]
      %v4533 = vld [vmem:[#allocation2 + $0x84] sm:$0x1]
      %v4534 = vld [vmem:[#allocation2 + $0x88] sm:$0xe]
      %v4535 = vld [vmem:[#allocation2 + $0x8c] sm:$0x1]
      %v4568 = vrot.slane %v4504, 5
      %v4569 = vrot.slane %v4568, 4
      %v4570 = vrot.slane %v4505, 5
      %v4571 = vsel %vm1189, %v4569, %v4570
      %v4572 = vrot.slane %v4506, 5
      %v4573 = vrot.slane %v4572, 4
      %v4574 = vrot.slane %v4507, 5
      %v4575 = vsel %vm1189, %v4573, %v4574
      %v4576 = vrot.slane %v4508, 5
      %v4577 = vrot.slane %v4576, 4
      %v4578 = vrot.slane %v4509, 5
      %v4579 = vsel %vm1189, %v4577, %v4578
      %v4580 = vrot.slane %v4510, 5
      %v4581 = vrot.slane %v4580, 4
      %v4582 = vrot.slane %v4511, 5
      %v4583 = vsel %vm1189, %v4581, %v4582
      %v4584 = vrot.slane %v4512, 5
      %v4585 = vrot.slane %v4584, 4
      %v4586 = vrot.slane %v4513, 5
      %v4587 = vsel %vm1189, %v4585, %v4586
      %v4588 = vrot.slane %v4514, 5
      %v4589 = vrot.slane %v4588, 4
      %v4590 = vrot.slane %v4515, 5
      %v4591 = vsel %vm1189, %v4589, %v4590
      %v4592 = vrot.slane %v4516, 5
      %v4593 = vrot.slane %v4592, 4
      %v4594 = vrot.slane %v4517, 5
      %v4595 = vsel %vm1189, %v4593, %v4594
      %v4596 = vrot.slane %v4518, 5
      %v4597 = vrot.slane %v4596, 4
      %v4598 = vrot.slane %v4519, 5
      %v4599 = vsel %vm1189, %v4597, %v4598
      %v4600 = vrot.slane %v4520, 5
      %v4601 = vrot.slane %v4600, 4
      %v4602 = vrot.slane %v4521, 5
      %v4603 = vsel %vm1189, %v4601, %v4602
      %v4604 = vrot.slane %v4522, 5
      %v4605 = vrot.slane %v4604, 4
      %v4606 = vrot.slane %v4523, 5
      %v4607 = vsel %vm1189, %v4605, %v4606
      %v4608 = vrot.slane %v4524, 5
      %v4609 = vrot.slane %v4608, 4
      %v4610 = vrot.slane %v4525, 5
      %v4611 = vsel %vm1189, %v4609, %v4610
      %v4612 = vrot.slane %v4526, 5
      %v4613 = vrot.slane %v4612, 4
      %v4614 = vrot.slane %v4527, 5
      %v4615 = vsel %vm1189, %v4613, %v4614
      %v4616 = vrot.slane %v4528, 5
      %v4617 = vrot.slane %v4616, 4
      %v4618 = vrot.slane %v4529, 5
      %v4619 = vsel %vm1189, %v4617, %v4618
      %v4620 = vrot.slane %v4530, 5
      %v4621 = vrot.slane %v4620, 4
      %v4622 = vrot.slane %v4531, 5
      %v4623 = vsel %vm1189, %v4621, %v4622
      %v4624 = vrot.slane %v4532, 5
      %v4625 = vrot.slane %v4624, 4
      %v4626 = vrot.slane %v4533, 5
      %v4627 = vsel %vm1189, %v4625, %v4626
      %v4628 = vrot.slane %v4534, 5
      %v4629 = vrot.slane %v4628, 4
      %v4630 = vrot.slane %v4535, 5
      %v4631 = vsel %vm1189, %v4629, %v4630
      %v4632 = vunpack.c.l.b16 %v4571
      %v4633 = vunpack.c.l.b16 %v4575
      %v4634 = vunpack.c.l.b16 %v4579
      %v4635 = vunpack.c.l.b16 %v4583
      %v4636 = vunpack.c.l.b16 %v4587
      %v4637 = vunpack.c.l.b16 %v4591
      %v4638 = vunpack.c.l.b16 %v4595
      %v4639 = vunpack.c.l.b16 %v4599
      %v4640 = vunpack.c.l.b16 %v4603
      %v4641 = vunpack.c.l.b16 %v4607
      %v4642 = vunpack.c.l.b16 %v4611
      %v4643 = vunpack.c.l.b16 %v4615
      %v4644 = vunpack.c.l.b16 %v4619
      %v4645 = vunpack.c.l.b16 %v4623
      %v4646 = vunpack.c.l.b16 %v4627
      %v4647 = vunpack.c.l.b16 %v4631
      %v4648 = vpack.c.b16 %v4633, %v4632
      %v4649 = vpack.c.b16 %v4635, %v4634
      %v4650 = vpack.c.b16 %v4637, %v4636
      %v4651 = vpack.c.b16 %v4639, %v4638
      %v4652 = vpack.c.b16 %v4641, %v4640
      %v4653 = vpack.c.b16 %v4643, %v4642
      %v4654 = vpack.c.b16 %v4645, %v4644
      %v4655 = vpack.c.b16 %v4647, %v4646
      %4664 = vst [vmem:[#allocation3 + $0x10] sm:$0xff] %v4648
      %4665 = vst [vmem:[#allocation3 + $0x58] sm:$0xff] %v4649
      %4666 = vst [vmem:[#allocation3 + $0xa0] sm:$0xff] %v4650
      %4667 = vst [vmem:[#allocation3 + $0xe8] sm:$0xff] %v4651
      %4668 = vst [vmem:[#allocation3 + $0x130] sm:$0xff] %v4652
      %4669 = vst [vmem:[#allocation3 + $0x178] sm:$0xff] %v4653
      %4670 = vst [vmem:[#allocation3 + $0x1c0] sm:$0xff] %v4654
      %4671 = vst [vmem:[#allocation3 + $0x208] sm:$0xff] %v4655
      %v4672 = vld [vmem:[%s649] sm:$0xf]
      %v4673 = vld [vmem:[%s649 + $0x8] sm:$0xf]
      %v4674 = vld [vmem:[%s649 + $0x10] sm:$0xf]
      %v4675 = vld [vmem:[%s649 + $0x18] sm:$0xf]
      %v4676 = vld [vmem:[%s649 + $0x20] sm:$0xf]
      %v4677 = vld [vmem:[%s649 + $0x28] sm:$0xf]
      %v4678 = vld [vmem:[%s649 + $0x30] sm:$0xf]
      %v4679 = vld [vmem:[%s649 + $0x38] sm:$0xf]
      %v4680 = vld [vmem:[%s649 + $0x50] sm:$0xf]
      %v4681 = vld [vmem:[%s649 + $0x58] sm:$0xf]
      %v4682 = vld [vmem:[%s649 + $0x60] sm:$0xf]
      %v4683 = vld [vmem:[%s649 + $0x68] sm:$0xf]
      %v4684 = vld [vmem:[%s649 + $0x70] sm:$0xf]
      %v4685 = vld [vmem:[%s649 + $0x78] sm:$0xf]
      %v4686 = vld [vmem:[%s649 + $0x80] sm:$0xf]
      %v4687 = vld [vmem:[%s649 + $0x88] sm:$0xf]
      %v4704 = vunpack.c.l.b16 %v4672
      %v4705 = vunpack.c.l.b16 %v4673
      %v4706 = vunpack.c.l.b16 %v4674
      %v4707 = vunpack.c.l.b16 %v4675
      %v4708 = vunpack.c.l.b16 %v4676
      %v4709 = vunpack.c.l.b16 %v4677
      %v4710 = vunpack.c.l.b16 %v4678
      %v4711 = vunpack.c.l.b16 %v4679
      %v4712 = vunpack.c.l.b16 %v4680
      %v4713 = vunpack.c.l.b16 %v4681
      %v4714 = vunpack.c.l.b16 %v4682
      %v4715 = vunpack.c.l.b16 %v4683
      %v4716 = vunpack.c.l.b16 %v4684
      %v4717 = vunpack.c.l.b16 %v4685
      %v4718 = vunpack.c.l.b16 %v4686
      %v4719 = vunpack.c.l.b16 %v4687
      %v4720 = vpack.c.b16 %v4705, %v4704
      %v4721 = vpack.c.b16 %v4707, %v4706
      %v4722 = vpack.c.b16 %v4709, %v4708
      %v4723 = vpack.c.b16 %v4711, %v4710
      %v4724 = vpack.c.b16 %v4713, %v4712
      %v4725 = vpack.c.b16 %v4715, %v4714
      %v4726 = vpack.c.b16 %v4717, %v4716
      %v4727 = vpack.c.b16 %v4719, %v4718
      %4736 = vst [vmem:[#allocation3 + $0x18] sm:$0xff] %v4720
      %4737 = vst [vmem:[#allocation3 + $0x60] sm:$0xff] %v4721
      %4738 = vst [vmem:[#allocation3 + $0xa8] sm:$0xff] %v4722
      %4739 = vst [vmem:[#allocation3 + $0xf0] sm:$0xff] %v4723
      %4740 = vst [vmem:[#allocation3 + $0x138] sm:$0xff] %v4724
      %4741 = vst [vmem:[#allocation3 + $0x180] sm:$0xff] %v4725
      %4742 = vst [vmem:[#allocation3 + $0x1c8] sm:$0xff] %v4726
      %4743 = vst [vmem:[#allocation3 + $0x210] sm:$0xff] %v4727
      %v4744 = vld [vmem:[%s649] sm:$0xf]
      %v4745 = vld [vmem:[%s649 + $0x4] sm:$0x1]
      %v4746 = vld [vmem:[%s649 + $0x8] sm:$0xf]
      %v4747 = vld [vmem:[%s649 + $0xc] sm:$0x1]
      %v4748 = vld [vmem:[%s649 + $0x10] sm:$0xf]
      %v4749 = vld [vmem:[%s649 + $0x14] sm:$0x1]
      %v4750 = vld [vmem:[%s649 + $0x18] sm:$0xf]
      %v4751 = vld [vmem:[%s649 + $0x1c] sm:$0x1]
      %v4752 = vld [vmem:[%s649 + $0x20] sm:$0xf]
      %v4753 = vld [vmem:[%s649 + $0x24] sm:$0x1]
      %v4754 = vld [vmem:[%s649 + $0x28] sm:$0xf]
      %v4755 = vld [vmem:[%s649 + $0x2c] sm:$0x1]
      %v4756 = vld [vmem:[%s649 + $0x30] sm:$0xf]
      %v4757 = vld [vmem:[%s649 + $0x34] sm:$0x1]
      %v4758 = vld [vmem:[%s649 + $0x38] sm:$0xf]
      %v4759 = vld [vmem:[%s649 + $0x3c] sm:$0x1]
      %v4760 = vld [vmem:[%s649 + $0x50] sm:$0xf]
      %v4761 = vld [vmem:[%s649 + $0x54] sm:$0x1]
      %v4762 = vld [vmem:[%s649 + $0x58] sm:$0xf]
      %v4763 = vld [vmem:[%s649 + $0x5c] sm:$0x1]
      %v4764 = vld [vmem:[%s649 + $0x60] sm:$0xf]
      %v4765 = vld [vmem:[%s649 + $0x64] sm:$0x1]
      %v4766 = vld [vmem:[%s649 + $0x68] sm:$0xf]
      %v4767 = vld [vmem:[%s649 + $0x6c] sm:$0x1]
      %v4768 = vld [vmem:[%s649 + $0x70] sm:$0xf]
      %v4769 = vld [vmem:[%s649 + $0x74] sm:$0x1]
      %v4770 = vld [vmem:[%s649 + $0x78] sm:$0xf]
      %v4771 = vld [vmem:[%s649 + $0x7c] sm:$0x1]
      %v4772 = vld [vmem:[%s649 + $0x80] sm:$0xf]
      %v4773 = vld [vmem:[%s649 + $0x84] sm:$0x1]
      %v4774 = vld [vmem:[%s649 + $0x88] sm:$0xf]
      %v4775 = vld [vmem:[%s649 + $0x8c] sm:$0x1]
      %v4777 = vshrl.u32 %v4744, 16
      %v4779 = vrot.slane %v4777, 4
      %v4780 = vshll.u32 %v4744, 16
      %v4782 = vrot.slane %v4780, 5
      %v4783 = vor.u32 %v4779, %v4782
      %v4784 = vrot.slane %v4783, 4
      %v4786 = vshll.u32 %v4745, 16
      %v4788 = vrot.slane %v4786, 5
      %v4789 = vsel %vm858, %v4784, %v4788
      %v4791 = vshrl.u32 %v4746, 16
      %v4793 = vrot.slane %v4791, 4
      %v4794 = vshll.u32 %v4746, 16
      %v4796 = vrot.slane %v4794, 5
      %v4797 = vor.u32 %v4793, %v4796
      %v4798 = vrot.slane %v4797, 4
      %v4800 = vshll.u32 %v4747, 16
      %v4802 = vrot.slane %v4800, 5
      %v4803 = vsel %vm858, %v4798, %v4802
      %v4805 = vshrl.u32 %v4748, 16
      %v4807 = vrot.slane %v4805, 4
      %v4808 = vshll.u32 %v4748, 16
      %v4810 = vrot.slane %v4808, 5
      %v4811 = vor.u32 %v4807, %v4810
      %v4812 = vrot.slane %v4811, 4
      %v4814 = vshll.u32 %v4749, 16
      %v4816 = vrot.slane %v4814, 5
      %v4817 = vsel %vm858, %v4812, %v4816
      %v4819 = vshrl.u32 %v4750, 16
      %v4821 = vrot.slane %v4819, 4
      %v4822 = vshll.u32 %v4750, 16
      %v4824 = vrot.slane %v4822, 5
      %v4825 = vor.u32 %v4821, %v4824
      %v4826 = vrot.slane %v4825, 4
      %v4828 = vshll.u32 %v4751, 16
      %v4830 = vrot.slane %v4828, 5
      %v4831 = vsel %vm858, %v4826, %v4830
      %v4833 = vshrl.u32 %v4752, 16
      %v4835 = vrot.slane %v4833, 4
      %v4836 = vshll.u32 %v4752, 16
      %v4838 = vrot.slane %v4836, 5
      %v4839 = vor.u32 %v4835, %v4838
      %v4840 = vrot.slane %v4839, 4
      %v4842 = vshll.u32 %v4753, 16
      %v4844 = vrot.slane %v4842, 5
      %v4845 = vsel %vm858, %v4840, %v4844
      %v4847 = vshrl.u32 %v4754, 16
      %v4849 = vrot.slane %v4847, 4
      %v4850 = vshll.u32 %v4754, 16
      %v4852 = vrot.slane %v4850, 5
      %v4853 = vor.u32 %v4849, %v4852
      %v4854 = vrot.slane %v4853, 4
      %v4856 = vshll.u32 %v4755, 16
      %v4858 = vrot.slane %v4856, 5
      %v4859 = vsel %vm858, %v4854, %v4858
      %v4861 = vshrl.u32 %v4756, 16
      %v4863 = vrot.slane %v4861, 4
      %v4864 = vshll.u32 %v4756, 16
      %v4866 = vrot.slane %v4864, 5
      %v4867 = vor.u32 %v4863, %v4866
      %v4868 = vrot.slane %v4867, 4
      %v4870 = vshll.u32 %v4757, 16
      %v4872 = vrot.slane %v4870, 5
      %v4873 = vsel %vm858, %v4868, %v4872
      %v4875 = vshrl.u32 %v4758, 16
      %v4877 = vrot.slane %v4875, 4
      %v4878 = vshll.u32 %v4758, 16
      %v4880 = vrot.slane %v4878, 5
      %v4881 = vor.u32 %v4877, %v4880
      %v4882 = vrot.slane %v4881, 4
      %v4884 = vshll.u32 %v4759, 16
      %v4886 = vrot.slane %v4884, 5
      %v4887 = vsel %vm858, %v4882, %v4886
      %v4889 = vshrl.u32 %v4760, 16
      %v4891 = vrot.slane %v4889, 4
      %v4892 = vshll.u32 %v4760, 16
      %v4894 = vrot.slane %v4892, 5
      %v4895 = vor.u32 %v4891, %v4894
      %v4896 = vrot.slane %v4895, 4
      %v4898 = vshll.u32 %v4761, 16
      %v4900 = vrot.slane %v4898, 5
      %v4901 = vsel %vm858, %v4896, %v4900
      %v4903 = vshrl.u32 %v4762, 16
      %v4905 = vrot.slane %v4903, 4
      %v4906 = vshll.u32 %v4762, 16
      %v4908 = vrot.slane %v4906, 5
      %v4909 = vor.u32 %v4905, %v4908
      %v4910 = vrot.slane %v4909, 4
      %v4912 = vshll.u32 %v4763, 16
      %v4914 = vrot.slane %v4912, 5
      %v4915 = vsel %vm858, %v4910, %v4914
      %v4917 = vshrl.u32 %v4764, 16
      %v4919 = vrot.slane %v4917, 4
      %v4920 = vshll.u32 %v4764, 16
      %v4922 = vrot.slane %v4920, 5
      %v4923 = vor.u32 %v4919, %v4922
      %v4924 = vrot.slane %v4923, 4
      %v4926 = vshll.u32 %v4765, 16
      %v4928 = vrot.slane %v4926, 5
      %v4929 = vsel %vm858, %v4924, %v4928
      %v4931 = vshrl.u32 %v4766, 16
      %v4933 = vrot.slane %v4931, 4
      %v4934 = vshll.u32 %v4766, 16
      %v4936 = vrot.slane %v4934, 5
      %v4937 = vor.u32 %v4933, %v4936
      %v4938 = vrot.slane %v4937, 4
      %v4940 = vshll.u32 %v4767, 16
      %v4942 = vrot.slane %v4940, 5
      %v4943 = vsel %vm858, %v4938, %v4942
      %v4945 = vshrl.u32 %v4768, 16
      %v4947 = vrot.slane %v4945, 4
      %v4948 = vshll.u32 %v4768, 16
      %v4950 = vrot.slane %v4948, 5
      %v4951 = vor.u32 %v4947, %v4950
      %v4952 = vrot.slane %v4951, 4
      %v4954 = vshll.u32 %v4769, 16
      %v4956 = vrot.slane %v4954, 5
      %v4957 = vsel %vm858, %v4952, %v4956
      %v4959 = vshrl.u32 %v4770, 16
      %v4961 = vrot.slane %v4959, 4
      %v4962 = vshll.u32 %v4770, 16
      %v4964 = vrot.slane %v4962, 5
      %v4965 = vor.u32 %v4961, %v4964
      %v4966 = vrot.slane %v4965, 4
      %v4968 = vshll.u32 %v4771, 16
      %v4970 = vrot.slane %v4968, 5
      %v4971 = vsel %vm858, %v4966, %v4970
      %v4973 = vshrl.u32 %v4772, 16
      %v4975 = vrot.slane %v4973, 4
      %v4976 = vshll.u32 %v4772, 16
      %v4978 = vrot.slane %v4976, 5
      %v4979 = vor.u32 %v4975, %v4978
      %v4980 = vrot.slane %v4979, 4
      %v4982 = vshll.u32 %v4773, 16
      %v4984 = vrot.slane %v4982, 5
      %v4985 = vsel %vm858, %v4980, %v4984
      %v4987 = vshrl.u32 %v4774, 16
      %v4989 = vrot.slane %v4987, 4
      %v4990 = vshll.u32 %v4774, 16
      %v4992 = vrot.slane %v4990, 5
      %v4993 = vor.u32 %v4989, %v4992
      %v4994 = vrot.slane %v4993, 4
      %v4996 = vshll.u32 %v4775, 16
      %v4998 = vrot.slane %v4996, 5
      %v4999 = vsel %vm858, %v4994, %v4998
      %v5000 = vunpack.c.l.b16 %v4789
      %v5001 = vunpack.c.l.b16 %v4803
      %v5002 = vunpack.c.l.b16 %v4817
      %v5003 = vunpack.c.l.b16 %v4831
      %v5004 = vunpack.c.l.b16 %v4845
      %v5005 = vunpack.c.l.b16 %v4859
      %v5006 = vunpack.c.l.b16 %v4873
      %v5007 = vunpack.c.l.b16 %v4887
      %v5008 = vunpack.c.l.b16 %v4901
      %v5009 = vunpack.c.l.b16 %v4915
      %v5010 = vunpack.c.l.b16 %v4929
      %v5011 = vunpack.c.l.b16 %v4943
      %v5012 = vunpack.c.l.b16 %v4957
      %v5013 = vunpack.c.l.b16 %v4971
      %v5014 = vunpack.c.l.b16 %v4985
      %v5015 = vunpack.c.l.b16 %v4999
      %v5016 = vpack.c.b16 %v5001, %v5000
      %v5017 = vpack.c.b16 %v5003, %v5002
      %v5018 = vpack.c.b16 %v5005, %v5004
      %v5019 = vpack.c.b16 %v5007, %v5006
      %v5020 = vpack.c.b16 %v5009, %v5008
      %v5021 = vpack.c.b16 %v5011, %v5010
      %v5022 = vpack.c.b16 %v5013, %v5012
      %v5023 = vpack.c.b16 %v5015, %v5014
      %5032 = vst [vmem:[#allocation3 + $0x20] sm:$0xff] %v5016
      %5033 = vst [vmem:[#allocation3 + $0x68] sm:$0xff] %v5017
      %5034 = vst [vmem:[#allocation3 + $0xb0] sm:$0xff] %v5018
      %5035 = vst [vmem:[#allocation3 + $0xf8] sm:$0xff] %v5019
      %5036 = vst [vmem:[#allocation3 + $0x140] sm:$0xff] %v5020
      %5037 = vst [vmem:[#allocation3 + $0x188] sm:$0xff] %v5021
      %5038 = vst [vmem:[#allocation3 + $0x1d0] sm:$0xff] %v5022
      %5039 = vst [vmem:[#allocation3 + $0x218] sm:$0xff] %v5023
      %v5040 = vld [vmem:[%s649] sm:$0xe]
      %v5041 = vld [vmem:[%s649 + $0x4] sm:$0x1]
      %v5042 = vld [vmem:[%s649 + $0x8] sm:$0xe]
      %v5043 = vld [vmem:[%s649 + $0xc] sm:$0x1]
      %v5044 = vld [vmem:[%s649 + $0x10] sm:$0xe]
      %v5045 = vld [vmem:[%s649 + $0x14] sm:$0x1]
      %v5046 = vld [vmem:[%s649 + $0x18] sm:$0xe]
      %v5047 = vld [vmem:[%s649 + $0x1c] sm:$0x1]
      %v5048 = vld [vmem:[%s649 + $0x20] sm:$0xe]
      %v5049 = vld [vmem:[%s649 + $0x24] sm:$0x1]
      %v5050 = vld [vmem:[%s649 + $0x28] sm:$0xe]
      %v5051 = vld [vmem:[%s649 + $0x2c] sm:$0x1]
      %v5052 = vld [vmem:[%s649 + $0x30] sm:$0xe]
      %v5053 = vld [vmem:[%s649 + $0x34] sm:$0x1]
      %v5054 = vld [vmem:[%s649 + $0x38] sm:$0xe]
      %v5055 = vld [vmem:[%s649 + $0x3c] sm:$0x1]
      %v5056 = vld [vmem:[%s649 + $0x50] sm:$0xe]
      %v5057 = vld [vmem:[%s649 + $0x54] sm:$0x1]
      %v5058 = vld [vmem:[%s649 + $0x58] sm:$0xe]
      %v5059 = vld [vmem:[%s649 + $0x5c] sm:$0x1]
      %v5060 = vld [vmem:[%s649 + $0x60] sm:$0xe]
      %v5061 = vld [vmem:[%s649 + $0x64] sm:$0x1]
      %v5062 = vld [vmem:[%s649 + $0x68] sm:$0xe]
      %v5063 = vld [vmem:[%s649 + $0x6c] sm:$0x1]
      %v5064 = vld [vmem:[%s649 + $0x70] sm:$0xe]
      %v5065 = vld [vmem:[%s649 + $0x74] sm:$0x1]
      %v5066 = vld [vmem:[%s649 + $0x78] sm:$0xe]
      %v5067 = vld [vmem:[%s649 + $0x7c] sm:$0x1]
      %v5068 = vld [vmem:[%s649 + $0x80] sm:$0xe]
      %v5069 = vld [vmem:[%s649 + $0x84] sm:$0x1]
      %v5070 = vld [vmem:[%s649 + $0x88] sm:$0xe]
      %v5071 = vld [vmem:[%s649 + $0x8c] sm:$0x1]
      %v5104 = vrot.slane %v5040, 5
      %v5105 = vrot.slane %v5104, 4
      %v5106 = vrot.slane %v5041, 5
      %v5107 = vsel %vm1189, %v5105, %v5106
      %v5108 = vrot.slane %v5042, 5
      %v5109 = vrot.slane %v5108, 4
      %v5110 = vrot.slane %v5043, 5
      %v5111 = vsel %vm1189, %v5109, %v5110
      %v5112 = vrot.slane %v5044, 5
      %v5113 = vrot.slane %v5112, 4
      %v5114 = vrot.slane %v5045, 5
      %v5115 = vsel %vm1189, %v5113, %v5114
      %v5116 = vrot.slane %v5046, 5
      %v5117 = vrot.slane %v5116, 4
      %v5118 = vrot.slane %v5047, 5
      %v5119 = vsel %vm1189, %v5117, %v5118
      %v5120 = vrot.slane %v5048, 5
      %v5121 = vrot.slane %v5120, 4
      %v5122 = vrot.slane %v5049, 5
      %v5123 = vsel %vm1189, %v5121, %v5122
      %v5124 = vrot.slane %v5050, 5
      %v5125 = vrot.slane %v5124, 4
      %v5126 = vrot.slane %v5051, 5
      %v5127 = vsel %vm1189, %v5125, %v5126
      %v5128 = vrot.slane %v5052, 5
      %v5129 = vrot.slane %v5128, 4
      %v5130 = vrot.slane %v5053, 5
      %v5131 = vsel %vm1189, %v5129, %v5130
      %v5132 = vrot.slane %v5054, 5
      %v5133 = vrot.slane %v5132, 4
      %v5134 = vrot.slane %v5055, 5
      %v5135 = vsel %vm1189, %v5133, %v5134
      %v5136 = vrot.slane %v5056, 5
      %v5137 = vrot.slane %v5136, 4
      %v5138 = vrot.slane %v5057, 5
      %v5139 = vsel %vm1189, %v5137, %v5138
      %v5140 = vrot.slane %v5058, 5
      %v5141 = vrot.slane %v5140, 4
      %v5142 = vrot.slane %v5059, 5
      %v5143 = vsel %vm1189, %v5141, %v5142
      %v5144 = vrot.slane %v5060, 5
      %v5145 = vrot.slane %v5144, 4
      %v5146 = vrot.slane %v5061, 5
      %v5147 = vsel %vm1189, %v5145, %v5146
      %v5148 = vrot.slane %v5062, 5
      %v5149 = vrot.slane %v5148, 4
      %v5150 = vrot.slane %v5063, 5
      %v5151 = vsel %vm1189, %v5149, %v5150
      %v5152 = vrot.slane %v5064, 5
      %v5153 = vrot.slane %v5152, 4
      %v5154 = vrot.slane %v5065, 5
      %v5155 = vsel %vm1189, %v5153, %v5154
      %v5156 = vrot.slane %v5066, 5
      %v5157 = vrot.slane %v5156, 4
      %v5158 = vrot.slane %v5067, 5
      %v5159 = vsel %vm1189, %v5157, %v5158
      %v5160 = vrot.slane %v5068, 5
      %v5161 = vrot.slane %v5160, 4
      %v5162 = vrot.slane %v5069, 5
      %v5163 = vsel %vm1189, %v5161, %v5162
      %v5164 = vrot.slane %v5070, 5
      %v5165 = vrot.slane %v5164, 4
      %v5166 = vrot.slane %v5071, 5
      %v5167 = vsel %vm1189, %v5165, %v5166
      %v5168 = vunpack.c.l.b16 %v5107
      %v5169 = vunpack.c.l.b16 %v5111
      %v5170 = vunpack.c.l.b16 %v5115
      %v5171 = vunpack.c.l.b16 %v5119
      %v5172 = vunpack.c.l.b16 %v5123
      %v5173 = vunpack.c.l.b16 %v5127
      %v5174 = vunpack.c.l.b16 %v5131
      %v5175 = vunpack.c.l.b16 %v5135
      %v5176 = vunpack.c.l.b16 %v5139
      %v5177 = vunpack.c.l.b16 %v5143
      %v5178 = vunpack.c.l.b16 %v5147
      %v5179 = vunpack.c.l.b16 %v5151
      %v5180 = vunpack.c.l.b16 %v5155
      %v5181 = vunpack.c.l.b16 %v5159
      %v5182 = vunpack.c.l.b16 %v5163
      %v5183 = vunpack.c.l.b16 %v5167
      %v5184 = vpack.c.b16 %v5169, %v5168
      %v5185 = vpack.c.b16 %v5171, %v5170
      %v5186 = vpack.c.b16 %v5173, %v5172
      %v5187 = vpack.c.b16 %v5175, %v5174
      %v5188 = vpack.c.b16 %v5177, %v5176
      %v5189 = vpack.c.b16 %v5179, %v5178
      %v5190 = vpack.c.b16 %v5181, %v5180
      %v5191 = vpack.c.b16 %v5183, %v5182
      %5200 = vst [vmem:[#allocation3 + $0x28] sm:$0xff] %v5184
      %5201 = vst [vmem:[#allocation3 + $0x70] sm:$0xff] %v5185
      %5202 = vst [vmem:[#allocation3 + $0xb8] sm:$0xff] %v5186
      %5203 = vst [vmem:[#allocation3 + $0x100] sm:$0xff] %v5187
      %5204 = vst [vmem:[#allocation3 + $0x148] sm:$0xff] %v5188
      %5205 = vst [vmem:[#allocation3 + $0x190] sm:$0xff] %v5189
      %5206 = vst [vmem:[#allocation3 + $0x1d8] sm:$0xff] %v5190
      %5207 = vst [vmem:[#allocation3 + $0x220] sm:$0xff] %v5191
      %v5208 = vld [vmem:[%s1830] sm:$0xf]
      %v5209 = vld [vmem:[%s1830 + $0x8] sm:$0xf]
      %v5210 = vld [vmem:[%s1830 + $0x10] sm:$0xf]
      %v5211 = vld [vmem:[%s1830 + $0x18] sm:$0xf]
      %v5212 = vld [vmem:[%s1830 + $0x20] sm:$0xf]
      %v5213 = vld [vmem:[%s1830 + $0x28] sm:$0xf]
      %v5214 = vld [vmem:[%s1830 + $0x30] sm:$0xf]
      %v5215 = vld [vmem:[%s1830 + $0x38] sm:$0xf]
      %v5216 = vld [vmem:[%s1830 + $0x50] sm:$0xf]
      %v5217 = vld [vmem:[%s1830 + $0x58] sm:$0xf]
      %v5218 = vld [vmem:[%s1830 + $0x60] sm:$0xf]
      %v5219 = vld [vmem:[%s1830 + $0x68] sm:$0xf]
      %v5220 = vld [vmem:[%s1830 + $0x70] sm:$0xf]
      %v5221 = vld [vmem:[%s1830 + $0x78] sm:$0xf]
      %v5222 = vld [vmem:[%s1830 + $0x80] sm:$0xf]
      %v5223 = vld [vmem:[%s1830 + $0x88] sm:$0xf]
      %v5240 = vunpack.c.l.b16 %v5208
      %v5241 = vunpack.c.l.b16 %v5209
      %v5242 = vunpack.c.l.b16 %v5210
      %v5243 = vunpack.c.l.b16 %v5211
      %v5244 = vunpack.c.l.b16 %v5212
      %v5245 = vunpack.c.l.b16 %v5213
      %v5246 = vunpack.c.l.b16 %v5214
      %v5247 = vunpack.c.l.b16 %v5215
      %v5248 = vunpack.c.l.b16 %v5216
      %v5249 = vunpack.c.l.b16 %v5217
      %v5250 = vunpack.c.l.b16 %v5218
      %v5251 = vunpack.c.l.b16 %v5219
      %v5252 = vunpack.c.l.b16 %v5220
      %v5253 = vunpack.c.l.b16 %v5221
      %v5254 = vunpack.c.l.b16 %v5222
      %v5255 = vunpack.c.l.b16 %v5223
      %v5256 = vpack.c.b16 %v5241, %v5240
      %v5257 = vpack.c.b16 %v5243, %v5242
      %v5258 = vpack.c.b16 %v5245, %v5244
      %v5259 = vpack.c.b16 %v5247, %v5246
      %v5260 = vpack.c.b16 %v5249, %v5248
      %v5261 = vpack.c.b16 %v5251, %v5250
      %v5262 = vpack.c.b16 %v5253, %v5252
      %v5263 = vpack.c.b16 %v5255, %v5254
      %5272 = vst [vmem:[#allocation3 + $0x30] sm:$0xff] %v5256
      %5273 = vst [vmem:[#allocation3 + $0x78] sm:$0xff] %v5257
      %5274 = vst [vmem:[#allocation3 + $0xc0] sm:$0xff] %v5258
      %5275 = vst [vmem:[#allocation3 + $0x108] sm:$0xff] %v5259
      %5276 = vst [vmem:[#allocation3 + $0x150] sm:$0xff] %v5260
      %5277 = vst [vmem:[#allocation3 + $0x198] sm:$0xff] %v5261
      %5278 = vst [vmem:[#allocation3 + $0x1e0] sm:$0xff] %v5262
      %5279 = vst [vmem:[#allocation3 + $0x228] sm:$0xff] %v5263
      %v5280 = vld [vmem:[%s1830] sm:$0xf]
      %v5281 = vld [vmem:[%s1830 + $0x4] sm:$0x1]
      %v5282 = vld [vmem:[%s1830 + $0x8] sm:$0xf]
      %v5283 = vld [vmem:[%s1830 + $0xc] sm:$0x1]
      %v5284 = vld [vmem:[%s1830 + $0x10] sm:$0xf]
      %v5285 = vld [vmem:[%s1830 + $0x14] sm:$0x1]
      %v5286 = vld [vmem:[%s1830 + $0x18] sm:$0xf]
      %v5287 = vld [vmem:[%s1830 + $0x1c] sm:$0x1]
      %v5288 = vld [vmem:[%s1830 + $0x20] sm:$0xf]
      %v5289 = vld [vmem:[%s1830 + $0x24] sm:$0x1]
      %v5290 = vld [vmem:[%s1830 + $0x28] sm:$0xf]
      %v5291 = vld [vmem:[%s1830 + $0x2c] sm:$0x1]
      %v5292 = vld [vmem:[%s1830 + $0x30] sm:$0xf]
      %v5293 = vld [vmem:[%s1830 + $0x34] sm:$0x1]
      %v5294 = vld [vmem:[%s1830 + $0x38] sm:$0xf]
      %v5295 = vld [vmem:[%s1830 + $0x3c] sm:$0x1]
      %v5296 = vld [vmem:[%s1830 + $0x50] sm:$0xf]
      %v5297 = vld [vmem:[%s1830 + $0x54] sm:$0x1]
      %v5298 = vld [vmem:[%s1830 + $0x58] sm:$0xf]
      %v5299 = vld [vmem:[%s1830 + $0x5c] sm:$0x1]
      %v5300 = vld [vmem:[%s1830 + $0x60] sm:$0xf]
      %v5301 = vld [vmem:[%s1830 + $0x64] sm:$0x1]
      %v5302 = vld [vmem:[%s1830 + $0x68] sm:$0xf]
      %v5303 = vld [vmem:[%s1830 + $0x6c] sm:$0x1]
      %v5304 = vld [vmem:[%s1830 + $0x70] sm:$0xf]
      %v5305 = vld [vmem:[%s1830 + $0x74] sm:$0x1]
      %v5306 = vld [vmem:[%s1830 + $0x78] sm:$0xf]
      %v5307 = vld [vmem:[%s1830 + $0x7c] sm:$0x1]
      %v5308 = vld [vmem:[%s1830 + $0x80] sm:$0xf]
      %v5309 = vld [vmem:[%s1830 + $0x84] sm:$0x1]
      %v5310 = vld [vmem:[%s1830 + $0x88] sm:$0xf]
      %v5311 = vld [vmem:[%s1830 + $0x8c] sm:$0x1]
      %v5313 = vshrl.u32 %v5280, 16
      %v5315 = vrot.slane %v5313, 4
      %v5316 = vshll.u32 %v5280, 16
      %v5318 = vrot.slane %v5316, 5
      %v5319 = vor.u32 %v5315, %v5318
      %v5320 = vrot.slane %v5319, 4
      %v5322 = vshll.u32 %v5281, 16
      %v5324 = vrot.slane %v5322, 5
      %v5325 = vsel %vm858, %v5320, %v5324
      %v5327 = vshrl.u32 %v5282, 16
      %v5329 = vrot.slane %v5327, 4
      %v5330 = vshll.u32 %v5282, 16
      %v5332 = vrot.slane %v5330, 5
      %v5333 = vor.u32 %v5329, %v5332
      %v5334 = vrot.slane %v5333, 4
      %v5336 = vshll.u32 %v5283, 16
      %v5338 = vrot.slane %v5336, 5
      %v5339 = vsel %vm858, %v5334, %v5338
      %v5341 = vshrl.u32 %v5284, 16
      %v5343 = vrot.slane %v5341, 4
      %v5344 = vshll.u32 %v5284, 16
      %v5346 = vrot.slane %v5344, 5
      %v5347 = vor.u32 %v5343, %v5346
      %v5348 = vrot.slane %v5347, 4
      %v5350 = vshll.u32 %v5285, 16
      %v5352 = vrot.slane %v5350, 5
      %v5353 = vsel %vm858, %v5348, %v5352
      %v5355 = vshrl.u32 %v5286, 16
      %v5357 = vrot.slane %v5355, 4
      %v5358 = vshll.u32 %v5286, 16
      %v5360 = vrot.slane %v5358, 5
      %v5361 = vor.u32 %v5357, %v5360
      %v5362 = vrot.slane %v5361, 4
      %v5364 = vshll.u32 %v5287, 16
      %v5366 = vrot.slane %v5364, 5
      %v5367 = vsel %vm858, %v5362, %v5366
      %v5369 = vshrl.u32 %v5288, 16
      %v5371 = vrot.slane %v5369, 4
      %v5372 = vshll.u32 %v5288, 16
      %v5374 = vrot.slane %v5372, 5
      %v5375 = vor.u32 %v5371, %v5374
      %v5376 = vrot.slane %v5375, 4
      %v5378 = vshll.u32 %v5289, 16
      %v5380 = vrot.slane %v5378, 5
      %v5381 = vsel %vm858, %v5376, %v5380
      %v5383 = vshrl.u32 %v5290, 16
      %v5385 = vrot.slane %v5383, 4
      %v5386 = vshll.u32 %v5290, 16
      %v5388 = vrot.slane %v5386, 5
      %v5389 = vor.u32 %v5385, %v5388
      %v5390 = vrot.slane %v5389, 4
      %v5392 = vshll.u32 %v5291, 16
      %v5394 = vrot.slane %v5392, 5
      %v5395 = vsel %vm858, %v5390, %v5394
      %v5397 = vshrl.u32 %v5292, 16
      %v5399 = vrot.slane %v5397, 4
      %v5400 = vshll.u32 %v5292, 16
      %v5402 = vrot.slane %v5400, 5
      %v5403 = vor.u32 %v5399, %v5402
      %v5404 = vrot.slane %v5403, 4
      %v5406 = vshll.u32 %v5293, 16
      %v5408 = vrot.slane %v5406, 5
      %v5409 = vsel %vm858, %v5404, %v5408
      %v5411 = vshrl.u32 %v5294, 16
      %v5413 = vrot.slane %v5411, 4
      %v5414 = vshll.u32 %v5294, 16
      %v5416 = vrot.slane %v5414, 5
      %v5417 = vor.u32 %v5413, %v5416
      %v5418 = vrot.slane %v5417, 4
      %v5420 = vshll.u32 %v5295, 16
      %v5422 = vrot.slane %v5420, 5
      %v5423 = vsel %vm858, %v5418, %v5422
      %v5425 = vshrl.u32 %v5296, 16
      %v5427 = vrot.slane %v5425, 4
      %v5428 = vshll.u32 %v5296, 16
      %v5430 = vrot.slane %v5428, 5
      %v5431 = vor.u32 %v5427, %v5430
      %v5432 = vrot.slane %v5431, 4
      %v5434 = vshll.u32 %v5297, 16
      %v5436 = vrot.slane %v5434, 5
      %v5437 = vsel %vm858, %v5432, %v5436
      %v5439 = vshrl.u32 %v5298, 16
      %v5441 = vrot.slane %v5439, 4
      %v5442 = vshll.u32 %v5298, 16
      %v5444 = vrot.slane %v5442, 5
      %v5445 = vor.u32 %v5441, %v5444
      %v5446 = vrot.slane %v5445, 4
      %v5448 = vshll.u32 %v5299, 16
      %v5450 = vrot.slane %v5448, 5
      %v5451 = vsel %vm858, %v5446, %v5450
      %v5453 = vshrl.u32 %v5300, 16
      %v5455 = vrot.slane %v5453, 4
      %v5456 = vshll.u32 %v5300, 16
      %v5458 = vrot.slane %v5456, 5
      %v5459 = vor.u32 %v5455, %v5458
      %v5460 = vrot.slane %v5459, 4
      %v5462 = vshll.u32 %v5301, 16
      %v5464 = vrot.slane %v5462, 5
      %v5465 = vsel %vm858, %v5460, %v5464
      %v5467 = vshrl.u32 %v5302, 16
      %v5469 = vrot.slane %v5467, 4
      %v5470 = vshll.u32 %v5302, 16
      %v5472 = vrot.slane %v5470, 5
      %v5473 = vor.u32 %v5469, %v5472
      %v5474 = vrot.slane %v5473, 4
      %v5476 = vshll.u32 %v5303, 16
      %v5478 = vrot.slane %v5476, 5
      %v5479 = vsel %vm858, %v5474, %v5478
      %v5481 = vshrl.u32 %v5304, 16
      %v5483 = vrot.slane %v5481, 4
      %v5484 = vshll.u32 %v5304, 16
      %v5486 = vrot.slane %v5484, 5
      %v5487 = vor.u32 %v5483, %v5486
      %v5488 = vrot.slane %v5487, 4
      %v5490 = vshll.u32 %v5305, 16
      %v5492 = vrot.slane %v5490, 5
      %v5493 = vsel %vm858, %v5488, %v5492
      %v5495 = vshrl.u32 %v5306, 16
      %v5497 = vrot.slane %v5495, 4
      %v5498 = vshll.u32 %v5306, 16
      %v5500 = vrot.slane %v5498, 5
      %v5501 = vor.u32 %v5497, %v5500
      %v5502 = vrot.slane %v5501, 4
      %v5504 = vshll.u32 %v5307, 16
      %v5506 = vrot.slane %v5504, 5
      %v5507 = vsel %vm858, %v5502, %v5506
      %v5509 = vshrl.u32 %v5308, 16
      %v5511 = vrot.slane %v5509, 4
      %v5512 = vshll.u32 %v5308, 16
      %v5514 = vrot.slane %v5512, 5
      %v5515 = vor.u32 %v5511, %v5514
      %v5516 = vrot.slane %v5515, 4
      %v5518 = vshll.u32 %v5309, 16
      %v5520 = vrot.slane %v5518, 5
      %v5521 = vsel %vm858, %v5516, %v5520
      %v5523 = vshrl.u32 %v5310, 16
      %v5525 = vrot.slane %v5523, 4
      %v5526 = vshll.u32 %v5310, 16
      %v5528 = vrot.slane %v5526, 5
      %v5529 = vor.u32 %v5525, %v5528
      %v5530 = vrot.slane %v5529, 4
      %v5532 = vshll.u32 %v5311, 16
      %v5534 = vrot.slane %v5532, 5
      %v5535 = vsel %vm858, %v5530, %v5534
      %v5536 = vunpack.c.l.b16 %v5325
      %v5537 = vunpack.c.l.b16 %v5339
      %v5538 = vunpack.c.l.b16 %v5353
      %v5539 = vunpack.c.l.b16 %v5367
      %v5540 = vunpack.c.l.b16 %v5381
      %v5541 = vunpack.c.l.b16 %v5395
      %v5542 = vunpack.c.l.b16 %v5409
      %v5543 = vunpack.c.l.b16 %v5423
      %v5544 = vunpack.c.l.b16 %v5437
      %v5545 = vunpack.c.l.b16 %v5451
      %v5546 = vunpack.c.l.b16 %v5465
      %v5547 = vunpack.c.l.b16 %v5479
      %v5548 = vunpack.c.l.b16 %v5493
      %v5549 = vunpack.c.l.b16 %v5507
      %v5550 = vunpack.c.l.b16 %v5521
      %v5551 = vunpack.c.l.b16 %v5535
      %v5552 = vpack.c.b16 %v5537, %v5536
      %v5553 = vpack.c.b16 %v5539, %v5538
      %v5554 = vpack.c.b16 %v5541, %v5540
      %v5555 = vpack.c.b16 %v5543, %v5542
      %v5556 = vpack.c.b16 %v5545, %v5544
      %v5557 = vpack.c.b16 %v5547, %v5546
      %v5558 = vpack.c.b16 %v5549, %v5548
      %v5559 = vpack.c.b16 %v5551, %v5550
      %5568 = vst [vmem:[#allocation3 + $0x38] sm:$0xff] %v5552
      %5569 = vst [vmem:[#allocation3 + $0x80] sm:$0xff] %v5553
      %5570 = vst [vmem:[#allocation3 + $0xc8] sm:$0xff] %v5554
      %5571 = vst [vmem:[#allocation3 + $0x110] sm:$0xff] %v5555
      %5572 = vst [vmem:[#allocation3 + $0x158] sm:$0xff] %v5556
      %5573 = vst [vmem:[#allocation3 + $0x1a0] sm:$0xff] %v5557
      %5574 = vst [vmem:[#allocation3 + $0x1e8] sm:$0xff] %v5558
      %5575 = vst [vmem:[#allocation3 + $0x230] sm:$0xff] %v5559
      %v5576 = vld [vmem:[%s1830] sm:$0xe]
      %v5577 = vld [vmem:[%s1830 + $0x4] sm:$0x1]
      %v5578 = vld [vmem:[%s1830 + $0x8] sm:$0xe]
      %v5579 = vld [vmem:[%s1830 + $0xc] sm:$0x1]
      %v5580 = vld [vmem:[%s1830 + $0x10] sm:$0xe]
      %v5581 = vld [vmem:[%s1830 + $0x14] sm:$0x1]
      %v5582 = vld [vmem:[%s1830 + $0x18] sm:$0xe]
      %v5583 = vld [vmem:[%s1830 + $0x1c] sm:$0x1]
      %v5584 = vld [vmem:[%s1830 + $0x20] sm:$0xe]
      %v5585 = vld [vmem:[%s1830 + $0x24] sm:$0x1]
      %v5586 = vld [vmem:[%s1830 + $0x28] sm:$0xe]
      %v5587 = vld [vmem:[%s1830 + $0x2c] sm:$0x1]
      %v5588 = vld [vmem:[%s1830 + $0x30] sm:$0xe]
      %v5589 = vld [vmem:[%s1830 + $0x34] sm:$0x1]
      %v5590 = vld [vmem:[%s1830 + $0x38] sm:$0xe]
      %v5591 = vld [vmem:[%s1830 + $0x3c] sm:$0x1]
      %v5592 = vld [vmem:[%s1830 + $0x50] sm:$0xe]
      %v5593 = vld [vmem:[%s1830 + $0x54] sm:$0x1]
      %v5594 = vld [vmem:[%s1830 + $0x58] sm:$0xe]
      %v5595 = vld [vmem:[%s1830 + $0x5c] sm:$0x1]
      %v5596 = vld [vmem:[%s1830 + $0x60] sm:$0xe]
      %v5597 = vld [vmem:[%s1830 + $0x64] sm:$0x1]
      %v5598 = vld [vmem:[%s1830 + $0x68] sm:$0xe]
      %v5599 = vld [vmem:[%s1830 + $0x6c] sm:$0x1]
      %v5600 = vld [vmem:[%s1830 + $0x70] sm:$0xe]
      %v5601 = vld [vmem:[%s1830 + $0x74] sm:$0x1]
      %v5602 = vld [vmem:[%s1830 + $0x78] sm:$0xe]
      %v5603 = vld [vmem:[%s1830 + $0x7c] sm:$0x1]
      %v5604 = vld [vmem:[%s1830 + $0x80] sm:$0xe]
      %v5605 = vld [vmem:[%s1830 + $0x84] sm:$0x1]
      %v5606 = vld [vmem:[%s1830 + $0x88] sm:$0xe]
      %v5607 = vld [vmem:[%s1830 + $0x8c] sm:$0x1]
      %v5640 = vrot.slane %v5576, 5
      %v5641 = vrot.slane %v5640, 4
      %v5642 = vrot.slane %v5577, 5
      %v5643 = vsel %vm1189, %v5641, %v5642
      %v5644 = vrot.slane %v5578, 5
      %v5645 = vrot.slane %v5644, 4
      %v5646 = vrot.slane %v5579, 5
      %v5647 = vsel %vm1189, %v5645, %v5646
      %v5648 = vrot.slane %v5580, 5
      %v5649 = vrot.slane %v5648, 4
      %v5650 = vrot.slane %v5581, 5
      %v5651 = vsel %vm1189, %v5649, %v5650
      %v5652 = vrot.slane %v5582, 5
      %v5653 = vrot.slane %v5652, 4
      %v5654 = vrot.slane %v5583, 5
      %v5655 = vsel %vm1189, %v5653, %v5654
      %v5656 = vrot.slane %v5584, 5
      %v5657 = vrot.slane %v5656, 4
      %v5658 = vrot.slane %v5585, 5
      %v5659 = vsel %vm1189, %v5657, %v5658
      %v5660 = vrot.slane %v5586, 5
      %v5661 = vrot.slane %v5660, 4
      %v5662 = vrot.slane %v5587, 5
      %v5663 = vsel %vm1189, %v5661, %v5662
      %v5664 = vrot.slane %v5588, 5
      %v5665 = vrot.slane %v5664, 4
      %v5666 = vrot.slane %v5589, 5
      %v5667 = vsel %vm1189, %v5665, %v5666
      %v5668 = vrot.slane %v5590, 5
      %v5669 = vrot.slane %v5668, 4
      %v5670 = vrot.slane %v5591, 5
      %v5671 = vsel %vm1189, %v5669, %v5670
      %v5672 = vrot.slane %v5592, 5
      %v5673 = vrot.slane %v5672, 4
      %v5674 = vrot.slane %v5593, 5
      %v5675 = vsel %vm1189, %v5673, %v5674
      %v5676 = vrot.slane %v5594, 5
      %v5677 = vrot.slane %v5676, 4
      %v5678 = vrot.slane %v5595, 5
      %v5679 = vsel %vm1189, %v5677, %v5678
      %v5680 = vrot.slane %v5596, 5
      %v5681 = vrot.slane %v5680, 4
      %v5682 = vrot.slane %v5597, 5
      %v5683 = vsel %vm1189, %v5681, %v5682
      %v5684 = vrot.slane %v5598, 5
      %v5685 = vrot.slane %v5684, 4
      %v5686 = vrot.slane %v5599, 5
      %v5687 = vsel %vm1189, %v5685, %v5686
      %v5688 = vrot.slane %v5600, 5
      %v5689 = vrot.slane %v5688, 4
      %v5690 = vrot.slane %v5601, 5
      %v5691 = vsel %vm1189, %v5689, %v5690
      %v5692 = vrot.slane %v5602, 5
      %v5693 = vrot.slane %v5692, 4
      %v5694 = vrot.slane %v5603, 5
      %v5695 = vsel %vm1189, %v5693, %v5694
      %v5696 = vrot.slane %v5604, 5
      %v5697 = vrot.slane %v5696, 4
      %v5698 = vrot.slane %v5605, 5
      %v5699 = vsel %vm1189, %v5697, %v5698
      %v5700 = vrot.slane %v5606, 5
      %v5701 = vrot.slane %v5700, 4
      %v5702 = vrot.slane %v5607, 5
      %v5703 = vsel %vm1189, %v5701, %v5702
      %v5704 = vunpack.c.l.b16 %v5643
      %v5705 = vunpack.c.l.b16 %v5647
      %v5706 = vunpack.c.l.b16 %v5651
      %v5707 = vunpack.c.l.b16 %v5655
      %v5708 = vunpack.c.l.b16 %v5659
      %v5709 = vunpack.c.l.b16 %v5663
      %v5710 = vunpack.c.l.b16 %v5667
      %v5711 = vunpack.c.l.b16 %v5671
      %v5712 = vunpack.c.l.b16 %v5675
      %v5713 = vunpack.c.l.b16 %v5679
      %v5714 = vunpack.c.l.b16 %v5683
      %v5715 = vunpack.c.l.b16 %v5687
      %v5716 = vunpack.c.l.b16 %v5691
      %v5717 = vunpack.c.l.b16 %v5695
      %v5718 = vunpack.c.l.b16 %v5699
      %v5719 = vunpack.c.l.b16 %v5703
      %v5720 = vpack.c.b16 %v5705, %v5704
      %v5721 = vpack.c.b16 %v5707, %v5706
      %v5722 = vpack.c.b16 %v5709, %v5708
      %v5723 = vpack.c.b16 %v5711, %v5710
      %v5724 = vpack.c.b16 %v5713, %v5712
      %v5725 = vpack.c.b16 %v5715, %v5714
      %v5726 = vpack.c.b16 %v5717, %v5716
      %v5727 = vpack.c.b16 %v5719, %v5718
      %5736 = vst [vmem:[#allocation3 + $0x40] sm:$0xff] %v5720
      %5737 = vst [vmem:[#allocation3 + $0x88] sm:$0xff] %v5721
      %5738 = vst [vmem:[#allocation3 + $0xd0] sm:$0xff] %v5722
      %5739 = vst [vmem:[#allocation3 + $0x118] sm:$0xff] %v5723
      %5740 = vst [vmem:[#allocation3 + $0x160] sm:$0xff] %v5724
      %5741 = vst [vmem:[#allocation3 + $0x1a8] sm:$0xff] %v5725
      %5742 = vst [vmem:[#allocation3 + $0x1f0] sm:$0xff] %v5726
      %5743 = vst [vmem:[#allocation3 + $0x238] sm:$0xff] %v5727
      %v5744 = vld [vmem:[#allocation3] sm:$0xff]
      %v5745 = vld [vmem:[#allocation3 + $0x8] sm:$0xff]
      %v5746 = vld [vmem:[#allocation3 + $0x10] sm:$0xff]
      %v5747 = vld [vmem:[#allocation3 + $0x18] sm:$0xff]
      %v5748 = vld [vmem:[#allocation3 + $0x20] sm:$0xff]
      %v5749 = vld [vmem:[#allocation3 + $0x28] sm:$0xff]
      %v5750 = vld [vmem:[#allocation3 + $0x30] sm:$0xff]
      %v5751 = vld [vmem:[#allocation3 + $0x38] sm:$0xff]
      %v5752 = vld [vmem:[#allocation3 + $0x40] sm:$0xff]
      %v5753 = vld [vmem:[#allocation3 + $0x48] sm:$0xff]
      %v5754 = vld [vmem:[#allocation3 + $0x50] sm:$0xff]
      %v5755 = vld [vmem:[#allocation3 + $0x58] sm:$0xff]
      %v5756 = vld [vmem:[#allocation3 + $0x60] sm:$0xff]
      %v5757 = vld [vmem:[#allocation3 + $0x68] sm:$0xff]
      %v5758 = vld [vmem:[#allocation3 + $0x70] sm:$0xff]
      %v5759 = vld [vmem:[#allocation3 + $0x78] sm:$0xff]
      %v5760 = vld [vmem:[#allocation3 + $0x80] sm:$0xff]
      %v5761 = vld [vmem:[#allocation3 + $0x88] sm:$0xff]
      %v5762 = vld [vmem:[#allocation3 + $0x90] sm:$0xff]
      %v5763 = vld [vmem:[#allocation3 + $0x98] sm:$0xff]
      %v5764 = vld [vmem:[#allocation3 + $0xa0] sm:$0xff]
      %v5765 = vld [vmem:[#allocation3 + $0xa8] sm:$0xff]
      %v5766 = vld [vmem:[#allocation3 + $0xb0] sm:$0xff]
      %v5767 = vld [vmem:[#allocation3 + $0xb8] sm:$0xff]
      %v5768 = vld [vmem:[#allocation3 + $0xc0] sm:$0xff]
      %v5769 = vld [vmem:[#allocation3 + $0xc8] sm:$0xff]
      %v5770 = vld [vmem:[#allocation3 + $0xd0] sm:$0xff]
      %v5771 = vld [vmem:[#allocation3 + $0xd8] sm:$0xff]
      %v5772 = vld [vmem:[#allocation3 + $0xe0] sm:$0xff]
      %v5773 = vld [vmem:[#allocation3 + $0xe8] sm:$0xff]
      %v5774 = vld [vmem:[#allocation3 + $0xf0] sm:$0xff]
      %v5775 = vld [vmem:[#allocation3 + $0xf8] sm:$0xff]
      %v5776 = vld [vmem:[#allocation3 + $0x100] sm:$0xff]
      %v5777 = vld [vmem:[#allocation3 + $0x108] sm:$0xff]
      %v5778 = vld [vmem:[#allocation3 + $0x110] sm:$0xff]
      %v5779 = vld [vmem:[#allocation3 + $0x118] sm:$0xff]
      %v5780 = vld [vmem:[#allocation3 + $0x120] sm:$0xff]
      %v5781 = vld [vmem:[#allocation3 + $0x128] sm:$0xff]
      %v5782 = vld [vmem:[#allocation3 + $0x130] sm:$0xff]
      %v5783 = vld [vmem:[#allocation3 + $0x138] sm:$0xff]
      %v5784 = vld [vmem:[#allocation3 + $0x140] sm:$0xff]
      %v5785 = vld [vmem:[#allocation3 + $0x148] sm:$0xff]
      %v5786 = vld [vmem:[#allocation3 + $0x150] sm:$0xff]
      %v5787 = vld [vmem:[#allocation3 + $0x158] sm:$0xff]
      %v5788 = vld [vmem:[#allocation3 + $0x160] sm:$0xff]
      %v5789 = vld [vmem:[#allocation3 + $0x168] sm:$0xff]
      %v5790 = vld [vmem:[#allocation3 + $0x170] sm:$0xff]
      %v5791 = vld [vmem:[#allocation3 + $0x178] sm:$0xff]
      %v5792 = vld [vmem:[#allocation3 + $0x180] sm:$0xff]
      %v5793 = vld [vmem:[#allocation3 + $0x188] sm:$0xff]
      %v5794 = vld [vmem:[#allocation3 + $0x190] sm:$0xff]
      %v5795 = vld [vmem:[#allocation3 + $0x198] sm:$0xff]
      %v5796 = vld [vmem:[#allocation3 + $0x1a0] sm:$0xff]
      %v5797 = vld [vmem:[#allocation3 + $0x1a8] sm:$0xff]
      %v5798 = vld [vmem:[#allocation3 + $0x1b0] sm:$0xff]
      %v5799 = vld [vmem:[#allocation3 + $0x1b8] sm:$0xff]
      %v5800 = vld [vmem:[#allocation3 + $0x1c0] sm:$0xff]
      %v5801 = vld [vmem:[#allocation3 + $0x1c8] sm:$0xff]
      %v5802 = vld [vmem:[#allocation3 + $0x1d0] sm:$0xff]
      %v5803 = vld [vmem:[#allocation3 + $0x1d8] sm:$0xff]
      %v5804 = vld [vmem:[#allocation3 + $0x1e0] sm:$0xff]
      %v5805 = vld [vmem:[#allocation3 + $0x1e8] sm:$0xff]
      %v5806 = vld [vmem:[#allocation3 + $0x1f0] sm:$0xff]
      %v5807 = vld [vmem:[#allocation3 + $0x1f8] sm:$0xff]
      %v5808 = vld [vmem:[#allocation3 + $0x200] sm:$0xff]
      %v5809 = vld [vmem:[#allocation3 + $0x208] sm:$0xff]
      %v5810 = vld [vmem:[#allocation3 + $0x210] sm:$0xff]
      %v5811 = vld [vmem:[#allocation3 + $0x218] sm:$0xff]
      %v5812 = vld [vmem:[#allocation3 + $0x220] sm:$0xff]
      %v5813 = vld [vmem:[#allocation3 + $0x228] sm:$0xff]
      %v5814 = vld [vmem:[#allocation3 + $0x230] sm:$0xff]
      %v5815 = vld [vmem:[#allocation3 + $0x238] sm:$0xff]
      %v5816 = vld [vmem:[%s5] sm:$0xf]
      %v5817 = vld [vmem:[%s5 + $0x4] sm:$0xf]
      %v5818 = vld [vmem:[%s5 + $0x8] sm:$0xf]
      %v5819 = vld [vmem:[%s5 + $0xc] sm:$0xf]
      %v5820 = vld [vmem:[%s5 + $0x10] sm:$0xf]
      %v5821 = vld [vmem:[%s5 + $0x14] sm:$0xf]
      %v5822 = vld [vmem:[%s5 + $0x18] sm:$0xf]
      %v5823 = vld [vmem:[%s5 + $0x1c] sm:$0xf]
      %v5824 = vld [vmem:[%s5 + $0x20] sm:$0xf]
      %v5825 = vld [vmem:[%s5 + $0x24] sm:$0xf]
      %v5826 = vld [vmem:[%s5 + $0x28] sm:$0xf]
      %v5827 = vld [vmem:[%s5 + $0x2c] sm:$0xf]
      %v5828 = vld [vmem:[%s5 + $0x30] sm:$0xf]
      %v5829 = vld [vmem:[%s5 + $0x34] sm:$0xf]
      %v5830 = vld [vmem:[%s5 + $0x38] sm:$0xf]
      %v5831 = vld [vmem:[%s5 + $0x3c] sm:$0xf]
      %v5832 = vld [vmem:[%s5 + $0x40] sm:$0xf]
      %v5833 = vld [vmem:[%s5 + $0x44] sm:$0xf]
      %v5834 = vld [vmem:[%s5 + $0x48] sm:$0xf]
      %v5835 = vld [vmem:[%s5 + $0x4c] sm:$0xf]
      %v5836 = vld [vmem:[%s5 + $0x50] sm:$0xf]
      %v5837 = vld [vmem:[%s5 + $0x54] sm:$0xf]
      %v5838 = vld [vmem:[%s5 + $0x58] sm:$0xf]
      %v5839 = vld [vmem:[%s5 + $0x5c] sm:$0xf]
      %v5840 = vld [vmem:[%s5 + $0x60] sm:$0xf]
      %v5841 = vld [vmem:[%s5 + $0x64] sm:$0xf]
      %v5842 = vld [vmem:[%s5 + $0x68] sm:$0xf]
      %v5843 = vld [vmem:[%s5 + $0x6c] sm:$0xf]
      %v5844 = vld [vmem:[%s5 + $0x70] sm:$0xf]
      %v5845 = vld [vmem:[%s5 + $0x74] sm:$0xf]
      %v5846 = vld [vmem:[%s5 + $0x78] sm:$0xf]
      %v5847 = vld [vmem:[%s5 + $0x7c] sm:$0xf]
      %v5848 = vld [vmem:[%s5 + $0x80] sm:$0xf]
      %v5849 = vld [vmem:[%s5 + $0x84] sm:$0xf]
      %v5850 = vld [vmem:[%s5 + $0x88] sm:$0xf]
      %v5851 = vld [vmem:[%s5 + $0x8c] sm:$0xf]
      %v5852 = vld [vmem:[%s5 + $0x90] sm:$0xf]
      %v5853 = vld [vmem:[%s5 + $0x94] sm:$0xf]
      %v5854 = vld [vmem:[%s5 + $0x98] sm:$0xf]
      %v5855 = vld [vmem:[%s5 + $0x9c] sm:$0xf]
      %v5856 = vld [vmem:[%s5 + $0xa0] sm:$0xf]
      %v5857 = vld [vmem:[%s5 + $0xa4] sm:$0xf]
      %v5858 = vld [vmem:[%s5 + $0xa8] sm:$0xf]
      %v5859 = vld [vmem:[%s5 + $0xac] sm:$0xf]
      %v5860 = vld [vmem:[%s5 + $0xb0] sm:$0xf]
      %v5861 = vld [vmem:[%s5 + $0xb4] sm:$0xf]
      %v5862 = vld [vmem:[%s5 + $0xb8] sm:$0xf]
      %v5863 = vld [vmem:[%s5 + $0xbc] sm:$0xf]
      %v5864 = vld [vmem:[%s5 + $0xc0] sm:$0xf]
      %v5865 = vld [vmem:[%s5 + $0xc4] sm:$0xf]
      %v5866 = vld [vmem:[%s5 + $0xc8] sm:$0xf]
      %v5867 = vld [vmem:[%s5 + $0xcc] sm:$0xf]
      %v5868 = vld [vmem:[%s5 + $0xd0] sm:$0xf]
      %v5869 = vld [vmem:[%s5 + $0xd4] sm:$0xf]
      %v5870 = vld [vmem:[%s5 + $0xd8] sm:$0xf]
      %v5871 = vld [vmem:[%s5 + $0xdc] sm:$0xf]
      %v5872 = vld [vmem:[%s5 + $0xe0] sm:$0xf]
      %v5873 = vld [vmem:[%s5 + $0xe4] sm:$0xf]
      %v5874 = vld [vmem:[%s5 + $0xe8] sm:$0xf]
      %v5875 = vld [vmem:[%s5 + $0xec] sm:$0xf]
      %v5876 = vld [vmem:[%s5 + $0xf0] sm:$0xf]
      %v5877 = vld [vmem:[%s5 + $0xf4] sm:$0xf]
      %v5878 = vld [vmem:[%s5 + $0xf8] sm:$0xf]
      %v5879 = vld [vmem:[%s5 + $0xfc] sm:$0xf]
      %v5880 = vld [vmem:[%s5 + $0x100] sm:$0xf]
      %v5881 = vld [vmem:[%s5 + $0x104] sm:$0xf]
      %v5882 = vld [vmem:[%s5 + $0x108] sm:$0xf]
      %v5883 = vld [vmem:[%s5 + $0x10c] sm:$0xf]
      %v5884 = vld [vmem:[%s5 + $0x110] sm:$0xf]
      %v5885 = vld [vmem:[%s5 + $0x114] sm:$0xf]
      %v5886 = vld [vmem:[%s5 + $0x118] sm:$0xf]
      %v5887 = vld [vmem:[%s5 + $0x11c] sm:$0xf]
      %v5888 = vld [vmem:[%s5 + $0x120] sm:$0xf]
      %v5889 = vld [vmem:[%s5 + $0x124] sm:$0xf]
      %v5890 = vld [vmem:[%s5 + $0x128] sm:$0xf]
      %v5891 = vld [vmem:[%s5 + $0x12c] sm:$0xf]
      %v5892 = vld [vmem:[%s5 + $0x130] sm:$0xf]
      %v5893 = vld [vmem:[%s5 + $0x134] sm:$0xf]
      %v5894 = vld [vmem:[%s5 + $0x138] sm:$0xf]
      %v5895 = vld [vmem:[%s5 + $0x13c] sm:$0xf]
      %v5896 = vld [vmem:[%s5 + $0x140] sm:$0xf]
      %v5897 = vld [vmem:[%s5 + $0x144] sm:$0xf]
      %v5898 = vld [vmem:[%s5 + $0x148] sm:$0xf]
      %v5899 = vld [vmem:[%s5 + $0x14c] sm:$0xf]
      %v5900 = vld [vmem:[%s5 + $0x150] sm:$0xf]
      %v5901 = vld [vmem:[%s5 + $0x154] sm:$0xf]
      %v5902 = vld [vmem:[%s5 + $0x158] sm:$0xf]
      %v5903 = vld [vmem:[%s5 + $0x15c] sm:$0xf]
      %v5904 = vld [vmem:[%s5 + $0x160] sm:$0xf]
      %v5905 = vld [vmem:[%s5 + $0x164] sm:$0xf]
      %v5906 = vld [vmem:[%s5 + $0x168] sm:$0xf]
      %v5907 = vld [vmem:[%s5 + $0x16c] sm:$0xf]
      %v5908 = vld [vmem:[%s5 + $0x170] sm:$0xf]
      %v5909 = vld [vmem:[%s5 + $0x174] sm:$0xf]
      %v5910 = vld [vmem:[%s5 + $0x178] sm:$0xf]
      %v5911 = vld [vmem:[%s5 + $0x17c] sm:$0xf]
      %v5912 = vld [vmem:[%s5 + $0x180] sm:$0xf]
      %v5913 = vld [vmem:[%s5 + $0x184] sm:$0xf]
      %v5914 = vld [vmem:[%s5 + $0x188] sm:$0xf]
      %v5915 = vld [vmem:[%s5 + $0x18c] sm:$0xf]
      %v5916 = vld [vmem:[%s5 + $0x190] sm:$0xf]
      %v5917 = vld [vmem:[%s5 + $0x194] sm:$0xf]
      %v5918 = vld [vmem:[%s5 + $0x198] sm:$0xf]
      %v5919 = vld [vmem:[%s5 + $0x19c] sm:$0xf]
      %v5920 = vld [vmem:[%s5 + $0x1a0] sm:$0xf]
      %v5921 = vld [vmem:[%s5 + $0x1a4] sm:$0xf]
      %v5922 = vld [vmem:[%s5 + $0x1a8] sm:$0xf]
      %v5923 = vld [vmem:[%s5 + $0x1ac] sm:$0xf]
      %v5924 = vld [vmem:[%s5 + $0x1b0] sm:$0xf]
      %v5925 = vld [vmem:[%s5 + $0x1b4] sm:$0xf]
      %v5926 = vld [vmem:[%s5 + $0x1b8] sm:$0xf]
      %v5927 = vld [vmem:[%s5 + $0x1bc] sm:$0xf]
      %v5928 = vld [vmem:[%s5 + $0x1c0] sm:$0xf]
      %v5929 = vld [vmem:[%s5 + $0x1c4] sm:$0xf]
      %v5930 = vld [vmem:[%s5 + $0x1c8] sm:$0xf]
      %v5931 = vld [vmem:[%s5 + $0x1cc] sm:$0xf]
      %v5932 = vld [vmem:[%s5 + $0x1d0] sm:$0xf]
      %v5933 = vld [vmem:[%s5 + $0x1d4] sm:$0xf]
      %v5934 = vld [vmem:[%s5 + $0x1d8] sm:$0xf]
      %v5935 = vld [vmem:[%s5 + $0x1dc] sm:$0xf]
      %v5936 = vld [vmem:[%s5 + $0x1e0] sm:$0xf]
      %v5937 = vld [vmem:[%s5 + $0x1e4] sm:$0xf]
      %v5938 = vld [vmem:[%s5 + $0x1e8] sm:$0xf]
      %v5939 = vld [vmem:[%s5 + $0x1ec] sm:$0xf]
      %v5940 = vld [vmem:[%s5 + $0x1f0] sm:$0xf]
      %v5941 = vld [vmem:[%s5 + $0x1f4] sm:$0xf]
      %v5942 = vld [vmem:[%s5 + $0x1f8] sm:$0xf]
      %v5943 = vld [vmem:[%s5 + $0x1fc] sm:$0xf]
      %v5944 = vld [vmem:[%s5 + $0x200] sm:$0xf]
      %v5945 = vld [vmem:[%s5 + $0x204] sm:$0xf]
      %v5946 = vld [vmem:[%s5 + $0x208] sm:$0xf]
      %v5947 = vld [vmem:[%s5 + $0x20c] sm:$0xf]
      %v5948 = vld [vmem:[%s5 + $0x210] sm:$0xf]
      %v5949 = vld [vmem:[%s5 + $0x214] sm:$0xf]
      %v5950 = vld [vmem:[%s5 + $0x218] sm:$0xf]
      %v5951 = vld [vmem:[%s5 + $0x21c] sm:$0xf]
      %v5952 = vld [vmem:[%s5 + $0x220] sm:$0xf]
      %v5953 = vld [vmem:[%s5 + $0x224] sm:$0xf]
      %v5954 = vld [vmem:[%s5 + $0x228] sm:$0xf]
      %v5955 = vld [vmem:[%s5 + $0x22c] sm:$0xf]
      %v5956 = vld [vmem:[%s5 + $0x230] sm:$0xf]
      %v5957 = vld [vmem:[%s5 + $0x234] sm:$0xf]
      %v5958 = vld [vmem:[%s5 + $0x238] sm:$0xf]
      %v5959 = vld [vmem:[%s5 + $0x23c] sm:$0xf]
      %v5960 = vld [vmem:[%s6] sm:$0x1]
      %v5962 = vlaneseq
      %v5963 = vshrl.u32 %v5962, 7
      %v5964 = vsub.s32 0, %v5963
      %v5965 = vrot.slane %v5960, %v5964
      %v6111 = vunpack.c.l.b16 %v5816
      %v6112 = vunpack.c.l.b16 %v5817
      %v6113 = vunpack.c.l.b16 %v5818
      %v6114 = vunpack.c.l.b16 %v5819
      %v6115 = vunpack.c.l.b16 %v5820
      %v6116 = vunpack.c.l.b16 %v5821
      %v6117 = vunpack.c.l.b16 %v5822
      %v6118 = vunpack.c.l.b16 %v5823
      %v6119 = vunpack.c.l.b16 %v5824
      %v6120 = vunpack.c.l.b16 %v5825
      %v6121 = vunpack.c.l.b16 %v5826
      %v6122 = vunpack.c.l.b16 %v5827
      %v6123 = vunpack.c.l.b16 %v5828
      %v6124 = vunpack.c.l.b16 %v5829
      %v6125 = vunpack.c.l.b16 %v5830
      %v6126 = vunpack.c.l.b16 %v5831
      %v6127 = vunpack.c.l.b16 %v5832
      %v6128 = vunpack.c.l.b16 %v5833
      %v6129 = vunpack.c.l.b16 %v5834
      %v6130 = vunpack.c.l.b16 %v5835
      %v6131 = vunpack.c.l.b16 %v5836
      %v6132 = vunpack.c.l.b16 %v5837
      %v6133 = vunpack.c.l.b16 %v5838
      %v6134 = vunpack.c.l.b16 %v5839
      %v6135 = vunpack.c.l.b16 %v5840
      %v6136 = vunpack.c.l.b16 %v5841
      %v6137 = vunpack.c.l.b16 %v5842
      %v6138 = vunpack.c.l.b16 %v5843
      %v6139 = vunpack.c.l.b16 %v5844
      %v6140 = vunpack.c.l.b16 %v5845
      %v6141 = vunpack.c.l.b16 %v5846
      %v6142 = vunpack.c.l.b16 %v5847
      %v6143 = vunpack.c.l.b16 %v5848
      %v6144 = vunpack.c.l.b16 %v5849
      %v6145 = vunpack.c.l.b16 %v5850
      %v6146 = vunpack.c.l.b16 %v5851
      %v6147 = vunpack.c.l.b16 %v5852
      %v6148 = vunpack.c.l.b16 %v5853
      %v6149 = vunpack.c.l.b16 %v5854
      %v6150 = vunpack.c.l.b16 %v5855
      %v6151 = vunpack.c.l.b16 %v5856
      %v6152 = vunpack.c.l.b16 %v5857
      %v6153 = vunpack.c.l.b16 %v5858
      %v6154 = vunpack.c.l.b16 %v5859
      %v6155 = vunpack.c.l.b16 %v5860
      %v6156 = vunpack.c.l.b16 %v5861
      %v6157 = vunpack.c.l.b16 %v5862
      %v6158 = vunpack.c.l.b16 %v5863
      %v6159 = vunpack.c.l.b16 %v5864
      %v6160 = vunpack.c.l.b16 %v5865
      %v6161 = vunpack.c.l.b16 %v5866
      %v6162 = vunpack.c.l.b16 %v5867
      %v6163 = vunpack.c.l.b16 %v5868
      %v6164 = vunpack.c.l.b16 %v5869
      %v6165 = vunpack.c.l.b16 %v5870
      %v6166 = vunpack.c.l.b16 %v5871
      %v6167 = vunpack.c.l.b16 %v5872
      %v6168 = vunpack.c.l.b16 %v5873
      %v6169 = vunpack.c.l.b16 %v5874
      %v6170 = vunpack.c.l.b16 %v5875
      %v6171 = vunpack.c.l.b16 %v5876
      %v6172 = vunpack.c.l.b16 %v5877
      %v6173 = vunpack.c.l.b16 %v5878
      %v6174 = vunpack.c.l.b16 %v5879
      %v6175 = vunpack.c.l.b16 %v5880
      %v6176 = vunpack.c.l.b16 %v5881
      %v6177 = vunpack.c.l.b16 %v5882
      %v6178 = vunpack.c.l.b16 %v5883
      %v6179 = vunpack.c.l.b16 %v5884
      %v6180 = vunpack.c.l.b16 %v5885
      %v6181 = vunpack.c.l.b16 %v5886
      %v6182 = vunpack.c.l.b16 %v5887
      %v6183 = vunpack.c.l.b16 %v5888
      %v6184 = vunpack.c.l.b16 %v5889
      %v6185 = vunpack.c.l.b16 %v5890
      %v6186 = vunpack.c.l.b16 %v5891
      %v6187 = vunpack.c.l.b16 %v5892
      %v6188 = vunpack.c.l.b16 %v5893
      %v6189 = vunpack.c.l.b16 %v5894
      %v6190 = vunpack.c.l.b16 %v5895
      %v6191 = vunpack.c.l.b16 %v5896
      %v6192 = vunpack.c.l.b16 %v5897
      %v6193 = vunpack.c.l.b16 %v5898
      %v6194 = vunpack.c.l.b16 %v5899
      %v6195 = vunpack.c.l.b16 %v5900
      %v6196 = vunpack.c.l.b16 %v5901
      %v6197 = vunpack.c.l.b16 %v5902
      %v6198 = vunpack.c.l.b16 %v5903
      %v6199 = vunpack.c.l.b16 %v5904
      %v6200 = vunpack.c.l.b16 %v5905
      %v6201 = vunpack.c.l.b16 %v5906
      %v6202 = vunpack.c.l.b16 %v5907
      %v6203 = vunpack.c.l.b16 %v5908
      %v6204 = vunpack.c.l.b16 %v5909
      %v6205 = vunpack.c.l.b16 %v5910
      %v6206 = vunpack.c.l.b16 %v5911
      %v6207 = vunpack.c.l.b16 %v5912
      %v6208 = vunpack.c.l.b16 %v5913
      %v6209 = vunpack.c.l.b16 %v5914
      %v6210 = vunpack.c.l.b16 %v5915
      %v6211 = vunpack.c.l.b16 %v5916
      %v6212 = vunpack.c.l.b16 %v5917
      %v6213 = vunpack.c.l.b16 %v5918
      %v6214 = vunpack.c.l.b16 %v5919
      %v6215 = vunpack.c.l.b16 %v5920
      %v6216 = vunpack.c.l.b16 %v5921
      %v6217 = vunpack.c.l.b16 %v5922
      %v6218 = vunpack.c.l.b16 %v5923
      %v6219 = vunpack.c.l.b16 %v5924
      %v6220 = vunpack.c.l.b16 %v5925
      %v6221 = vunpack.c.l.b16 %v5926
      %v6222 = vunpack.c.l.b16 %v5927
      %v6223 = vunpack.c.l.b16 %v5928
      %v6224 = vunpack.c.l.b16 %v5929
      %v6225 = vunpack.c.l.b16 %v5930
      %v6226 = vunpack.c.l.b16 %v5931
      %v6227 = vunpack.c.l.b16 %v5932
      %v6228 = vunpack.c.l.b16 %v5933
      %v6229 = vunpack.c.l.b16 %v5934
      %v6230 = vunpack.c.l.b16 %v5935
      %v6231 = vunpack.c.l.b16 %v5936
      %v6232 = vunpack.c.l.b16 %v5937
      %v6233 = vunpack.c.l.b16 %v5938
      %v6234 = vunpack.c.l.b16 %v5939
      %v6235 = vunpack.c.l.b16 %v5940
      %v6236 = vunpack.c.l.b16 %v5941
      %v6237 = vunpack.c.l.b16 %v5942
      %v6238 = vunpack.c.l.b16 %v5943
      %v6239 = vunpack.c.l.b16 %v5944
      %v6240 = vunpack.c.l.b16 %v5945
      %v6241 = vunpack.c.l.b16 %v5946
      %v6242 = vunpack.c.l.b16 %v5947
      %v6243 = vunpack.c.l.b16 %v5948
      %v6244 = vunpack.c.l.b16 %v5949
      %v6245 = vunpack.c.l.b16 %v5950
      %v6246 = vunpack.c.l.b16 %v5951
      %v6247 = vunpack.c.l.b16 %v5952
      %v6248 = vunpack.c.l.b16 %v5953
      %v6249 = vunpack.c.l.b16 %v5954
      %v6250 = vunpack.c.l.b16 %v5955
      %v6251 = vunpack.c.l.b16 %v5956
      %v6252 = vunpack.c.l.b16 %v5957
      %v6253 = vunpack.c.l.b16 %v5958
      %v6254 = vunpack.c.l.b16 %v5959
      %v6255 = vpack.c.b16 %v6112, %v6111
      %v6256 = vpack.c.b16 %v6114, %v6113
      %v6257 = vpack.c.b16 %v6116, %v6115
      %v6258 = vpack.c.b16 %v6118, %v6117
      %v6259 = vpack.c.b16 %v6120, %v6119
      %v6260 = vpack.c.b16 %v6122, %v6121
      %v6261 = vpack.c.b16 %v6124, %v6123
      %v6262 = vpack.c.b16 %v6126, %v6125
      %v6263 = vpack.c.b16 %v6128, %v6127
      %v6264 = vpack.c.b16 %v6130, %v6129
      %v6265 = vpack.c.b16 %v6132, %v6131
      %v6266 = vpack.c.b16 %v6134, %v6133
      %v6267 = vpack.c.b16 %v6136, %v6135
      %v6268 = vpack.c.b16 %v6138, %v6137
      %v6269 = vpack.c.b16 %v6140, %v6139
      %v6270 = vpack.c.b16 %v6142, %v6141
      %v6271 = vpack.c.b16 %v6144, %v6143
      %v6272 = vpack.c.b16 %v6146, %v6145
      %v6273 = vpack.c.b16 %v6148, %v6147
      %v6274 = vpack.c.b16 %v6150, %v6149
      %v6275 = vpack.c.b16 %v6152, %v6151
      %v6276 = vpack.c.b16 %v6154, %v6153
      %v6277 = vpack.c.b16 %v6156, %v6155
      %v6278 = vpack.c.b16 %v6158, %v6157
      %v6279 = vpack.c.b16 %v6160, %v6159
      %v6280 = vpack.c.b16 %v6162, %v6161
      %v6281 = vpack.c.b16 %v6164, %v6163
      %v6282 = vpack.c.b16 %v6166, %v6165
      %v6283 = vpack.c.b16 %v6168, %v6167
      %v6284 = vpack.c.b16 %v6170, %v6169
      %v6285 = vpack.c.b16 %v6172, %v6171
      %v6286 = vpack.c.b16 %v6174, %v6173
      %v6287 = vpack.c.b16 %v6176, %v6175
      %v6288 = vpack.c.b16 %v6178, %v6177
      %v6289 = vpack.c.b16 %v6180, %v6179
      %v6290 = vpack.c.b16 %v6182, %v6181
      %v6291 = vpack.c.b16 %v6184, %v6183
      %v6292 = vpack.c.b16 %v6186, %v6185
      %v6293 = vpack.c.b16 %v6188, %v6187
      %v6294 = vpack.c.b16 %v6190, %v6189
      %v6295 = vpack.c.b16 %v6192, %v6191
      %v6296 = vpack.c.b16 %v6194, %v6193
      %v6297 = vpack.c.b16 %v6196, %v6195
      %v6298 = vpack.c.b16 %v6198, %v6197
      %v6299 = vpack.c.b16 %v6200, %v6199
      %v6300 = vpack.c.b16 %v6202, %v6201
      %v6301 = vpack.c.b16 %v6204, %v6203
      %v6302 = vpack.c.b16 %v6206, %v6205
      %v6303 = vpack.c.b16 %v6208, %v6207
      %v6304 = vpack.c.b16 %v6210, %v6209
      %v6305 = vpack.c.b16 %v6212, %v6211
      %v6306 = vpack.c.b16 %v6214, %v6213
      %v6307 = vpack.c.b16 %v6216, %v6215
      %v6308 = vpack.c.b16 %v6218, %v6217
      %v6309 = vpack.c.b16 %v6220, %v6219
      %v6310 = vpack.c.b16 %v6222, %v6221
      %v6311 = vpack.c.b16 %v6224, %v6223
      %v6312 = vpack.c.b16 %v6226, %v6225
      %v6313 = vpack.c.b16 %v6228, %v6227
      %v6314 = vpack.c.b16 %v6230, %v6229
      %v6315 = vpack.c.b16 %v6232, %v6231
      %v6316 = vpack.c.b16 %v6234, %v6233
      %v6317 = vpack.c.b16 %v6236, %v6235
      %v6318 = vpack.c.b16 %v6238, %v6237
      %v6319 = vpack.c.b16 %v6240, %v6239
      %v6320 = vpack.c.b16 %v6242, %v6241
      %v6321 = vpack.c.b16 %v6244, %v6243
      %v6322 = vpack.c.b16 %v6246, %v6245
      %v6323 = vpack.c.b16 %v6248, %v6247
      %v6324 = vpack.c.b16 %v6250, %v6249
      %v6325 = vpack.c.b16 %v6252, %v6251
      %v6326 = vpack.c.b16 %v6254, %v6253
      %6399 = vmatprep.subr.bf16.mxu0 0
      %6400 = vmatpush1.bf16.msra.mxu0 %v6255
      %6401 = vmatprep.subr.bf16.mxu0 0
      %6402 = vmatpush1.bf16.msra.mxu0 %v6256
      %6403 = vmatprep.subr.bf16.mxu0 0
      %6404 = vmatpush1.bf16.msra.mxu0 %v6257
      %6405 = vmatprep.subr.bf16.mxu0 0
      %6406 = vmatpush1.bf16.msra.mxu0 %v6258
      %6407 = vmatprep.subr.bf16.mxu0 0
      %6408 = vmatpush1.bf16.msra.mxu0 %v6259
      %6409 = vmatprep.subr.bf16.mxu0 0
      %6410 = vmatpush1.bf16.msra.mxu0 %v6260
      %6411 = vmatprep.subr.bf16.mxu0 0
      %6412 = vmatpush1.bf16.msra.mxu0 %v6261
      %6413 = vmatprep.subr.bf16.mxu0 0
      %6414 = vmatpush1.bf16.msra.mxu0 %v6262
      %6415 = vmatprep.subr.bf16.mxu0 0
      %6416 = vmatpush1.bf16.msra.mxu0 %v6263
      %6417 = vmatprep.subr.bf16.mxu0 0
      %6418 = vmatpush1.bf16.msra.mxu0 %v6264
      %6419 = vmatprep.subr.bf16.mxu0 0
      %6420 = vmatpush1.bf16.msra.mxu0 %v6265
      %6421 = vmatprep.subr.bf16.mxu0 0
      %6422 = vmatpush1.bf16.msra.mxu0 %v6266
      %6423 = vmatprep.subr.bf16.mxu0 0
      %6424 = vmatpush1.bf16.msra.mxu0 %v6267
      %6425 = vmatprep.subr.bf16.mxu0 0
      %6426 = vmatpush1.bf16.msra.mxu0 %v6268
      %6427 = vmatprep.subr.bf16.mxu0 0
      %6428 = vmatpush1.bf16.msra.mxu0 %v6269
      %6429 = vmatprep.subr.bf16.mxu0 0
      %6430 = vmatpush1.bf16.msra.mxu0 %v6270
      %6431 = vmatprep.mubr.bf16.mxu0 %v5745
      %6432 = vmatmul.mubr.bf16.gmra.mrb[0].mxu0 %v5744
      %v6433 = vpop.f32.mrb[0].mxu0
      %v6434 = vadd.f32 %v5965, %v6433
      %v6435 = vpop.f32.mrb[0].mxu0
      %v6436 = vpop.f32.mrb[0].mxu0
      %v6437 = vadd.f32 %v5965, %v6436
      %v6438 = vpop.f32.mrb[0].mxu0
      %6439 = vmatprep.mubr.bf16.mxu0 %v5754
      %6440 = vmatmul.mubr.bf16.gmra.mrb[0].mxu0 %v5753
      %v6441 = vpop.f32.mrb[0].mxu0
      %v6442 = vadd.f32 %v5965, %v6441
      %v6443 = vpop.f32.mrb[0].mxu0
      %v6444 = vpop.f32.mrb[0].mxu0
      %v6445 = vadd.f32 %v5965, %v6444
      %v6446 = vpop.f32.mrb[0].mxu0
      %6447 = vmatprep.mubr.bf16.mxu0 %v5763
      %6448 = vmatmul.mubr.bf16.gmra.mrb[0].mxu0 %v5762
      %v6449 = vpop.f32.mrb[0].mxu0
      %v6450 = vadd.f32 %v5965, %v6449
      %v6451 = vpop.f32.mrb[0].mxu0
      %v6452 = vpop.f32.mrb[0].mxu0
      %v6453 = vadd.f32 %v5965, %v6452
      %v6454 = vpop.f32.mrb[0].mxu0
      %6455 = vmatprep.mubr.bf16.mxu0 %v5772
      %6456 = vmatmul.mubr.bf16.gmra.mrb[0].mxu0 %v5771
      %v6457 = vpop.f32.mrb[0].mxu0
      %v6458 = vadd.f32 %v5965, %v6457
      %v6459 = vpop.f32.mrb[0].mxu0
      %v6460 = vpop.f32.mrb[0].mxu0
      %v6461 = vadd.f32 %v5965, %v6460
      %v6462 = vpop.f32.mrb[0].mxu0
      %6463 = vmatprep.mubr.bf16.mxu0 %v5781
      %6464 = vmatmul.mubr.bf16.gmra.mrb[0].mxu0 %v5780
      %v6465 = vpop.f32.mrb[0].mxu0
      %v6466 = vadd.f32 %v5965, %v6465
      %v6467 = vpop.f32.mrb[0].mxu0
      %v6468 = vpop.f32.mrb[0].mxu0
      %v6469 = vadd.f32 %v5965, %v6468
      %v6470 = vpop.f32.mrb[0].mxu0
      %6471 = vmatprep.mubr.bf16.mxu0 %v5790
      %6472 = vmatmul.mubr.bf16.gmra.mrb[0].mxu0 %v5789
      %v6473 = vpop.f32.mrb[0].mxu0
      %v6474 = vadd.f32 %v5965, %v6473
      %v6475 = vpop.f32.mrb[0].mxu0
      %v6476 = vpop.f32.mrb[0].mxu0
      %v6477 = vadd.f32 %v5965, %v6476
      %v6478 = vpop.f32.mrb[0].mxu0
      %6479 = vmatprep.mubr.bf16.mxu0 %v5799
      %6480 = vmatmul.mubr.bf16.gmra.mrb[0].mxu0 %v5798
      %v6481 = vpop.f32.mrb[0].mxu0
      %v6482 = vadd.f32 %v5965, %v6481
      %v6483 = vpop.f32.mrb[0].mxu0
      %v6484 = vpop.f32.mrb[0].mxu0
      %v6485 = vadd.f32 %v5965, %v6484
      %v6486 = vpop.f32.mrb[0].mxu0
      %6487 = vmatprep.mubr.bf16.mxu0 %v5808
      %6488 = vmatmul.mubr.bf16.gmra.mrb[0].mxu0 %v5807
      %v6489 = vpop.f32.mrb[0].mxu0
      %v6490 = vadd.f32 %v5965, %v6489
      %v6491 = vpop.f32.mrb[0].mxu0
      %v6492 = vpop.f32.mrb[0].mxu0
      %v6493 = vadd.f32 %v5965, %v6492
      %v6494 = vpop.f32.mrb[0].mxu0
      %6495 = vdwg.mxu0
      %6496 = vmatprep.subr.bf16.mxu0 0
      %6497 = vmatpush1.bf16.msra.mxu0 %v6271
      %6498 = vmatprep.subr.bf16.mxu0 0
      %6499 = vmatpush1.bf16.msra.mxu0 %v6272
      %6500 = vmatprep.subr.bf16.mxu0 0
      %6501 = vmatpush1.bf16.msra.mxu0 %v6273
      %6502 = vmatprep.subr.bf16.mxu0 0
      %6503 = vmatpush1.bf16.msra.mxu0 %v6274
      %6504 = vmatprep.subr.bf16.mxu0 0
      %6505 = vmatpush1.bf16.msra.mxu0 %v6275
      %6506 = vmatprep.subr.bf16.mxu0 0
      %6507 = vmatpush1.bf16.msra.mxu0 %v6276
      %6508 = vmatprep.subr.bf16.mxu0 0
      %6509 = vmatpush1.bf16.msra.mxu0 %v6277
      %6510 = vmatprep.subr.bf16.mxu0 0
      %6511 = vmatpush1.bf16.msra.mxu0 %v6278
      %6512 = vmatprep.subr.bf16.mxu0 0
      %6513 = vmatpush1.bf16.msra.mxu0 %v6279
      %6514 = vmatprep.subr.bf16.mxu0 0
      %6515 = vmatpush1.bf16.msra.mxu0 %v6280
      %6516 = vmatprep.subr.bf16.mxu0 0
      %6517 = vmatpush1.bf16.msra.mxu0 %v6281
      %6518 = vmatprep.subr.bf16.mxu0 0
      %6519 = vmatpush1.bf16.msra.mxu0 %v6282
      %6520 = vmatprep.subr.bf16.mxu0 0
      %6521 = vmatpush1.bf16.msra.mxu0 %v6283
      %6522 = vmatprep.subr.bf16.mxu0 0
      %6523 = vmatpush1.bf16.msra.mxu0 %v6284
      %6524 = vmatprep.subr.bf16.mxu0 0
      %6525 = vmatpush1.bf16.msra.mxu0 %v6285
      %6526 = vmatprep.subr.bf16.mxu0 0
      %6527 = vmatpush1.bf16.msra.mxu0 %v6286
      %6528 = vmatprep.mubr.bf16.mxu0 %v5747
      %6529 = vmatmul.mubr.bf16.gmra.mrb[0].mxu0 %v5746
      %v6530 = vpop.f32.mrb[0].mxu0
      %v6531 = vadd.f32 %v6434, %v6530
      %v6532 = vpop.f32.mrb[0].mxu0
      %v6533 = vpop.f32.mrb[0].mxu0
      %v6534 = vadd.f32 %v6437, %v6533
      %v6535 = vpop.f32.mrb[0].mxu0
      %6536 = vmatprep.mubr.bf16.mxu0 %v5756
      %6537 = vmatmul.mubr.bf16.gmra.mrb[0].mxu0 %v5755
      %v6538 = vpop.f32.mrb[0].mxu0
      %v6539 = vadd.f32 %v6442, %v6538
      %v6540 = vpop.f32.mrb[0].mxu0
      %v6541 = vpop.f32.mrb[0].mxu0
      %v6542 = vadd.f32 %v6445, %v6541
      %v6543 = vpop.f32.mrb[0].mxu0
      %6544 = vmatprep.mubr.bf16.mxu0 %v5765
      %6545 = vmatmul.mubr.bf16.gmra.mrb[0].mxu0 %v5764
      %v6546 = vpop.f32.mrb[0].mxu0
      %v6547 = vadd.f32 %v6450, %v6546
      %v6548 = vpop.f32.mrb[0].mxu0
      %v6549 = vpop.f32.mrb[0].mxu0
      %v6550 = vadd.f32 %v6453, %v6549
      %v6551 = vpop.f32.mrb[0].mxu0
      %6552 = vmatprep.mubr.bf16.mxu0 %v5774
      %6553 = vmatmul.mubr.bf16.gmra.mrb[0].mxu0 %v5773
      %v6554 = vpop.f32.mrb[0].mxu0
      %v6555 = vadd.f32 %v6458, %v6554
      %v6556 = vpop.f32.mrb[0].mxu0
      %v6557 = vpop.f32.mrb[0].mxu0
      %v6558 = vadd.f32 %v6461, %v6557
      %v6559 = vpop.f32.mrb[0].mxu0
      %6560 = vmatprep.mubr.bf16.mxu0 %v5783
      %6561 = vmatmul.mubr.bf16.gmra.mrb[0].mxu0 %v5782
      %v6562 = vpop.f32.mrb[0].mxu0
      %v6563 = vadd.f32 %v6466, %v6562
      %v6564 = vpop.f32.mrb[0].mxu0
      %v6565 = vpop.f32.mrb[0].mxu0
      %v6566 = vadd.f32 %v6469, %v6565
      %v6567 = vpop.f32.mrb[0].mxu0
      %6568 = vmatprep.mubr.bf16.mxu0 %v5792
      %6569 = vmatmul.mubr.bf16.gmra.mrb[0].mxu0 %v5791
      %v6570 = vpop.f32.mrb[0].mxu0
      %v6571 = vadd.f32 %v6474, %v6570
      %v6572 = vpop.f32.mrb[0].mxu0
      %v6573 = vpop.f32.mrb[0].mxu0
      %v6574 = vadd.f32 %v6477, %v6573
      %v6575 = vpop.f32.mrb[0].mxu0
      %6576 = vmatprep.mubr.bf16.mxu0 %v5801
      %6577 = vmatmul.mubr.bf16.gmra.mrb[0].mxu0 %v5800
      %v6578 = vpop.f32.mrb[0].mxu0
      %v6579 = vadd.f32 %v6482, %v6578
      %v6580 = vpop.f32.mrb[0].mxu0
      %v6581 = vpop.f32.mrb[0].mxu0
      %v6582 = vadd.f32 %v6485, %v6581
      %v6583 = vpop.f32.mrb[0].mxu0
      %6584 = vmatprep.mubr.bf16.mxu0 %v5810
      %6585 = vmatmul.mubr.bf16.gmra.mrb[0].mxu0 %v5809
      %v6586 = vpop.f32.mrb[0].mxu0
      %v6587 = vadd.f32 %v6490, %v6586
      %v6588 = vpop.f32.mrb[0].mxu0
      %v6589 = vpop.f32.mrb[0].mxu0
      %v6590 = vadd.f32 %v6493, %v6589
      %v6591 = vpop.f32.mrb[0].mxu0
      %6592 = vdwg.mxu0
      %6593 = vmatprep.subr.bf16.mxu0 0
      %6594 = vmatpush1.bf16.msra.mxu0 %v6287
      %6595 = vmatprep.subr.bf16.mxu0 0
      %6596 = vmatpush1.bf16.msra.mxu0 %v6288
      %6597 = vmatprep.subr.bf16.mxu0 0
      %6598 = vmatpush1.bf16.msra.mxu0 %v6289
      %6599 = vmatprep.subr.bf16.mxu0 0
      %6600 = vmatpush1.bf16.msra.mxu0 %v6290
      %6601 = vmatprep.subr.bf16.mxu0 0
      %6602 = vmatpush1.bf16.msra.mxu0 %v6291
      %6603 = vmatprep.subr.bf16.mxu0 0
      %6604 = vmatpush1.bf16.msra.mxu0 %v6292
      %6605 = vmatprep.subr.bf16.mxu0 0
      %6606 = vmatpush1.bf16.msra.mxu0 %v6293
      %6607 = vmatprep.subr.bf16.mxu0 0
      %6608 = vmatpush1.bf16.msra.mxu0 %v6294
      %6609 = vmatprep.subr.bf16.mxu0 0
      %6610 = vmatpush1.bf16.msra.mxu0 %v6295
      %6611 = vmatprep.subr.bf16.mxu0 0
      %6612 = vmatpush1.bf16.msra.mxu0 %v6296
      %6613 = vmatprep.subr.bf16.mxu0 0
      %6614 = vmatpush1.bf16.msra.mxu0 %v6297
      %6615 = vmatprep.subr.bf16.mxu0 0
      %6616 = vmatpush1.bf16.msra.mxu0 %v6298
      %6617 = vmatprep.subr.bf16.mxu0 0
      %6618 = vmatpush1.bf16.msra.mxu0 %v6299
      %6619 = vmatprep.subr.bf16.mxu0 0
      %6620 = vmatpush1.bf16.msra.mxu0 %v6300
      %6621 = vmatprep.subr.bf16.mxu0 0
      %6622 = vmatpush1.bf16.msra.mxu0 %v6301
      %6623 = vmatprep.subr.bf16.mxu0 0
      %6624 = vmatpush1.bf16.msra.mxu0 %v6302
      %6625 = vmatprep.mubr.bf16.mxu0 %v5749
      %6626 = vmatmul.mubr.bf16.gmra.mrb[0].mxu0 %v5748
      %v6627 = vpop.f32.mrb[0].mxu0
      %v6628 = vadd.f32 %v6531, %v6627
      %v6629 = vpop.f32.mrb[0].mxu0
      %v6630 = vpop.f32.mrb[0].mxu0
      %v6631 = vadd.f32 %v6534, %v6630
      %v6632 = vpop.f32.mrb[0].mxu0
      %6633 = vmatprep.mubr.bf16.mxu0 %v5758
      %6634 = vmatmul.mubr.bf16.gmra.mrb[0].mxu0 %v5757
      %v6635 = vpop.f32.mrb[0].mxu0
      %v6636 = vadd.f32 %v6539, %v6635
      %v6637 = vpop.f32.mrb[0].mxu0
      %v6638 = vpop.f32.mrb[0].mxu0
      %v6639 = vadd.f32 %v6542, %v6638
      %v6640 = vpop.f32.mrb[0].mxu0
      %6641 = vmatprep.mubr.bf16.mxu0 %v5767
      %6642 = vmatmul.mubr.bf16.gmra.mrb[0].mxu0 %v5766
      %v6643 = vpop.f32.mrb[0].mxu0
      %v6644 = vadd.f32 %v6547, %v6643
      %v6645 = vpop.f32.mrb[0].mxu0
      %v6646 = vpop.f32.mrb[0].mxu0
      %v6647 = vadd.f32 %v6550, %v6646
      %v6648 = vpop.f32.mrb[0].mxu0
      %6649 = vmatprep.mubr.bf16.mxu0 %v5776
      %6650 = vmatmul.mubr.bf16.gmra.mrb[0].mxu0 %v5775
      %v6651 = vpop.f32.mrb[0].mxu0
      %v6652 = vadd.f32 %v6555, %v6651
      %v6653 = vpop.f32.mrb[0].mxu0
      %v6654 = vpop.f32.mrb[0].mxu0
      %v6655 = vadd.f32 %v6558, %v6654
      %v6656 = vpop.f32.mrb[0].mxu0
      %6657 = vmatprep.mubr.bf16.mxu0 %v5785
      %6658 = vmatmul.mubr.bf16.gmra.mrb[0].mxu0 %v5784
      %v6659 = vpop.f32.mrb[0].mxu0
      %v6660 = vadd.f32 %v6563, %v6659
      %v6661 = vpop.f32.mrb[0].mxu0
      %v6662 = vpop.f32.mrb[0].mxu0
      %v6663 = vadd.f32 %v6566, %v6662
      %v6664 = vpop.f32.mrb[0].mxu0
      %6665 = vmatprep.mubr.bf16.mxu0 %v5794
      %6666 = vmatmul.mubr.bf16.gmra.mrb[0].mxu0 %v5793
      %v6667 = vpop.f32.mrb[0].mxu0
      %v6668 = vadd.f32 %v6571, %v6667
      %v6669 = vpop.f32.mrb[0].mxu0
      %v6670 = vpop.f32.mrb[0].mxu0
      %v6671 = vadd.f32 %v6574, %v6670
      %v6672 = vpop.f32.mrb[0].mxu0
      %6673 = vmatprep.mubr.bf16.mxu0 %v5803
      %6674 = vmatmul.mubr.bf16.gmra.mrb[0].mxu0 %v5802
      %v6675 = vpop.f32.mrb[0].mxu0
      %v6676 = vadd.f32 %v6579, %v6675
      %v6677 = vpop.f32.mrb[0].mxu0
      %v6678 = vpop.f32.mrb[0].mxu0
      %v6679 = vadd.f32 %v6582, %v6678
      %v6680 = vpop.f32.mrb[0].mxu0
      %6681 = vmatprep.mubr.bf16.mxu0 %v5812
      %6682 = vmatmul.mubr.bf16.gmra.mrb[0].mxu0 %v5811
      %v6683 = vpop.f32.mrb[0].mxu0
      %v6684 = vadd.f32 %v6587, %v6683
      %v6685 = vpop.f32.mrb[0].mxu0
      %v6686 = vpop.f32.mrb[0].mxu0
      %v6687 = vadd.f32 %v6590, %v6686
      %v6688 = vpop.f32.mrb[0].mxu0
      %6689 = vdwg.mxu0
      %6690 = vmatprep.subr.bf16.mxu0 0
      %6691 = vmatpush1.bf16.msra.mxu0 %v6303
      %6692 = vmatprep.subr.bf16.mxu0 0
      %6693 = vmatpush1.bf16.msra.mxu0 %v6304
      %6694 = vmatprep.subr.bf16.mxu0 0
      %6695 = vmatpush1.bf16.msra.mxu0 %v6305
      %6696 = vmatprep.subr.bf16.mxu0 0
      %6697 = vmatpush1.bf16.msra.mxu0 %v6306
      %6698 = vmatprep.subr.bf16.mxu0 0
      %6699 = vmatpush1.bf16.msra.mxu0 %v6307
      %6700 = vmatprep.subr.bf16.mxu0 0
      %6701 = vmatpush1.bf16.msra.mxu0 %v6308
      %6702 = vmatprep.subr.bf16.mxu0 0
      %6703 = vmatpush1.bf16.msra.mxu0 %v6309
      %6704 = vmatprep.subr.bf16.mxu0 0
      %6705 = vmatpush1.bf16.msra.mxu0 %v6310
      %6706 = vmatprep.subr.bf16.mxu0 0
      %6707 = vmatpush1.bf16.msra.mxu0 %v6311
      %6708 = vmatprep.subr.bf16.mxu0 0
      %6709 = vmatpush1.bf16.msra.mxu0 %v6312
      %6710 = vmatprep.subr.bf16.mxu0 0
      %6711 = vmatpush1.bf16.msra.mxu0 %v6313
      %6712 = vmatprep.subr.bf16.mxu0 0
      %6713 = vmatpush1.bf16.msra.mxu0 %v6314
      %6714 = vmatprep.subr.bf16.mxu0 0
      %6715 = vmatpush1.bf16.msra.mxu0 %v6315
      %6716 = vmatprep.subr.bf16.mxu0 0
      %6717 = vmatpush1.bf16.msra.mxu0 %v6316
      %6718 = vmatprep.subr.bf16.mxu0 0
      %6719 = vmatpush1.bf16.msra.mxu0 %v6317
      %6720 = vmatprep.subr.bf16.mxu0 0
      %6721 = vmatpush1.bf16.msra.mxu0 %v6318
      %6722 = vmatprep.mubr.bf16.mxu0 %v5751
      %6723 = vmatmul.mubr.bf16.gmra.mrb[0].mxu0 %v5750
      %v6724 = vpop.f32.mrb[0].mxu0
      %v6725 = vadd.f32 %v6628, %v6724
      %v6726 = vpop.f32.mrb[0].mxu0
      %v6727 = vpop.f32.mrb[0].mxu0
      %v6728 = vadd.f32 %v6631, %v6727
      %v6729 = vpop.f32.mrb[0].mxu0
      %6730 = vmatprep.mubr.bf16.mxu0 %v5760
      %6731 = vmatmul.mubr.bf16.gmra.mrb[0].mxu0 %v5759
      %v6732 = vpop.f32.mrb[0].mxu0
      %v6733 = vadd.f32 %v6636, %v6732
      %v6734 = vpop.f32.mrb[0].mxu0
      %v6735 = vpop.f32.mrb[0].mxu0
      %v6736 = vadd.f32 %v6639, %v6735
      %v6737 = vpop.f32.mrb[0].mxu0
      %6738 = vmatprep.mubr.bf16.mxu0 %v5769
      %6739 = vmatmul.mubr.bf16.gmra.mrb[0].mxu0 %v5768
      %v6740 = vpop.f32.mrb[0].mxu0
      %v6741 = vadd.f32 %v6644, %v6740
      %v6742 = vpop.f32.mrb[0].mxu0
      %v6743 = vpop.f32.mrb[0].mxu0
      %v6744 = vadd.f32 %v6647, %v6743
      %v6745 = vpop.f32.mrb[0].mxu0
      %6746 = vmatprep.mubr.bf16.mxu0 %v5778
      %6747 = vmatmul.mubr.bf16.gmra.mrb[0].mxu0 %v5777
      %v6748 = vpop.f32.mrb[0].mxu0
      %v6749 = vadd.f32 %v6652, %v6748
      %v6750 = vpop.f32.mrb[0].mxu0
      %v6751 = vpop.f32.mrb[0].mxu0
      %v6752 = vadd.f32 %v6655, %v6751
      %v6753 = vpop.f32.mrb[0].mxu0
      %6754 = vmatprep.mubr.bf16.mxu0 %v5787
      %6755 = vmatmul.mubr.bf16.gmra.mrb[0].mxu0 %v5786
      %v6756 = vpop.f32.mrb[0].mxu0
      %v6757 = vadd.f32 %v6660, %v6756
      %v6758 = vpop.f32.mrb[0].mxu0
      %v6759 = vpop.f32.mrb[0].mxu0
      %v6760 = vadd.f32 %v6663, %v6759
      %v6761 = vpop.f32.mrb[0].mxu0
      %6762 = vmatprep.mubr.bf16.mxu0 %v5796
      %6763 = vmatmul.mubr.bf16.gmra.mrb[0].mxu0 %v5795
      %v6764 = vpop.f32.mrb[0].mxu0
      %v6765 = vadd.f32 %v6668, %v6764
      %v6766 = vpop.f32.mrb[0].mxu0
      %v6767 = vpop.f32.mrb[0].mxu0
      %v6768 = vadd.f32 %v6671, %v6767
      %v6769 = vpop.f32.mrb[0].mxu0
      %6770 = vmatprep.mubr.bf16.mxu0 %v5805
      %6771 = vmatmul.mubr.bf16.gmra.mrb[0].mxu0 %v5804
      %v6772 = vpop.f32.mrb[0].mxu0
      %v6773 = vadd.f32 %v6676, %v6772
      %v6774 = vpop.f32.mrb[0].mxu0
      %v6775 = vpop.f32.mrb[0].mxu0
      %v6776 = vadd.f32 %v6679, %v6775
      %v6777 = vpop.f32.mrb[0].mxu0
      %6778 = vmatprep.mubr.bf16.mxu0 %v5814
      %6779 = vmatmul.mubr.bf16.gmra.mrb[0].mxu0 %v5813
      %v6780 = vpop.f32.mrb[0].mxu0
      %v6781 = vadd.f32 %v6684, %v6780
      %v6782 = vpop.f32.mrb[0].mxu0
      %v6783 = vpop.f32.mrb[0].mxu0
      %v6784 = vadd.f32 %v6687, %v6783
      %v6785 = vpop.f32.mrb[0].mxu0
      %6786 = vdwg.mxu0
      %6787 = vmatprep.subr.bf16.mxu0 0
      %6788 = vmatpush1.bf16.msra.mxu0 %v6319
      %6789 = vmatprep.subr.bf16.mxu0 0
      %6790 = vmatpush1.bf16.msra.mxu0 %v6320
      %6791 = vmatprep.subr.bf16.mxu0 0
      %6792 = vmatpush1.bf16.msra.mxu0 %v6321
      %6793 = vmatprep.subr.bf16.mxu0 0
      %6794 = vmatpush1.bf16.msra.mxu0 %v6322
      %6795 = vmatprep.subr.bf16.mxu0 0
      %6796 = vmatpush1.bf16.msra.mxu0 %v6323
      %6797 = vmatprep.subr.bf16.mxu0 0
      %6798 = vmatpush1.bf16.msra.mxu0 %v6324
      %6799 = vmatprep.subr.bf16.mxu0 0
      %6800 = vmatpush1.bf16.msra.mxu0 %v6325
      %6801 = vmatprep.subr.bf16.mxu0 0
      %6802 = vmatpush1.bf16.msra.mxu0 %v6326
      %6803 = vmatprep.subr.bf16.mxu0 0
      %6804 = vmatpush1.bf16.msra.mxu0 0
      %6805 = vmatprep.subr.bf16.mxu0 0
      %6806 = vmatpush1.bf16.msra.mxu0 0
      %6807 = vmatprep.subr.bf16.mxu0 0
      %6808 = vmatpush1.bf16.msra.mxu0 0
      %6809 = vmatprep.subr.bf16.mxu0 0
      %6810 = vmatpush1.bf16.msra.mxu0 0
      %6811 = vmatprep.subr.bf16.mxu0 0
      %6812 = vmatpush1.bf16.msra.mxu0 0
      %6813 = vmatprep.subr.bf16.mxu0 0
      %6814 = vmatpush1.bf16.msra.mxu0 0
      %6815 = vmatprep.subr.bf16.mxu0 0
      %6816 = vmatpush1.bf16.msra.mxu0 0
      %6817 = vmatprep.subr.bf16.mxu0 0
      %6818 = vmatpush1.bf16.msra.mxu0 0
      %6819 = vmatprep.mubr.bf16.mxu0 0
      %6820 = vmatmul.mubr.bf16.gmra.mrb[0].mxu0 %v5752
      %v6821 = vpop.f32.mrb[0].mxu0
      %v6822 = vadd.f32 %v6725, %v6821
      %v6823 = vpop.f32.mrb[0].mxu0
      %v6824 = vpop.f32.mrb[0].mxu0
      %v6825 = vadd.f32 %v6728, %v6824
      %v6826 = vpop.f32.mrb[0].mxu0
      %6827 = vmatprep.mubr.bf16.mxu0 0
      %6828 = vmatmul.mubr.bf16.gmra.mrb[0].mxu0 %v5761
      %v6829 = vpop.f32.mrb[0].mxu0
      %v6830 = vadd.f32 %v6733, %v6829
      %v6831 = vpop.f32.mrb[0].mxu0
      %v6832 = vpop.f32.mrb[0].mxu0
      %v6833 = vadd.f32 %v6736, %v6832
      %v6834 = vpop.f32.mrb[0].mxu0
      %6835 = vmatprep.mubr.bf16.mxu0 0
      %6836 = vmatmul.mubr.bf16.gmra.mrb[0].mxu0 %v5770
      %v6837 = vpop.f32.mrb[0].mxu0
      %v6838 = vadd.f32 %v6741, %v6837
      %v6839 = vpop.f32.mrb[0].mxu0
      %v6840 = vpop.f32.mrb[0].mxu0
      %v6841 = vadd.f32 %v6744, %v6840
      %v6842 = vpop.f32.mrb[0].mxu0
      %6843 = vmatprep.mubr.bf16.mxu0 0
      %6844 = vmatmul.mubr.bf16.gmra.mrb[0].mxu0 %v5779
      %v6845 = vpop.f32.mrb[0].mxu0
      %v6846 = vadd.f32 %v6749, %v6845
      %v6847 = vpop.f32.mrb[0].mxu0
      %v6848 = vpop.f32.mrb[0].mxu0
      %v6849 = vadd.f32 %v6752, %v6848
      %v6850 = vpop.f32.mrb[0].mxu0
      %6851 = vmatprep.mubr.bf16.mxu0 0
      %6852 = vmatmul.mubr.bf16.gmra.mrb[0].mxu0 %v5788
      %v6853 = vpop.f32.mrb[0].mxu0
      %v6854 = vadd.f32 %v6757, %v6853
      %v6855 = vpop.f32.mrb[0].mxu0
      %v6856 = vpop.f32.mrb[0].mxu0
      %v6857 = vadd.f32 %v6760, %v6856
      %v6858 = vpop.f32.mrb[0].mxu0
      %6859 = vmatprep.mubr.bf16.mxu0 0
      %6860 = vmatmul.mubr.bf16.gmra.mrb[0].mxu0 %v5797
      %v6861 = vpop.f32.mrb[0].mxu0
      %v6862 = vadd.f32 %v6765, %v6861
      %v6863 = vpop.f32.mrb[0].mxu0
      %v6864 = vpop.f32.mrb[0].mxu0
      %v6865 = vadd.f32 %v6768, %v6864
      %v6866 = vpop.f32.mrb[0].mxu0
      %6867 = vmatprep.mubr.bf16.mxu0 0
      %6868 = vmatmul.mubr.bf16.gmra.mrb[0].mxu0 %v5806
      %v6869 = vpop.f32.mrb[0].mxu0
      %v6870 = vadd.f32 %v6773, %v6869
      %v6871 = vpop.f32.mrb[0].mxu0
      %v6872 = vpop.f32.mrb[0].mxu0
      %v6873 = vadd.f32 %v6776, %v6872
      %v6874 = vpop.f32.mrb[0].mxu0
      %6875 = vmatprep.mubr.bf16.mxu0 0
      %6876 = vmatmul.mubr.bf16.gmra.mrb[0].mxu0 %v5815
      %v6877 = vpop.f32.mrb[0].mxu0
      %v6878 = vadd.f32 %v6781, %v6877
      %v6879 = vpop.f32.mrb[0].mxu0
      %v6880 = vpop.f32.mrb[0].mxu0
      %v6881 = vadd.f32 %v6784, %v6880
      %v6882 = vpop.f32.mrb[0].mxu0
      %6883 = vdwg.mxu0
      %v6884 = vadd.f32 %v6822, %v6825
      %v6885 = vadd.f32 %v6884, %v6830
      %v6886 = vadd.f32 %v6885, %v6833
      %v6887 = vadd.f32 %v6886, %v6838
      %v6888 = vadd.f32 %v6887, %v6841
      %v6889 = vadd.f32 %v6888, %v6846
      %v6890 = vadd.f32 %v6889, %v6849
      %v6891 = vrot.slane %v6890, 4
      %v6892 = vadd.f32 %v6890, %v6891
      %v6893 = vrot.slane %v6892, 2
      %v6894 = vadd.f32 %v6892, %v6893
      %v6895 = vrot.slane %v6894, 1
      %v6896 = vadd.f32 %v6894, %v6895
      %v6897 = vadd.f32 %v6854, %v6857
      %v6898 = vadd.f32 %v6897, %v6862
      %v6899 = vadd.f32 %v6898, %v6865
      %v6900 = vadd.f32 %v6899, %v6870
      %v6901 = vadd.f32 %v6900, %v6873
      %v6902 = vadd.f32 %v6901, %v6878
      %v6903 = vadd.f32 %v6902, %v6881
      %v6904 = vrot.slane %v6903, 4
      %v6905 = vadd.f32 %v6903, %v6904
      %v6906 = vrot.slane %v6905, 2
      %v6907 = vadd.f32 %v6905, %v6906
      %v6908 = vrot.slane %v6907, 1
      %v6909 = vadd.f32 %v6907, %v6908
      %v6910 = vmul.f32 %v6822, %v6822
      %v6911 = vmul.f32 %v6825, %v6825
      %v6912 = vmul.f32 %v6830, %v6830
      %v6913 = vmul.f32 %v6833, %v6833
      %v6914 = vmul.f32 %v6838, %v6838
      %v6915 = vmul.f32 %v6841, %v6841
      %v6916 = vmul.f32 %v6846, %v6846
      %v6917 = vmul.f32 %v6849, %v6849
      %v6918 = vmul.f32 %v6854, %v6854
      %v6919 = vmul.f32 %v6857, %v6857
      %v6920 = vmul.f32 %v6862, %v6862
      %v6921 = vmul.f32 %v6865, %v6865
      %v6922 = vmul.f32 %v6870, %v6870
      %v6923 = vmul.f32 %v6873, %v6873
      %v6924 = vmul.f32 %v6878, %v6878
      %v6925 = vmul.f32 %v6881, %v6881
      %v6926 = vadd.f32 %v6910, %v6911
      %v6927 = vadd.f32 %v6926, %v6912
      %v6928 = vadd.f32 %v6927, %v6913
      %v6929 = vadd.f32 %v6928, %v6914
      %v6930 = vadd.f32 %v6929, %v6915
      %v6931 = vadd.f32 %v6930, %v6916
      %v6932 = vadd.f32 %v6931, %v6917
      %v6933 = vrot.slane %v6932, 4
      %v6934 = vadd.f32 %v6932, %v6933
      %v6935 = vrot.slane %v6934, 2
      %v6936 = vadd.f32 %v6934, %v6935
      %v6937 = vrot.slane %v6936, 1
      %v6938 = vadd.f32 %v6936, %v6937
      %v6939 = vadd.f32 %v6918, %v6919
      %v6940 = vadd.f32 %v6939, %v6920
      %v6941 = vadd.f32 %v6940, %v6921
      %v6942 = vadd.f32 %v6941, %v6922
      %v6943 = vadd.f32 %v6942, %v6923
      %v6944 = vadd.f32 %v6943, %v6924
      %v6945 = vadd.f32 %v6944, %v6925
      %v6946 = vrot.slane %v6945, 4
      %v6947 = vadd.f32 %v6945, %v6946
      %v6948 = vrot.slane %v6947, 2
      %v6949 = vadd.f32 %v6947, %v6948
      %v6950 = vrot.slane %v6949, 1
      %v6951 = vadd.f32 %v6949, %v6950
      %v6954 = vsel %vm3577, %v6909, %v6896
      %v6958 = vsel %vm3582, %v6951, %v6938
      %v6960 = vsel %vm3585, %v6954, %v6958
      %v6961 = vld [vmem:[%s9] sm:$0xff]
      %v6962 = vld [vmem:[%s9 + $0x8] sm:$0xff]
      %v6963 = vld [vmem:[%s9 + $0x10] sm:$0xff]
      %v6964 = vld [vmem:[%s9 + $0x18] sm:$0xff]
      %v6965 = vld [vmem:[%s9 + $0x20] sm:$0xff]
      %v6966 = vld [vmem:[%s9 + $0x28] sm:$0xff]
      %v6967 = vld [vmem:[%s9 + $0x30] sm:$0xff]
      %v6968 = vld [vmem:[%s9 + $0x38] sm:$0xff]
      %v6969 = vld [vmem:[%s9 + $0x40] sm:$0xff]
      %v6970 = vld [vmem:[%s9 + $0x48] sm:$0xff]
      %v6971 = vld [vmem:[%s9 + $0x50] sm:$0xff]
      %v6972 = vld [vmem:[%s9 + $0x58] sm:$0xff]
      %v6973 = vld [vmem:[%s9 + $0x60] sm:$0xff]
      %v6974 = vld [vmem:[%s9 + $0x68] sm:$0xff]
      %v6975 = vld [vmem:[%s9 + $0x70] sm:$0xff]
      %v6976 = vld [vmem:[%s9 + $0x78] sm:$0xff]
      %6977 = vmatprep.subr.mxu0 0.0
      %6978 = vmatpush1.msra.mxu0 %v6961
      %6979 = vmatprep.subr.mxu0 0.0
      %6980 = vmatpush1.msra.mxu0 %v6962
      %6981 = vmatprep.subr.mxu0 0.0
      %6982 = vmatpush1.msra.mxu0 %v6963
      %6983 = vmatprep.subr.mxu0 0.0
      %6984 = vmatpush1.msra.mxu0 %v6964
      %6985 = vmatprep.subr.mxu0 0.0
      %6986 = vmatpush1.msra.mxu0 %v6965
      %6987 = vmatprep.subr.mxu0 0.0
      %6988 = vmatpush1.msra.mxu0 %v6966
      %6989 = vmatprep.subr.mxu0 0.0
      %6990 = vmatpush1.msra.mxu0 %v6967
      %6991 = vmatprep.subr.mxu0 0.0
      %6992 = vmatpush1.msra.mxu0 %v6968
      %6993 = vmatprep.subr.mxu0 0.0
      %6994 = vmatpush1.msra.mxu0 %v6969
      %6995 = vmatprep.subr.mxu0 0.0
      %6996 = vmatpush1.msra.mxu0 %v6970
      %6997 = vmatprep.subr.mxu0 0.0
      %6998 = vmatpush1.msra.mxu0 %v6971
      %6999 = vmatprep.subr.mxu0 0.0
      %7000 = vmatpush1.msra.mxu0 %v6972
      %7001 = vmatprep.subr.mxu0 0.0
      %7002 = vmatpush1.msra.mxu0 %v6973
      %7003 = vmatprep.subr.mxu0 0.0
      %7004 = vmatpush1.msra.mxu0 %v6974
      %7005 = vmatprep.subr.mxu0 0.0
      %7006 = vmatpush1.msra.mxu0 %v6975
      %7007 = vmatprep.subr.mxu0 0.0
      %7008 = vmatpush1.msra.mxu0 %v6976
      %7009 = vmatprep.subr.mxu0 0.0
      %7010 = vmatpush1.msra.mxu0 0.0
      %7011 = vmatprep.subr.mxu0 0.0
      %7012 = vmatpush1.msra.mxu0 0.0
      %7013 = vmatprep.subr.mxu0 0.0
      %7014 = vmatpush1.msra.mxu0 0.0
      %7015 = vmatprep.subr.mxu0 0.0
      %7016 = vmatpush1.msra.mxu0 0.0
      %7017 = vmatprep.subr.mxu0 0.0
      %7018 = vmatpush1.msra.mxu0 0.0
      %7019 = vmatprep.subr.mxu0 0.0
      %7020 = vmatpush1.msra.mxu0 0.0
      %7021 = vmatprep.subr.mxu0 0.0
      %7022 = vmatpush1.msra.mxu0 0.0
      %7023 = vmatprep.subr.mxu0 0.0
      %7024 = vmatpush1.msra.mxu0 0.0
      %7025 = vmatprep.subr.mxu0 0.0
      %7026 = vmatpush1.msra.mxu0 0.0
      %7027 = vmatprep.subr.mxu0 0.0
      %7028 = vmatpush1.msra.mxu0 0.0
      %7029 = vmatprep.subr.mxu0 0.0
      %7030 = vmatpush1.msra.mxu0 0.0
      %7031 = vmatprep.subr.mxu0 0.0
      %7032 = vmatpush1.msra.mxu0 0.0
      %7033 = vmatprep.subr.mxu0 0.0
      %7034 = vmatpush1.msra.mxu0 0.0
      %7035 = vmatprep.subr.mxu0 0.0
      %7036 = vmatpush1.msra.mxu0 0.0
      %7037 = vmatprep.subr.mxu0 0.0
      %7038 = vmatpush1.msra.mxu0 0.0
      %7039 = vmatprep.subr.mxu0 0.0
      %7040 = vmatpush1.msra.mxu0 0.0
      %7041 = vmatprep.mubr.f32.mxu0 0.0
      %7042 = vmatmul.mubr.f32.gmra.mrb[0].mxu0 %v6960
      %v7043 = vpop.f32.mrb[0].mxu0
      %v7044 = vadd.f32 0.0, %v7043
      %v7045 = vpop.f32.mrb[0].mxu0
      %7046 = vdwg.mxu0
      %v7047 = vmul.f32 %v7044, %v7044
      %v7049 = vrot.slane %v7047, 6
      %v7051 = vsub.f32 %v7044, %v7049
      %v7052 = vmax.f32 %v7051, 0.0
      %v7053 = vadd.f32 %v7052, 1e-05
      %v7054 = vrsqrt.pop %v7053
      %v7055 = vld [vmem:[%s7] sm:$0x1]
      %v7057 = vlaneseq
      %v7058 = vshrl.u32 %v7057, 7
      %v7059 = vsub.s32 0, %v7058
      %v7060 = vrot.slane %v7055, %v7059
      %v7062 = vmul.f32 %v7054, %v7060
      %v7063 = vld [vmem:[%s8] sm:$0x1]
      %v7065 = vrot.slane %v7062, 2
      %v7067 = vmul.f32 %v7044, %v7065
      %v7069 = vlaneseq
      %v7070 = vshrl.u32 %v7069, 7
      %v7071 = vsub.s32 0, %v7070
      %v7072 = vrot.slane %v7063, %v7071
      %v7074 = vsub.f32 %v7072, %v7067
      %v7076 = vunpack.c.l.s4 1966171168
      %v7077 = vunpack.c.0.s8 %v7076
      %v7078 = vlaneseq
      %v7079 = vshrl.u32 %v7078, 7
      %v7080 = vsub.s32 %v7077, %v7079
      %v7081 = vrot.slane %v7062, %v7080
      %v7082 = vcombine.high %v7081, %v7081
      %v7084 = vunpack.c.l.s4 1966171168
      %v7085 = vunpack.c.0.s8 %v7084
      %v7086 = vlaneseq
      %v7087 = vshrl.u32 %v7086, 7
      %v7088 = vsub.s32 %v7085, %v7087
      %v7089 = vrot.slane %v7081, %v7088
      %v7091 = vunpack.c.l.s4 1966171168
      %v7092 = vunpack.c.0.s8 %v7091
      %v7093 = vlaneseq
      %v7094 = vshrl.u32 %v7093, 7
      %v7095 = vsub.s32 %v7092, %v7094
      %v7096 = vrot.slane %v7082, %v7095
      %v7097 = vcombine.high %v7089, %v7089
      %v7098 = vcombine.high %v7096, %v7096
      %v7099 = vlaneseq
      %v7100 = vshrl.u32 %v7099, 7
      %v7101 = vsub.s32 0, %v7100
      %v7102 = vrot.slane %v7097, %v7101
      %v7103 = vlaneseq
      %v7104 = vshrl.u32 %v7103, 7
      %v7105 = vsub.s32 0, %v7104
      %v7106 = vrot.slane %v7098, %v7105
      %v7109 = vmul.f32 %v6822, %v7102
      %v7110 = vmul.f32 %v6825, %v7102
      %v7111 = vmul.f32 %v6830, %v7102
      %v7112 = vmul.f32 %v6833, %v7102
      %v7113 = vmul.f32 %v6838, %v7102
      %v7114 = vmul.f32 %v6841, %v7102
      %v7115 = vmul.f32 %v6846, %v7102
      %v7116 = vmul.f32 %v6849, %v7102
      %v7117 = vmul.f32 %v6854, %v7106
      %v7118 = vmul.f32 %v6857, %v7106
      %v7119 = vmul.f32 %v6862, %v7106
      %v7120 = vmul.f32 %v6865, %v7106
      %v7121 = vmul.f32 %v6870, %v7106
      %v7122 = vmul.f32 %v6873, %v7106
      %v7123 = vmul.f32 %v6878, %v7106
      %v7124 = vmul.f32 %v6881, %v7106
      %v7127 = vunpack.c.l.s4 1966171168
      %v7128 = vunpack.c.0.s8 %v7127
      %v7129 = vlaneseq
      %v7130 = vshrl.u32 %v7129, 7
      %v7131 = vsub.s32 %v7128, %v7130
      %v7132 = vrot.slane %v7074, %v7131
      %v7133 = vcombine.high %v7132, %v7132
      %v7135 = vunpack.c.l.s4 1966171168
      %v7136 = vunpack.c.0.s8 %v7135
      %v7137 = vlaneseq
      %v7138 = vshrl.u32 %v7137, 7
      %v7139 = vsub.s32 %v7136, %v7138
      %v7140 = vrot.slane %v7132, %v7139
      %v7142 = vunpack.c.l.s4 1966171168
      %v7143 = vunpack.c.0.s8 %v7142
      %v7144 = vlaneseq
      %v7145 = vshrl.u32 %v7144, 7
      %v7146 = vsub.s32 %v7143, %v7145
      %v7147 = vrot.slane %v7133, %v7146
      %v7148 = vlaneseq
      %v7149 = vshrl.u32 %v7148, 7
      %v7150 = vsub.s32 0, %v7149
      %v7151 = vrot.slane %v7140, %v7150
      %v7152 = vlaneseq
      %v7153 = vshrl.u32 %v7152, 7
      %v7154 = vsub.s32 0, %v7153
      %v7155 = vrot.slane %v7147, %v7154
      %v7158 = vadd.f32 %v7109, %v7151
      %v7159 = vadd.f32 %v7110, %v7151
      %v7160 = vadd.f32 %v7111, %v7151
      %v7161 = vadd.f32 %v7112, %v7151
      %v7162 = vadd.f32 %v7113, %v7151
      %v7163 = vadd.f32 %v7114, %v7151
      %v7164 = vadd.f32 %v7115, %v7151
      %v7165 = vadd.f32 %v7116, %v7151
      %v7166 = vadd.f32 %v7117, %v7155
      %v7167 = vadd.f32 %v7118, %v7155
      %v7168 = vadd.f32 %v7119, %v7155
      %v7169 = vadd.f32 %v7120, %v7155
      %v7170 = vadd.f32 %v7121, %v7155
      %v7171 = vadd.f32 %v7122, %v7155
      %v7172 = vadd.f32 %v7123, %v7155
      %v7173 = vadd.f32 %v7124, %v7155
      %v7174 = vld [vmem:[%s359] sm:$0xff]
      %v7175 = vld [vmem:[%s359 + $0x8] sm:$0xff]
      %v7176 = vld [vmem:[%s359 + $0x10] sm:$0xff]
      %v7177 = vld [vmem:[%s359 + $0x18] sm:$0xff]
      %v7178 = vld [vmem:[%s359 + $0x20] sm:$0xff]
      %v7179 = vld [vmem:[%s359 + $0x28] sm:$0xff]
      %v7180 = vld [vmem:[%s359 + $0x30] sm:$0xff]
      %v7181 = vld [vmem:[%s359 + $0x38] sm:$0xff]
      %v7182 = vld [vmem:[%s359 + $0x40] sm:$0xff]
      %v7183 = vld [vmem:[%s359 + $0x48] sm:$0xff]
      %v7184 = vld [vmem:[%s359 + $0x50] sm:$0xff]
      %v7185 = vld [vmem:[%s359 + $0x58] sm:$0xff]
      %v7186 = vld [vmem:[%s359 + $0x60] sm:$0xff]
      %v7187 = vld [vmem:[%s359 + $0x68] sm:$0xff]
      %v7188 = vld [vmem:[%s359 + $0x70] sm:$0xff]
      %v7189 = vld [vmem:[%s359 + $0x78] sm:$0xff]
      %v7190 = vadd.f32 %v7158, %v7174
      %v7191 = vadd.f32 %v7159, %v7175
      %v7192 = vadd.f32 %v7160, %v7176
      %v7193 = vadd.f32 %v7161, %v7177
      %v7194 = vadd.f32 %v7162, %v7178
      %v7195 = vadd.f32 %v7163, %v7179
      %v7196 = vadd.f32 %v7164, %v7180
      %v7197 = vadd.f32 %v7165, %v7181
      %v7198 = vadd.f32 %v7166, %v7182
      %v7199 = vadd.f32 %v7167, %v7183
      %v7200 = vadd.f32 %v7168, %v7184
      %v7201 = vadd.f32 %v7169, %v7185
      %v7202 = vadd.f32 %v7170, %v7186
      %v7203 = vadd.f32 %v7171, %v7187
      %v7204 = vadd.f32 %v7172, %v7188
      %v7205 = vadd.f32 %v7173, %v7189
      %v7206 = vmax.f32 %v7190, 0.0
      %v7207 = vmax.f32 %v7191, 0.0
      %v7208 = vmax.f32 %v7192, 0.0
      %v7209 = vmax.f32 %v7193, 0.0
      %v7210 = vmax.f32 %v7194, 0.0
      %v7211 = vmax.f32 %v7195, 0.0
      %v7212 = vmax.f32 %v7196, 0.0
      %v7213 = vmax.f32 %v7197, 0.0
      %v7214 = vmax.f32 %v7198, 0.0
      %v7215 = vmax.f32 %v7199, 0.0
      %v7216 = vmax.f32 %v7200, 0.0
      %v7217 = vmax.f32 %v7201, 0.0
      %v7218 = vmax.f32 %v7202, 0.0
      %v7219 = vmax.f32 %v7203, 0.0
      %v7220 = vmax.f32 %v7204, 0.0
      %v7221 = vmax.f32 %v7205, 0.0
      %7222 = vst [vmem:[%s366] sm:$0xff] %v7206
      %7223 = vst [vmem:[%s366 + $0x8] sm:$0xff] %v7207
      %7224 = vst [vmem:[%s366 + $0x10] sm:$0xff] %v7208
      %7225 = vst [vmem:[%s366 + $0x18] sm:$0xff] %v7209
      %7226 = vst [vmem:[%s366 + $0x20] sm:$0xff] %v7210
      %7227 = vst [vmem:[%s366 + $0x28] sm:$0xff] %v7211
      %7228 = vst [vmem:[%s366 + $0x30] sm:$0xff] %v7212
      %7229 = vst [vmem:[%s366 + $0x38] sm:$0xff] %v7213
      %7230 = vst [vmem:[%s366 + $0x40] sm:$0xff] %v7214
      %7231 = vst [vmem:[%s366 + $0x48] sm:$0xff] %v7215
      %7232 = vst [vmem:[%s366 + $0x50] sm:$0xff] %v7216
      %7233 = vst [vmem:[%s366 + $0x58] sm:$0xff] %v7217
      %7234 = vst [vmem:[%s366 + $0x60] sm:$0xff] %v7218
      %7235 = vst [vmem:[%s366 + $0x68] sm:$0xff] %v7219
      %7236 = vst [vmem:[%s366 + $0x70] sm:$0xff] %v7220
      %7237 = vst [vmem:[%s366 + $0x78] sm:$0xff] %v7221
      %s7238 = smul.u32 2, %s21
      %p7239 = scmp.lt.s32.totalorder %s7238, 3
      %s7240 = scalar_select %p7239, %s7238, 3
      %s7241 = smul.addr %s7240, 8
      %s7242 = smul.addr %s7241, 8
      %s7243 = scalar_lea.vmem %s10, %s7242
      // Predicated region
      $region61: #{basic_block_forward.1} parent=59 // pred_check
        %p7244 = pneg %p254
      $region62: #{basic_block_forward.1} parent=59 // pred_check_branch
        %7246 = sbr.rel (%p7244) target = $region64
      $region63: #{basic_block_forward.1} parent=59 // pred_region
        %s7247 = smul.u32 2, %s21
      $region64: #{basic_block_forward.1} parent=59 // pred_fallthru
        _
    $region60: #{basic_block_forward.1} parent=5 // pred_fallthru
      _
    %p7248 = scmp.le.s32.totalorder 2, %s16
    // Predicated region
    $region65: #{basic_block_forward.1} parent=5 // pred_check
      %p7249 = pneg %p7248
    $region66: #{basic_block_forward.1} parent=5 // pred_check_branch
      %7251 = sbr.rel (%p7249) target = $region68
    $region67: #{basic_block_forward.1} parent=5 // pred_region
      %s7252 = ssub.s32 %s16, 2
      // Predicated region
      $region69: #{basic_block_forward.1} parent=67 // pred_check
        %p7253 = pneg %p260
      $region70: #{basic_block_forward.1} parent=67 // pred_check_branch
        %7255 = sbr.rel (%p7253) target = $region72
      $region71: #{basic_block_forward.1} parent=67 // pred_region
        %s7256 = smul.u32 2, %s22
        %p7257 = scmp.lt.s32.totalorder %s7256, 3
        %s7258 = scalar_select %p7257, %s7256, 3
        %s7259 = smul.addr %s7258, 8
        %s7260 = smul.addr %s7259, 8
        %s7261 = scalar_lea.vmem %s10, %s7260
      $region72: #{basic_block_forward.1} parent=67 // pred_fallthru
        _
    $region68: #{basic_block_forward.1} parent=5 // pred_fallthru
      _
  $region6: #{basic_block_forward.1} parent=0 // loop_footer
    %s20 = sadd.s32 1, %s16
  $region7: #{basic_block_forward.1} parent=0 // loop_footer_branch
    %15 = sbr.rel target = $region3
  $region8: #{basic_block_forward.1} parent=0 // loop_exit
    _

</llo_original>
